<compile_context>
chip_gen: v7x
topology: tpu7x:2x2x1
jax: 0.10.0
libtpu: 0.0.40
codegen_flags: <defaults>
</compile_context>

<pallas_src>
import jax
import jax.numpy as jnp
from jax.experimental import pallas as pl
from jax.experimental.pallas import tpu as pltpu

DIM = 256          # module global `dim`
LAYER_NUM = 4      # module global `layer_num`
LSTM_HIDDEN = 256  # module global `lstm_hidden`


def geniepath_kernel(x_ref, adj_ref, l1w_ref, l1b_ref,
                     gwcat_ref, gas_ref, gad_ref, gb_ref,
                     wtop_ref, wcomb_ref, l2w_ref, l2b_ref,
                     out_ref):
    H = LSTM_HIDDEN
    bf16 = jnp.bfloat16
    adj = adj_ref[...]                                               # [N, N] 0/1 f32, incl. self loops

    # ---- lin1 (bf16 operands, f32 accumulation) ----
    x = jnp.dot(x_ref[...].astype(bf16), l1w_ref[...],
                preferred_element_type=jnp.float32) + l1b_ref[...]   # [N, DIM] f32
    x_bf = x.astype(bf16)

    # ---- Breadth layers: GATConv(heads=1) + tanh ----
    # One wide projection matmul for all 4 layers: [N,256] x [256,1024].
    xp_all = jnp.dot(x_bf, gwcat_ref[...],
                     preferred_element_type=jnp.float32)             # [N, 4*DIM] f32

    h_tmps = []
    for l in range(LAYER_NUM):
        xp = xp_all[:, l * DIM:(l + 1) * DIM]                        # [N, DIM] (lane-aligned slice)
        a_dst = jnp.sum(xp * gad_ref[l], axis=-1, keepdims=True)     # [N, 1]  (VPU reduce)
        a_src = jnp.sum(xp * gas_ref[l], axis=-1, keepdims=True)     # [N, 1]  (VPU reduce)
        alpha = a_dst + a_src.T                                      # alpha[i, j] = dst_i + src_j
        alpha = jnp.where(alpha > 0, alpha, 0.2 * alpha)             # LeakyReLU(0.2)
        masked = jnp.where(adj > 0, alpha, jnp.float32(-1e30))
        m = jnp.max(masked, axis=-1, keepdims=True)
        e = jnp.exp(masked - m)                                      # non-edges underflow to 0 (self loops ensure m finite)
        denom = jnp.maximum(jnp.sum(e, axis=-1, keepdims=True), jnp.float32(1e-20))
        inv = pl.reciprocal(denom, approx=True)                      # EUP, folded in as a row scale below
        agg = jnp.dot(e.astype(bf16), xp.astype(bf16),
                      preferred_element_type=jnp.float32) * inv + gb_ref[l]
        h_tmps.append(jnp.tanh(agg))                                 # [N, DIM] f32

    # ---- Depth layers: one LSTM step per layer (bias=False), gate order i, f, g, o ----
    # Hoist the four independent h_tmps[l] @ W_ih_top[l] matmuls out of the serial chain.
    pre = [jnp.dot(h_tmps[l].astype(bf16), wtop_ref[l],
                   preferred_element_type=jnp.float32) for l in range(LAYER_NUM)]   # [N, 4H] each

    # Layer 0: h == c == 0 -> gates = pre[0] + x @ W_ih_bot[0]; c = i*g (no forget term).
    gates = pre[0] + jnp.dot(x_bf, wcomb_ref[0], preferred_element_type=jnp.float32)
    i_g = jax.nn.sigmoid(gates[:, 0 * H:1 * H])
    g_g = jnp.tanh(gates[:, 2 * H:3 * H])
    o_g = jax.nn.sigmoid(gates[:, 3 * H:4 * H])
    c = i_g * g_g
    h = o_g * jnp.tanh(c)

    # Layers 1..3: xs == h, so xs @ W_ih_bot + h @ W_hh == h @ (W_ih_bot + W_hh) (pre-added).
    for l in range(1, LAYER_NUM):
        gates = pre[l] + jnp.dot(h.astype(bf16), wcomb_ref[l],
                                 preferred_element_type=jnp.float32)
        i_g = jax.nn.sigmoid(gates[:, 0 * H:1 * H])
        f_g = jax.nn.sigmoid(gates[:, 1 * H:2 * H])
        g_g = jnp.tanh(gates[:, 2 * H:3 * H])
        o_g = jax.nn.sigmoid(gates[:, 3 * H:4 * H])
        c = f_g * c + i_g * g_g
        h = o_g * jnp.tanh(c)

    # ---- lin2 ----
    out_ref[...] = jnp.dot(h.astype(bf16), l2w_ref[...],
                           preferred_element_type=jnp.float32) + l2b_ref[...]


@jax.jit
def geniepath_forward(x, adj, params):
    n = x.shape[0]
    out_dim = params["l2w"].shape[1]
    bf16 = jnp.bfloat16

    # GATConv adds self loops by default -> guard the softmax denominator inside the wrapper.
    adj = jnp.maximum(adj, jnp.eye(n, dtype=adj.dtype))

    # Batch the 4 GAT projection weights along the output (lane) axis: [256, 4*256].
    gw_cat = jnp.concatenate([params["gat_w"][l] for l in range(LAYER_NUM)], axis=1)

    # Split / fuse the LSTM weights (input = cat(h_tmp, xs), rows 0..255 -> h_tmp, 256..511 -> xs).
    w_ih = params["w_ih"]                       # [L, 2*DIM, 4H]
    w_hh = params["w_hh"]                       # [L, H, 4H]
    w_top = w_ih[:, :DIM, :]                    # multiplies h_tmps[l]
    w_bot = w_ih[:, DIM:, :]                    # multiplies xs
    # layer 0: h == 0 so W_hh never contributes; layers >= 1: xs == h so W_hh folds into W_ih_bot.
    w_comb = jnp.concatenate([w_bot[:1], w_bot[1:] + w_hh[1:]], axis=0)   # [L, H, 4H]

    args = (x, adj,
            params["l1w"].astype(bf16), params["l1b"],
            gw_cat.astype(bf16),
            params["gat_att_src"], params["gat_att_dst"], params["gat_b"],
            w_top.astype(bf16), w_comb.astype(bf16),
            params["l2w"].astype(bf16), params["l2b"])

    return pl.pallas_call(
        geniepath_kernel,
        out_shape=jax.ShapeDtypeStruct((n, out_dim), jnp.float32),
        in_specs=[pl.BlockSpec(memory_space=pltpu.MemorySpace.VMEM)] * len(args),
        out_specs=pl.BlockSpec(memory_space=pltpu.MemorySpace.VMEM),
        compiler_params=pltpu.CompilerParams(vmem_limit_bytes=24 * 1024 * 1024),
    )(*args)


def init_params(key, in_dim, out_dim):
    ks = jax.random.split(key, 12)
    s = 0.05
    return {
        # lin1: Linear(in_dim, DIM)
        "l1w": s * jax.random.normal(ks[0], (in_dim, DIM), jnp.float32),
        "l1b": s * jax.random.normal(ks[1], (1, DIM), jnp.float32),
        # 4 x GATConv(DIM, DIM, heads=1): lin weight, att_src, att_dst, bias
        "gat_w": s * jax.random.normal(ks[2], (LAYER_NUM, DIM, DIM), jnp.float32),
        "gat_att_src": s * jax.random.normal(ks[3], (LAYER_NUM, 1, DIM), jnp.float32),
        "gat_att_dst": s * jax.random.normal(ks[4], (LAYER_NUM, 1, DIM), jnp.float32),
        "gat_b": s * jax.random.normal(ks[5], (LAYER_NUM, 1, DIM), jnp.float32),
        # 4 x LSTM(2*DIM -> LSTM_HIDDEN, bias=False): W_ih^T [2*DIM, 4H], W_hh^T [H, 4H]
        "w_ih": s * jax.random.normal(ks[6], (LAYER_NUM, 2 * DIM, 4 * LSTM_HIDDEN), jnp.float32),
        "w_hh": s * jax.random.normal(ks[7], (LAYER_NUM, LSTM_HIDDEN, 4 * LSTM_HIDDEN), jnp.float32),
        # lin2: Linear(DIM, out_dim)
        "l2w": s * jax.random.normal(ks[8], (DIM, out_dim), jnp.float32),
        "l2b": s * jax.random.normal(ks[9], (1, out_dim), jnp.float32),
    }


if __name__ == "__main__":
    N = 64          # number of nodes
    IN_DIM = 128    # input feature dim
    OUT_DIM = 128   # output feature dim
    E = 256         # number of edges

    key = jax.random.PRNGKey(0)
    k_x, k_src, k_dst, k_param = jax.random.split(key, 4)

    x = jax.random.normal(k_x, (N, IN_DIM), jnp.float32)
    src = jax.random.randint(k_src, (E,), 0, N)
    dst = jax.random.randint(k_dst, (E,), 0, N)
    # Dense adjacency with adj[i, j] = 1 iff edge j -> i (self loops added inside the wrapper,
    # matching GATConv's add_self_loops=True).
    adj = jnp.zeros((N, N), jnp.float32).at[dst, src].set(1.0)

    params = init_params(k_param, IN_DIM, OUT_DIM)

    out = geniepath_forward(x, adj, params)
    jax.block_until_ready(out)
    assert out.shape == (N, OUT_DIM)
    assert bool(jnp.all(jnp.isfinite(out)))
    print("KERNEL_OK")
</pallas_src>

<mosaic_0001>
module attributes {stable_mosaic.version = 11 : i64} {
  func.func @geniepath_kernel(%arg0: memref<64x128xf32, #tpu.memory_space<vmem>>, %arg1: memref<64x64xf32, #tpu.memory_space<vmem>>, %arg2: memref<128x256xbf16, #tpu.memory_space<vmem>>, %arg3: memref<1x256xf32, #tpu.memory_space<vmem>>, %arg4: memref<256x1024xbf16, #tpu.memory_space<vmem>>, %arg5: memref<4x1x256xf32, #tpu.memory_space<vmem>>, %arg6: memref<4x1x256xf32, #tpu.memory_space<vmem>>, %arg7: memref<4x1x256xf32, #tpu.memory_space<vmem>>, %arg8: memref<4x256x1024xbf16, #tpu.memory_space<vmem>>, %arg9: memref<4x256x1024xbf16, #tpu.memory_space<vmem>>, %arg10: memref<256x128xbf16, #tpu.memory_space<vmem>>, %arg11: memref<1x128xf32, #tpu.memory_space<vmem>>, %arg12: memref<64x128xf32, #tpu.memory_space<vmem>>) attributes {dimension_semantics = [], scalar_prefetch = 0 : i64, scratch_operands = 0 : i64, tpu.core_type = #tpu.core_type<tc>} {
    %c0 = arith.constant 0 : index
    %c0_0 = arith.constant 0 : index
    %0 = vector.load %arg1[%c0, %c0_0] : memref<64x64xf32, #tpu.memory_space<vmem>>, vector<64x64xf32>
    %c0_1 = arith.constant 0 : index
    %c0_2 = arith.constant 0 : index
    %1 = vector.load %arg0[%c0_1, %c0_2] : memref<64x128xf32, #tpu.memory_space<vmem>>, vector<64x128xf32>
    %2 = arith.truncf %1 : vector<64x128xf32> to vector<64x128xbf16>
    %c0_3 = arith.constant 0 : index
    %c0_4 = arith.constant 0 : index
    %3 = vector.load %arg2[%c0_3, %c0_4] : memref<128x256xbf16, #tpu.memory_space<vmem>>, vector<128x256xbf16>
    %cst = arith.constant dense<0.000000e+00> : vector<64x256xf32>
    %4 = tpu.matmul %2, %3, %cst {dimension_numbers = #tpu.dot_dimension_numbers<[1], [0], [0], [1], [0, 0, 1, 1], [], []>} : vector<64x128xbf16>, vector<128x256xbf16>, vector<64x256xf32> -> vector<64x256xf32>
    %c0_5 = arith.constant 0 : index
    %c0_6 = arith.constant 0 : index
    %5 = vector.load %arg3[%c0_5, %c0_6] : memref<1x256xf32, #tpu.memory_space<vmem>>, vector<1x256xf32>
    %6 = vector.broadcast %5 : vector<1x256xf32> to vector<64x256xf32>
    %7 = arith.addf %4, %6 : vector<64x256xf32>
    %8 = arith.truncf %7 : vector<64x256xf32> to vector<64x256xbf16>
    %c0_7 = arith.constant 0 : index
    %c0_8 = arith.constant 0 : index
    %9 = vector.load %arg4[%c0_7, %c0_8] : memref<256x1024xbf16, #tpu.memory_space<vmem>>, vector<256x1024xbf16>
    %cst_9 = arith.constant dense<0.000000e+00> : vector<64x1024xf32>
    %10 = tpu.matmul %8, %9, %cst_9 {dimension_numbers = #tpu.dot_dimension_numbers<[1], [0], [0], [1], [0, 0, 1, 1], [], []>} : vector<64x256xbf16>, vector<256x1024xbf16>, vector<64x1024xf32> -> vector<64x1024xf32>
    %11 = vector.extract_strided_slice %10 {offsets = [0, 0], sizes = [64, 256], strides = [1, 1]} : vector<64x1024xf32> to vector<64x256xf32>
    %c0_10 = arith.constant 0 : index
    %c0_11 = arith.constant 0 : index
    %c0_12 = arith.constant 0 : index
    %12 = vector.load %arg6[%c0_10, %c0_11, %c0_12] : memref<4x1x256xf32, #tpu.memory_space<vmem>>, vector<1x1x256xf32>
    %13 = vector.shape_cast %12 : vector<1x1x256xf32> to vector<1x256xf32>
    %14 = vector.broadcast %13 : vector<1x256xf32> to vector<64x256xf32>
    %15 = arith.mulf %11, %14 : vector<64x256xf32>
    %cst_13 = arith.constant dense<0.000000e+00> : vector<64xf32>
    %16 = vector.multi_reduction <add>, %15, %cst_13 [1] : vector<64x256xf32> to vector<64xf32>
    %17 = vector.shape_cast %16 : vector<64xf32> to vector<64x1xf32>
    %c0_14 = arith.constant 0 : index
    %c0_15 = arith.constant 0 : index
    %c0_16 = arith.constant 0 : index
    %18 = vector.load %arg5[%c0_14, %c0_15, %c0_16] : memref<4x1x256xf32, #tpu.memory_space<vmem>>, vector<1x1x256xf32>
    %19 = vector.shape_cast %18 : vector<1x1x256xf32> to vector<1x256xf32>
    %20 = vector.broadcast %19 : vector<1x256xf32> to vector<64x256xf32>
    %21 = arith.mulf %11, %20 : vector<64x256xf32>
    %cst_17 = arith.constant dense<0.000000e+00> : vector<64xf32>
    %22 = vector.multi_reduction <add>, %21, %cst_17 [1] : vector<64x256xf32> to vector<64xf32>
    %23 = vector.shape_cast %22 : vector<64xf32> to vector<64x1xf32>
    %24 = tpu.transpose %23, [1, 0] : vector<64x1xf32> -> vector<1x64xf32>
    %25 = vector.broadcast %17 : vector<64x1xf32> to vector<64x64xf32>
    %26 = vector.broadcast %24 : vector<1x64xf32> to vector<64x64xf32>
    %27 = arith.addf %25, %26 : vector<64x64xf32>
    %cst_18 = arith.constant 0.000000e+00 : f32
    %28 = vector.broadcast %cst_18 : f32 to vector<64x64xf32>
    %29 = arith.cmpf ogt, %27, %28 : vector<64x64xf32>
    %cst_19 = arith.constant 2.000000e-01 : f32
    %30 = vector.broadcast %cst_19 : f32 to vector<64x64xf32>
    %31 = arith.mulf %30, %27 : vector<64x64xf32>
    %32 = arith.select %29, %27, %31 : vector<64x64xi1>, vector<64x64xf32>
    %cst_20 = arith.constant 0.000000e+00 : f32
    %33 = vector.broadcast %cst_20 : f32 to vector<64x64xf32>
    %34 = arith.cmpf ogt, %0, %33 : vector<64x64xf32>
    %cst_21 = arith.constant -1.000000e+30 : f32
    %35 = vector.broadcast %cst_21 : f32 to vector<64x64xf32>
    %36 = arith.select %34, %32, %35 : vector<64x64xi1>, vector<64x64xf32>
    %cst_22 = arith.constant dense<0xFF800000> : vector<64xf32>
    %37 = vector.multi_reduction <maximumf>, %36, %cst_22 [1] : vector<64x64xf32> to vector<64xf32>
    %38 = vector.shape_cast %37 : vector<64xf32> to vector<64x1xf32>
    %39 = vector.broadcast %38 : vector<64x1xf32> to vector<64x64xf32>
    %40 = arith.subf %36, %39 : vector<64x64xf32>
    %41 = math.exp %40 : vector<64x64xf32>
    %cst_23 = arith.constant dense<0.000000e+00> : vector<64xf32>
    %42 = vector.multi_reduction <add>, %41, %cst_23 [1] : vector<64x64xf32> to vector<64xf32>
    %43 = vector.shape_cast %42 : vector<64xf32> to vector<64x1xf32>
    %cst_24 = arith.constant 9.99999968E-21 : f32
    %44 = vector.broadcast %cst_24 : f32 to vector<64x1xf32>
    %45 = arith.maximumf %43, %44 : vector<64x1xf32>
    %46 = tpu.reciprocal %45 {approx = true} : vector<64x1xf32> -> vector<64x1xf32>
    %47 = arith.truncf %41 : vector<64x64xf32> to vector<64x64xbf16>
    %48 = arith.truncf %11 : vector<64x256xf32> to vector<64x256xbf16>
    %cst_25 = arith.constant dense<0.000000e+00> : vector<64x256xf32>
    %49 = tpu.matmul %47, %48, %cst_25 {dimension_numbers = #tpu.dot_dimension_numbers<[1], [0], [0], [1], [0, 0, 1, 1], [], []>} : vector<64x64xbf16>, vector<64x256xbf16>, vector<64x256xf32> -> vector<64x256xf32>
    %50 = vector.broadcast %46 : vector<64x1xf32> to vector<64x256xf32>
    %51 = arith.mulf %49, %50 : vector<64x256xf32>
    %c0_26 = arith.constant 0 : index
    %c0_27 = arith.constant 0 : index
    %c0_28 = arith.constant 0 : index
    %52 = vector.load %arg7[%c0_26, %c0_27, %c0_28] : memref<4x1x256xf32, #tpu.memory_space<vmem>>, vector<1x1x256xf32>
    %53 = vector.shape_cast %52 : vector<1x1x256xf32> to vector<1x256xf32>
    %54 = vector.broadcast %53 : vector<1x256xf32> to vector<64x256xf32>
    %55 = arith.addf %51, %54 : vector<64x256xf32>
    %56 = math.tanh %55 : vector<64x256xf32>
    %57 = vector.extract_strided_slice %10 {offsets = [0, 256], sizes = [64, 256], strides = [1, 1]} : vector<64x1024xf32> to vector<64x256xf32>
    %c1 = arith.constant 1 : index
    %c0_29 = arith.constant 0 : index
    %c0_30 = arith.constant 0 : index
    %58 = vector.load %arg6[%c1, %c0_29, %c0_30] : memref<4x1x256xf32, #tpu.memory_space<vmem>>, vector<1x1x256xf32>
    %59 = vector.shape_cast %58 : vector<1x1x256xf32> to vector<1x256xf32>
    %60 = vector.broadcast %59 : vector<1x256xf32> to vector<64x256xf32>
    %61 = arith.mulf %57, %60 : vector<64x256xf32>
    %cst_31 = arith.constant dense<0.000000e+00> : vector<64xf32>
    %62 = vector.multi_reduction <add>, %61, %cst_31 [1] : vector<64x256xf32> to vector<64xf32>
    %63 = vector.shape_cast %62 : vector<64xf32> to vector<64x1xf32>
    %c1_32 = arith.constant 1 : index
    %c0_33 = arith.constant 0 : index
    %c0_34 = arith.constant 0 : index
    %64 = vector.load %arg5[%c1_32, %c0_33, %c0_34] : memref<4x1x256xf32, #tpu.memory_space<vmem>>, vector<1x1x256xf32>
    %65 = vector.shape_cast %64 : vector<1x1x256xf32> to vector<1x256xf32>
    %66 = vector.broadcast %65 : vector<1x256xf32> to vector<64x256xf32>
    %67 = arith.mulf %57, %66 : vector<64x256xf32>
    %cst_35 = arith.constant dense<0.000000e+00> : vector<64xf32>
    %68 = vector.multi_reduction <add>, %67, %cst_35 [1] : vector<64x256xf32> to vector<64xf32>
    %69 = vector.shape_cast %68 : vector<64xf32> to vector<64x1xf32>
    %70 = tpu.transpose %69, [1, 0] : vector<64x1xf32> -> vector<1x64xf32>
    %71 = vector.broadcast %63 : vector<64x1xf32> to vector<64x64xf32>
    %72 = vector.broadcast %70 : vector<1x64xf32> to vector<64x64xf32>
    %73 = arith.addf %71, %72 : vector<64x64xf32>
    %cst_36 = arith.constant 0.000000e+00 : f32
    %74 = vector.broadcast %cst_36 : f32 to vector<64x64xf32>
    %75 = arith.cmpf ogt, %73, %74 : vector<64x64xf32>
    %cst_37 = arith.constant 2.000000e-01 : f32
    %76 = vector.broadcast %cst_37 : f32 to vector<64x64xf32>
    %77 = arith.mulf %76, %73 : vector<64x64xf32>
    %78 = arith.select %75, %73, %77 : vector<64x64xi1>, vector<64x64xf32>
    %cst_38 = arith.constant 0.000000e+00 : f32
    %79 = vector.broadcast %cst_38 : f32 to vector<64x64xf32>
    %80 = arith.cmpf ogt, %0, %79 : vector<64x64xf32>
    %cst_39 = arith.constant -1.000000e+30 : f32
    %81 = vector.broadcast %cst_39 : f32 to vector<64x64xf32>
    %82 = arith.select %80, %78, %81 : vector<64x64xi1>, vector<64x64xf32>
    %cst_40 = arith.constant dense<0xFF800000> : vector<64xf32>
    %83 = vector.multi_reduction <maximumf>, %82, %cst_40 [1] : vector<64x64xf32> to vector<64xf32>
    %84 = vector.shape_cast %83 : vector<64xf32> to vector<64x1xf32>
    %85 = vector.broadcast %84 : vector<64x1xf32> to vector<64x64xf32>
    %86 = arith.subf %82, %85 : vector<64x64xf32>
    %87 = math.exp %86 : vector<64x64xf32>
    %cst_41 = arith.constant dense<0.000000e+00> : vector<64xf32>
    %88 = vector.multi_reduction <add>, %87, %cst_41 [1] : vector<64x64xf32> to vector<64xf32>
    %89 = vector.shape_cast %88 : vector<64xf32> to vector<64x1xf32>
    %cst_42 = arith.constant 9.99999968E-21 : f32
    %90 = vector.broadcast %cst_42 : f32 to vector<64x1xf32>
    %91 = arith.maximumf %89, %90 : vector<64x1xf32>
    %92 = tpu.reciprocal %91 {approx = true} : vector<64x1xf32> -> vector<64x1xf32>
    %93 = arith.truncf %87 : vector<64x64xf32> to vector<64x64xbf16>
    %94 = arith.truncf %57 : vector<64x256xf32> to vector<64x256xbf16>
    %cst_43 = arith.constant dense<0.000000e+00> : vector<64x256xf32>
    %95 = tpu.matmul %93, %94, %cst_43 {dimension_numbers = #tpu.dot_dimension_numbers<[1], [0], [0], [1], [0, 0, 1, 1], [], []>} : vector<64x64xbf16>, vector<64x256xbf16>, vector<64x256xf32> -> vector<64x256xf32>
    %96 = vector.broadcast %92 : vector<64x1xf32> to vector<64x256xf32>
    %97 = arith.mulf %95, %96 : vector<64x256xf32>
    %c1_44 = arith.constant 1 : index
    %c0_45 = arith.constant 0 : index
    %c0_46 = arith.constant 0 : index
    %98 = vector.load %arg7[%c1_44, %c0_45, %c0_46] : memref<4x1x256xf32, #tpu.memory_space<vmem>>, vector<1x1x256xf32>
    %99 = vector.shape_cast %98 : vector<1x1x256xf32> to vector<1x256xf32>
    %100 = vector.broadcast %99 : vector<1x256xf32> to vector<64x256xf32>
    %101 = arith.addf %97, %100 : vector<64x256xf32>
    %102 = math.tanh %101 : vector<64x256xf32>
    %103 = vector.extract_strided_slice %10 {offsets = [0, 512], sizes = [64, 256], strides = [1, 1]} : vector<64x1024xf32> to vector<64x256xf32>
    %c2 = arith.constant 2 : index
    %c0_47 = arith.constant 0 : index
    %c0_48 = arith.constant 0 : index
    %104 = vector.load %arg6[%c2, %c0_47, %c0_48] : memref<4x1x256xf32, #tpu.memory_space<vmem>>, vector<1x1x256xf32>
    %105 = vector.shape_cast %104 : vector<1x1x256xf32> to vector<1x256xf32>
    %106 = vector.broadcast %105 : vector<1x256xf32> to vector<64x256xf32>
    %107 = arith.mulf %103, %106 : vector<64x256xf32>
    %cst_49 = arith.constant dense<0.000000e+00> : vector<64xf32>
    %108 = vector.multi_reduction <add>, %107, %cst_49 [1] : vector<64x256xf32> to vector<64xf32>
    %109 = vector.shape_cast %108 : vector<64xf32> to vector<64x1xf32>
    %c2_50 = arith.constant 2 : index
    %c0_51 = arith.constant 0 : index
    %c0_52 = arith.constant 0 : index
    %110 = vector.load %arg5[%c2_50, %c0_51, %c0_52] : memref<4x1x256xf32, #tpu.memory_space<vmem>>, vector<1x1x256xf32>
    %111 = vector.shape_cast %110 : vector<1x1x256xf32> to vector<1x256xf32>
    %112 = vector.broadcast %111 : vector<1x256xf32> to vector<64x256xf32>
    %113 = arith.mulf %103, %112 : vector<64x256xf32>
    %cst_53 = arith.constant dense<0.000000e+00> : vector<64xf32>
    %114 = vector.multi_reduction <add>, %113, %cst_53 [1] : vector<64x256xf32> to vector<64xf32>
    %115 = vector.shape_cast %114 : vector<64xf32> to vector<64x1xf32>
    %116 = tpu.transpose %115, [1, 0] : vector<64x1xf32> -> vector<1x64xf32>
    %117 = vector.broadcast %109 : vector<64x1xf32> to vector<64x64xf32>
    %118 = vector.broadcast %116 : vector<1x64xf32> to vector<64x64xf32>
    %119 = arith.addf %117, %118 : vector<64x64xf32>
    %cst_54 = arith.constant 0.000000e+00 : f32
    %120 = vector.broadcast %cst_54 : f32 to vector<64x64xf32>
    %121 = arith.cmpf ogt, %119, %120 : vector<64x64xf32>
    %cst_55 = arith.constant 2.000000e-01 : f32
    %122 = vector.broadcast %cst_55 : f32 to vector<64x64xf32>
    %123 = arith.mulf %122, %119 : vector<64x64xf32>
    %124 = arith.select %121, %119, %123 : vector<64x64xi1>, vector<64x64xf32>
    %cst_56 = arith.constant 0.000000e+00 : f32
    %125 = vector.broadcast %cst_56 : f32 to vector<64x64xf32>
    %126 = arith.cmpf ogt, %0, %125 : vector<64x64xf32>
    %cst_57 = arith.constant -1.000000e+30 : f32
    %127 = vector.broadcast %cst_57 : f32 to vector<64x64xf32>
    %128 = arith.select %126, %124, %127 : vector<64x64xi1>, vector<64x64xf32>
    %cst_58 = arith.constant dense<0xFF800000> : vector<64xf32>
    %129 = vector.multi_reduction <maximumf>, %128, %cst_58 [1] : vector<64x64xf32> to vector<64xf32>
    %130 = vector.shape_cast %129 : vector<64xf32> to vector<64x1xf32>
    %131 = vector.broadcast %130 : vector<64x1xf32> to vector<64x64xf32>
    %132 = arith.subf %128, %131 : vector<64x64xf32>
    %133 = math.exp %132 : vector<64x64xf32>
    %cst_59 = arith.constant dense<0.000000e+00> : vector<64xf32>
    %134 = vector.multi_reduction <add>, %133, %cst_59 [1] : vector<64x64xf32> to vector<64xf32>
    %135 = vector.shape_cast %134 : vector<64xf32> to vector<64x1xf32>
    %cst_60 = arith.constant 9.99999968E-21 : f32
    %136 = vector.broadcast %cst_60 : f32 to vector<64x1xf32>
    %137 = arith.maximumf %135, %136 : vector<64x1xf32>
    %138 = tpu.reciprocal %137 {approx = true} : vector<64x1xf32> -> vector<64x1xf32>
    %139 = arith.truncf %133 : vector<64x64xf32> to vector<64x64xbf16>
    %140 = arith.truncf %103 : vector<64x256xf32> to vector<64x256xbf16>
    %cst_61 = arith.constant dense<0.000000e+00> : vector<64x256xf32>
    %141 = tpu.matmul %139, %140, %cst_61 {dimension_numbers = #tpu.dot_dimension_numbers<[1], [0], [0], [1], [0, 0, 1, 1], [], []>} : vector<64x64xbf16>, vector<64x256xbf16>, vector<64x256xf32> -> vector<64x256xf32>
    %142 = vector.broadcast %138 : vector<64x1xf32> to vector<64x256xf32>
    %143 = arith.mulf %141, %142 : vector<64x256xf32>
    %c2_62 = arith.constant 2 : index
    %c0_63 = arith.constant 0 : index
    %c0_64 = arith.constant 0 : index
    %144 = vector.load %arg7[%c2_62, %c0_63, %c0_64] : memref<4x1x256xf32, #tpu.memory_space<vmem>>, vector<1x1x256xf32>
    %145 = vector.shape_cast %144 : vector<1x1x256xf32> to vector<1x256xf32>
    %146 = vector.broadcast %145 : vector<1x256xf32> to vector<64x256xf32>
    %147 = arith.addf %143, %146 : vector<64x256xf32>
    %148 = math.tanh %147 : vector<64x256xf32>
    %149 = vector.extract_strided_slice %10 {offsets = [0, 768], sizes = [64, 256], strides = [1, 1]} : vector<64x1024xf32> to vector<64x256xf32>
    %c3 = arith.constant 3 : index
    %c0_65 = arith.constant 0 : index
    %c0_66 = arith.constant 0 : index
    %150 = vector.load %arg6[%c3, %c0_65, %c0_66] : memref<4x1x256xf32, #tpu.memory_space<vmem>>, vector<1x1x256xf32>
    %151 = vector.shape_cast %150 : vector<1x1x256xf32> to vector<1x256xf32>
    %152 = vector.broadcast %151 : vector<1x256xf32> to vector<64x256xf32>
    %153 = arith.mulf %149, %152 : vector<64x256xf32>
    %cst_67 = arith.constant dense<0.000000e+00> : vector<64xf32>
    %154 = vector.multi_reduction <add>, %153, %cst_67 [1] : vector<64x256xf32> to vector<64xf32>
    %155 = vector.shape_cast %154 : vector<64xf32> to vector<64x1xf32>
    %c3_68 = arith.constant 3 : index
    %c0_69 = arith.constant 0 : index
    %c0_70 = arith.constant 0 : index
    %156 = vector.load %arg5[%c3_68, %c0_69, %c0_70] : memref<4x1x256xf32, #tpu.memory_space<vmem>>, vector<1x1x256xf32>
    %157 = vector.shape_cast %156 : vector<1x1x256xf32> to vector<1x256xf32>
    %158 = vector.broadcast %157 : vector<1x256xf32> to vector<64x256xf32>
    %159 = arith.mulf %149, %158 : vector<64x256xf32>
    %cst_71 = arith.constant dense<0.000000e+00> : vector<64xf32>
    %160 = vector.multi_reduction <add>, %159, %cst_71 [1] : vector<64x256xf32> to vector<64xf32>
    %161 = vector.shape_cast %160 : vector<64xf32> to vector<64x1xf32>
    %162 = tpu.transpose %161, [1, 0] : vector<64x1xf32> -> vector<1x64xf32>
    %163 = vector.broadcast %155 : vector<64x1xf32> to vector<64x64xf32>
    %164 = vector.broadcast %162 : vector<1x64xf32> to vector<64x64xf32>
    %165 = arith.addf %163, %164 : vector<64x64xf32>
    %cst_72 = arith.constant 0.000000e+00 : f32
    %166 = vector.broadcast %cst_72 : f32 to vector<64x64xf32>
    %167 = arith.cmpf ogt, %165, %166 : vector<64x64xf32>
    %cst_73 = arith.constant 2.000000e-01 : f32
    %168 = vector.broadcast %cst_73 : f32 to vector<64x64xf32>
    %169 = arith.mulf %168, %165 : vector<64x64xf32>
    %170 = arith.select %167, %165, %169 : vector<64x64xi1>, vector<64x64xf32>
    %cst_74 = arith.constant 0.000000e+00 : f32
    %171 = vector.broadcast %cst_74 : f32 to vector<64x64xf32>
    %172 = arith.cmpf ogt, %0, %171 : vector<64x64xf32>
    %cst_75 = arith.constant -1.000000e+30 : f32
    %173 = vector.broadcast %cst_75 : f32 to vector<64x64xf32>
    %174 = arith.select %172, %170, %173 : vector<64x64xi1>, vector<64x64xf32>
    %cst_76 = arith.constant dense<0xFF800000> : vector<64xf32>
    %175 = vector.multi_reduction <maximumf>, %174, %cst_76 [1] : vector<64x64xf32> to vector<64xf32>
    %176 = vector.shape_cast %175 : vector<64xf32> to vector<64x1xf32>
    %177 = vector.broadcast %176 : vector<64x1xf32> to vector<64x64xf32>
    %178 = arith.subf %174, %177 : vector<64x64xf32>
    %179 = math.exp %178 : vector<64x64xf32>
    %cst_77 = arith.constant dense<0.000000e+00> : vector<64xf32>
    %180 = vector.multi_reduction <add>, %179, %cst_77 [1] : vector<64x64xf32> to vector<64xf32>
    %181 = vector.shape_cast %180 : vector<64xf32> to vector<64x1xf32>
    %cst_78 = arith.constant 9.99999968E-21 : f32
    %182 = vector.broadcast %cst_78 : f32 to vector<64x1xf32>
    %183 = arith.maximumf %181, %182 : vector<64x1xf32>
    %184 = tpu.reciprocal %183 {approx = true} : vector<64x1xf32> -> vector<64x1xf32>
    %185 = arith.truncf %179 : vector<64x64xf32> to vector<64x64xbf16>
    %186 = arith.truncf %149 : vector<64x256xf32> to vector<64x256xbf16>
    %cst_79 = arith.constant dense<0.000000e+00> : vector<64x256xf32>
    %187 = tpu.matmul %185, %186, %cst_79 {dimension_numbers = #tpu.dot_dimension_numbers<[1], [0], [0], [1], [0, 0, 1, 1], [], []>} : vector<64x64xbf16>, vector<64x256xbf16>, vector<64x256xf32> -> vector<64x256xf32>
    %188 = vector.broadcast %184 : vector<64x1xf32> to vector<64x256xf32>
    %189 = arith.mulf %187, %188 : vector<64x256xf32>
    %c3_80 = arith.constant 3 : index
    %c0_81 = arith.constant 0 : index
    %c0_82 = arith.constant 0 : index
    %190 = vector.load %arg7[%c3_80, %c0_81, %c0_82] : memref<4x1x256xf32, #tpu.memory_space<vmem>>, vector<1x1x256xf32>
    %191 = vector.shape_cast %190 : vector<1x1x256xf32> to vector<1x256xf32>
    %192 = vector.broadcast %191 : vector<1x256xf32> to vector<64x256xf32>
    %193 = arith.addf %189, %192 : vector<64x256xf32>
    %194 = math.tanh %193 : vector<64x256xf32>
    %195 = arith.truncf %56 : vector<64x256xf32> to vector<64x256xbf16>
    %c0_83 = arith.constant 0 : index
    %c0_84 = arith.constant 0 : index
    %c0_85 = arith.constant 0 : index
    %196 = vector.load %arg8[%c0_83, %c0_84, %c0_85] : memref<4x256x1024xbf16, #tpu.memory_space<vmem>>, vector<1x256x1024xbf16>
    %197 = vector.shape_cast %196 : vector<1x256x1024xbf16> to vector<256x1024xbf16>
    %cst_86 = arith.constant dense<0.000000e+00> : vector<64x1024xf32>
    %198 = tpu.matmul %195, %197, %cst_86 {dimension_numbers = #tpu.dot_dimension_numbers<[1], [0], [0], [1], [0, 0, 1, 1], [], []>} : vector<64x256xbf16>, vector<256x1024xbf16>, vector<64x1024xf32> -> vector<64x1024xf32>
    %199 = arith.truncf %102 : vector<64x256xf32> to vector<64x256xbf16>
    %c1_87 = arith.constant 1 : index
    %c0_88 = arith.constant 0 : index
    %c0_89 = arith.constant 0 : index
    %200 = vector.load %arg8[%c1_87, %c0_88, %c0_89] : memref<4x256x1024xbf16, #tpu.memory_space<vmem>>, vector<1x256x1024xbf16>
    %201 = vector.shape_cast %200 : vector<1x256x1024xbf16> to vector<256x1024xbf16>
    %cst_90 = arith.constant dense<0.000000e+00> : vector<64x1024xf32>
    %202 = tpu.matmul %199, %201, %cst_90 {dimension_numbers = #tpu.dot_dimension_numbers<[1], [0], [0], [1], [0, 0, 1, 1], [], []>} : vector<64x256xbf16>, vector<256x1024xbf16>, vector<64x1024xf32> -> vector<64x1024xf32>
    %203 = arith.truncf %148 : vector<64x256xf32> to vector<64x256xbf16>
    %c2_91 = arith.constant 2 : index
    %c0_92 = arith.constant 0 : index
    %c0_93 = arith.constant 0 : index
    %204 = vector.load %arg8[%c2_91, %c0_92, %c0_93] : memref<4x256x1024xbf16, #tpu.memory_space<vmem>>, vector<1x256x1024xbf16>
    %205 = vector.shape_cast %204 : vector<1x256x1024xbf16> to vector<256x1024xbf16>
    %cst_94 = arith.constant dense<0.000000e+00> : vector<64x1024xf32>
    %206 = tpu.matmul %203, %205, %cst_94 {dimension_numbers = #tpu.dot_dimension_numbers<[1], [0], [0], [1], [0, 0, 1, 1], [], []>} : vector<64x256xbf16>, vector<256x1024xbf16>, vector<64x1024xf32> -> vector<64x1024xf32>
    %207 = arith.truncf %194 : vector<64x256xf32> to vector<64x256xbf16>
    %c3_95 = arith.constant 3 : index
    %c0_96 = arith.constant 0 : index
    %c0_97 = arith.constant 0 : index
    %208 = vector.load %arg8[%c3_95, %c0_96, %c0_97] : memref<4x256x1024xbf16, #tpu.memory_space<vmem>>, vector<1x256x1024xbf16>
    %209 = vector.shape_cast %208 : vector<1x256x1024xbf16> to vector<256x1024xbf16>
    %cst_98 = arith.constant dense<0.000000e+00> : vector<64x1024xf32>
    %210 = tpu.matmul %207, %209, %cst_98 {dimension_numbers = #tpu.dot_dimension_numbers<[1], [0], [0], [1], [0, 0, 1, 1], [], []>} : vector<64x256xbf16>, vector<256x1024xbf16>, vector<64x1024xf32> -> vector<64x1024xf32>
    %c0_99 = arith.constant 0 : index
    %c0_100 = arith.constant 0 : index
    %c0_101 = arith.constant 0 : index
    %211 = vector.load %arg9[%c0_99, %c0_100, %c0_101] : memref<4x256x1024xbf16, #tpu.memory_space<vmem>>, vector<1x256x1024xbf16>
    %212 = vector.shape_cast %211 : vector<1x256x1024xbf16> to vector<256x1024xbf16>
    %cst_102 = arith.constant dense<0.000000e+00> : vector<64x1024xf32>
    %213 = tpu.matmul %8, %212, %cst_102 {dimension_numbers = #tpu.dot_dimension_numbers<[1], [0], [0], [1], [0, 0, 1, 1], [], []>} : vector<64x256xbf16>, vector<256x1024xbf16>, vector<64x1024xf32> -> vector<64x1024xf32>
    %214 = arith.addf %198, %213 : vector<64x1024xf32>
    %215 = vector.extract_strided_slice %214 {offsets = [0, 0], sizes = [64, 256], strides = [1, 1]} : vector<64x1024xf32> to vector<64x256xf32>
    %216 = arith.negf %215 : vector<64x256xf32>
    %217 = math.exp %216 : vector<64x256xf32>
    %cst_103 = arith.constant 1.000000e+00 : f32
    %218 = vector.broadcast %cst_103 : f32 to vector<64x256xf32>
    %219 = arith.addf %218, %217 : vector<64x256xf32>
    %220 = arith.divf %218, %219 : vector<64x256xf32>
    %221 = vector.extract_strided_slice %214 {offsets = [0, 512], sizes = [64, 256], strides = [1, 1]} : vector<64x1024xf32> to vector<64x256xf32>
    %222 = math.tanh %221 : vector<64x256xf32>
    %223 = vector.extract_strided_slice %214 {offsets = [0, 768], sizes = [64, 256], strides = [1, 1]} : vector<64x1024xf32> to vector<64x256xf32>
    %224 = arith.negf %223 : vector<64x256xf32>
    %225 = math.exp %224 : vector<64x256xf32>
    %cst_104 = arith.constant 1.000000e+00 : f32
    %226 = vector.broadcast %cst_104 : f32 to vector<64x256xf32>
    %227 = arith.addf %226, %225 : vector<64x256xf32>
    %228 = arith.divf %226, %227 : vector<64x256xf32>
    %229 = arith.mulf %220, %222 : vector<64x256xf32>
    %230 = math.tanh %229 : vector<64x256xf32>
    %231 = arith.mulf %228, %230 : vector<64x256xf32>
    %232 = arith.truncf %231 : vector<64x256xf32> to vector<64x256xbf16>
    %c1_105 = arith.constant 1 : index
    %c0_106 = arith.constant 0 : index
    %c0_107 = arith.constant 0 : index
    %233 = vector.load %arg9[%c1_105, %c0_106, %c0_107] : memref<4x256x1024xbf16, #tpu.memory_space<vmem>>, vector<1x256x1024xbf16>
    %234 = vector.shape_cast %233 : vector<1x256x1024xbf16> to vector<256x1024xbf16>
    %cst_108 = arith.constant dense<0.000000e+00> : vector<64x1024xf32>
    %235 = tpu.matmul %232, %234, %cst_108 {dimension_numbers = #tpu.dot_dimension_numbers<[1], [0], [0], [1], [0, 0, 1, 1], [], []>} : vector<64x256xbf16>, vector<256x1024xbf16>, vector<64x1024xf32> -> vector<64x1024xf32>
    %236 = arith.addf %202, %235 : vector<64x1024xf32>
    %237 = vector.extract_strided_slice %236 {offsets = [0, 0], sizes = [64, 256], strides = [1, 1]} : vector<64x1024xf32> to vector<64x256xf32>
    %238 = arith.negf %237 : vector<64x256xf32>
    %239 = math.exp %238 : vector<64x256xf32>
    %cst_109 = arith.constant 1.000000e+00 : f32
    %240 = vector.broadcast %cst_109 : f32 to vector<64x256xf32>
    %241 = arith.addf %240, %239 : vector<64x256xf32>
    %242 = arith.divf %240, %241 : vector<64x256xf32>
    %243 = vector.extract_strided_slice %236 {offsets = [0, 256], sizes = [64, 256], strides = [1, 1]} : vector<64x1024xf32> to vector<64x256xf32>
    %244 = arith.negf %243 : vector<64x256xf32>
    %245 = math.exp %244 : vector<64x256xf32>
    %cst_110 = arith.constant 1.000000e+00 : f32
    %246 = vector.broadcast %cst_110 : f32 to vector<64x256xf32>
    %247 = arith.addf %246, %245 : vector<64x256xf32>
    %248 = arith.divf %246, %247 : vector<64x256xf32>
    %249 = vector.extract_strided_slice %236 {offsets = [0, 512], sizes = [64, 256], strides = [1, 1]} : vector<64x1024xf32> to vector<64x256xf32>
    %250 = math.tanh %249 : vector<64x256xf32>
    %251 = vector.extract_strided_slice %236 {offsets = [0, 768], sizes = [64, 256], strides = [1, 1]} : vector<64x1024xf32> to vector<64x256xf32>
    %252 = arith.negf %251 : vector<64x256xf32>
    %253 = math.exp %252 : vector<64x256xf32>
    %cst_111 = arith.constant 1.000000e+00 : f32
    %254 = vector.broadcast %cst_111 : f32 to vector<64x256xf32>
    %255 = arith.addf %254, %253 : vector<64x256xf32>
    %256 = arith.divf %254, %255 : vector<64x256xf32>
    %257 = arith.mulf %248, %229 : vector<64x256xf32>
    %258 = arith.mulf %242, %250 : vector<64x256xf32>
    %259 = arith.addf %257, %258 : vector<64x256xf32>
    %260 = math.tanh %259 : vector<64x256xf32>
    %261 = arith.mulf %256, %260 : vector<64x256xf32>
    %262 = arith.truncf %261 : vector<64x256xf32> to vector<64x256xbf16>
    %c2_112 = arith.constant 2 : index
    %c0_113 = arith.constant 0 : index
    %c0_114 = arith.constant 0 : index
    %263 = vector.load %arg9[%c2_112, %c0_113, %c0_114] : memref<4x256x1024xbf16, #tpu.memory_space<vmem>>, vector<1x256x1024xbf16>
    %264 = vector.shape_cast %263 : vector<1x256x1024xbf16> to vector<256x1024xbf16>
    %cst_115 = arith.constant dense<0.000000e+00> : vector<64x1024xf32>
    %265 = tpu.matmul %262, %264, %cst_115 {dimension_numbers = #tpu.dot_dimension_numbers<[1], [0], [0], [1], [0, 0, 1, 1], [], []>} : vector<64x256xbf16>, vector<256x1024xbf16>, vector<64x1024xf32> -> vector<64x1024xf32>
    %266 = arith.addf %206, %265 : vector<64x1024xf32>
    %267 = vector.extract_strided_slice %266 {offsets = [0, 0], sizes = [64, 256], strides = [1, 1]} : vector<64x1024xf32> to vector<64x256xf32>
    %268 = arith.negf %267 : vector<64x256xf32>
    %269 = math.exp %268 : vector<64x256xf32>
    %cst_116 = arith.constant 1.000000e+00 : f32
    %270 = vector.broadcast %cst_116 : f32 to vector<64x256xf32>
    %271 = arith.addf %270, %269 : vector<64x256xf32>
    %272 = arith.divf %270, %271 : vector<64x256xf32>
    %273 = vector.extract_strided_slice %266 {offsets = [0, 256], sizes = [64, 256], strides = [1, 1]} : vector<64x1024xf32> to vector<64x256xf32>
    %274 = arith.negf %273 : vector<64x256xf32>
    %275 = math.exp %274 : vector<64x256xf32>
    %cst_117 = arith.constant 1.000000e+00 : f32
    %276 = vector.broadcast %cst_117 : f32 to vector<64x256xf32>
    %277 = arith.addf %276, %275 : vector<64x256xf32>
    %278 = arith.divf %276, %277 : vector<64x256xf32>
    %279 = vector.extract_strided_slice %266 {offsets = [0, 512], sizes = [64, 256], strides = [1, 1]} : vector<64x1024xf32> to vector<64x256xf32>
    %280 = math.tanh %279 : vector<64x256xf32>
    %281 = vector.extract_strided_slice %266 {offsets = [0, 768], sizes = [64, 256], strides = [1, 1]} : vector<64x1024xf32> to vector<64x256xf32>
    %282 = arith.negf %281 : vector<64x256xf32>
    %283 = math.exp %282 : vector<64x256xf32>
    %cst_118 = arith.constant 1.000000e+00 : f32
    %284 = vector.broadcast %cst_118 : f32 to vector<64x256xf32>
    %285 = arith.addf %284, %283 : vector<64x256xf32>
    %286 = arith.divf %284, %285 : vector<64x256xf32>
    %287 = arith.mulf %278, %259 : vector<64x256xf32>
    %288 = arith.mulf %272, %280 : vector<64x256xf32>
    %289 = arith.addf %287, %288 : vector<64x256xf32>
    %290 = math.tanh %289 : vector<64x256xf32>
    %291 = arith.mulf %286, %290 : vector<64x256xf32>
    %292 = arith.truncf %291 : vector<64x256xf32> to vector<64x256xbf16>
    %c3_119 = arith.constant 3 : index
    %c0_120 = arith.constant 0 : index
    %c0_121 = arith.constant 0 : index
    %293 = vector.load %arg9[%c3_119, %c0_120, %c0_121] : memref<4x256x1024xbf16, #tpu.memory_space<vmem>>, vector<1x256x1024xbf16>
    %294 = vector.shape_cast %293 : vector<1x256x1024xbf16> to vector<256x1024xbf16>
    %cst_122 = arith.constant dense<0.000000e+00> : vector<64x1024xf32>
    %295 = tpu.matmul %292, %294, %cst_122 {dimension_numbers = #tpu.dot_dimension_numbers<[1], [0], [0], [1], [0, 0, 1, 1], [], []>} : vector<64x256xbf16>, vector<256x1024xbf16>, vector<64x1024xf32> -> vector<64x1024xf32>
    %296 = arith.addf %210, %295 : vector<64x1024xf32>
    %297 = vector.extract_strided_slice %296 {offsets = [0, 0], sizes = [64, 256], strides = [1, 1]} : vector<64x1024xf32> to vector<64x256xf32>
    %298 = arith.negf %297 : vector<64x256xf32>
    %299 = math.exp %298 : vector<64x256xf32>
    %cst_123 = arith.constant 1.000000e+00 : f32
    %300 = vector.broadcast %cst_123 : f32 to vector<64x256xf32>
    %301 = arith.addf %300, %299 : vector<64x256xf32>
    %302 = arith.divf %300, %301 : vector<64x256xf32>
    %303 = vector.extract_strided_slice %296 {offsets = [0, 256], sizes = [64, 256], strides = [1, 1]} : vector<64x1024xf32> to vector<64x256xf32>
    %304 = arith.negf %303 : vector<64x256xf32>
    %305 = math.exp %304 : vector<64x256xf32>
    %cst_124 = arith.constant 1.000000e+00 : f32
    %306 = vector.broadcast %cst_124 : f32 to vector<64x256xf32>
    %307 = arith.addf %306, %305 : vector<64x256xf32>
    %308 = arith.divf %306, %307 : vector<64x256xf32>
    %309 = vector.extract_strided_slice %296 {offsets = [0, 512], sizes = [64, 256], strides = [1, 1]} : vector<64x1024xf32> to vector<64x256xf32>
    %310 = math.tanh %309 : vector<64x256xf32>
    %311 = vector.extract_strided_slice %296 {offsets = [0, 768], sizes = [64, 256], strides = [1, 1]} : vector<64x1024xf32> to vector<64x256xf32>
    %312 = arith.negf %311 : vector<64x256xf32>
    %313 = math.exp %312 : vector<64x256xf32>
    %cst_125 = arith.constant 1.000000e+00 : f32
    %314 = vector.broadcast %cst_125 : f32 to vector<64x256xf32>
    %315 = arith.addf %314, %313 : vector<64x256xf32>
    %316 = arith.divf %314, %315 : vector<64x256xf32>
    %317 = arith.mulf %308, %289 : vector<64x256xf32>
    %318 = arith.mulf %302, %310 : vector<64x256xf32>
    %319 = arith.addf %317, %318 : vector<64x256xf32>
    %320 = math.tanh %319 : vector<64x256xf32>
    %321 = arith.mulf %316, %320 : vector<64x256xf32>
    %322 = arith.truncf %321 : vector<64x256xf32> to vector<64x256xbf16>
    %c0_126 = arith.constant 0 : index
    %c0_127 = arith.constant 0 : index
    %323 = vector.load %arg10[%c0_126, %c0_127] : memref<256x128xbf16, #tpu.memory_space<vmem>>, vector<256x128xbf16>
    %cst_128 = arith.constant dense<0.000000e+00> : vector<64x128xf32>
    %324 = tpu.matmul %322, %323, %cst_128 {dimension_numbers = #tpu.dot_dimension_numbers<[1], [0], [0], [1], [0, 0, 1, 1], [], []>} : vector<64x256xbf16>, vector<256x128xbf16>, vector<64x128xf32> -> vector<64x128xf32>
    %c0_129 = arith.constant 0 : index
    %c0_130 = arith.constant 0 : index
    %325 = vector.load %arg11[%c0_129, %c0_130] : memref<1x128xf32, #tpu.memory_space<vmem>>, vector<1x128xf32>
    %326 = vector.broadcast %325 : vector<1x128xf32> to vector<64x128xf32>
    %327 = arith.addf %324, %326 : vector<64x128xf32>
    %c0_131 = arith.constant 0 : index
    %c0_132 = arith.constant 0 : index
    %328 = vector.load %arg12[%c0_131, %c0_132] : memref<64x128xf32, #tpu.memory_space<vmem>>, vector<64x128xf32>
    tpu.vector_store %arg12[%c0_131, %c0_132], %327 {strides = array<i32>} : memref<64x128xf32, #tpu.memory_space<vmem>>, vector<64x128xf32>,
    return
  }
}

</mosaic_0001>

<llo_original>
// kernel: geniepath_forward.1
$region0: #{geniepath_forward.1}
  #allocation0 [shape = 'u32[]', space=smem, size = 0x4, offset = 0x4, fixed_abs, tag = 'smem constant byte address 0x4 - core index']
  #allocation1 [shape = 'u32[144,128]{1,0:T(1,128)}', space=vmem, size = 0x12000, scoped, tag = 'internal scratch']
  %s0 = inlined_call_operand.vmem [shape: f32[64,128], index: 0, kind: input, shape index: {}]
  %s1 = inlined_call_operand.vmem [shape: f32[64,64], index: 1, kind: input, shape index: {}]
  %s2 = inlined_call_operand.vmem [shape: bf16[128,256], index: 2, kind: input, shape index: {}]
  %s3 = inlined_call_operand.vmem [shape: f32[1,256], index: 3, kind: input, shape index: {}]
  %s4 = inlined_call_operand.vmem [shape: bf16[256,1024], index: 4, kind: input, shape index: {}]
  %s5 = inlined_call_operand.vmem [shape: f32[4,1,256], index: 5, kind: input, shape index: {}]
  %s6 = inlined_call_operand.vmem [shape: f32[4,1,256], index: 6, kind: input, shape index: {}]
  %s7 = inlined_call_operand.vmem [shape: f32[4,1,256], index: 7, kind: input, shape index: {}]
  %s8 = inlined_call_operand.vmem [shape: bf16[4,256,1024], index: 8, kind: input, shape index: {}]
  %s9 = inlined_call_operand.vmem [shape: bf16[4,256,1024], index: 9, kind: input, shape index: {}]
  %s10 = inlined_call_operand.vmem [shape: bf16[256,128], index: 10, kind: input, shape index: {}]
  %s11 = inlined_call_operand.vmem [shape: f32[1,128], index: 11, kind: input, shape index: {}]
  %s12 = inlined_call_operand.hbm [shape: f32[64,128], index: 12, kind: output, shape index: {}]
  %s13 = sld [smem:[#allocation0]]
  $region58: #{geniepath_forward.1} parent=0
    _
  %s15 = ssub.s32 1, %s13
  %s16 = scalar_select 0, %s15, %s13
  $region1: #{geniepath_forward.1} parent=0
    #allocation2 [shape = 'u8[32768]{0}', space=vmem, size = 0x8000, scoped, tag = 'output window, operand 0, single buffered']
    #allocation3 [shape = 's32[1]{0}', space=sflag, size = 0x4, scoped, tag = 'scoped memory for geniepath_forward.1']
    %17 = vsyncpa [#allocation3], 0
    // Predicated region
    $region2: #{geniepath_forward.1} parent=1 // pred_check
      _
    $region3: #{geniepath_forward.1} parent=1 // pred_check_branch
      %19 = sbr.rel (0) target = $region5
    $region4: #{geniepath_forward.1} parent=1 // pred_region
      _
    $region5: #{geniepath_forward.1} parent=1 // pred_fallthru
      _
    // Predicated region
    $region6: #{geniepath_forward.1} parent=1 // pred_check
      _
    $region7: #{geniepath_forward.1} parent=1 // pred_check_branch
      %21 = sbr.rel (0) target = $region9
    $region8: #{geniepath_forward.1} parent=1 // pred_region
      _
    $region9: #{geniepath_forward.1} parent=1 // pred_fallthru
      _
    // Predicated region
    $region10: #{geniepath_forward.1} parent=1 // pred_check
      _
    $region11: #{geniepath_forward.1} parent=1 // pred_check_branch
      %23 = sbr.rel (0) target = $region13
    $region12: #{geniepath_forward.1} parent=1 // pred_region
      _
    $region13: #{geniepath_forward.1} parent=1 // pred_fallthru
      _
    // Predicated region
    $region14: #{geniepath_forward.1} parent=1 // pred_check
      _
    $region15: #{geniepath_forward.1} parent=1 // pred_check_branch
      %25 = sbr.rel (0) target = $region17
    $region16: #{geniepath_forward.1} parent=1 // pred_region
      _
    $region17: #{geniepath_forward.1} parent=1 // pred_fallthru
      _
    // Predicated region
    $region18: #{geniepath_forward.1} parent=1 // pred_check
      _
    $region19: #{geniepath_forward.1} parent=1 // pred_check_branch
      %27 = sbr.rel (0) target = $region21
    $region20: #{geniepath_forward.1} parent=1 // pred_region
      _
    $region21: #{geniepath_forward.1} parent=1 // pred_fallthru
      _
    // Predicated region
    $region22: #{geniepath_forward.1} parent=1 // pred_check
      _
    $region23: #{geniepath_forward.1} parent=1 // pred_check_branch
      %29 = sbr.rel (0) target = $region25
    $region24: #{geniepath_forward.1} parent=1 // pred_region
      _
    $region25: #{geniepath_forward.1} parent=1 // pred_fallthru
      _
    // Predicated region
    $region26: #{geniepath_forward.1} parent=1 // pred_check
      _
    $region27: #{geniepath_forward.1} parent=1 // pred_check_branch
      %31 = sbr.rel (0) target = $region29
    $region28: #{geniepath_forward.1} parent=1 // pred_region
      _
    $region29: #{geniepath_forward.1} parent=1 // pred_fallthru
      _
    // Predicated region
    $region30: #{geniepath_forward.1} parent=1 // pred_check
      _
    $region31: #{geniepath_forward.1} parent=1 // pred_check_branch
      %33 = sbr.rel (0) target = $region33
    $region32: #{geniepath_forward.1} parent=1 // pred_region
      _
    $region33: #{geniepath_forward.1} parent=1 // pred_fallthru
      _
    // Predicated region
    $region34: #{geniepath_forward.1} parent=1 // pred_check
      _
    $region35: #{geniepath_forward.1} parent=1 // pred_check_branch
      %35 = sbr.rel (0) target = $region37
    $region36: #{geniepath_forward.1} parent=1 // pred_region
      _
    $region37: #{geniepath_forward.1} parent=1 // pred_fallthru
      _
    // Predicated region
    $region38: #{geniepath_forward.1} parent=1 // pred_check
      _
    $region39: #{geniepath_forward.1} parent=1 // pred_check_branch
      %37 = sbr.rel (0) target = $region41
    $region40: #{geniepath_forward.1} parent=1 // pred_region
      _
    $region41: #{geniepath_forward.1} parent=1 // pred_fallthru
      _
    // Predicated region
    $region42: #{geniepath_forward.1} parent=1 // pred_check
      _
    $region43: #{geniepath_forward.1} parent=1 // pred_check_branch
      %39 = sbr.rel (0) target = $region45
    $region44: #{geniepath_forward.1} parent=1 // pred_region
      _
    $region45: #{geniepath_forward.1} parent=1 // pred_fallthru
      _
    // Predicated region
    $region46: #{geniepath_forward.1} parent=1 // pred_check
      _
    $region47: #{geniepath_forward.1} parent=1 // pred_check_branch
      %41 = sbr.rel (0) target = $region49
    $region48: #{geniepath_forward.1} parent=1 // pred_region
      _
    $region49: #{geniepath_forward.1} parent=1 // pred_fallthru
      _
    %v43 = vld [vmem:[%s1] sm:$0xff]
    %v44 = vld [vmem:[%s1 + $0x8] sm:$0xff]
    %v45 = vld [vmem:[%s1 + $0x10] sm:$0xff]
    %v46 = vld [vmem:[%s1 + $0x18] sm:$0xff]
    %v47 = vld [vmem:[%s1 + $0x20] sm:$0xff]
    %v48 = vld [vmem:[%s1 + $0x28] sm:$0xff]
    %v49 = vld [vmem:[%s1 + $0x30] sm:$0xff]
    %v50 = vld [vmem:[%s1 + $0x38] sm:$0xff]
    %v51 = vld [vmem:[%s0] sm:$0xff]
    %v52 = vld [vmem:[%s0 + $0x8] sm:$0xff]
    %v53 = vld [vmem:[%s0 + $0x10] sm:$0xff]
    %v54 = vld [vmem:[%s0 + $0x18] sm:$0xff]
    %v55 = vld [vmem:[%s0 + $0x20] sm:$0xff]
    %v56 = vld [vmem:[%s0 + $0x28] sm:$0xff]
    %v57 = vld [vmem:[%s0 + $0x30] sm:$0xff]
    %v58 = vld [vmem:[%s0 + $0x38] sm:$0xff]
    %v59 = vpack.c.bf16 %v52, %v51
    %v60 = vpack.c.bf16 %v54, %v53
    %v61 = vpack.c.bf16 %v56, %v55
    %v62 = vpack.c.bf16 %v58, %v57
    %v63 = vld [vmem:[%s2] sm:$0xff]
    %v64 = vld [vmem:[%s2 + $0x8] sm:$0xff]
    %v65 = vld [vmem:[%s2 + $0x10] sm:$0xff]
    %v66 = vld [vmem:[%s2 + $0x18] sm:$0xff]
    %v67 = vld [vmem:[%s2 + $0x20] sm:$0xff]
    %v68 = vld [vmem:[%s2 + $0x28] sm:$0xff]
    %v69 = vld [vmem:[%s2 + $0x30] sm:$0xff]
    %v70 = vld [vmem:[%s2 + $0x38] sm:$0xff]
    %v71 = vld [vmem:[%s2 + $0x40] sm:$0xff]
    %v72 = vld [vmem:[%s2 + $0x48] sm:$0xff]
    %v73 = vld [vmem:[%s2 + $0x50] sm:$0xff]
    %v74 = vld [vmem:[%s2 + $0x58] sm:$0xff]
    %v75 = vld [vmem:[%s2 + $0x60] sm:$0xff]
    %v76 = vld [vmem:[%s2 + $0x68] sm:$0xff]
    %v77 = vld [vmem:[%s2 + $0x70] sm:$0xff]
    %v78 = vld [vmem:[%s2 + $0x78] sm:$0xff]
    %v79 = vld [vmem:[%s3] sm:$0x3]
    %v81 = vlaneseq
    %v82 = vshrl.u32 %v81, 7
    %v83 = vsub.s32 0, %v82
    %v84 = vrot.slane %v79, %v83
    %v85 = vlaneseq
    %v86 = vshrl.u32 %v85, 7
    %v87 = vsub.s32 1, %v86
    %v88 = vrot.slane %v79, %v87
    %v107 = vunpack.c.l.b16 %v63
    %v108 = vunpack.c.h.b16 %v63
    %v109 = vunpack.c.l.b16 %v64
    %v110 = vunpack.c.h.b16 %v64
    %v111 = vunpack.c.l.b16 %v65
    %v112 = vunpack.c.h.b16 %v65
    %v113 = vunpack.c.l.b16 %v66
    %v114 = vunpack.c.h.b16 %v66
    %v115 = vunpack.c.l.b16 %v67
    %v116 = vunpack.c.h.b16 %v67
    %v117 = vunpack.c.l.b16 %v68
    %v118 = vunpack.c.h.b16 %v68
    %v119 = vunpack.c.l.b16 %v69
    %v120 = vunpack.c.h.b16 %v69
    %v121 = vunpack.c.l.b16 %v70
    %v122 = vunpack.c.h.b16 %v70
    %v123 = vunpack.c.l.b16 %v71
    %v124 = vunpack.c.h.b16 %v71
    %v125 = vunpack.c.l.b16 %v72
    %v126 = vunpack.c.h.b16 %v72
    %v127 = vunpack.c.l.b16 %v73
    %v128 = vunpack.c.h.b16 %v73
    %v129 = vunpack.c.l.b16 %v74
    %v130 = vunpack.c.h.b16 %v74
    %v131 = vunpack.c.l.b16 %v75
    %v132 = vunpack.c.h.b16 %v75
    %v133 = vunpack.c.l.b16 %v76
    %v134 = vunpack.c.h.b16 %v76
    %v135 = vunpack.c.l.b16 %v77
    %v136 = vunpack.c.h.b16 %v77
    %v137 = vunpack.c.l.b16 %v78
    %v138 = vunpack.c.h.b16 %v78
    %v139 = vpack.c.b16 %v109, %v107
    %v140 = vpack.c.b16 %v110, %v108
    %v141 = vpack.c.b16 %v113, %v111
    %v142 = vpack.c.b16 %v114, %v112
    %v143 = vpack.c.b16 %v117, %v115
    %v144 = vpack.c.b16 %v118, %v116
    %v145 = vpack.c.b16 %v121, %v119
    %v146 = vpack.c.b16 %v122, %v120
    %v147 = vpack.c.b16 %v125, %v123
    %v148 = vpack.c.b16 %v126, %v124
    %v149 = vpack.c.b16 %v129, %v127
    %v150 = vpack.c.b16 %v130, %v128
    %v151 = vpack.c.b16 %v133, %v131
    %v152 = vpack.c.b16 %v134, %v132
    %v153 = vpack.c.b16 %v137, %v135
    %v154 = vpack.c.b16 %v138, %v136
    %171 = vmatprep.subr.bf16.mxu0 %v140
    %172 = vmatpush1.bf16.msra.mxu0 %v139
    %173 = vmatprep.subr.bf16.mxu0 %v142
    %174 = vmatpush1.bf16.msra.mxu0 %v141
    %175 = vmatprep.subr.bf16.mxu0 %v144
    %176 = vmatpush1.bf16.msra.mxu0 %v143
    %177 = vmatprep.subr.bf16.mxu0 %v146
    %178 = vmatpush1.bf16.msra.mxu0 %v145
    %179 = vmatprep.subr.bf16.mxu0 %v148
    %180 = vmatpush1.bf16.msra.mxu0 %v147
    %181 = vmatprep.subr.bf16.mxu0 %v150
    %182 = vmatpush1.bf16.msra.mxu0 %v149
    %183 = vmatprep.subr.bf16.mxu0 %v152
    %184 = vmatpush1.bf16.msra.mxu0 %v151
    %185 = vmatprep.subr.bf16.mxu0 %v154
    %186 = vmatpush1.bf16.msra.mxu0 %v153
    %187 = vmatprep.subr.bf16.mxu0 0
    %188 = vmatpush1.bf16.msra.mxu0 0
    %189 = vmatprep.subr.bf16.mxu0 0
    %190 = vmatpush1.bf16.msra.mxu0 0
    %191 = vmatprep.subr.bf16.mxu0 0
    %192 = vmatpush1.bf16.msra.mxu0 0
    %193 = vmatprep.subr.bf16.mxu0 0
    %194 = vmatpush1.bf16.msra.mxu0 0
    %195 = vmatprep.subr.bf16.mxu0 0
    %196 = vmatpush1.bf16.msra.mxu0 0
    %197 = vmatprep.subr.bf16.mxu0 0
    %198 = vmatpush1.bf16.msra.mxu0 0
    %199 = vmatprep.subr.bf16.mxu0 0
    %200 = vmatpush1.bf16.msra.mxu0 0
    %201 = vmatprep.subr.bf16.mxu0 0
    %202 = vmatpush1.bf16.msra.mxu0 0
    %203 = vmatprep.mubr.bf16.mxu0 0
    %204 = vmatmul.mubr.bf16.gmra.mrb[0].mxu0 %v59
    %v205 = vpop.f32.mrb[0].mxu0
    %v206 = vadd.f32 %v84, %v205
    %v207 = vpop.f32.mrb[0].mxu0
    %v208 = vadd.f32 %v88, %v207
    %v209 = vpop.f32.mrb[0].mxu0
    %v210 = vadd.f32 %v84, %v209
    %v211 = vpop.f32.mrb[0].mxu0
    %v212 = vadd.f32 %v88, %v211
    %213 = vmatprep.mubr.bf16.mxu0 0
    %214 = vmatmul.mubr.bf16.gmra.mrb[0].mxu0 %v60
    %v215 = vpop.f32.mrb[0].mxu0
    %v216 = vadd.f32 %v84, %v215
    %v217 = vpop.f32.mrb[0].mxu0
    %v218 = vadd.f32 %v88, %v217
    %v219 = vpop.f32.mrb[0].mxu0
    %v220 = vadd.f32 %v84, %v219
    %v221 = vpop.f32.mrb[0].mxu0
    %v222 = vadd.f32 %v88, %v221
    %223 = vmatprep.mubr.bf16.mxu0 0
    %224 = vmatmul.mubr.bf16.gmra.mrb[0].mxu0 %v61
    %v225 = vpop.f32.mrb[0].mxu0
    %v226 = vadd.f32 %v84, %v225
    %v227 = vpop.f32.mrb[0].mxu0
    %v228 = vadd.f32 %v88, %v227
    %v229 = vpop.f32.mrb[0].mxu0
    %v230 = vadd.f32 %v84, %v229
    %v231 = vpop.f32.mrb[0].mxu0
    %v232 = vadd.f32 %v88, %v231
    %233 = vmatprep.mubr.bf16.mxu0 0
    %234 = vmatmul.mubr.bf16.gmra.mrb[0].mxu0 %v62
    %v235 = vpop.f32.mrb[0].mxu0
    %v236 = vadd.f32 %v84, %v235
    %v237 = vpop.f32.mrb[0].mxu0
    %v238 = vadd.f32 %v88, %v237
    %v239 = vpop.f32.mrb[0].mxu0
    %v240 = vadd.f32 %v84, %v239
    %v241 = vpop.f32.mrb[0].mxu0
    %v242 = vadd.f32 %v88, %v241
    %243 = vdwg.mxu0
    %v244 = vpack.c.bf16 %v210, %v206
    %v245 = vpack.c.bf16 %v212, %v208
    %v246 = vpack.c.bf16 %v220, %v216
    %v247 = vpack.c.bf16 %v222, %v218
    %v248 = vpack.c.bf16 %v230, %v226
    %v249 = vpack.c.bf16 %v232, %v228
    %v250 = vpack.c.bf16 %v240, %v236
    %v251 = vpack.c.bf16 %v242, %v238
    %v252 = vld [vmem:[%s4] sm:$0xff]
    %v253 = vld [vmem:[%s4 + $0x8] sm:$0xff]
    %v254 = vld [vmem:[%s4 + $0x10] sm:$0xff]
    %v255 = vld [vmem:[%s4 + $0x18] sm:$0xff]
    %v256 = vld [vmem:[%s4 + $0x20] sm:$0xff]
    %v257 = vld [vmem:[%s4 + $0x28] sm:$0xff]
    %v258 = vld [vmem:[%s4 + $0x30] sm:$0xff]
    %v259 = vld [vmem:[%s4 + $0x38] sm:$0xff]
    %v260 = vld [vmem:[%s4 + $0x40] sm:$0xff]
    %v261 = vld [vmem:[%s4 + $0x48] sm:$0xff]
    %v262 = vld [vmem:[%s4 + $0x50] sm:$0xff]
    %v263 = vld [vmem:[%s4 + $0x58] sm:$0xff]
    %v264 = vld [vmem:[%s4 + $0x60] sm:$0xff]
    %v265 = vld [vmem:[%s4 + $0x68] sm:$0xff]
    %v266 = vld [vmem:[%s4 + $0x70] sm:$0xff]
    %v267 = vld [vmem:[%s4 + $0x78] sm:$0xff]
    %v268 = vld [vmem:[%s4 + $0x80] sm:$0xff]
    %v269 = vld [vmem:[%s4 + $0x88] sm:$0xff]
    %v270 = vld [vmem:[%s4 + $0x90] sm:$0xff]
    %v271 = vld [vmem:[%s4 + $0x98] sm:$0xff]
    %v272 = vld [vmem:[%s4 + $0xa0] sm:$0xff]
    %v273 = vld [vmem:[%s4 + $0xa8] sm:$0xff]
    %v274 = vld [vmem:[%s4 + $0xb0] sm:$0xff]
    %v275 = vld [vmem:[%s4 + $0xb8] sm:$0xff]
    %v276 = vld [vmem:[%s4 + $0xc0] sm:$0xff]
    %v277 = vld [vmem:[%s4 + $0xc8] sm:$0xff]
    %v278 = vld [vmem:[%s4 + $0xd0] sm:$0xff]
    %v279 = vld [vmem:[%s4 + $0xd8] sm:$0xff]
    %v280 = vld [vmem:[%s4 + $0xe0] sm:$0xff]
    %v281 = vld [vmem:[%s4 + $0xe8] sm:$0xff]
    %v282 = vld [vmem:[%s4 + $0xf0] sm:$0xff]
    %v283 = vld [vmem:[%s4 + $0xf8] sm:$0xff]
    %v284 = vld [vmem:[%s4 + $0x100] sm:$0xff]
    %v285 = vld [vmem:[%s4 + $0x108] sm:$0xff]
    %v286 = vld [vmem:[%s4 + $0x110] sm:$0xff]
    %v287 = vld [vmem:[%s4 + $0x118] sm:$0xff]
    %v288 = vld [vmem:[%s4 + $0x120] sm:$0xff]
    %v289 = vld [vmem:[%s4 + $0x128] sm:$0xff]
    %v290 = vld [vmem:[%s4 + $0x130] sm:$0xff]
    %v291 = vld [vmem:[%s4 + $0x138] sm:$0xff]
    %v292 = vld [vmem:[%s4 + $0x140] sm:$0xff]
    %v293 = vld [vmem:[%s4 + $0x148] sm:$0xff]
    %v294 = vld [vmem:[%s4 + $0x150] sm:$0xff]
    %v295 = vld [vmem:[%s4 + $0x158] sm:$0xff]
    %v296 = vld [vmem:[%s4 + $0x160] sm:$0xff]
    %v297 = vld [vmem:[%s4 + $0x168] sm:$0xff]
    %v298 = vld [vmem:[%s4 + $0x170] sm:$0xff]
    %v299 = vld [vmem:[%s4 + $0x178] sm:$0xff]
    %v300 = vld [vmem:[%s4 + $0x180] sm:$0xff]
    %v301 = vld [vmem:[%s4 + $0x188] sm:$0xff]
    %v302 = vld [vmem:[%s4 + $0x190] sm:$0xff]
    %v303 = vld [vmem:[%s4 + $0x198] sm:$0xff]
    %v304 = vld [vmem:[%s4 + $0x1a0] sm:$0xff]
    %v305 = vld [vmem:[%s4 + $0x1a8] sm:$0xff]
    %v306 = vld [vmem:[%s4 + $0x1b0] sm:$0xff]
    %v307 = vld [vmem:[%s4 + $0x1b8] sm:$0xff]
    %v308 = vld [vmem:[%s4 + $0x1c0] sm:$0xff]
    %v309 = vld [vmem:[%s4 + $0x1c8] sm:$0xff]
    %v310 = vld [vmem:[%s4 + $0x1d0] sm:$0xff]
    %v311 = vld [vmem:[%s4 + $0x1d8] sm:$0xff]
    %v312 = vld [vmem:[%s4 + $0x1e0] sm:$0xff]
    %v313 = vld [vmem:[%s4 + $0x1e8] sm:$0xff]
    %v314 = vld [vmem:[%s4 + $0x1f0] sm:$0xff]
    %v315 = vld [vmem:[%s4 + $0x1f8] sm:$0xff]
    %v316 = vld [vmem:[%s4 + $0x200] sm:$0xff]
    %v317 = vld [vmem:[%s4 + $0x208] sm:$0xff]
    %v318 = vld [vmem:[%s4 + $0x210] sm:$0xff]
    %v319 = vld [vmem:[%s4 + $0x218] sm:$0xff]
    %v320 = vld [vmem:[%s4 + $0x220] sm:$0xff]
    %v321 = vld [vmem:[%s4 + $0x228] sm:$0xff]
    %v322 = vld [vmem:[%s4 + $0x230] sm:$0xff]
    %v323 = vld [vmem:[%s4 + $0x238] sm:$0xff]
    %v324 = vld [vmem:[%s4 + $0x240] sm:$0xff]
    %v325 = vld [vmem:[%s4 + $0x248] sm:$0xff]
    %v326 = vld [vmem:[%s4 + $0x250] sm:$0xff]
    %v327 = vld [vmem:[%s4 + $0x258] sm:$0xff]
    %v328 = vld [vmem:[%s4 + $0x260] sm:$0xff]
    %v329 = vld [vmem:[%s4 + $0x268] sm:$0xff]
    %v330 = vld [vmem:[%s4 + $0x270] sm:$0xff]
    %v331 = vld [vmem:[%s4 + $0x278] sm:$0xff]
    %v332 = vld [vmem:[%s4 + $0x280] sm:$0xff]
    %v333 = vld [vmem:[%s4 + $0x288] sm:$0xff]
    %v334 = vld [vmem:[%s4 + $0x290] sm:$0xff]
    %v335 = vld [vmem:[%s4 + $0x298] sm:$0xff]
    %v336 = vld [vmem:[%s4 + $0x2a0] sm:$0xff]
    %v337 = vld [vmem:[%s4 + $0x2a8] sm:$0xff]
    %v338 = vld [vmem:[%s4 + $0x2b0] sm:$0xff]
    %v339 = vld [vmem:[%s4 + $0x2b8] sm:$0xff]
    %v340 = vld [vmem:[%s4 + $0x2c0] sm:$0xff]
    %v341 = vld [vmem:[%s4 + $0x2c8] sm:$0xff]
    %v342 = vld [vmem:[%s4 + $0x2d0] sm:$0xff]
    %v343 = vld [vmem:[%s4 + $0x2d8] sm:$0xff]
    %v344 = vld [vmem:[%s4 + $0x2e0] sm:$0xff]
    %v345 = vld [vmem:[%s4 + $0x2e8] sm:$0xff]
    %v346 = vld [vmem:[%s4 + $0x2f0] sm:$0xff]
    %v347 = vld [vmem:[%s4 + $0x2f8] sm:$0xff]
    %v348 = vld [vmem:[%s4 + $0x300] sm:$0xff]
    %v349 = vld [vmem:[%s4 + $0x308] sm:$0xff]
    %v350 = vld [vmem:[%s4 + $0x310] sm:$0xff]
    %v351 = vld [vmem:[%s4 + $0x318] sm:$0xff]
    %v352 = vld [vmem:[%s4 + $0x320] sm:$0xff]
    %v353 = vld [vmem:[%s4 + $0x328] sm:$0xff]
    %v354 = vld [vmem:[%s4 + $0x330] sm:$0xff]
    %v355 = vld [vmem:[%s4 + $0x338] sm:$0xff]
    %v356 = vld [vmem:[%s4 + $0x340] sm:$0xff]
    %v357 = vld [vmem:[%s4 + $0x348] sm:$0xff]
    %v358 = vld [vmem:[%s4 + $0x350] sm:$0xff]
    %v359 = vld [vmem:[%s4 + $0x358] sm:$0xff]
    %v360 = vld [vmem:[%s4 + $0x360] sm:$0xff]
    %v361 = vld [vmem:[%s4 + $0x368] sm:$0xff]
    %v362 = vld [vmem:[%s4 + $0x370] sm:$0xff]
    %v363 = vld [vmem:[%s4 + $0x378] sm:$0xff]
    %v364 = vld [vmem:[%s4 + $0x380] sm:$0xff]
    %v365 = vld [vmem:[%s4 + $0x388] sm:$0xff]
    %v366 = vld [vmem:[%s4 + $0x390] sm:$0xff]
    %v367 = vld [vmem:[%s4 + $0x398] sm:$0xff]
    %v368 = vld [vmem:[%s4 + $0x3a0] sm:$0xff]
    %v369 = vld [vmem:[%s4 + $0x3a8] sm:$0xff]
    %v370 = vld [vmem:[%s4 + $0x3b0] sm:$0xff]
    %v371 = vld [vmem:[%s4 + $0x3b8] sm:$0xff]
    %v372 = vld [vmem:[%s4 + $0x3c0] sm:$0xff]
    %v373 = vld [vmem:[%s4 + $0x3c8] sm:$0xff]
    %v374 = vld [vmem:[%s4 + $0x3d0] sm:$0xff]
    %v375 = vld [vmem:[%s4 + $0x3d8] sm:$0xff]
    %v376 = vld [vmem:[%s4 + $0x3e0] sm:$0xff]
    %v377 = vld [vmem:[%s4 + $0x3e8] sm:$0xff]
    %v378 = vld [vmem:[%s4 + $0x3f0] sm:$0xff]
    %v379 = vld [vmem:[%s4 + $0x3f8] sm:$0xff]
    %v508 = vunpack.c.l.b16 %v252
    %v509 = vunpack.c.h.b16 %v252
    %v510 = vunpack.c.l.b16 %v253
    %v511 = vunpack.c.h.b16 %v253
    %v512 = vunpack.c.l.b16 %v254
    %v513 = vunpack.c.h.b16 %v254
    %v514 = vunpack.c.l.b16 %v255
    %v515 = vunpack.c.h.b16 %v255
    %v516 = vunpack.c.l.b16 %v256
    %v517 = vunpack.c.h.b16 %v256
    %v518 = vunpack.c.l.b16 %v257
    %v519 = vunpack.c.h.b16 %v257
    %v520 = vunpack.c.l.b16 %v258
    %v521 = vunpack.c.h.b16 %v258
    %v522 = vunpack.c.l.b16 %v259
    %v523 = vunpack.c.h.b16 %v259
    %v524 = vunpack.c.l.b16 %v260
    %v525 = vunpack.c.h.b16 %v260
    %v526 = vunpack.c.l.b16 %v261
    %v527 = vunpack.c.h.b16 %v261
    %v528 = vunpack.c.l.b16 %v262
    %v529 = vunpack.c.h.b16 %v262
    %v530 = vunpack.c.l.b16 %v263
    %v531 = vunpack.c.h.b16 %v263
    %v532 = vunpack.c.l.b16 %v264
    %v533 = vunpack.c.h.b16 %v264
    %v534 = vunpack.c.l.b16 %v265
    %v535 = vunpack.c.h.b16 %v265
    %v536 = vunpack.c.l.b16 %v266
    %v537 = vunpack.c.h.b16 %v266
    %v538 = vunpack.c.l.b16 %v267
    %v539 = vunpack.c.h.b16 %v267
    %v540 = vunpack.c.l.b16 %v268
    %v541 = vunpack.c.h.b16 %v268
    %v542 = vunpack.c.l.b16 %v269
    %v543 = vunpack.c.h.b16 %v269
    %v544 = vunpack.c.l.b16 %v270
    %v545 = vunpack.c.h.b16 %v270
    %v546 = vunpack.c.l.b16 %v271
    %v547 = vunpack.c.h.b16 %v271
    %v548 = vunpack.c.l.b16 %v272
    %v549 = vunpack.c.h.b16 %v272
    %v550 = vunpack.c.l.b16 %v273
    %v551 = vunpack.c.h.b16 %v273
    %v552 = vunpack.c.l.b16 %v274
    %v553 = vunpack.c.h.b16 %v274
    %v554 = vunpack.c.l.b16 %v275
    %v555 = vunpack.c.h.b16 %v275
    %v556 = vunpack.c.l.b16 %v276
    %v557 = vunpack.c.h.b16 %v276
    %v558 = vunpack.c.l.b16 %v277
    %v559 = vunpack.c.h.b16 %v277
    %v560 = vunpack.c.l.b16 %v278
    %v561 = vunpack.c.h.b16 %v278
    %v562 = vunpack.c.l.b16 %v279
    %v563 = vunpack.c.h.b16 %v279
    %v564 = vunpack.c.l.b16 %v280
    %v565 = vunpack.c.h.b16 %v280
    %v566 = vunpack.c.l.b16 %v281
    %v567 = vunpack.c.h.b16 %v281
    %v568 = vunpack.c.l.b16 %v282
    %v569 = vunpack.c.h.b16 %v282
    %v570 = vunpack.c.l.b16 %v283
    %v571 = vunpack.c.h.b16 %v283
    %v572 = vunpack.c.l.b16 %v284
    %v573 = vunpack.c.h.b16 %v284
    %v574 = vunpack.c.l.b16 %v285
    %v575 = vunpack.c.h.b16 %v285
    %v576 = vunpack.c.l.b16 %v286
    %v577 = vunpack.c.h.b16 %v286
    %v578 = vunpack.c.l.b16 %v287
    %v579 = vunpack.c.h.b16 %v287
    %v580 = vunpack.c.l.b16 %v288
    %v581 = vunpack.c.h.b16 %v288
    %v582 = vunpack.c.l.b16 %v289
    %v583 = vunpack.c.h.b16 %v289
    %v584 = vunpack.c.l.b16 %v290
    %v585 = vunpack.c.h.b16 %v290
    %v586 = vunpack.c.l.b16 %v291
    %v587 = vunpack.c.h.b16 %v291
    %v588 = vunpack.c.l.b16 %v292
    %v589 = vunpack.c.h.b16 %v292
    %v590 = vunpack.c.l.b16 %v293
    %v591 = vunpack.c.h.b16 %v293
    %v592 = vunpack.c.l.b16 %v294
    %v593 = vunpack.c.h.b16 %v294
    %v594 = vunpack.c.l.b16 %v295
    %v595 = vunpack.c.h.b16 %v295
    %v596 = vunpack.c.l.b16 %v296
    %v597 = vunpack.c.h.b16 %v296
    %v598 = vunpack.c.l.b16 %v297
    %v599 = vunpack.c.h.b16 %v297
    %v600 = vunpack.c.l.b16 %v298
    %v601 = vunpack.c.h.b16 %v298
    %v602 = vunpack.c.l.b16 %v299
    %v603 = vunpack.c.h.b16 %v299
    %v604 = vunpack.c.l.b16 %v300
    %v605 = vunpack.c.h.b16 %v300
    %v606 = vunpack.c.l.b16 %v301
    %v607 = vunpack.c.h.b16 %v301
    %v608 = vunpack.c.l.b16 %v302
    %v609 = vunpack.c.h.b16 %v302
    %v610 = vunpack.c.l.b16 %v303
    %v611 = vunpack.c.h.b16 %v303
    %v612 = vunpack.c.l.b16 %v304
    %v613 = vunpack.c.h.b16 %v304
    %v614 = vunpack.c.l.b16 %v305
    %v615 = vunpack.c.h.b16 %v305
    %v616 = vunpack.c.l.b16 %v306
    %v617 = vunpack.c.h.b16 %v306
    %v618 = vunpack.c.l.b16 %v307
    %v619 = vunpack.c.h.b16 %v307
    %v620 = vunpack.c.l.b16 %v308
    %v621 = vunpack.c.h.b16 %v308
    %v622 = vunpack.c.l.b16 %v309
    %v623 = vunpack.c.h.b16 %v309
    %v624 = vunpack.c.l.b16 %v310
    %v625 = vunpack.c.h.b16 %v310
    %v626 = vunpack.c.l.b16 %v311
    %v627 = vunpack.c.h.b16 %v311
    %v628 = vunpack.c.l.b16 %v312
    %v629 = vunpack.c.h.b16 %v312
    %v630 = vunpack.c.l.b16 %v313
    %v631 = vunpack.c.h.b16 %v313
    %v632 = vunpack.c.l.b16 %v314
    %v633 = vunpack.c.h.b16 %v314
    %v634 = vunpack.c.l.b16 %v315
    %v635 = vunpack.c.h.b16 %v315
    %v636 = vunpack.c.l.b16 %v316
    %v637 = vunpack.c.h.b16 %v316
    %v638 = vunpack.c.l.b16 %v317
    %v639 = vunpack.c.h.b16 %v317
    %v640 = vunpack.c.l.b16 %v318
    %v641 = vunpack.c.h.b16 %v318
    %v642 = vunpack.c.l.b16 %v319
    %v643 = vunpack.c.h.b16 %v319
    %v644 = vunpack.c.l.b16 %v320
    %v645 = vunpack.c.h.b16 %v320
    %v646 = vunpack.c.l.b16 %v321
    %v647 = vunpack.c.h.b16 %v321
    %v648 = vunpack.c.l.b16 %v322
    %v649 = vunpack.c.h.b16 %v322
    %v650 = vunpack.c.l.b16 %v323
    %v651 = vunpack.c.h.b16 %v323
    %v652 = vunpack.c.l.b16 %v324
    %v653 = vunpack.c.h.b16 %v324
    %v654 = vunpack.c.l.b16 %v325
    %v655 = vunpack.c.h.b16 %v325
    %v656 = vunpack.c.l.b16 %v326
    %v657 = vunpack.c.h.b16 %v326
    %v658 = vunpack.c.l.b16 %v327
    %v659 = vunpack.c.h.b16 %v327
    %v660 = vunpack.c.l.b16 %v328
    %v661 = vunpack.c.h.b16 %v328
    %v662 = vunpack.c.l.b16 %v329
    %v663 = vunpack.c.h.b16 %v329
    %v664 = vunpack.c.l.b16 %v330
    %v665 = vunpack.c.h.b16 %v330
    %v666 = vunpack.c.l.b16 %v331
    %v667 = vunpack.c.h.b16 %v331
    %v668 = vunpack.c.l.b16 %v332
    %v669 = vunpack.c.h.b16 %v332
    %v670 = vunpack.c.l.b16 %v333
    %v671 = vunpack.c.h.b16 %v333
    %v672 = vunpack.c.l.b16 %v334
    %v673 = vunpack.c.h.b16 %v334
    %v674 = vunpack.c.l.b16 %v335
    %v675 = vunpack.c.h.b16 %v335
    %v676 = vunpack.c.l.b16 %v336
    %v677 = vunpack.c.h.b16 %v336
    %v678 = vunpack.c.l.b16 %v337
    %v679 = vunpack.c.h.b16 %v337
    %v680 = vunpack.c.l.b16 %v338
    %v681 = vunpack.c.h.b16 %v338
    %v682 = vunpack.c.l.b16 %v339
    %v683 = vunpack.c.h.b16 %v339
    %v684 = vunpack.c.l.b16 %v340
    %v685 = vunpack.c.h.b16 %v340
    %v686 = vunpack.c.l.b16 %v341
    %v687 = vunpack.c.h.b16 %v341
    %v688 = vunpack.c.l.b16 %v342
    %v689 = vunpack.c.h.b16 %v342
    %v690 = vunpack.c.l.b16 %v343
    %v691 = vunpack.c.h.b16 %v343
    %v692 = vunpack.c.l.b16 %v344
    %v693 = vunpack.c.h.b16 %v344
    %v694 = vunpack.c.l.b16 %v345
    %v695 = vunpack.c.h.b16 %v345
    %v696 = vunpack.c.l.b16 %v346
    %v697 = vunpack.c.h.b16 %v346
    %v698 = vunpack.c.l.b16 %v347
    %v699 = vunpack.c.h.b16 %v347
    %v700 = vunpack.c.l.b16 %v348
    %v701 = vunpack.c.h.b16 %v348
    %v702 = vunpack.c.l.b16 %v349
    %v703 = vunpack.c.h.b16 %v349
    %v704 = vunpack.c.l.b16 %v350
    %v705 = vunpack.c.h.b16 %v350
    %v706 = vunpack.c.l.b16 %v351
    %v707 = vunpack.c.h.b16 %v351
    %v708 = vunpack.c.l.b16 %v352
    %v709 = vunpack.c.h.b16 %v352
    %v710 = vunpack.c.l.b16 %v353
    %v711 = vunpack.c.h.b16 %v353
    %v712 = vunpack.c.l.b16 %v354
    %v713 = vunpack.c.h.b16 %v354
    %v714 = vunpack.c.l.b16 %v355
    %v715 = vunpack.c.h.b16 %v355
    %v716 = vunpack.c.l.b16 %v356
    %v717 = vunpack.c.h.b16 %v356
    %v718 = vunpack.c.l.b16 %v357
    %v719 = vunpack.c.h.b16 %v357
    %v720 = vunpack.c.l.b16 %v358
    %v721 = vunpack.c.h.b16 %v358
    %v722 = vunpack.c.l.b16 %v359
    %v723 = vunpack.c.h.b16 %v359
    %v724 = vunpack.c.l.b16 %v360
    %v725 = vunpack.c.h.b16 %v360
    %v726 = vunpack.c.l.b16 %v361
    %v727 = vunpack.c.h.b16 %v361
    %v728 = vunpack.c.l.b16 %v362
    %v729 = vunpack.c.h.b16 %v362
    %v730 = vunpack.c.l.b16 %v363
    %v731 = vunpack.c.h.b16 %v363
    %v732 = vunpack.c.l.b16 %v364
    %v733 = vunpack.c.h.b16 %v364
    %v734 = vunpack.c.l.b16 %v365
    %v735 = vunpack.c.h.b16 %v365
    %v736 = vunpack.c.l.b16 %v366
    %v737 = vunpack.c.h.b16 %v366
    %v738 = vunpack.c.l.b16 %v367
    %v739 = vunpack.c.h.b16 %v367
    %v740 = vunpack.c.l.b16 %v368
    %v741 = vunpack.c.h.b16 %v368
    %v742 = vunpack.c.l.b16 %v369
    %v743 = vunpack.c.h.b16 %v369
    %v744 = vunpack.c.l.b16 %v370
    %v745 = vunpack.c.h.b16 %v370
    %v746 = vunpack.c.l.b16 %v371
    %v747 = vunpack.c.h.b16 %v371
    %v748 = vunpack.c.l.b16 %v372
    %v749 = vunpack.c.h.b16 %v372
    %v750 = vunpack.c.l.b16 %v373
    %v751 = vunpack.c.h.b16 %v373
    %v752 = vunpack.c.l.b16 %v374
    %v753 = vunpack.c.h.b16 %v374
    %v754 = vunpack.c.l.b16 %v375
    %v755 = vunpack.c.h.b16 %v375
    %v756 = vunpack.c.l.b16 %v376
    %v757 = vunpack.c.h.b16 %v376
    %v758 = vunpack.c.l.b16 %v377
    %v759 = vunpack.c.h.b16 %v377
    %v760 = vunpack.c.l.b16 %v378
    %v761 = vunpack.c.h.b16 %v378
    %v762 = vunpack.c.l.b16 %v379
    %v763 = vunpack.c.h.b16 %v379
    %v764 = vpack.c.b16 %v516, %v508
    %v765 = vpack.c.b16 %v517, %v509
    %v766 = vpack.c.b16 %v518, %v510
    %v767 = vpack.c.b16 %v519, %v511
    %v768 = vpack.c.b16 %v520, %v512
    %v769 = vpack.c.b16 %v521, %v513
    %v770 = vpack.c.b16 %v522, %v514
    %v771 = vpack.c.b16 %v523, %v515
    %v772 = vpack.c.b16 %v532, %v524
    %v773 = vpack.c.b16 %v533, %v525
    %v774 = vpack.c.b16 %v534, %v526
    %v775 = vpack.c.b16 %v535, %v527
    %v776 = vpack.c.b16 %v536, %v528
    %v777 = vpack.c.b16 %v537, %v529
    %v778 = vpack.c.b16 %v538, %v530
    %v779 = vpack.c.b16 %v539, %v531
    %v780 = vpack.c.b16 %v548, %v540
    %v781 = vpack.c.b16 %v549, %v541
    %v782 = vpack.c.b16 %v550, %v542
    %v783 = vpack.c.b16 %v551, %v543
    %v784 = vpack.c.b16 %v552, %v544
    %v785 = vpack.c.b16 %v553, %v545
    %v786 = vpack.c.b16 %v554, %v546
    %v787 = vpack.c.b16 %v555, %v547
    %v788 = vpack.c.b16 %v564, %v556
    %v789 = vpack.c.b16 %v565, %v557
    %v790 = vpack.c.b16 %v566, %v558
    %v791 = vpack.c.b16 %v567, %v559
    %v792 = vpack.c.b16 %v568, %v560
    %v793 = vpack.c.b16 %v569, %v561
    %v794 = vpack.c.b16 %v570, %v562
    %v795 = vpack.c.b16 %v571, %v563
    %v796 = vpack.c.b16 %v580, %v572
    %v797 = vpack.c.b16 %v581, %v573
    %v798 = vpack.c.b16 %v582, %v574
    %v799 = vpack.c.b16 %v583, %v575
    %v800 = vpack.c.b16 %v584, %v576
    %v801 = vpack.c.b16 %v585, %v577
    %v802 = vpack.c.b16 %v586, %v578
    %v803 = vpack.c.b16 %v587, %v579
    %v804 = vpack.c.b16 %v596, %v588
    %v805 = vpack.c.b16 %v597, %v589
    %v806 = vpack.c.b16 %v598, %v590
    %v807 = vpack.c.b16 %v599, %v591
    %v808 = vpack.c.b16 %v600, %v592
    %v809 = vpack.c.b16 %v601, %v593
    %v810 = vpack.c.b16 %v602, %v594
    %v811 = vpack.c.b16 %v603, %v595
    %v812 = vpack.c.b16 %v612, %v604
    %v813 = vpack.c.b16 %v613, %v605
    %v814 = vpack.c.b16 %v614, %v606
    %v815 = vpack.c.b16 %v615, %v607
    %v816 = vpack.c.b16 %v616, %v608
    %v817 = vpack.c.b16 %v617, %v609
    %v818 = vpack.c.b16 %v618, %v610
    %v819 = vpack.c.b16 %v619, %v611
    %v820 = vpack.c.b16 %v628, %v620
    %v821 = vpack.c.b16 %v629, %v621
    %v822 = vpack.c.b16 %v630, %v622
    %v823 = vpack.c.b16 %v631, %v623
    %v824 = vpack.c.b16 %v632, %v624
    %v825 = vpack.c.b16 %v633, %v625
    %v826 = vpack.c.b16 %v634, %v626
    %v827 = vpack.c.b16 %v635, %v627
    %v828 = vpack.c.b16 %v644, %v636
    %v829 = vpack.c.b16 %v645, %v637
    %v830 = vpack.c.b16 %v646, %v638
    %v831 = vpack.c.b16 %v647, %v639
    %v832 = vpack.c.b16 %v648, %v640
    %v833 = vpack.c.b16 %v649, %v641
    %v834 = vpack.c.b16 %v650, %v642
    %v835 = vpack.c.b16 %v651, %v643
    %v836 = vpack.c.b16 %v660, %v652
    %v837 = vpack.c.b16 %v661, %v653
    %v838 = vpack.c.b16 %v662, %v654
    %v839 = vpack.c.b16 %v663, %v655
    %v840 = vpack.c.b16 %v664, %v656
    %v841 = vpack.c.b16 %v665, %v657
    %v842 = vpack.c.b16 %v666, %v658
    %v843 = vpack.c.b16 %v667, %v659
    %v844 = vpack.c.b16 %v676, %v668
    %v845 = vpack.c.b16 %v677, %v669
    %v846 = vpack.c.b16 %v678, %v670
    %v847 = vpack.c.b16 %v679, %v671
    %v848 = vpack.c.b16 %v680, %v672
    %v849 = vpack.c.b16 %v681, %v673
    %v850 = vpack.c.b16 %v682, %v674
    %v851 = vpack.c.b16 %v683, %v675
    %v852 = vpack.c.b16 %v692, %v684
    %v853 = vpack.c.b16 %v693, %v685
    %v854 = vpack.c.b16 %v694, %v686
    %v855 = vpack.c.b16 %v695, %v687
    %v856 = vpack.c.b16 %v696, %v688
    %v857 = vpack.c.b16 %v697, %v689
    %v858 = vpack.c.b16 %v698, %v690
    %v859 = vpack.c.b16 %v699, %v691
    %v860 = vpack.c.b16 %v708, %v700
    %v861 = vpack.c.b16 %v709, %v701
    %v862 = vpack.c.b16 %v710, %v702
    %v863 = vpack.c.b16 %v711, %v703
    %v864 = vpack.c.b16 %v712, %v704
    %v865 = vpack.c.b16 %v713, %v705
    %v866 = vpack.c.b16 %v714, %v706
    %v867 = vpack.c.b16 %v715, %v707
    %v868 = vpack.c.b16 %v724, %v716
    %v869 = vpack.c.b16 %v725, %v717
    %v870 = vpack.c.b16 %v726, %v718
    %v871 = vpack.c.b16 %v727, %v719
    %v872 = vpack.c.b16 %v728, %v720
    %v873 = vpack.c.b16 %v729, %v721
    %v874 = vpack.c.b16 %v730, %v722
    %v875 = vpack.c.b16 %v731, %v723
    %v876 = vpack.c.b16 %v740, %v732
    %v877 = vpack.c.b16 %v741, %v733
    %v878 = vpack.c.b16 %v742, %v734
    %v879 = vpack.c.b16 %v743, %v735
    %v880 = vpack.c.b16 %v744, %v736
    %v881 = vpack.c.b16 %v745, %v737
    %v882 = vpack.c.b16 %v746, %v738
    %v883 = vpack.c.b16 %v747, %v739
    %v884 = vpack.c.b16 %v756, %v748
    %v885 = vpack.c.b16 %v757, %v749
    %v886 = vpack.c.b16 %v758, %v750
    %v887 = vpack.c.b16 %v759, %v751
    %v888 = vpack.c.b16 %v760, %v752
    %v889 = vpack.c.b16 %v761, %v753
    %v890 = vpack.c.b16 %v762, %v754
    %v891 = vpack.c.b16 %v763, %v755
    %1020 = vmatprep.subr.bf16.mxu0 %v765
    %1021 = vmatpush1.bf16.msra.mxu0 %v764
    %1022 = vmatprep.subr.bf16.mxu0 %v773
    %1023 = vmatpush1.bf16.msra.mxu0 %v772
    %1024 = vmatprep.subr.bf16.mxu0 %v781
    %1025 = vmatpush1.bf16.msra.mxu0 %v780
    %1026 = vmatprep.subr.bf16.mxu0 %v789
    %1027 = vmatpush1.bf16.msra.mxu0 %v788
    %1028 = vmatprep.subr.bf16.mxu0 %v797
    %1029 = vmatpush1.bf16.msra.mxu0 %v796
    %1030 = vmatprep.subr.bf16.mxu0 %v805
    %1031 = vmatpush1.bf16.msra.mxu0 %v804
    %1032 = vmatprep.subr.bf16.mxu0 %v813
    %1033 = vmatpush1.bf16.msra.mxu0 %v812
    %1034 = vmatprep.subr.bf16.mxu0 %v821
    %1035 = vmatpush1.bf16.msra.mxu0 %v820
    %1036 = vmatprep.subr.bf16.mxu0 %v829
    %1037 = vmatpush1.bf16.msra.mxu0 %v828
    %1038 = vmatprep.subr.bf16.mxu0 %v837
    %1039 = vmatpush1.bf16.msra.mxu0 %v836
    %1040 = vmatprep.subr.bf16.mxu0 %v845
    %1041 = vmatpush1.bf16.msra.mxu0 %v844
    %1042 = vmatprep.subr.bf16.mxu0 %v853
    %1043 = vmatpush1.bf16.msra.mxu0 %v852
    %1044 = vmatprep.subr.bf16.mxu0 %v861
    %1045 = vmatpush1.bf16.msra.mxu0 %v860
    %1046 = vmatprep.subr.bf16.mxu0 %v869
    %1047 = vmatpush1.bf16.msra.mxu0 %v868
    %1048 = vmatprep.subr.bf16.mxu0 %v877
    %1049 = vmatpush1.bf16.msra.mxu0 %v876
    %1050 = vmatprep.subr.bf16.mxu0 %v885
    %1051 = vmatpush1.bf16.msra.mxu0 %v884
    %1052 = vmatprep.mubr.bf16.mxu0 %v245
    %1053 = vmatmul.mubr.bf16.gmra.mrb[0].mxu0 %v244
    %v1054 = vpop.f32.mrb[0].mxu0
    %v1055 = vadd.f32 0.0, %v1054
    %v1056 = vpop.f32.mrb[0].mxu0
    %v1057 = vadd.f32 0.0, %v1056
    %v1058 = vpop.f32.mrb[0].mxu0
    %v1059 = vadd.f32 0.0, %v1058
    %v1060 = vpop.f32.mrb[0].mxu0
    %v1061 = vadd.f32 0.0, %v1060
    %1062 = vmatprep.mubr.bf16.mxu0 %v247
    %1063 = vmatmul.mubr.bf16.gmra.mrb[0].mxu0 %v246
    %v1064 = vpop.f32.mrb[0].mxu0
    %v1065 = vadd.f32 0.0, %v1064
    %v1066 = vpop.f32.mrb[0].mxu0
    %v1067 = vadd.f32 0.0, %v1066
    %v1068 = vpop.f32.mrb[0].mxu0
    %v1069 = vadd.f32 0.0, %v1068
    %v1070 = vpop.f32.mrb[0].mxu0
    %v1071 = vadd.f32 0.0, %v1070
    %1072 = vmatprep.mubr.bf16.mxu0 %v249
    %1073 = vmatmul.mubr.bf16.gmra.mrb[0].mxu0 %v248
    %v1074 = vpop.f32.mrb[0].mxu0
    %v1075 = vadd.f32 0.0, %v1074
    %v1076 = vpop.f32.mrb[0].mxu0
    %v1077 = vadd.f32 0.0, %v1076
    %v1078 = vpop.f32.mrb[0].mxu0
    %v1079 = vadd.f32 0.0, %v1078
    %v1080 = vpop.f32.mrb[0].mxu0
    %v1081 = vadd.f32 0.0, %v1080
    %1082 = vmatprep.mubr.bf16.mxu0 %v251
    %1083 = vmatmul.mubr.bf16.gmra.mrb[0].mxu0 %v250
    %v1084 = vpop.f32.mrb[0].mxu0
    %v1085 = vadd.f32 0.0, %v1084
    %v1086 = vpop.f32.mrb[0].mxu0
    %v1087 = vadd.f32 0.0, %v1086
    %v1088 = vpop.f32.mrb[0].mxu0
    %v1089 = vadd.f32 0.0, %v1088
    %v1090 = vpop.f32.mrb[0].mxu0
    %v1091 = vadd.f32 0.0, %v1090
    %1092 = vdwg.mxu0
    %1093 = vmatprep.subr.bf16.mxu0 %v767
    %1094 = vmatpush1.bf16.msra.mxu0 %v766
    %1095 = vmatprep.subr.bf16.mxu0 %v775
    %1096 = vmatpush1.bf16.msra.mxu0 %v774
    %1097 = vmatprep.subr.bf16.mxu0 %v783
    %1098 = vmatpush1.bf16.msra.mxu0 %v782
    %1099 = vmatprep.subr.bf16.mxu0 %v791
    %1100 = vmatpush1.bf16.msra.mxu0 %v790
    %1101 = vmatprep.subr.bf16.mxu0 %v799
    %1102 = vmatpush1.bf16.msra.mxu0 %v798
    %1103 = vmatprep.subr.bf16.mxu0 %v807
    %1104 = vmatpush1.bf16.msra.mxu0 %v806
    %1105 = vmatprep.subr.bf16.mxu0 %v815
    %1106 = vmatpush1.bf16.msra.mxu0 %v814
    %1107 = vmatprep.subr.bf16.mxu0 %v823
    %1108 = vmatpush1.bf16.msra.mxu0 %v822
    %1109 = vmatprep.subr.bf16.mxu0 %v831
    %1110 = vmatpush1.bf16.msra.mxu0 %v830
    %1111 = vmatprep.subr.bf16.mxu0 %v839
    %1112 = vmatpush1.bf16.msra.mxu0 %v838
    %1113 = vmatprep.subr.bf16.mxu0 %v847
    %1114 = vmatpush1.bf16.msra.mxu0 %v846
    %1115 = vmatprep.subr.bf16.mxu0 %v855
    %1116 = vmatpush1.bf16.msra.mxu0 %v854
    %1117 = vmatprep.subr.bf16.mxu0 %v863
    %1118 = vmatpush1.bf16.msra.mxu0 %v862
    %1119 = vmatprep.subr.bf16.mxu0 %v871
    %1120 = vmatpush1.bf16.msra.mxu0 %v870
    %1121 = vmatprep.subr.bf16.mxu0 %v879
    %1122 = vmatpush1.bf16.msra.mxu0 %v878
    %1123 = vmatprep.subr.bf16.mxu0 %v887
    %1124 = vmatpush1.bf16.msra.mxu0 %v886
    %1125 = vmatprep.mubr.bf16.mxu0 %v245
    %1126 = vmatmul.mubr.bf16.gmra.mrb[0].mxu0 %v244
    %v1127 = vpop.f32.mrb[0].mxu0
    %v1128 = vadd.f32 0.0, %v1127
    %v1129 = vpop.f32.mrb[0].mxu0
    %v1130 = vadd.f32 0.0, %v1129
    %v1131 = vpop.f32.mrb[0].mxu0
    %v1132 = vadd.f32 0.0, %v1131
    %v1133 = vpop.f32.mrb[0].mxu0
    %v1134 = vadd.f32 0.0, %v1133
    %1135 = vmatprep.mubr.bf16.mxu0 %v247
    %1136 = vmatmul.mubr.bf16.gmra.mrb[0].mxu0 %v246
    %v1137 = vpop.f32.mrb[0].mxu0
    %v1138 = vadd.f32 0.0, %v1137
    %v1139 = vpop.f32.mrb[0].mxu0
    %v1140 = vadd.f32 0.0, %v1139
    %v1141 = vpop.f32.mrb[0].mxu0
    %v1142 = vadd.f32 0.0, %v1141
    %v1143 = vpop.f32.mrb[0].mxu0
    %v1144 = vadd.f32 0.0, %v1143
    %1145 = vmatprep.mubr.bf16.mxu0 %v249
    %1146 = vmatmul.mubr.bf16.gmra.mrb[0].mxu0 %v248
    %v1147 = vpop.f32.mrb[0].mxu0
    %v1148 = vadd.f32 0.0, %v1147
    %v1149 = vpop.f32.mrb[0].mxu0
    %v1150 = vadd.f32 0.0, %v1149
    %v1151 = vpop.f32.mrb[0].mxu0
    %v1152 = vadd.f32 0.0, %v1151
    %v1153 = vpop.f32.mrb[0].mxu0
    %v1154 = vadd.f32 0.0, %v1153
    %1155 = vmatprep.mubr.bf16.mxu0 %v251
    %1156 = vmatmul.mubr.bf16.gmra.mrb[0].mxu0 %v250
    %v1157 = vpop.f32.mrb[0].mxu0
    %v1158 = vadd.f32 0.0, %v1157
    %v1159 = vpop.f32.mrb[0].mxu0
    %v1160 = vadd.f32 0.0, %v1159
    %v1161 = vpop.f32.mrb[0].mxu0
    %v1162 = vadd.f32 0.0, %v1161
    %v1163 = vpop.f32.mrb[0].mxu0
    %v1164 = vadd.f32 0.0, %v1163
    %1165 = vdwg.mxu0
    %1166 = vmatprep.subr.bf16.mxu0 %v769
    %1167 = vmatpush1.bf16.msra.mxu0 %v768
    %1168 = vmatprep.subr.bf16.mxu0 %v777
    %1169 = vmatpush1.bf16.msra.mxu0 %v776
    %1170 = vmatprep.subr.bf16.mxu0 %v785
    %1171 = vmatpush1.bf16.msra.mxu0 %v784
    %1172 = vmatprep.subr.bf16.mxu0 %v793
    %1173 = vmatpush1.bf16.msra.mxu0 %v792
    %1174 = vmatprep.subr.bf16.mxu0 %v801
    %1175 = vmatpush1.bf16.msra.mxu0 %v800
    %1176 = vmatprep.subr.bf16.mxu0 %v809
    %1177 = vmatpush1.bf16.msra.mxu0 %v808
    %1178 = vmatprep.subr.bf16.mxu0 %v817
    %1179 = vmatpush1.bf16.msra.mxu0 %v816
    %1180 = vmatprep.subr.bf16.mxu0 %v825
    %1181 = vmatpush1.bf16.msra.mxu0 %v824
    %1182 = vmatprep.subr.bf16.mxu0 %v833
    %1183 = vmatpush1.bf16.msra.mxu0 %v832
    %1184 = vmatprep.subr.bf16.mxu0 %v841
    %1185 = vmatpush1.bf16.msra.mxu0 %v840
    %1186 = vmatprep.subr.bf16.mxu0 %v849
    %1187 = vmatpush1.bf16.msra.mxu0 %v848
    %1188 = vmatprep.subr.bf16.mxu0 %v857
    %1189 = vmatpush1.bf16.msra.mxu0 %v856
    %1190 = vmatprep.subr.bf16.mxu0 %v865
    %1191 = vmatpush1.bf16.msra.mxu0 %v864
    %1192 = vmatprep.subr.bf16.mxu0 %v873
    %1193 = vmatpush1.bf16.msra.mxu0 %v872
    %1194 = vmatprep.subr.bf16.mxu0 %v881
    %1195 = vmatpush1.bf16.msra.mxu0 %v880
    %1196 = vmatprep.subr.bf16.mxu0 %v889
    %1197 = vmatpush1.bf16.msra.mxu0 %v888
    %1198 = vmatprep.mubr.bf16.mxu0 %v245
    %1199 = vmatmul.mubr.bf16.gmra.mrb[0].mxu0 %v244
    %v1200 = vpop.f32.mrb[0].mxu0
    %v1201 = vadd.f32 0.0, %v1200
    %v1202 = vpop.f32.mrb[0].mxu0
    %v1203 = vadd.f32 0.0, %v1202
    %v1204 = vpop.f32.mrb[0].mxu0
    %v1205 = vadd.f32 0.0, %v1204
    %v1206 = vpop.f32.mrb[0].mxu0
    %v1207 = vadd.f32 0.0, %v1206
    %1208 = vmatprep.mubr.bf16.mxu0 %v247
    %1209 = vmatmul.mubr.bf16.gmra.mrb[0].mxu0 %v246
    %v1210 = vpop.f32.mrb[0].mxu0
    %v1211 = vadd.f32 0.0, %v1210
    %v1212 = vpop.f32.mrb[0].mxu0
    %v1213 = vadd.f32 0.0, %v1212
    %v1214 = vpop.f32.mrb[0].mxu0
    %v1215 = vadd.f32 0.0, %v1214
    %v1216 = vpop.f32.mrb[0].mxu0
    %v1217 = vadd.f32 0.0, %v1216
    %1218 = vmatprep.mubr.bf16.mxu0 %v249
    %1219 = vmatmul.mubr.bf16.gmra.mrb[0].mxu0 %v248
    %v1220 = vpop.f32.mrb[0].mxu0
    %v1221 = vadd.f32 0.0, %v1220
    %v1222 = vpop.f32.mrb[0].mxu0
    %v1223 = vadd.f32 0.0, %v1222
    %v1224 = vpop.f32.mrb[0].mxu0
    %v1225 = vadd.f32 0.0, %v1224
    %v1226 = vpop.f32.mrb[0].mxu0
    %v1227 = vadd.f32 0.0, %v1226
    %1228 = vmatprep.mubr.bf16.mxu0 %v251
    %1229 = vmatmul.mubr.bf16.gmra.mrb[0].mxu0 %v250
    %v1230 = vpop.f32.mrb[0].mxu0
    %v1231 = vadd.f32 0.0, %v1230
    %v1232 = vpop.f32.mrb[0].mxu0
    %v1233 = vadd.f32 0.0, %v1232
    %v1234 = vpop.f32.mrb[0].mxu0
    %v1235 = vadd.f32 0.0, %v1234
    %v1236 = vpop.f32.mrb[0].mxu0
    %v1237 = vadd.f32 0.0, %v1236
    %1238 = vdwg.mxu0
    %1239 = vmatprep.subr.bf16.mxu0 %v771
    %1240 = vmatpush1.bf16.msra.mxu0 %v770
    %1241 = vmatprep.subr.bf16.mxu0 %v779
    %1242 = vmatpush1.bf16.msra.mxu0 %v778
    %1243 = vmatprep.subr.bf16.mxu0 %v787
    %1244 = vmatpush1.bf16.msra.mxu0 %v786
    %1245 = vmatprep.subr.bf16.mxu0 %v795
    %1246 = vmatpush1.bf16.msra.mxu0 %v794
    %1247 = vmatprep.subr.bf16.mxu0 %v803
    %1248 = vmatpush1.bf16.msra.mxu0 %v802
    %1249 = vmatprep.subr.bf16.mxu0 %v811
    %1250 = vmatpush1.bf16.msra.mxu0 %v810
    %1251 = vmatprep.subr.bf16.mxu0 %v819
    %1252 = vmatpush1.bf16.msra.mxu0 %v818
    %1253 = vmatprep.subr.bf16.mxu0 %v827
    %1254 = vmatpush1.bf16.msra.mxu0 %v826
    %1255 = vmatprep.subr.bf16.mxu0 %v835
    %1256 = vmatpush1.bf16.msra.mxu0 %v834
    %1257 = vmatprep.subr.bf16.mxu0 %v843
    %1258 = vmatpush1.bf16.msra.mxu0 %v842
    %1259 = vmatprep.subr.bf16.mxu0 %v851
    %1260 = vmatpush1.bf16.msra.mxu0 %v850
    %1261 = vmatprep.subr.bf16.mxu0 %v859
    %1262 = vmatpush1.bf16.msra.mxu0 %v858
    %1263 = vmatprep.subr.bf16.mxu0 %v867
    %1264 = vmatpush1.bf16.msra.mxu0 %v866
    %1265 = vmatprep.subr.bf16.mxu0 %v875
    %1266 = vmatpush1.bf16.msra.mxu0 %v874
    %1267 = vmatprep.subr.bf16.mxu0 %v883
    %1268 = vmatpush1.bf16.msra.mxu0 %v882
    %1269 = vmatprep.subr.bf16.mxu0 %v891
    %1270 = vmatpush1.bf16.msra.mxu0 %v890
    %1271 = vmatprep.mubr.bf16.mxu0 %v245
    %1272 = vmatmul.mubr.bf16.gmra.mrb[0].mxu0 %v244
    %v1273 = vpop.f32.mrb[0].mxu0
    %v1274 = vadd.f32 0.0, %v1273
    %v1275 = vpop.f32.mrb[0].mxu0
    %v1276 = vadd.f32 0.0, %v1275
    %v1277 = vpop.f32.mrb[0].mxu0
    %v1278 = vadd.f32 0.0, %v1277
    %v1279 = vpop.f32.mrb[0].mxu0
    %v1280 = vadd.f32 0.0, %v1279
    %1281 = vmatprep.mubr.bf16.mxu0 %v247
    %1282 = vmatmul.mubr.bf16.gmra.mrb[0].mxu0 %v246
    %v1283 = vpop.f32.mrb[0].mxu0
    %v1284 = vadd.f32 0.0, %v1283
    %v1285 = vpop.f32.mrb[0].mxu0
    %v1286 = vadd.f32 0.0, %v1285
    %v1287 = vpop.f32.mrb[0].mxu0
    %v1288 = vadd.f32 0.0, %v1287
    %v1289 = vpop.f32.mrb[0].mxu0
    %v1290 = vadd.f32 0.0, %v1289
    %1291 = vmatprep.mubr.bf16.mxu0 %v249
    %1292 = vmatmul.mubr.bf16.gmra.mrb[0].mxu0 %v248
    %v1293 = vpop.f32.mrb[0].mxu0
    %v1294 = vadd.f32 0.0, %v1293
    %v1295 = vpop.f32.mrb[0].mxu0
    %v1296 = vadd.f32 0.0, %v1295
    %v1297 = vpop.f32.mrb[0].mxu0
    %v1298 = vadd.f32 0.0, %v1297
    %v1299 = vpop.f32.mrb[0].mxu0
    %v1300 = vadd.f32 0.0, %v1299
    %1301 = vmatprep.mubr.bf16.mxu0 %v251
    %1302 = vmatmul.mubr.bf16.gmra.mrb[0].mxu0 %v250
    %v1303 = vpop.f32.mrb[0].mxu0
    %v1304 = vadd.f32 0.0, %v1303
    %v1305 = vpop.f32.mrb[0].mxu0
    %v1306 = vadd.f32 0.0, %v1305
    %v1307 = vpop.f32.mrb[0].mxu0
    %v1308 = vadd.f32 0.0, %v1307
    %v1309 = vpop.f32.mrb[0].mxu0
    %v1310 = vadd.f32 0.0, %v1309
    %1311 = vdwg.mxu0
    %v1312 = vld [vmem:[%s6] sm:$0x3]
    %v1314 = vlaneseq
    %v1315 = vshrl.u32 %v1314, 7
    %v1316 = vsub.s32 0, %v1315
    %v1317 = vrot.slane %v1312, %v1316
    %v1318 = vlaneseq
    %v1319 = vshrl.u32 %v1318, 7
    %v1320 = vsub.s32 1, %v1319
    %v1321 = vrot.slane %v1312, %v1320
    %v1324 = vmul.f32 %v1055, %v1317
    %v1325 = vmul.f32 %v1057, %v1321
    %v1326 = vmul.f32 %v1059, %v1317
    %v1327 = vmul.f32 %v1061, %v1321
    %v1328 = vmul.f32 %v1065, %v1317
    %v1329 = vmul.f32 %v1067, %v1321
    %v1330 = vmul.f32 %v1069, %v1317
    %v1331 = vmul.f32 %v1071, %v1321
    %v1332 = vmul.f32 %v1075, %v1317
    %v1333 = vmul.f32 %v1077, %v1321
    %v1334 = vmul.f32 %v1079, %v1317
    %v1335 = vmul.f32 %v1081, %v1321
    %v1336 = vmul.f32 %v1085, %v1317
    %v1337 = vmul.f32 %v1087, %v1321
    %v1338 = vmul.f32 %v1089, %v1317
    %v1339 = vmul.f32 %v1091, %v1321
    %v1340 = vadd.f32 %v1324, %v1325
    %1341 = vadd.xlane.f32.xlu0 %v1340
    %v1342 = vpop.xlane.xlu0 %1341
    %v1343 = vadd.f32 %v1326, %v1327
    %1344 = vadd.xlane.f32.xlu0 %v1343
    %v1345 = vpop.xlane.xlu0 %1344
    %v1346 = vadd.f32 %v1328, %v1329
    %1347 = vadd.xlane.f32.xlu0 %v1346
    %v1348 = vpop.xlane.xlu0 %1347
    %v1349 = vadd.f32 %v1330, %v1331
    %1350 = vadd.xlane.f32.xlu0 %v1349
    %v1351 = vpop.xlane.xlu0 %1350
    %v1352 = vadd.f32 %v1332, %v1333
    %1353 = vadd.xlane.f32.xlu0 %v1352
    %v1354 = vpop.xlane.xlu0 %1353
    %v1355 = vadd.f32 %v1334, %v1335
    %1356 = vadd.xlane.f32.xlu0 %v1355
    %v1357 = vpop.xlane.xlu0 %1356
    %v1358 = vadd.f32 %v1336, %v1337
    %1359 = vadd.xlane.f32.xlu0 %v1358
    %v1360 = vpop.xlane.xlu0 %1359
    %v1361 = vadd.f32 %v1338, %v1339
    %1362 = vadd.xlane.f32.xlu0 %v1361
    %v1363 = vpop.xlane.xlu0 %1362
    %v1364 = vld [vmem:[%s5] sm:$0x3]
    %v1366 = vlaneseq
    %v1367 = vshrl.u32 %v1366, 7
    %v1368 = vsub.s32 0, %v1367
    %v1369 = vrot.slane %v1364, %v1368
    %v1370 = vlaneseq
    %v1371 = vshrl.u32 %v1370, 7
    %v1372 = vsub.s32 1, %v1371
    %v1373 = vrot.slane %v1364, %v1372
    %v1376 = vmul.f32 %v1055, %v1369
    %v1377 = vmul.f32 %v1057, %v1373
    %v1378 = vmul.f32 %v1059, %v1369
    %v1379 = vmul.f32 %v1061, %v1373
    %v1380 = vmul.f32 %v1065, %v1369
    %v1381 = vmul.f32 %v1067, %v1373
    %v1382 = vmul.f32 %v1069, %v1369
    %v1383 = vmul.f32 %v1071, %v1373
    %v1384 = vmul.f32 %v1075, %v1369
    %v1385 = vmul.f32 %v1077, %v1373
    %v1386 = vmul.f32 %v1079, %v1369
    %v1387 = vmul.f32 %v1081, %v1373
    %v1388 = vmul.f32 %v1085, %v1369
    %v1389 = vmul.f32 %v1087, %v1373
    %v1390 = vmul.f32 %v1089, %v1369
    %v1391 = vmul.f32 %v1091, %v1373
    %v1392 = vadd.f32 %v1376, %v1377
    %1393 = vadd.xlane.f32.xlu0 %v1392
    %v1394 = vpop.xlane.xlu0 %1393
    %v1395 = vadd.f32 %v1378, %v1379
    %1396 = vadd.xlane.f32.xlu0 %v1395
    %v1397 = vpop.xlane.xlu0 %1396
    %v1398 = vadd.f32 %v1380, %v1381
    %1399 = vadd.xlane.f32.xlu0 %v1398
    %v1400 = vpop.xlane.xlu0 %1399
    %v1401 = vadd.f32 %v1382, %v1383
    %1402 = vadd.xlane.f32.xlu0 %v1401
    %v1403 = vpop.xlane.xlu0 %1402
    %v1404 = vadd.f32 %v1384, %v1385
    %1405 = vadd.xlane.f32.xlu0 %v1404
    %v1406 = vpop.xlane.xlu0 %1405
    %v1407 = vadd.f32 %v1386, %v1387
    %1408 = vadd.xlane.f32.xlu0 %v1407
    %v1409 = vpop.xlane.xlu0 %1408
    %v1410 = vadd.f32 %v1388, %v1389
    %1411 = vadd.xlane.f32.xlu0 %v1410
    %v1412 = vpop.xlane.xlu0 %1411
    %v1413 = vadd.f32 %v1390, %v1391
    %1414 = vadd.xlane.f32.xlu0 %v1413
    %v1415 = vpop.xlane.xlu0 %1414
    %1416 = vxpose.xlu0.b32.start [1/16] %v1394, 128
    %1417 = vxpose.xlu0.b32.cont [2/16] %v1397, 128
    %1418 = vxpose.xlu0.b32.cont [3/16] %v1400, 128
    %1419 = vxpose.xlu0.b32.cont [4/16] %v1403, 128
    %1420 = vxpose.xlu0.b32.cont [5/16] %v1406, 128
    %1421 = vxpose.xlu0.b32.cont [6/16] %v1409, 128
    %1422 = vxpose.xlu0.b32.cont [7/16] %v1412, 128
    %1423 = vxpose.xlu0.b32.cont [8/16] %v1415, 128
    %1424 = vxpose.xlu0.b32.cont [9/16] 0.0, 128
    %1425 = vxpose.xlu0.b32.cont [10/16] 0.0, 128
    %1426 = vxpose.xlu0.b32.cont [11/16] 0.0, 128
    %1427 = vxpose.xlu0.b32.cont [12/16] 0.0, 128
    %1428 = vxpose.xlu0.b32.cont [13/16] 0.0, 128
    %1429 = vxpose.xlu0.b32.cont [14/16] 0.0, 128
    %1430 = vxpose.xlu0.b32.cont [15/16] 0.0, 128
    %1431 = vxpose.xlu0.b32.end [16/16] 0.0, 128
    %v1432 = vpop.trf.xlu0
    %v1433 = vpop.trf.xlu0
    %v1434 = vpop.trf.xlu0
    %v1435 = vpop.trf.xlu0
    %v1436 = vpop.trf.xlu0
    %v1437 = vpop.trf.xlu0
    %v1438 = vpop.trf.xlu0
    %v1439 = vpop.trf.xlu0
    %v1440 = vpop.trf.xlu0
    %v1441 = vpop.trf.xlu0
    %v1442 = vpop.trf.xlu0
    %v1443 = vpop.trf.xlu0
    %v1444 = vpop.trf.xlu0
    %v1445 = vpop.trf.xlu0
    %v1446 = vpop.trf.xlu0
    %v1447 = vpop.trf.xlu0
    %v1448 = vlaneseq
    %v1449 = vshrl.u32 %v1448, 7
    %v1450 = vsub.s32 0, %v1449
    %v1451 = vrot.slane %v1432, %v1450
    %v1452 = vadd.f32 %v1342, %v1451
    %v1453 = vadd.f32 %v1345, %v1451
    %v1454 = vadd.f32 %v1348, %v1451
    %v1455 = vadd.f32 %v1351, %v1451
    %v1456 = vadd.f32 %v1354, %v1451
    %v1457 = vadd.f32 %v1357, %v1451
    %v1458 = vadd.f32 %v1360, %v1451
    %v1459 = vadd.f32 %v1363, %v1451
    %vm1460 = vcmp.gt.f32.partialorder %v1452, 0.0
    %vm1461 = vcmp.gt.f32.partialorder %v1453, 0.0
    %vm1462 = vcmp.gt.f32.partialorder %v1454, 0.0
    %vm1463 = vcmp.gt.f32.partialorder %v1455, 0.0
    %vm1464 = vcmp.gt.f32.partialorder %v1456, 0.0
    %vm1465 = vcmp.gt.f32.partialorder %v1457, 0.0
    %vm1466 = vcmp.gt.f32.partialorder %v1458, 0.0
    %vm1467 = vcmp.gt.f32.partialorder %v1459, 0.0
    %v1468 = vmul.f32 %v1452, 0.2
    %v1469 = vmul.f32 %v1453, 0.2
    %v1470 = vmul.f32 %v1454, 0.2
    %v1471 = vmul.f32 %v1455, 0.2
    %v1472 = vmul.f32 %v1456, 0.2
    %v1473 = vmul.f32 %v1457, 0.2
    %v1474 = vmul.f32 %v1458, 0.2
    %v1475 = vmul.f32 %v1459, 0.2
    %v1476 = vsel %vm1460, %v1452, %v1468
    %v1477 = vsel %vm1461, %v1453, %v1469
    %v1478 = vsel %vm1462, %v1454, %v1470
    %v1479 = vsel %vm1463, %v1455, %v1471
    %v1480 = vsel %vm1464, %v1456, %v1472
    %v1481 = vsel %vm1465, %v1457, %v1473
    %v1482 = vsel %vm1466, %v1458, %v1474
    %v1483 = vsel %vm1467, %v1459, %v1475
    %vm1484 = vcmp.gt.f32.partialorder %v43, 0.0
    %vm1485 = vcmp.gt.f32.partialorder %v44, 0.0
    %vm1486 = vcmp.gt.f32.partialorder %v45, 0.0
    %vm1487 = vcmp.gt.f32.partialorder %v46, 0.0
    %vm1488 = vcmp.gt.f32.partialorder %v47, 0.0
    %vm1489 = vcmp.gt.f32.partialorder %v48, 0.0
    %vm1490 = vcmp.gt.f32.partialorder %v49, 0.0
    %vm1491 = vcmp.gt.f32.partialorder %v50, 0.0
    %v1492 = vsel %vm1484, %v1476, -1e+30
    %v1493 = vsel %vm1485, %v1477, -1e+30
    %v1494 = vsel %vm1486, %v1478, -1e+30
    %v1495 = vsel %vm1487, %v1479, -1e+30
    %v1496 = vsel %vm1488, %v1480, -1e+30
    %v1497 = vsel %vm1489, %v1481, -1e+30
    %v1498 = vsel %vm1490, %v1482, -1e+30
    %v1499 = vsel %vm1491, %v1483, -1e+30
    %vm1500 = vcmask 523264
    %v1501 = vsel %vm1500, %v1492, -inf
    %1502 = vmax.xlane.f32.xlu0 %v1501
    %v1503 = vpop.xlane.xlu0 %1502
    %v1504 = vsel %vm1500, %v1493, -inf
    %1505 = vmax.xlane.f32.xlu0 %v1504
    %v1506 = vpop.xlane.xlu0 %1505
    %v1507 = vsel %vm1500, %v1494, -inf
    %1508 = vmax.xlane.f32.xlu0 %v1507
    %v1509 = vpop.xlane.xlu0 %1508
    %v1510 = vsel %vm1500, %v1495, -inf
    %1511 = vmax.xlane.f32.xlu0 %v1510
    %v1512 = vpop.xlane.xlu0 %1511
    %v1513 = vsel %vm1500, %v1496, -inf
    %1514 = vmax.xlane.f32.xlu0 %v1513
    %v1515 = vpop.xlane.xlu0 %1514
    %v1516 = vsel %vm1500, %v1497, -inf
    %1517 = vmax.xlane.f32.xlu0 %v1516
    %v1518 = vpop.xlane.xlu0 %1517
    %v1519 = vsel %vm1500, %v1498, -inf
    %1520 = vmax.xlane.f32.xlu0 %v1519
    %v1521 = vpop.xlane.xlu0 %1520
    %v1522 = vsel %vm1500, %v1499, -inf
    %1523 = vmax.xlane.f32.xlu0 %v1522
    %v1524 = vpop.xlane.xlu0 %1523
    %v1525 = vsub.f32 %v1492, %v1503
    %v1526 = vsub.f32 %v1493, %v1506
    %v1527 = vsub.f32 %v1494, %v1509
    %v1528 = vsub.f32 %v1495, %v1512
    %v1529 = vsub.f32 %v1496, %v1515
    %v1530 = vsub.f32 %v1497, %v1518
    %v1531 = vsub.f32 %v1498, %v1521
    %v1532 = vsub.f32 %v1499, %v1524
    %v1533 = vmul.f32 %v1525, 1.442695
    %v1534 = vpow.pop %v1533
    %v1535 = vmul.f32 %v1526, 1.442695
    %v1536 = vpow.pop %v1535
    %v1537 = vmul.f32 %v1527, 1.442695
    %v1538 = vpow.pop %v1537
    %v1539 = vmul.f32 %v1528, 1.442695
    %v1540 = vpow.pop %v1539
    %v1541 = vmul.f32 %v1529, 1.442695
    %v1542 = vpow.pop %v1541
    %v1543 = vmul.f32 %v1530, 1.442695
    %v1544 = vpow.pop %v1543
    %v1545 = vmul.f32 %v1531, 1.442695
    %v1546 = vpow.pop %v1545
    %v1547 = vmul.f32 %v1532, 1.442695
    %v1548 = vpow.pop %v1547
    %v1549 = vsel %vm1500, %v1534, 0.0
    %1550 = vadd.xlane.f32.xlu0 %v1549
    %v1551 = vpop.xlane.xlu0 %1550
    %v1552 = vsel %vm1500, %v1536, 0.0
    %1553 = vadd.xlane.f32.xlu0 %v1552
    %v1554 = vpop.xlane.xlu0 %1553
    %v1555 = vsel %vm1500, %v1538, 0.0
    %1556 = vadd.xlane.f32.xlu0 %v1555
    %v1557 = vpop.xlane.xlu0 %1556
    %v1558 = vsel %vm1500, %v1540, 0.0
    %1559 = vadd.xlane.f32.xlu0 %v1558
    %v1560 = vpop.xlane.xlu0 %1559
    %v1561 = vsel %vm1500, %v1542, 0.0
    %1562 = vadd.xlane.f32.xlu0 %v1561
    %v1563 = vpop.xlane.xlu0 %1562
    %v1564 = vsel %vm1500, %v1544, 0.0
    %1565 = vadd.xlane.f32.xlu0 %v1564
    %v1566 = vpop.xlane.xlu0 %1565
    %v1567 = vsel %vm1500, %v1546, 0.0
    %1568 = vadd.xlane.f32.xlu0 %v1567
    %v1569 = vpop.xlane.xlu0 %1568
    %v1570 = vsel %vm1500, %v1548, 0.0
    %1571 = vadd.xlane.f32.xlu0 %v1570
    %v1572 = vpop.xlane.xlu0 %1571
    %v1573 = vmax.f32 %v1551, 1e-20
    %v1574 = vmax.f32 %v1554, 1e-20
    %v1575 = vmax.f32 %v1557, 1e-20
    %v1576 = vmax.f32 %v1560, 1e-20
    %v1577 = vmax.f32 %v1563, 1e-20
    %v1578 = vmax.f32 %v1566, 1e-20
    %v1579 = vmax.f32 %v1569, 1e-20
    %v1580 = vmax.f32 %v1572, 1e-20
    %v1581 = vrcp.pop %v1573
    %v1582 = vrcp.pop %v1574
    %v1583 = vrcp.pop %v1575
    %v1584 = vrcp.pop %v1576
    %v1585 = vrcp.pop %v1577
    %v1586 = vrcp.pop %v1578
    %v1587 = vrcp.pop %v1579
    %v1588 = vrcp.pop %v1580
    %v1589 = vpack.c.bf16 %v1536, %v1534
    %v1590 = vpack.c.bf16 %v1540, %v1538
    %v1591 = vpack.c.bf16 %v1544, %v1542
    %v1592 = vpack.c.bf16 %v1548, %v1546
    %v1593 = vpack.c.bf16 %v1059, %v1055
    %v1594 = vpack.c.bf16 %v1061, %v1057
    %v1595 = vpack.c.bf16 %v1069, %v1065
    %v1596 = vpack.c.bf16 %v1071, %v1067
    %v1597 = vpack.c.bf16 %v1079, %v1075
    %v1598 = vpack.c.bf16 %v1081, %v1077
    %v1599 = vpack.c.bf16 %v1089, %v1085
    %v1600 = vpack.c.bf16 %v1091, %v1087
    %v1602 = vsel %vm1500, %v1589, 0
    %v1605 = vsel %vm1500, %v1590, 0
    %v1608 = vsel %vm1500, %v1591, 0
    %v1611 = vsel %vm1500, %v1592, 0
    %1613 = vmatprep.subr.bf16.mxu0 %v1594
    %1614 = vmatpush1.bf16.msra.mxu0 %v1593
    %1615 = vmatprep.subr.bf16.mxu0 %v1596
    %1616 = vmatpush1.bf16.msra.mxu0 %v1595
    %1617 = vmatprep.subr.bf16.mxu0 %v1598
    %1618 = vmatpush1.bf16.msra.mxu0 %v1597
    %1619 = vmatprep.subr.bf16.mxu0 %v1600
    %1620 = vmatpush1.bf16.msra.mxu0 %v1599
    %1621 = vmatprep.subr.bf16.mxu0 0
    %1622 = vmatpush1.bf16.msra.mxu0 0
    %1623 = vmatprep.subr.bf16.mxu0 0
    %1624 = vmatpush1.bf16.msra.mxu0 0
    %1625 = vmatprep.subr.bf16.mxu0 0
    %1626 = vmatpush1.bf16.msra.mxu0 0
    %1627 = vmatprep.subr.bf16.mxu0 0
    %1628 = vmatpush1.bf16.msra.mxu0 0
    %1629 = vmatprep.subr.bf16.mxu0 0
    %1630 = vmatpush1.bf16.msra.mxu0 0
    %1631 = vmatprep.subr.bf16.mxu0 0
    %1632 = vmatpush1.bf16.msra.mxu0 0
    %1633 = vmatprep.subr.bf16.mxu0 0
    %1634 = vmatpush1.bf16.msra.mxu0 0
    %1635 = vmatprep.subr.bf16.mxu0 0
    %1636 = vmatpush1.bf16.msra.mxu0 0
    %1637 = vmatprep.subr.bf16.mxu0 0
    %1638 = vmatpush1.bf16.msra.mxu0 0
    %1639 = vmatprep.subr.bf16.mxu0 0
    %1640 = vmatpush1.bf16.msra.mxu0 0
    %1641 = vmatprep.subr.bf16.mxu0 0
    %1642 = vmatpush1.bf16.msra.mxu0 0
    %1643 = vmatprep.subr.bf16.mxu0 0
    %1644 = vmatpush1.bf16.msra.mxu0 0
    %1645 = vmatprep.mubr.bf16.mxu0 0
    %1646 = vmatmul.mubr.bf16.gmra.mrb[0].mxu0 %v1602
    %v1647 = vpop.f32.mrb[0].mxu0
    %v1648 = vadd.f32 0.0, %v1647
    %v1649 = vpop.f32.mrb[0].mxu0
    %v1650 = vadd.f32 0.0, %v1649
    %v1651 = vpop.f32.mrb[0].mxu0
    %v1652 = vadd.f32 0.0, %v1651
    %v1653 = vpop.f32.mrb[0].mxu0
    %v1654 = vadd.f32 0.0, %v1653
    %1655 = vmatprep.mubr.bf16.mxu0 0
    %1656 = vmatmul.mubr.bf16.gmra.mrb[0].mxu0 %v1605
    %v1657 = vpop.f32.mrb[0].mxu0
    %v1658 = vadd.f32 0.0, %v1657
    %v1659 = vpop.f32.mrb[0].mxu0
    %v1660 = vadd.f32 0.0, %v1659
    %v1661 = vpop.f32.mrb[0].mxu0
    %v1662 = vadd.f32 0.0, %v1661
    %v1663 = vpop.f32.mrb[0].mxu0
    %v1664 = vadd.f32 0.0, %v1663
    %1665 = vmatprep.mubr.bf16.mxu0 0
    %1666 = vmatmul.mubr.bf16.gmra.mrb[0].mxu0 %v1608
    %v1667 = vpop.f32.mrb[0].mxu0
    %v1668 = vadd.f32 0.0, %v1667
    %v1669 = vpop.f32.mrb[0].mxu0
    %v1670 = vadd.f32 0.0, %v1669
    %v1671 = vpop.f32.mrb[0].mxu0
    %v1672 = vadd.f32 0.0, %v1671
    %v1673 = vpop.f32.mrb[0].mxu0
    %v1674 = vadd.f32 0.0, %v1673
    %1675 = vmatprep.mubr.bf16.mxu0 0
    %1676 = vmatmul.mubr.bf16.gmra.mrb[0].mxu0 %v1611
    %v1677 = vpop.f32.mrb[0].mxu0
    %v1678 = vadd.f32 0.0, %v1677
    %v1679 = vpop.f32.mrb[0].mxu0
    %v1680 = vadd.f32 0.0, %v1679
    %v1681 = vpop.f32.mrb[0].mxu0
    %v1682 = vadd.f32 0.0, %v1681
    %v1683 = vpop.f32.mrb[0].mxu0
    %v1684 = vadd.f32 0.0, %v1683
    %1685 = vdwg.mxu0
    %v1686 = vmul.f32 %v1648, %v1581
    %v1687 = vmul.f32 %v1650, %v1581
    %v1688 = vmul.f32 %v1652, %v1582
    %v1689 = vmul.f32 %v1654, %v1582
    %v1690 = vmul.f32 %v1658, %v1583
    %v1691 = vmul.f32 %v1660, %v1583
    %v1692 = vmul.f32 %v1662, %v1584
    %v1693 = vmul.f32 %v1664, %v1584
    %v1694 = vmul.f32 %v1668, %v1585
    %v1695 = vmul.f32 %v1670, %v1585
    %v1696 = vmul.f32 %v1672, %v1586
    %v1697 = vmul.f32 %v1674, %v1586
    %v1698 = vmul.f32 %v1678, %v1587
    %v1699 = vmul.f32 %v1680, %v1587
    %v1700 = vmul.f32 %v1682, %v1588
    %v1701 = vmul.f32 %v1684, %v1588
    %v1702 = vld [vmem:[%s7] sm:$0x3]
    %v1704 = vlaneseq
    %v1705 = vshrl.u32 %v1704, 7
    %v1706 = vsub.s32 0, %v1705
    %v1707 = vrot.slane %v1702, %v1706
    %v1708 = vlaneseq
    %v1709 = vshrl.u32 %v1708, 7
    %v1710 = vsub.s32 1, %v1709
    %v1711 = vrot.slane %v1702, %v1710
    %v1714 = vadd.f32 %v1686, %v1707
    %v1715 = vadd.f32 %v1687, %v1711
    %v1716 = vadd.f32 %v1688, %v1707
    %v1717 = vadd.f32 %v1689, %v1711
    %v1718 = vadd.f32 %v1690, %v1707
    %v1719 = vadd.f32 %v1691, %v1711
    %v1720 = vadd.f32 %v1692, %v1707
    %v1721 = vadd.f32 %v1693, %v1711
    %v1722 = vadd.f32 %v1694, %v1707
    %v1723 = vadd.f32 %v1695, %v1711
    %v1724 = vadd.f32 %v1696, %v1707
    %v1725 = vadd.f32 %v1697, %v1711
    %v1726 = vadd.f32 %v1698, %v1707
    %v1727 = vadd.f32 %v1699, %v1711
    %v1728 = vadd.f32 %v1700, %v1707
    %v1729 = vadd.f32 %v1701, %v1711
    %v1730 = vtanh.pop %v1714
    %v1731 = vtanh.pop %v1715
    %v1732 = vtanh.pop %v1716
    %v1733 = vtanh.pop %v1717
    %v1734 = vtanh.pop %v1718
    %v1735 = vtanh.pop %v1719
    %v1736 = vtanh.pop %v1720
    %v1737 = vtanh.pop %v1721
    %v1738 = vtanh.pop %v1722
    %v1739 = vtanh.pop %v1723
    %v1740 = vtanh.pop %v1724
    %v1741 = vtanh.pop %v1725
    %v1742 = vtanh.pop %v1726
    %v1743 = vtanh.pop %v1727
    %v1744 = vtanh.pop %v1728
    %v1745 = vtanh.pop %v1729
    %s1746 = scalar_lea.vmem %s6, 2
    %v1747 = vld [vmem:[%s1746] sm:$0x3]
    %v1749 = vlaneseq
    %v1750 = vshrl.u32 %v1749, 7
    %v1751 = vsub.s32 0, %v1750
    %v1752 = vrot.slane %v1747, %v1751
    %v1753 = vlaneseq
    %v1754 = vshrl.u32 %v1753, 7
    %v1755 = vsub.s32 1, %v1754
    %v1756 = vrot.slane %v1747, %v1755
    %v1759 = vmul.f32 %v1128, %v1752
    %v1760 = vmul.f32 %v1130, %v1756
    %v1761 = vmul.f32 %v1132, %v1752
    %v1762 = vmul.f32 %v1134, %v1756
    %v1763 = vmul.f32 %v1138, %v1752
    %v1764 = vmul.f32 %v1140, %v1756
    %v1765 = vmul.f32 %v1142, %v1752
    %v1766 = vmul.f32 %v1144, %v1756
    %v1767 = vmul.f32 %v1148, %v1752
    %v1768 = vmul.f32 %v1150, %v1756
    %v1769 = vmul.f32 %v1152, %v1752
    %v1770 = vmul.f32 %v1154, %v1756
    %v1771 = vmul.f32 %v1158, %v1752
    %v1772 = vmul.f32 %v1160, %v1756
    %v1773 = vmul.f32 %v1162, %v1752
    %v1774 = vmul.f32 %v1164, %v1756
    %v1775 = vadd.f32 %v1759, %v1760
    %1776 = vadd.xlane.f32.xlu0 %v1775
    %v1777 = vpop.xlane.xlu0 %1776
    %v1778 = vadd.f32 %v1761, %v1762
    %1779 = vadd.xlane.f32.xlu0 %v1778
    %v1780 = vpop.xlane.xlu0 %1779
    %v1781 = vadd.f32 %v1763, %v1764
    %1782 = vadd.xlane.f32.xlu0 %v1781
    %v1783 = vpop.xlane.xlu0 %1782
    %v1784 = vadd.f32 %v1765, %v1766
    %1785 = vadd.xlane.f32.xlu0 %v1784
    %v1786 = vpop.xlane.xlu0 %1785
    %v1787 = vadd.f32 %v1767, %v1768
    %1788 = vadd.xlane.f32.xlu0 %v1787
    %v1789 = vpop.xlane.xlu0 %1788
    %v1790 = vadd.f32 %v1769, %v1770
    %1791 = vadd.xlane.f32.xlu0 %v1790
    %v1792 = vpop.xlane.xlu0 %1791
    %v1793 = vadd.f32 %v1771, %v1772
    %1794 = vadd.xlane.f32.xlu0 %v1793
    %v1795 = vpop.xlane.xlu0 %1794
    %v1796 = vadd.f32 %v1773, %v1774
    %1797 = vadd.xlane.f32.xlu0 %v1796
    %v1798 = vpop.xlane.xlu0 %1797
    %s1799 = scalar_lea.vmem %s5, 2
    %v1800 = vld [vmem:[%s1799] sm:$0x3]
    %v1802 = vlaneseq
    %v1803 = vshrl.u32 %v1802, 7
    %v1804 = vsub.s32 0, %v1803
    %v1805 = vrot.slane %v1800, %v1804
    %v1806 = vlaneseq
    %v1807 = vshrl.u32 %v1806, 7
    %v1808 = vsub.s32 1, %v1807
    %v1809 = vrot.slane %v1800, %v1808
    %v1812 = vmul.f32 %v1128, %v1805
    %v1813 = vmul.f32 %v1130, %v1809
    %v1814 = vmul.f32 %v1132, %v1805
    %v1815 = vmul.f32 %v1134, %v1809
    %v1816 = vmul.f32 %v1138, %v1805
    %v1817 = vmul.f32 %v1140, %v1809
    %v1818 = vmul.f32 %v1142, %v1805
    %v1819 = vmul.f32 %v1144, %v1809
    %v1820 = vmul.f32 %v1148, %v1805
    %v1821 = vmul.f32 %v1150, %v1809
    %v1822 = vmul.f32 %v1152, %v1805
    %v1823 = vmul.f32 %v1154, %v1809
    %v1824 = vmul.f32 %v1158, %v1805
    %v1825 = vmul.f32 %v1160, %v1809
    %v1826 = vmul.f32 %v1162, %v1805
    %v1827 = vmul.f32 %v1164, %v1809
    %v1828 = vadd.f32 %v1812, %v1813
    %1829 = vadd.xlane.f32.xlu0 %v1828
    %v1830 = vpop.xlane.xlu0 %1829
    %v1831 = vadd.f32 %v1814, %v1815
    %1832 = vadd.xlane.f32.xlu0 %v1831
    %v1833 = vpop.xlane.xlu0 %1832
    %v1834 = vadd.f32 %v1816, %v1817
    %1835 = vadd.xlane.f32.xlu0 %v1834
    %v1836 = vpop.xlane.xlu0 %1835
    %v1837 = vadd.f32 %v1818, %v1819
    %1838 = vadd.xlane.f32.xlu0 %v1837
    %v1839 = vpop.xlane.xlu0 %1838
    %v1840 = vadd.f32 %v1820, %v1821
    %1841 = vadd.xlane.f32.xlu0 %v1840
    %v1842 = vpop.xlane.xlu0 %1841
    %v1843 = vadd.f32 %v1822, %v1823
    %1844 = vadd.xlane.f32.xlu0 %v1843
    %v1845 = vpop.xlane.xlu0 %1844
    %v1846 = vadd.f32 %v1824, %v1825
    %1847 = vadd.xlane.f32.xlu0 %v1846
    %v1848 = vpop.xlane.xlu0 %1847
    %v1849 = vadd.f32 %v1826, %v1827
    %1850 = vadd.xlane.f32.xlu0 %v1849
    %v1851 = vpop.xlane.xlu0 %1850
    %1852 = vxpose.xlu0.b32.start [1/16] %v1830, 128
    %1853 = vxpose.xlu0.b32.cont [2/16] %v1833, 128
    %1854 = vxpose.xlu0.b32.cont [3/16] %v1836, 128
    %1855 = vxpose.xlu0.b32.cont [4/16] %v1839, 128
    %1856 = vxpose.xlu0.b32.cont [5/16] %v1842, 128
    %1857 = vxpose.xlu0.b32.cont [6/16] %v1845, 128
    %1858 = vxpose.xlu0.b32.cont [7/16] %v1848, 128
    %1859 = vxpose.xlu0.b32.cont [8/16] %v1851, 128
    %1860 = vxpose.xlu0.b32.cont [9/16] 0.0, 128
    %1861 = vxpose.xlu0.b32.cont [10/16] 0.0, 128
    %1862 = vxpose.xlu0.b32.cont [11/16] 0.0, 128
    %1863 = vxpose.xlu0.b32.cont [12/16] 0.0, 128
    %1864 = vxpose.xlu0.b32.cont [13/16] 0.0, 128
    %1865 = vxpose.xlu0.b32.cont [14/16] 0.0, 128
    %1866 = vxpose.xlu0.b32.cont [15/16] 0.0, 128
    %1867 = vxpose.xlu0.b32.end [16/16] 0.0, 128
    %v1868 = vpop.trf.xlu0
    %v1869 = vpop.trf.xlu0
    %v1870 = vpop.trf.xlu0
    %v1871 = vpop.trf.xlu0
    %v1872 = vpop.trf.xlu0
    %v1873 = vpop.trf.xlu0
    %v1874 = vpop.trf.xlu0
    %v1875 = vpop.trf.xlu0
    %v1876 = vpop.trf.xlu0
    %v1877 = vpop.trf.xlu0
    %v1878 = vpop.trf.xlu0
    %v1879 = vpop.trf.xlu0
    %v1880 = vpop.trf.xlu0
    %v1881 = vpop.trf.xlu0
    %v1882 = vpop.trf.xlu0
    %v1883 = vpop.trf.xlu0
    %v1884 = vlaneseq
    %v1885 = vshrl.u32 %v1884, 7
    %v1886 = vsub.s32 0, %v1885
    %v1887 = vrot.slane %v1868, %v1886
    %v1888 = vadd.f32 %v1777, %v1887
    %v1889 = vadd.f32 %v1780, %v1887
    %v1890 = vadd.f32 %v1783, %v1887
    %v1891 = vadd.f32 %v1786, %v1887
    %v1892 = vadd.f32 %v1789, %v1887
    %v1893 = vadd.f32 %v1792, %v1887
    %v1894 = vadd.f32 %v1795, %v1887
    %v1895 = vadd.f32 %v1798, %v1887
    %vm1896 = vcmp.gt.f32.partialorder %v1888, 0.0
    %vm1897 = vcmp.gt.f32.partialorder %v1889, 0.0
    %vm1898 = vcmp.gt.f32.partialorder %v1890, 0.0
    %vm1899 = vcmp.gt.f32.partialorder %v1891, 0.0
    %vm1900 = vcmp.gt.f32.partialorder %v1892, 0.0
    %vm1901 = vcmp.gt.f32.partialorder %v1893, 0.0
    %vm1902 = vcmp.gt.f32.partialorder %v1894, 0.0
    %vm1903 = vcmp.gt.f32.partialorder %v1895, 0.0
    %v1904 = vmul.f32 %v1888, 0.2
    %v1905 = vmul.f32 %v1889, 0.2
    %v1906 = vmul.f32 %v1890, 0.2
    %v1907 = vmul.f32 %v1891, 0.2
    %v1908 = vmul.f32 %v1892, 0.2
    %v1909 = vmul.f32 %v1893, 0.2
    %v1910 = vmul.f32 %v1894, 0.2
    %v1911 = vmul.f32 %v1895, 0.2
    %v1912 = vsel %vm1896, %v1888, %v1904
    %v1913 = vsel %vm1897, %v1889, %v1905
    %v1914 = vsel %vm1898, %v1890, %v1906
    %v1915 = vsel %vm1899, %v1891, %v1907
    %v1916 = vsel %vm1900, %v1892, %v1908
    %v1917 = vsel %vm1901, %v1893, %v1909
    %v1918 = vsel %vm1902, %v1894, %v1910
    %v1919 = vsel %vm1903, %v1895, %v1911
    %v1920 = vsel %vm1484, %v1912, -1e+30
    %v1921 = vsel %vm1485, %v1913, -1e+30
    %v1922 = vsel %vm1486, %v1914, -1e+30
    %v1923 = vsel %vm1487, %v1915, -1e+30
    %v1924 = vsel %vm1488, %v1916, -1e+30
    %v1925 = vsel %vm1489, %v1917, -1e+30
    %v1926 = vsel %vm1490, %v1918, -1e+30
    %v1927 = vsel %vm1491, %v1919, -1e+30
    %v1928 = vsel %vm1500, %v1920, -inf
    %1929 = vmax.xlane.f32.xlu0 %v1928
    %v1930 = vpop.xlane.xlu0 %1929
    %v1931 = vsel %vm1500, %v1921, -inf
    %1932 = vmax.xlane.f32.xlu0 %v1931
    %v1933 = vpop.xlane.xlu0 %1932
    %v1934 = vsel %vm1500, %v1922, -inf
    %1935 = vmax.xlane.f32.xlu0 %v1934
    %v1936 = vpop.xlane.xlu0 %1935
    %v1937 = vsel %vm1500, %v1923, -inf
    %1938 = vmax.xlane.f32.xlu0 %v1937
    %v1939 = vpop.xlane.xlu0 %1938
    %v1940 = vsel %vm1500, %v1924, -inf
    %1941 = vmax.xlane.f32.xlu0 %v1940
    %v1942 = vpop.xlane.xlu0 %1941
    %v1943 = vsel %vm1500, %v1925, -inf
    %1944 = vmax.xlane.f32.xlu0 %v1943
    %v1945 = vpop.xlane.xlu0 %1944
    %v1946 = vsel %vm1500, %v1926, -inf
    %1947 = vmax.xlane.f32.xlu0 %v1946
    %v1948 = vpop.xlane.xlu0 %1947
    %v1949 = vsel %vm1500, %v1927, -inf
    %1950 = vmax.xlane.f32.xlu0 %v1949
    %v1951 = vpop.xlane.xlu0 %1950
    %v1952 = vsub.f32 %v1920, %v1930
    %v1953 = vsub.f32 %v1921, %v1933
    %v1954 = vsub.f32 %v1922, %v1936
    %v1955 = vsub.f32 %v1923, %v1939
    %v1956 = vsub.f32 %v1924, %v1942
    %v1957 = vsub.f32 %v1925, %v1945
    %v1958 = vsub.f32 %v1926, %v1948
    %v1959 = vsub.f32 %v1927, %v1951
    %v1960 = vmul.f32 %v1952, 1.442695
    %v1961 = vpow.pop %v1960
    %v1962 = vmul.f32 %v1953, 1.442695
    %v1963 = vpow.pop %v1962
    %v1964 = vmul.f32 %v1954, 1.442695
    %v1965 = vpow.pop %v1964
    %v1966 = vmul.f32 %v1955, 1.442695
    %v1967 = vpow.pop %v1966
    %v1968 = vmul.f32 %v1956, 1.442695
    %v1969 = vpow.pop %v1968
    %v1970 = vmul.f32 %v1957, 1.442695
    %v1971 = vpow.pop %v1970
    %v1972 = vmul.f32 %v1958, 1.442695
    %v1973 = vpow.pop %v1972
    %v1974 = vmul.f32 %v1959, 1.442695
    %v1975 = vpow.pop %v1974
    %v1976 = vsel %vm1500, %v1961, 0.0
    %1977 = vadd.xlane.f32.xlu0 %v1976
    %v1978 = vpop.xlane.xlu0 %1977
    %v1979 = vsel %vm1500, %v1963, 0.0
    %1980 = vadd.xlane.f32.xlu0 %v1979
    %v1981 = vpop.xlane.xlu0 %1980
    %v1982 = vsel %vm1500, %v1965, 0.0
    %1983 = vadd.xlane.f32.xlu0 %v1982
    %v1984 = vpop.xlane.xlu0 %1983
    %v1985 = vsel %vm1500, %v1967, 0.0
    %1986 = vadd.xlane.f32.xlu0 %v1985
    %v1987 = vpop.xlane.xlu0 %1986
    %v1988 = vsel %vm1500, %v1969, 0.0
    %1989 = vadd.xlane.f32.xlu0 %v1988
    %v1990 = vpop.xlane.xlu0 %1989
    %v1991 = vsel %vm1500, %v1971, 0.0
    %1992 = vadd.xlane.f32.xlu0 %v1991
    %v1993 = vpop.xlane.xlu0 %1992
    %v1994 = vsel %vm1500, %v1973, 0.0
    %1995 = vadd.xlane.f32.xlu0 %v1994
    %v1996 = vpop.xlane.xlu0 %1995
    %v1997 = vsel %vm1500, %v1975, 0.0
    %1998 = vadd.xlane.f32.xlu0 %v1997
    %v1999 = vpop.xlane.xlu0 %1998
    %v2000 = vmax.f32 %v1978, 1e-20
    %v2001 = vmax.f32 %v1981, 1e-20
    %v2002 = vmax.f32 %v1984, 1e-20
    %v2003 = vmax.f32 %v1987, 1e-20
    %v2004 = vmax.f32 %v1990, 1e-20
    %v2005 = vmax.f32 %v1993, 1e-20
    %v2006 = vmax.f32 %v1996, 1e-20
    %v2007 = vmax.f32 %v1999, 1e-20
    %v2008 = vrcp.pop %v2000
    %v2009 = vrcp.pop %v2001
    %v2010 = vrcp.pop %v2002
    %v2011 = vrcp.pop %v2003
    %v2012 = vrcp.pop %v2004
    %v2013 = vrcp.pop %v2005
    %v2014 = vrcp.pop %v2006
    %v2015 = vrcp.pop %v2007
    %v2016 = vpack.c.bf16 %v1963, %v1961
    %v2017 = vpack.c.bf16 %v1967, %v1965
    %v2018 = vpack.c.bf16 %v1971, %v1969
    %v2019 = vpack.c.bf16 %v1975, %v1973
    %v2020 = vpack.c.bf16 %v1132, %v1128
    %v2021 = vpack.c.bf16 %v1134, %v1130
    %v2022 = vpack.c.bf16 %v1142, %v1138
    %v2023 = vpack.c.bf16 %v1144, %v1140
    %v2024 = vpack.c.bf16 %v1152, %v1148
    %v2025 = vpack.c.bf16 %v1154, %v1150
    %v2026 = vpack.c.bf16 %v1162, %v1158
    %v2027 = vpack.c.bf16 %v1164, %v1160
    %v2029 = vsel %vm1500, %v2016, 0
    %v2032 = vsel %vm1500, %v2017, 0
    %v2035 = vsel %vm1500, %v2018, 0
    %v2038 = vsel %vm1500, %v2019, 0
    %2040 = vmatprep.subr.bf16.mxu0 %v2021
    %2041 = vmatpush1.bf16.msra.mxu0 %v2020
    %2042 = vmatprep.subr.bf16.mxu0 %v2023
    %2043 = vmatpush1.bf16.msra.mxu0 %v2022
    %2044 = vmatprep.subr.bf16.mxu0 %v2025
    %2045 = vmatpush1.bf16.msra.mxu0 %v2024
    %2046 = vmatprep.subr.bf16.mxu0 %v2027
    %2047 = vmatpush1.bf16.msra.mxu0 %v2026
    %2048 = vmatprep.subr.bf16.mxu0 0
    %2049 = vmatpush1.bf16.msra.mxu0 0
    %2050 = vmatprep.subr.bf16.mxu0 0
    %2051 = vmatpush1.bf16.msra.mxu0 0
    %2052 = vmatprep.subr.bf16.mxu0 0
    %2053 = vmatpush1.bf16.msra.mxu0 0
    %2054 = vmatprep.subr.bf16.mxu0 0
    %2055 = vmatpush1.bf16.msra.mxu0 0
    %2056 = vmatprep.subr.bf16.mxu0 0
    %2057 = vmatpush1.bf16.msra.mxu0 0
    %2058 = vmatprep.subr.bf16.mxu0 0
    %2059 = vmatpush1.bf16.msra.mxu0 0
    %2060 = vmatprep.subr.bf16.mxu0 0
    %2061 = vmatpush1.bf16.msra.mxu0 0
    %2062 = vmatprep.subr.bf16.mxu0 0
    %2063 = vmatpush1.bf16.msra.mxu0 0
    %2064 = vmatprep.subr.bf16.mxu0 0
    %2065 = vmatpush1.bf16.msra.mxu0 0
    %2066 = vmatprep.subr.bf16.mxu0 0
    %2067 = vmatpush1.bf16.msra.mxu0 0
    %2068 = vmatprep.subr.bf16.mxu0 0
    %2069 = vmatpush1.bf16.msra.mxu0 0
    %2070 = vmatprep.subr.bf16.mxu0 0
    %2071 = vmatpush1.bf16.msra.mxu0 0
    %2072 = vmatprep.mubr.bf16.mxu0 0
    %2073 = vmatmul.mubr.bf16.gmra.mrb[0].mxu0 %v2029
    %v2074 = vpop.f32.mrb[0].mxu0
    %v2075 = vadd.f32 0.0, %v2074
    %v2076 = vpop.f32.mrb[0].mxu0
    %v2077 = vadd.f32 0.0, %v2076
    %v2078 = vpop.f32.mrb[0].mxu0
    %v2079 = vadd.f32 0.0, %v2078
    %v2080 = vpop.f32.mrb[0].mxu0
    %v2081 = vadd.f32 0.0, %v2080
    %2082 = vmatprep.mubr.bf16.mxu0 0
    %2083 = vmatmul.mubr.bf16.gmra.mrb[0].mxu0 %v2032
    %v2084 = vpop.f32.mrb[0].mxu0
    %v2085 = vadd.f32 0.0, %v2084
    %v2086 = vpop.f32.mrb[0].mxu0
    %v2087 = vadd.f32 0.0, %v2086
    %v2088 = vpop.f32.mrb[0].mxu0
    %v2089 = vadd.f32 0.0, %v2088
    %v2090 = vpop.f32.mrb[0].mxu0
    %v2091 = vadd.f32 0.0, %v2090
    %2092 = vmatprep.mubr.bf16.mxu0 0
    %2093 = vmatmul.mubr.bf16.gmra.mrb[0].mxu0 %v2035
    %v2094 = vpop.f32.mrb[0].mxu0
    %v2095 = vadd.f32 0.0, %v2094
    %v2096 = vpop.f32.mrb[0].mxu0
    %v2097 = vadd.f32 0.0, %v2096
    %v2098 = vpop.f32.mrb[0].mxu0
    %v2099 = vadd.f32 0.0, %v2098
    %v2100 = vpop.f32.mrb[0].mxu0
    %v2101 = vadd.f32 0.0, %v2100
    %2102 = vmatprep.mubr.bf16.mxu0 0
    %2103 = vmatmul.mubr.bf16.gmra.mrb[0].mxu0 %v2038
    %v2104 = vpop.f32.mrb[0].mxu0
    %v2105 = vadd.f32 0.0, %v2104
    %v2106 = vpop.f32.mrb[0].mxu0
    %v2107 = vadd.f32 0.0, %v2106
    %v2108 = vpop.f32.mrb[0].mxu0
    %v2109 = vadd.f32 0.0, %v2108
    %v2110 = vpop.f32.mrb[0].mxu0
    %v2111 = vadd.f32 0.0, %v2110
    %2112 = vdwg.mxu0
    %v2113 = vmul.f32 %v2075, %v2008
    %v2114 = vmul.f32 %v2077, %v2008
    %v2115 = vmul.f32 %v2079, %v2009
    %v2116 = vmul.f32 %v2081, %v2009
    %v2117 = vmul.f32 %v2085, %v2010
    %v2118 = vmul.f32 %v2087, %v2010
    %v2119 = vmul.f32 %v2089, %v2011
    %v2120 = vmul.f32 %v2091, %v2011
    %v2121 = vmul.f32 %v2095, %v2012
    %v2122 = vmul.f32 %v2097, %v2012
    %v2123 = vmul.f32 %v2099, %v2013
    %v2124 = vmul.f32 %v2101, %v2013
    %v2125 = vmul.f32 %v2105, %v2014
    %v2126 = vmul.f32 %v2107, %v2014
    %v2127 = vmul.f32 %v2109, %v2015
    %v2128 = vmul.f32 %v2111, %v2015
    %s2129 = scalar_lea.vmem %s7, 2
    %v2130 = vld [vmem:[%s2129] sm:$0x3]
    %v2132 = vlaneseq
    %v2133 = vshrl.u32 %v2132, 7
    %v2134 = vsub.s32 0, %v2133
    %v2135 = vrot.slane %v2130, %v2134
    %v2136 = vlaneseq
    %v2137 = vshrl.u32 %v2136, 7
    %v2138 = vsub.s32 1, %v2137
    %v2139 = vrot.slane %v2130, %v2138
    %v2142 = vadd.f32 %v2113, %v2135
    %v2143 = vadd.f32 %v2114, %v2139
    %v2144 = vadd.f32 %v2115, %v2135
    %v2145 = vadd.f32 %v2116, %v2139
    %v2146 = vadd.f32 %v2117, %v2135
    %v2147 = vadd.f32 %v2118, %v2139
    %v2148 = vadd.f32 %v2119, %v2135
    %v2149 = vadd.f32 %v2120, %v2139
    %v2150 = vadd.f32 %v2121, %v2135
    %v2151 = vadd.f32 %v2122, %v2139
    %v2152 = vadd.f32 %v2123, %v2135
    %v2153 = vadd.f32 %v2124, %v2139
    %v2154 = vadd.f32 %v2125, %v2135
    %v2155 = vadd.f32 %v2126, %v2139
    %v2156 = vadd.f32 %v2127, %v2135
    %v2157 = vadd.f32 %v2128, %v2139
    %v2158 = vtanh.pop %v2142
    %v2159 = vtanh.pop %v2143
    %v2160 = vtanh.pop %v2144
    %v2161 = vtanh.pop %v2145
    %v2162 = vtanh.pop %v2146
    %v2163 = vtanh.pop %v2147
    %v2164 = vtanh.pop %v2148
    %v2165 = vtanh.pop %v2149
    %v2166 = vtanh.pop %v2150
    %v2167 = vtanh.pop %v2151
    %v2168 = vtanh.pop %v2152
    %v2169 = vtanh.pop %v2153
    %v2170 = vtanh.pop %v2154
    %v2171 = vtanh.pop %v2155
    %v2172 = vtanh.pop %v2156
    %v2173 = vtanh.pop %v2157
    %s2174 = scalar_lea.vmem %s6, 4
    %v2175 = vld [vmem:[%s2174] sm:$0x3]
    %v2177 = vlaneseq
    %v2178 = vshrl.u32 %v2177, 7
    %v2179 = vsub.s32 0, %v2178
    %v2180 = vrot.slane %v2175, %v2179
    %v2181 = vlaneseq
    %v2182 = vshrl.u32 %v2181, 7
    %v2183 = vsub.s32 1, %v2182
    %v2184 = vrot.slane %v2175, %v2183
    %v2187 = vmul.f32 %v1201, %v2180
    %v2188 = vmul.f32 %v1203, %v2184
    %v2189 = vmul.f32 %v1205, %v2180
    %v2190 = vmul.f32 %v1207, %v2184
    %v2191 = vmul.f32 %v1211, %v2180
    %v2192 = vmul.f32 %v1213, %v2184
    %v2193 = vmul.f32 %v1215, %v2180
    %v2194 = vmul.f32 %v1217, %v2184
    %v2195 = vmul.f32 %v1221, %v2180
    %v2196 = vmul.f32 %v1223, %v2184
    %v2197 = vmul.f32 %v1225, %v2180
    %v2198 = vmul.f32 %v1227, %v2184
    %v2199 = vmul.f32 %v1231, %v2180
    %v2200 = vmul.f32 %v1233, %v2184
    %v2201 = vmul.f32 %v1235, %v2180
    %v2202 = vmul.f32 %v1237, %v2184
    %v2203 = vadd.f32 %v2187, %v2188
    %2204 = vadd.xlane.f32.xlu0 %v2203
    %v2205 = vpop.xlane.xlu0 %2204
    %v2206 = vadd.f32 %v2189, %v2190
    %2207 = vadd.xlane.f32.xlu0 %v2206
    %v2208 = vpop.xlane.xlu0 %2207
    %v2209 = vadd.f32 %v2191, %v2192
    %2210 = vadd.xlane.f32.xlu0 %v2209
    %v2211 = vpop.xlane.xlu0 %2210
    %v2212 = vadd.f32 %v2193, %v2194
    %2213 = vadd.xlane.f32.xlu0 %v2212
    %v2214 = vpop.xlane.xlu0 %2213
    %v2215 = vadd.f32 %v2195, %v2196
    %2216 = vadd.xlane.f32.xlu0 %v2215
    %v2217 = vpop.xlane.xlu0 %2216
    %v2218 = vadd.f32 %v2197, %v2198
    %2219 = vadd.xlane.f32.xlu0 %v2218
    %v2220 = vpop.xlane.xlu0 %2219
    %v2221 = vadd.f32 %v2199, %v2200
    %2222 = vadd.xlane.f32.xlu0 %v2221
    %v2223 = vpop.xlane.xlu0 %2222
    %v2224 = vadd.f32 %v2201, %v2202
    %2225 = vadd.xlane.f32.xlu0 %v2224
    %v2226 = vpop.xlane.xlu0 %2225
    %s2227 = scalar_lea.vmem %s5, 4
    %v2228 = vld [vmem:[%s2227] sm:$0x3]
    %v2230 = vlaneseq
    %v2231 = vshrl.u32 %v2230, 7
    %v2232 = vsub.s32 0, %v2231
    %v2233 = vrot.slane %v2228, %v2232
    %v2234 = vlaneseq
    %v2235 = vshrl.u32 %v2234, 7
    %v2236 = vsub.s32 1, %v2235
    %v2237 = vrot.slane %v2228, %v2236
    %v2240 = vmul.f32 %v1201, %v2233
    %v2241 = vmul.f32 %v1203, %v2237
    %v2242 = vmul.f32 %v1205, %v2233
    %v2243 = vmul.f32 %v1207, %v2237
    %v2244 = vmul.f32 %v1211, %v2233
    %v2245 = vmul.f32 %v1213, %v2237
    %v2246 = vmul.f32 %v1215, %v2233
    %v2247 = vmul.f32 %v1217, %v2237
    %v2248 = vmul.f32 %v1221, %v2233
    %v2249 = vmul.f32 %v1223, %v2237
    %v2250 = vmul.f32 %v1225, %v2233
    %v2251 = vmul.f32 %v1227, %v2237
    %v2252 = vmul.f32 %v1231, %v2233
    %v2253 = vmul.f32 %v1233, %v2237
    %v2254 = vmul.f32 %v1235, %v2233
    %v2255 = vmul.f32 %v1237, %v2237
    %v2256 = vadd.f32 %v2240, %v2241
    %2257 = vadd.xlane.f32.xlu0 %v2256
    %v2258 = vpop.xlane.xlu0 %2257
    %v2259 = vadd.f32 %v2242, %v2243
    %2260 = vadd.xlane.f32.xlu0 %v2259
    %v2261 = vpop.xlane.xlu0 %2260
    %v2262 = vadd.f32 %v2244, %v2245
    %2263 = vadd.xlane.f32.xlu0 %v2262
    %v2264 = vpop.xlane.xlu0 %2263
    %v2265 = vadd.f32 %v2246, %v2247
    %2266 = vadd.xlane.f32.xlu0 %v2265
    %v2267 = vpop.xlane.xlu0 %2266
    %v2268 = vadd.f32 %v2248, %v2249
    %2269 = vadd.xlane.f32.xlu0 %v2268
    %v2270 = vpop.xlane.xlu0 %2269
    %v2271 = vadd.f32 %v2250, %v2251
    %2272 = vadd.xlane.f32.xlu0 %v2271
    %v2273 = vpop.xlane.xlu0 %2272
    %v2274 = vadd.f32 %v2252, %v2253
    %2275 = vadd.xlane.f32.xlu0 %v2274
    %v2276 = vpop.xlane.xlu0 %2275
    %v2277 = vadd.f32 %v2254, %v2255
    %2278 = vadd.xlane.f32.xlu0 %v2277
    %v2279 = vpop.xlane.xlu0 %2278
    %2280 = vxpose.xlu0.b32.start [1/16] %v2258, 128
    %2281 = vxpose.xlu0.b32.cont [2/16] %v2261, 128
    %2282 = vxpose.xlu0.b32.cont [3/16] %v2264, 128
    %2283 = vxpose.xlu0.b32.cont [4/16] %v2267, 128
    %2284 = vxpose.xlu0.b32.cont [5/16] %v2270, 128
    %2285 = vxpose.xlu0.b32.cont [6/16] %v2273, 128
    %2286 = vxpose.xlu0.b32.cont [7/16] %v2276, 128
    %2287 = vxpose.xlu0.b32.cont [8/16] %v2279, 128
    %2288 = vxpose.xlu0.b32.cont [9/16] 0.0, 128
    %2289 = vxpose.xlu0.b32.cont [10/16] 0.0, 128
    %2290 = vxpose.xlu0.b32.cont [11/16] 0.0, 128
    %2291 = vxpose.xlu0.b32.cont [12/16] 0.0, 128
    %2292 = vxpose.xlu0.b32.cont [13/16] 0.0, 128
    %2293 = vxpose.xlu0.b32.cont [14/16] 0.0, 128
    %2294 = vxpose.xlu0.b32.cont [15/16] 0.0, 128
    %2295 = vxpose.xlu0.b32.end [16/16] 0.0, 128
    %v2296 = vpop.trf.xlu0
    %v2297 = vpop.trf.xlu0
    %v2298 = vpop.trf.xlu0
    %v2299 = vpop.trf.xlu0
    %v2300 = vpop.trf.xlu0
    %v2301 = vpop.trf.xlu0
    %v2302 = vpop.trf.xlu0
    %v2303 = vpop.trf.xlu0
    %v2304 = vpop.trf.xlu0
    %v2305 = vpop.trf.xlu0
    %v2306 = vpop.trf.xlu0
    %v2307 = vpop.trf.xlu0
    %v2308 = vpop.trf.xlu0
    %v2309 = vpop.trf.xlu0
    %v2310 = vpop.trf.xlu0
    %v2311 = vpop.trf.xlu0
    %v2312 = vlaneseq
    %v2313 = vshrl.u32 %v2312, 7
    %v2314 = vsub.s32 0, %v2313
    %v2315 = vrot.slane %v2296, %v2314
    %v2316 = vadd.f32 %v2205, %v2315
    %v2317 = vadd.f32 %v2208, %v2315
    %v2318 = vadd.f32 %v2211, %v2315
    %v2319 = vadd.f32 %v2214, %v2315
    %v2320 = vadd.f32 %v2217, %v2315
    %v2321 = vadd.f32 %v2220, %v2315
    %v2322 = vadd.f32 %v2223, %v2315
    %v2323 = vadd.f32 %v2226, %v2315
    %vm2324 = vcmp.gt.f32.partialorder %v2316, 0.0
    %vm2325 = vcmp.gt.f32.partialorder %v2317, 0.0
    %vm2326 = vcmp.gt.f32.partialorder %v2318, 0.0
    %vm2327 = vcmp.gt.f32.partialorder %v2319, 0.0
    %vm2328 = vcmp.gt.f32.partialorder %v2320, 0.0
    %vm2329 = vcmp.gt.f32.partialorder %v2321, 0.0
    %vm2330 = vcmp.gt.f32.partialorder %v2322, 0.0
    %vm2331 = vcmp.gt.f32.partialorder %v2323, 0.0
    %v2332 = vmul.f32 %v2316, 0.2
    %v2333 = vmul.f32 %v2317, 0.2
    %v2334 = vmul.f32 %v2318, 0.2
    %v2335 = vmul.f32 %v2319, 0.2
    %v2336 = vmul.f32 %v2320, 0.2
    %v2337 = vmul.f32 %v2321, 0.2
    %v2338 = vmul.f32 %v2322, 0.2
    %v2339 = vmul.f32 %v2323, 0.2
    %v2340 = vsel %vm2324, %v2316, %v2332
    %v2341 = vsel %vm2325, %v2317, %v2333
    %v2342 = vsel %vm2326, %v2318, %v2334
    %v2343 = vsel %vm2327, %v2319, %v2335
    %v2344 = vsel %vm2328, %v2320, %v2336
    %v2345 = vsel %vm2329, %v2321, %v2337
    %v2346 = vsel %vm2330, %v2322, %v2338
    %v2347 = vsel %vm2331, %v2323, %v2339
    %v2348 = vsel %vm1484, %v2340, -1e+30
    %v2349 = vsel %vm1485, %v2341, -1e+30
    %v2350 = vsel %vm1486, %v2342, -1e+30
    %v2351 = vsel %vm1487, %v2343, -1e+30
    %v2352 = vsel %vm1488, %v2344, -1e+30
    %v2353 = vsel %vm1489, %v2345, -1e+30
    %v2354 = vsel %vm1490, %v2346, -1e+30
    %v2355 = vsel %vm1491, %v2347, -1e+30
    %v2356 = vsel %vm1500, %v2348, -inf
    %2357 = vmax.xlane.f32.xlu0 %v2356
    %v2358 = vpop.xlane.xlu0 %2357
    %v2359 = vsel %vm1500, %v2349, -inf
    %2360 = vmax.xlane.f32.xlu0 %v2359
    %v2361 = vpop.xlane.xlu0 %2360
    %v2362 = vsel %vm1500, %v2350, -inf
    %2363 = vmax.xlane.f32.xlu0 %v2362
    %v2364 = vpop.xlane.xlu0 %2363
    %v2365 = vsel %vm1500, %v2351, -inf
    %2366 = vmax.xlane.f32.xlu0 %v2365
    %v2367 = vpop.xlane.xlu0 %2366
    %v2368 = vsel %vm1500, %v2352, -inf
    %2369 = vmax.xlane.f32.xlu0 %v2368
    %v2370 = vpop.xlane.xlu0 %2369
    %v2371 = vsel %vm1500, %v2353, -inf
    %2372 = vmax.xlane.f32.xlu0 %v2371
    %v2373 = vpop.xlane.xlu0 %2372
    %v2374 = vsel %vm1500, %v2354, -inf
    %2375 = vmax.xlane.f32.xlu0 %v2374
    %v2376 = vpop.xlane.xlu0 %2375
    %v2377 = vsel %vm1500, %v2355, -inf
    %2378 = vmax.xlane.f32.xlu0 %v2377
    %v2379 = vpop.xlane.xlu0 %2378
    %v2380 = vsub.f32 %v2348, %v2358
    %v2381 = vsub.f32 %v2349, %v2361
    %v2382 = vsub.f32 %v2350, %v2364
    %v2383 = vsub.f32 %v2351, %v2367
    %v2384 = vsub.f32 %v2352, %v2370
    %v2385 = vsub.f32 %v2353, %v2373
    %v2386 = vsub.f32 %v2354, %v2376
    %v2387 = vsub.f32 %v2355, %v2379
    %v2388 = vmul.f32 %v2380, 1.442695
    %v2389 = vpow.pop %v2388
    %v2390 = vmul.f32 %v2381, 1.442695
    %v2391 = vpow.pop %v2390
    %v2392 = vmul.f32 %v2382, 1.442695
    %v2393 = vpow.pop %v2392
    %v2394 = vmul.f32 %v2383, 1.442695
    %v2395 = vpow.pop %v2394
    %v2396 = vmul.f32 %v2384, 1.442695
    %v2397 = vpow.pop %v2396
    %v2398 = vmul.f32 %v2385, 1.442695
    %v2399 = vpow.pop %v2398
    %v2400 = vmul.f32 %v2386, 1.442695
    %v2401 = vpow.pop %v2400
    %v2402 = vmul.f32 %v2387, 1.442695
    %v2403 = vpow.pop %v2402
    %v2404 = vsel %vm1500, %v2389, 0.0
    %2405 = vadd.xlane.f32.xlu0 %v2404
    %v2406 = vpop.xlane.xlu0 %2405
    %v2407 = vsel %vm1500, %v2391, 0.0
    %2408 = vadd.xlane.f32.xlu0 %v2407
    %v2409 = vpop.xlane.xlu0 %2408
    %v2410 = vsel %vm1500, %v2393, 0.0
    %2411 = vadd.xlane.f32.xlu0 %v2410
    %v2412 = vpop.xlane.xlu0 %2411
    %v2413 = vsel %vm1500, %v2395, 0.0
    %2414 = vadd.xlane.f32.xlu0 %v2413
    %v2415 = vpop.xlane.xlu0 %2414
    %v2416 = vsel %vm1500, %v2397, 0.0
    %2417 = vadd.xlane.f32.xlu0 %v2416
    %v2418 = vpop.xlane.xlu0 %2417
    %v2419 = vsel %vm1500, %v2399, 0.0
    %2420 = vadd.xlane.f32.xlu0 %v2419
    %v2421 = vpop.xlane.xlu0 %2420
    %v2422 = vsel %vm1500, %v2401, 0.0
    %2423 = vadd.xlane.f32.xlu0 %v2422
    %v2424 = vpop.xlane.xlu0 %2423
    %v2425 = vsel %vm1500, %v2403, 0.0
    %2426 = vadd.xlane.f32.xlu0 %v2425
    %v2427 = vpop.xlane.xlu0 %2426
    %v2428 = vmax.f32 %v2406, 1e-20
    %v2429 = vmax.f32 %v2409, 1e-20
    %v2430 = vmax.f32 %v2412, 1e-20
    %v2431 = vmax.f32 %v2415, 1e-20
    %v2432 = vmax.f32 %v2418, 1e-20
    %v2433 = vmax.f32 %v2421, 1e-20
    %v2434 = vmax.f32 %v2424, 1e-20
    %v2435 = vmax.f32 %v2427, 1e-20
    %v2436 = vrcp.pop %v2428
    %v2437 = vrcp.pop %v2429
    %v2438 = vrcp.pop %v2430
    %v2439 = vrcp.pop %v2431
    %v2440 = vrcp.pop %v2432
    %v2441 = vrcp.pop %v2433
    %v2442 = vrcp.pop %v2434
    %v2443 = vrcp.pop %v2435
    %v2444 = vpack.c.bf16 %v2391, %v2389
    %v2445 = vpack.c.bf16 %v2395, %v2393
    %v2446 = vpack.c.bf16 %v2399, %v2397
    %v2447 = vpack.c.bf16 %v2403, %v2401
    %v2448 = vpack.c.bf16 %v1205, %v1201
    %v2449 = vpack.c.bf16 %v1207, %v1203
    %v2450 = vpack.c.bf16 %v1215, %v1211
    %v2451 = vpack.c.bf16 %v1217, %v1213
    %v2452 = vpack.c.bf16 %v1225, %v1221
    %v2453 = vpack.c.bf16 %v1227, %v1223
    %v2454 = vpack.c.bf16 %v1235, %v1231
    %v2455 = vpack.c.bf16 %v1237, %v1233
    %v2457 = vsel %vm1500, %v2444, 0
    %v2460 = vsel %vm1500, %v2445, 0
    %v2463 = vsel %vm1500, %v2446, 0
    %v2466 = vsel %vm1500, %v2447, 0
    %2468 = vmatprep.subr.bf16.mxu0 %v2449
    %2469 = vmatpush1.bf16.msra.mxu0 %v2448
    %2470 = vmatprep.subr.bf16.mxu0 %v2451
    %2471 = vmatpush1.bf16.msra.mxu0 %v2450
    %2472 = vmatprep.subr.bf16.mxu0 %v2453
    %2473 = vmatpush1.bf16.msra.mxu0 %v2452
    %2474 = vmatprep.subr.bf16.mxu0 %v2455
    %2475 = vmatpush1.bf16.msra.mxu0 %v2454
    %2476 = vmatprep.subr.bf16.mxu0 0
    %2477 = vmatpush1.bf16.msra.mxu0 0
    %2478 = vmatprep.subr.bf16.mxu0 0
    %2479 = vmatpush1.bf16.msra.mxu0 0
    %2480 = vmatprep.subr.bf16.mxu0 0
    %2481 = vmatpush1.bf16.msra.mxu0 0
    %2482 = vmatprep.subr.bf16.mxu0 0
    %2483 = vmatpush1.bf16.msra.mxu0 0
    %2484 = vmatprep.subr.bf16.mxu0 0
    %2485 = vmatpush1.bf16.msra.mxu0 0
    %2486 = vmatprep.subr.bf16.mxu0 0
    %2487 = vmatpush1.bf16.msra.mxu0 0
    %2488 = vmatprep.subr.bf16.mxu0 0
    %2489 = vmatpush1.bf16.msra.mxu0 0
    %2490 = vmatprep.subr.bf16.mxu0 0
    %2491 = vmatpush1.bf16.msra.mxu0 0
    %2492 = vmatprep.subr.bf16.mxu0 0
    %2493 = vmatpush1.bf16.msra.mxu0 0
    %2494 = vmatprep.subr.bf16.mxu0 0
    %2495 = vmatpush1.bf16.msra.mxu0 0
    %2496 = vmatprep.subr.bf16.mxu0 0
    %2497 = vmatpush1.bf16.msra.mxu0 0
    %2498 = vmatprep.subr.bf16.mxu0 0
    %2499 = vmatpush1.bf16.msra.mxu0 0
    %2500 = vmatprep.mubr.bf16.mxu0 0
    %2501 = vmatmul.mubr.bf16.gmra.mrb[0].mxu0 %v2457
    %v2502 = vpop.f32.mrb[0].mxu0
    %v2503 = vadd.f32 0.0, %v2502
    %v2504 = vpop.f32.mrb[0].mxu0
    %v2505 = vadd.f32 0.0, %v2504
    %v2506 = vpop.f32.mrb[0].mxu0
    %v2507 = vadd.f32 0.0, %v2506
    %v2508 = vpop.f32.mrb[0].mxu0
    %v2509 = vadd.f32 0.0, %v2508
    %2510 = vmatprep.mubr.bf16.mxu0 0
    %2511 = vmatmul.mubr.bf16.gmra.mrb[0].mxu0 %v2460
    %v2512 = vpop.f32.mrb[0].mxu0
    %v2513 = vadd.f32 0.0, %v2512
    %v2514 = vpop.f32.mrb[0].mxu0
    %v2515 = vadd.f32 0.0, %v2514
    %v2516 = vpop.f32.mrb[0].mxu0
    %v2517 = vadd.f32 0.0, %v2516
    %v2518 = vpop.f32.mrb[0].mxu0
    %v2519 = vadd.f32 0.0, %v2518
    %2520 = vmatprep.mubr.bf16.mxu0 0
    %2521 = vmatmul.mubr.bf16.gmra.mrb[0].mxu0 %v2463
    %v2522 = vpop.f32.mrb[0].mxu0
    %v2523 = vadd.f32 0.0, %v2522
    %v2524 = vpop.f32.mrb[0].mxu0
    %v2525 = vadd.f32 0.0, %v2524
    %v2526 = vpop.f32.mrb[0].mxu0
    %v2527 = vadd.f32 0.0, %v2526
    %v2528 = vpop.f32.mrb[0].mxu0
    %v2529 = vadd.f32 0.0, %v2528
    %2530 = vmatprep.mubr.bf16.mxu0 0
    %2531 = vmatmul.mubr.bf16.gmra.mrb[0].mxu0 %v2466
    %v2532 = vpop.f32.mrb[0].mxu0
    %v2533 = vadd.f32 0.0, %v2532
    %v2534 = vpop.f32.mrb[0].mxu0
    %v2535 = vadd.f32 0.0, %v2534
    %v2536 = vpop.f32.mrb[0].mxu0
    %v2537 = vadd.f32 0.0, %v2536
    %v2538 = vpop.f32.mrb[0].mxu0
    %v2539 = vadd.f32 0.0, %v2538
    %2540 = vdwg.mxu0
    %v2541 = vmul.f32 %v2503, %v2436
    %v2542 = vmul.f32 %v2505, %v2436
    %v2543 = vmul.f32 %v2507, %v2437
    %v2544 = vmul.f32 %v2509, %v2437
    %v2545 = vmul.f32 %v2513, %v2438
    %v2546 = vmul.f32 %v2515, %v2438
    %v2547 = vmul.f32 %v2517, %v2439
    %v2548 = vmul.f32 %v2519, %v2439
    %v2549 = vmul.f32 %v2523, %v2440
    %v2550 = vmul.f32 %v2525, %v2440
    %v2551 = vmul.f32 %v2527, %v2441
    %v2552 = vmul.f32 %v2529, %v2441
    %v2553 = vmul.f32 %v2533, %v2442
    %v2554 = vmul.f32 %v2535, %v2442
    %v2555 = vmul.f32 %v2537, %v2443
    %v2556 = vmul.f32 %v2539, %v2443
    %s2557 = scalar_lea.vmem %s7, 4
    %v2558 = vld [vmem:[%s2557] sm:$0x3]
    %v2560 = vlaneseq
    %v2561 = vshrl.u32 %v2560, 7
    %v2562 = vsub.s32 0, %v2561
    %v2563 = vrot.slane %v2558, %v2562
    %v2564 = vlaneseq
    %v2565 = vshrl.u32 %v2564, 7
    %v2566 = vsub.s32 1, %v2565
    %v2567 = vrot.slane %v2558, %v2566
    %v2570 = vadd.f32 %v2541, %v2563
    %v2571 = vadd.f32 %v2542, %v2567
    %v2572 = vadd.f32 %v2543, %v2563
    %v2573 = vadd.f32 %v2544, %v2567
    %v2574 = vadd.f32 %v2545, %v2563
    %v2575 = vadd.f32 %v2546, %v2567
    %v2576 = vadd.f32 %v2547, %v2563
    %v2577 = vadd.f32 %v2548, %v2567
    %v2578 = vadd.f32 %v2549, %v2563
    %v2579 = vadd.f32 %v2550, %v2567
    %v2580 = vadd.f32 %v2551, %v2563
    %v2581 = vadd.f32 %v2552, %v2567
    %v2582 = vadd.f32 %v2553, %v2563
    %v2583 = vadd.f32 %v2554, %v2567
    %v2584 = vadd.f32 %v2555, %v2563
    %v2585 = vadd.f32 %v2556, %v2567
    %v2586 = vtanh.pop %v2570
    %v2587 = vtanh.pop %v2571
    %v2588 = vtanh.pop %v2572
    %v2589 = vtanh.pop %v2573
    %v2590 = vtanh.pop %v2574
    %v2591 = vtanh.pop %v2575
    %v2592 = vtanh.pop %v2576
    %v2593 = vtanh.pop %v2577
    %v2594 = vtanh.pop %v2578
    %v2595 = vtanh.pop %v2579
    %v2596 = vtanh.pop %v2580
    %v2597 = vtanh.pop %v2581
    %v2598 = vtanh.pop %v2582
    %v2599 = vtanh.pop %v2583
    %v2600 = vtanh.pop %v2584
    %v2601 = vtanh.pop %v2585
    %s2602 = scalar_lea.vmem %s6, 6
    %v2603 = vld [vmem:[%s2602] sm:$0x3]
    %v2605 = vlaneseq
    %v2606 = vshrl.u32 %v2605, 7
    %v2607 = vsub.s32 0, %v2606
    %v2608 = vrot.slane %v2603, %v2607
    %v2609 = vlaneseq
    %v2610 = vshrl.u32 %v2609, 7
    %v2611 = vsub.s32 1, %v2610
    %v2612 = vrot.slane %v2603, %v2611
    %v2615 = vmul.f32 %v1274, %v2608
    %v2616 = vmul.f32 %v1276, %v2612
    %v2617 = vmul.f32 %v1278, %v2608
    %v2618 = vmul.f32 %v1280, %v2612
    %v2619 = vmul.f32 %v1284, %v2608
    %v2620 = vmul.f32 %v1286, %v2612
    %v2621 = vmul.f32 %v1288, %v2608
    %v2622 = vmul.f32 %v1290, %v2612
    %v2623 = vmul.f32 %v1294, %v2608
    %v2624 = vmul.f32 %v1296, %v2612
    %v2625 = vmul.f32 %v1298, %v2608
    %v2626 = vmul.f32 %v1300, %v2612
    %v2627 = vmul.f32 %v1304, %v2608
    %v2628 = vmul.f32 %v1306, %v2612
    %v2629 = vmul.f32 %v1308, %v2608
    %v2630 = vmul.f32 %v1310, %v2612
    %v2631 = vadd.f32 %v2615, %v2616
    %2632 = vadd.xlane.f32.xlu0 %v2631
    %v2633 = vpop.xlane.xlu0 %2632
    %v2634 = vadd.f32 %v2617, %v2618
    %2635 = vadd.xlane.f32.xlu0 %v2634
    %v2636 = vpop.xlane.xlu0 %2635
    %v2637 = vadd.f32 %v2619, %v2620
    %2638 = vadd.xlane.f32.xlu0 %v2637
    %v2639 = vpop.xlane.xlu0 %2638
    %v2640 = vadd.f32 %v2621, %v2622
    %2641 = vadd.xlane.f32.xlu0 %v2640
    %v2642 = vpop.xlane.xlu0 %2641
    %v2643 = vadd.f32 %v2623, %v2624
    %2644 = vadd.xlane.f32.xlu0 %v2643
    %v2645 = vpop.xlane.xlu0 %2644
    %v2646 = vadd.f32 %v2625, %v2626
    %2647 = vadd.xlane.f32.xlu0 %v2646
    %v2648 = vpop.xlane.xlu0 %2647
    %v2649 = vadd.f32 %v2627, %v2628
    %2650 = vadd.xlane.f32.xlu0 %v2649
    %v2651 = vpop.xlane.xlu0 %2650
    %v2652 = vadd.f32 %v2629, %v2630
    %2653 = vadd.xlane.f32.xlu0 %v2652
    %v2654 = vpop.xlane.xlu0 %2653
    %s2655 = scalar_lea.vmem %s5, 6
    %v2656 = vld [vmem:[%s2655] sm:$0x3]
    %v2658 = vlaneseq
    %v2659 = vshrl.u32 %v2658, 7
    %v2660 = vsub.s32 0, %v2659
    %v2661 = vrot.slane %v2656, %v2660
    %v2662 = vlaneseq
    %v2663 = vshrl.u32 %v2662, 7
    %v2664 = vsub.s32 1, %v2663
    %v2665 = vrot.slane %v2656, %v2664
    %v2668 = vmul.f32 %v1274, %v2661
    %v2669 = vmul.f32 %v1276, %v2665
    %v2670 = vmul.f32 %v1278, %v2661
    %v2671 = vmul.f32 %v1280, %v2665
    %v2672 = vmul.f32 %v1284, %v2661
    %v2673 = vmul.f32 %v1286, %v2665
    %v2674 = vmul.f32 %v1288, %v2661
    %v2675 = vmul.f32 %v1290, %v2665
    %v2676 = vmul.f32 %v1294, %v2661
    %v2677 = vmul.f32 %v1296, %v2665
    %v2678 = vmul.f32 %v1298, %v2661
    %v2679 = vmul.f32 %v1300, %v2665
    %v2680 = vmul.f32 %v1304, %v2661
    %v2681 = vmul.f32 %v1306, %v2665
    %v2682 = vmul.f32 %v1308, %v2661
    %v2683 = vmul.f32 %v1310, %v2665
    %v2684 = vadd.f32 %v2668, %v2669
    %2685 = vadd.xlane.f32.xlu0 %v2684
    %v2686 = vpop.xlane.xlu0 %2685
    %v2687 = vadd.f32 %v2670, %v2671
    %2688 = vadd.xlane.f32.xlu0 %v2687
    %v2689 = vpop.xlane.xlu0 %2688
    %v2690 = vadd.f32 %v2672, %v2673
    %2691 = vadd.xlane.f32.xlu0 %v2690
    %v2692 = vpop.xlane.xlu0 %2691
    %v2693 = vadd.f32 %v2674, %v2675
    %2694 = vadd.xlane.f32.xlu0 %v2693
    %v2695 = vpop.xlane.xlu0 %2694
    %v2696 = vadd.f32 %v2676, %v2677
    %2697 = vadd.xlane.f32.xlu0 %v2696
    %v2698 = vpop.xlane.xlu0 %2697
    %v2699 = vadd.f32 %v2678, %v2679
    %2700 = vadd.xlane.f32.xlu0 %v2699
    %v2701 = vpop.xlane.xlu0 %2700
    %v2702 = vadd.f32 %v2680, %v2681
    %2703 = vadd.xlane.f32.xlu0 %v2702
    %v2704 = vpop.xlane.xlu0 %2703
    %v2705 = vadd.f32 %v2682, %v2683
    %2706 = vadd.xlane.f32.xlu0 %v2705
    %v2707 = vpop.xlane.xlu0 %2706
    %2708 = vxpose.xlu0.b32.start [1/16] %v2686, 128
    %2709 = vxpose.xlu0.b32.cont [2/16] %v2689, 128
    %2710 = vxpose.xlu0.b32.cont [3/16] %v2692, 128
    %2711 = vxpose.xlu0.b32.cont [4/16] %v2695, 128
    %2712 = vxpose.xlu0.b32.cont [5/16] %v2698, 128
    %2713 = vxpose.xlu0.b32.cont [6/16] %v2701, 128
    %2714 = vxpose.xlu0.b32.cont [7/16] %v2704, 128
    %2715 = vxpose.xlu0.b32.cont [8/16] %v2707, 128
    %2716 = vxpose.xlu0.b32.cont [9/16] 0.0, 128
    %2717 = vxpose.xlu0.b32.cont [10/16] 0.0, 128
    %2718 = vxpose.xlu0.b32.cont [11/16] 0.0, 128
    %2719 = vxpose.xlu0.b32.cont [12/16] 0.0, 128
    %2720 = vxpose.xlu0.b32.cont [13/16] 0.0, 128
    %2721 = vxpose.xlu0.b32.cont [14/16] 0.0, 128
    %2722 = vxpose.xlu0.b32.cont [15/16] 0.0, 128
    %2723 = vxpose.xlu0.b32.end [16/16] 0.0, 128
    %v2724 = vpop.trf.xlu0
    %v2725 = vpop.trf.xlu0
    %v2726 = vpop.trf.xlu0
    %v2727 = vpop.trf.xlu0
    %v2728 = vpop.trf.xlu0
    %v2729 = vpop.trf.xlu0
    %v2730 = vpop.trf.xlu0
    %v2731 = vpop.trf.xlu0
    %v2732 = vpop.trf.xlu0
    %v2733 = vpop.trf.xlu0
    %v2734 = vpop.trf.xlu0
    %v2735 = vpop.trf.xlu0
    %v2736 = vpop.trf.xlu0
    %v2737 = vpop.trf.xlu0
    %v2738 = vpop.trf.xlu0
    %v2739 = vpop.trf.xlu0
    %v2740 = vlaneseq
    %v2741 = vshrl.u32 %v2740, 7
    %v2742 = vsub.s32 0, %v2741
    %v2743 = vrot.slane %v2724, %v2742
    %v2744 = vadd.f32 %v2633, %v2743
    %v2745 = vadd.f32 %v2636, %v2743
    %v2746 = vadd.f32 %v2639, %v2743
    %v2747 = vadd.f32 %v2642, %v2743
    %v2748 = vadd.f32 %v2645, %v2743
    %v2749 = vadd.f32 %v2648, %v2743
    %v2750 = vadd.f32 %v2651, %v2743
    %v2751 = vadd.f32 %v2654, %v2743
    %vm2752 = vcmp.gt.f32.partialorder %v2744, 0.0
    %vm2753 = vcmp.gt.f32.partialorder %v2745, 0.0
    %vm2754 = vcmp.gt.f32.partialorder %v2746, 0.0
    %vm2755 = vcmp.gt.f32.partialorder %v2747, 0.0
    %vm2756 = vcmp.gt.f32.partialorder %v2748, 0.0
    %vm2757 = vcmp.gt.f32.partialorder %v2749, 0.0
    %vm2758 = vcmp.gt.f32.partialorder %v2750, 0.0
    %vm2759 = vcmp.gt.f32.partialorder %v2751, 0.0
    %v2760 = vmul.f32 %v2744, 0.2
    %v2761 = vmul.f32 %v2745, 0.2
    %v2762 = vmul.f32 %v2746, 0.2
    %v2763 = vmul.f32 %v2747, 0.2
    %v2764 = vmul.f32 %v2748, 0.2
    %v2765 = vmul.f32 %v2749, 0.2
    %v2766 = vmul.f32 %v2750, 0.2
    %v2767 = vmul.f32 %v2751, 0.2
    %v2768 = vsel %vm2752, %v2744, %v2760
    %v2769 = vsel %vm2753, %v2745, %v2761
    %v2770 = vsel %vm2754, %v2746, %v2762
    %v2771 = vsel %vm2755, %v2747, %v2763
    %v2772 = vsel %vm2756, %v2748, %v2764
    %v2773 = vsel %vm2757, %v2749, %v2765
    %v2774 = vsel %vm2758, %v2750, %v2766
    %v2775 = vsel %vm2759, %v2751, %v2767
    %v2776 = vsel %vm1484, %v2768, -1e+30
    %v2777 = vsel %vm1485, %v2769, -1e+30
    %v2778 = vsel %vm1486, %v2770, -1e+30
    %v2779 = vsel %vm1487, %v2771, -1e+30
    %v2780 = vsel %vm1488, %v2772, -1e+30
    %v2781 = vsel %vm1489, %v2773, -1e+30
    %v2782 = vsel %vm1490, %v2774, -1e+30
    %v2783 = vsel %vm1491, %v2775, -1e+30
    %v2784 = vsel %vm1500, %v2776, -inf
    %2785 = vmax.xlane.f32.xlu0 %v2784
    %v2786 = vpop.xlane.xlu0 %2785
    %v2787 = vsel %vm1500, %v2777, -inf
    %2788 = vmax.xlane.f32.xlu0 %v2787
    %v2789 = vpop.xlane.xlu0 %2788
    %v2790 = vsel %vm1500, %v2778, -inf
    %2791 = vmax.xlane.f32.xlu0 %v2790
    %v2792 = vpop.xlane.xlu0 %2791
    %v2793 = vsel %vm1500, %v2779, -inf
    %2794 = vmax.xlane.f32.xlu0 %v2793
    %v2795 = vpop.xlane.xlu0 %2794
    %v2796 = vsel %vm1500, %v2780, -inf
    %2797 = vmax.xlane.f32.xlu0 %v2796
    %v2798 = vpop.xlane.xlu0 %2797
    %v2799 = vsel %vm1500, %v2781, -inf
    %2800 = vmax.xlane.f32.xlu0 %v2799
    %v2801 = vpop.xlane.xlu0 %2800
    %v2802 = vsel %vm1500, %v2782, -inf
    %2803 = vmax.xlane.f32.xlu0 %v2802
    %v2804 = vpop.xlane.xlu0 %2803
    %v2805 = vsel %vm1500, %v2783, -inf
    %2806 = vmax.xlane.f32.xlu0 %v2805
    %v2807 = vpop.xlane.xlu0 %2806
    %v2808 = vsub.f32 %v2776, %v2786
    %v2809 = vsub.f32 %v2777, %v2789
    %v2810 = vsub.f32 %v2778, %v2792
    %v2811 = vsub.f32 %v2779, %v2795
    %v2812 = vsub.f32 %v2780, %v2798
    %v2813 = vsub.f32 %v2781, %v2801
    %v2814 = vsub.f32 %v2782, %v2804
    %v2815 = vsub.f32 %v2783, %v2807
    %v2816 = vmul.f32 %v2808, 1.442695
    %v2817 = vpow.pop %v2816
    %v2818 = vmul.f32 %v2809, 1.442695
    %v2819 = vpow.pop %v2818
    %v2820 = vmul.f32 %v2810, 1.442695
    %v2821 = vpow.pop %v2820
    %v2822 = vmul.f32 %v2811, 1.442695
    %v2823 = vpow.pop %v2822
    %v2824 = vmul.f32 %v2812, 1.442695
    %v2825 = vpow.pop %v2824
    %v2826 = vmul.f32 %v2813, 1.442695
    %v2827 = vpow.pop %v2826
    %v2828 = vmul.f32 %v2814, 1.442695
    %v2829 = vpow.pop %v2828
    %v2830 = vmul.f32 %v2815, 1.442695
    %v2831 = vpow.pop %v2830
    %v2832 = vsel %vm1500, %v2817, 0.0
    %2833 = vadd.xlane.f32.xlu0 %v2832
    %v2834 = vpop.xlane.xlu0 %2833
    %v2835 = vsel %vm1500, %v2819, 0.0
    %2836 = vadd.xlane.f32.xlu0 %v2835
    %v2837 = vpop.xlane.xlu0 %2836
    %v2838 = vsel %vm1500, %v2821, 0.0
    %2839 = vadd.xlane.f32.xlu0 %v2838
    %v2840 = vpop.xlane.xlu0 %2839
    %v2841 = vsel %vm1500, %v2823, 0.0
    %2842 = vadd.xlane.f32.xlu0 %v2841
    %v2843 = vpop.xlane.xlu0 %2842
    %v2844 = vsel %vm1500, %v2825, 0.0
    %2845 = vadd.xlane.f32.xlu0 %v2844
    %v2846 = vpop.xlane.xlu0 %2845
    %v2847 = vsel %vm1500, %v2827, 0.0
    %2848 = vadd.xlane.f32.xlu0 %v2847
    %v2849 = vpop.xlane.xlu0 %2848
    %v2850 = vsel %vm1500, %v2829, 0.0
    %2851 = vadd.xlane.f32.xlu0 %v2850
    %v2852 = vpop.xlane.xlu0 %2851
    %v2853 = vsel %vm1500, %v2831, 0.0
    %2854 = vadd.xlane.f32.xlu0 %v2853
    %v2855 = vpop.xlane.xlu0 %2854
    %v2856 = vmax.f32 %v2834, 1e-20
    %v2857 = vmax.f32 %v2837, 1e-20
    %v2858 = vmax.f32 %v2840, 1e-20
    %v2859 = vmax.f32 %v2843, 1e-20
    %v2860 = vmax.f32 %v2846, 1e-20
    %v2861 = vmax.f32 %v2849, 1e-20
    %v2862 = vmax.f32 %v2852, 1e-20
    %v2863 = vmax.f32 %v2855, 1e-20
    %v2864 = vrcp.pop %v2856
    %v2865 = vrcp.pop %v2857
    %v2866 = vrcp.pop %v2858
    %v2867 = vrcp.pop %v2859
    %v2868 = vrcp.pop %v2860
    %v2869 = vrcp.pop %v2861
    %v2870 = vrcp.pop %v2862
    %v2871 = vrcp.pop %v2863
    %v2872 = vpack.c.bf16 %v2819, %v2817
    %v2873 = vpack.c.bf16 %v2823, %v2821
    %v2874 = vpack.c.bf16 %v2827, %v2825
    %v2875 = vpack.c.bf16 %v2831, %v2829
    %v2876 = vpack.c.bf16 %v1278, %v1274
    %v2877 = vpack.c.bf16 %v1280, %v1276
    %v2878 = vpack.c.bf16 %v1288, %v1284
    %v2879 = vpack.c.bf16 %v1290, %v1286
    %v2880 = vpack.c.bf16 %v1298, %v1294
    %v2881 = vpack.c.bf16 %v1300, %v1296
    %v2882 = vpack.c.bf16 %v1308, %v1304
    %v2883 = vpack.c.bf16 %v1310, %v1306
    %v2885 = vsel %vm1500, %v2872, 0
    %v2888 = vsel %vm1500, %v2873, 0
    %v2891 = vsel %vm1500, %v2874, 0
    %v2894 = vsel %vm1500, %v2875, 0
    %2896 = vmatprep.subr.bf16.mxu0 %v2877
    %2897 = vmatpush1.bf16.msra.mxu0 %v2876
    %2898 = vmatprep.subr.bf16.mxu0 %v2879
    %2899 = vmatpush1.bf16.msra.mxu0 %v2878
    %2900 = vmatprep.subr.bf16.mxu0 %v2881
    %2901 = vmatpush1.bf16.msra.mxu0 %v2880
    %2902 = vmatprep.subr.bf16.mxu0 %v2883
    %2903 = vmatpush1.bf16.msra.mxu0 %v2882
    %2904 = vmatprep.subr.bf16.mxu0 0
    %2905 = vmatpush1.bf16.msra.mxu0 0
    %2906 = vmatprep.subr.bf16.mxu0 0
    %2907 = vmatpush1.bf16.msra.mxu0 0
    %2908 = vmatprep.subr.bf16.mxu0 0
    %2909 = vmatpush1.bf16.msra.mxu0 0
    %2910 = vmatprep.subr.bf16.mxu0 0
    %2911 = vmatpush1.bf16.msra.mxu0 0
    %2912 = vmatprep.subr.bf16.mxu0 0
    %2913 = vmatpush1.bf16.msra.mxu0 0
    %2914 = vmatprep.subr.bf16.mxu0 0
    %2915 = vmatpush1.bf16.msra.mxu0 0
    %2916 = vmatprep.subr.bf16.mxu0 0
    %2917 = vmatpush1.bf16.msra.mxu0 0
    %2918 = vmatprep.subr.bf16.mxu0 0
    %2919 = vmatpush1.bf16.msra.mxu0 0
    %2920 = vmatprep.subr.bf16.mxu0 0
    %2921 = vmatpush1.bf16.msra.mxu0 0
    %2922 = vmatprep.subr.bf16.mxu0 0
    %2923 = vmatpush1.bf16.msra.mxu0 0
    %2924 = vmatprep.subr.bf16.mxu0 0
    %2925 = vmatpush1.bf16.msra.mxu0 0
    %2926 = vmatprep.subr.bf16.mxu0 0
    %2927 = vmatpush1.bf16.msra.mxu0 0
    %2928 = vmatprep.mubr.bf16.mxu0 0
    %2929 = vmatmul.mubr.bf16.gmra.mrb[0].mxu0 %v2885
    %v2930 = vpop.f32.mrb[0].mxu0
    %v2931 = vadd.f32 0.0, %v2930
    %v2932 = vpop.f32.mrb[0].mxu0
    %v2933 = vadd.f32 0.0, %v2932
    %v2934 = vpop.f32.mrb[0].mxu0
    %v2935 = vadd.f32 0.0, %v2934
    %v2936 = vpop.f32.mrb[0].mxu0
    %v2937 = vadd.f32 0.0, %v2936
    %2938 = vmatprep.mubr.bf16.mxu0 0
    %2939 = vmatmul.mubr.bf16.gmra.mrb[0].mxu0 %v2888
    %v2940 = vpop.f32.mrb[0].mxu0
    %v2941 = vadd.f32 0.0, %v2940
    %v2942 = vpop.f32.mrb[0].mxu0
    %v2943 = vadd.f32 0.0, %v2942
    %v2944 = vpop.f32.mrb[0].mxu0
    %v2945 = vadd.f32 0.0, %v2944
    %v2946 = vpop.f32.mrb[0].mxu0
    %v2947 = vadd.f32 0.0, %v2946
    %2948 = vmatprep.mubr.bf16.mxu0 0
    %2949 = vmatmul.mubr.bf16.gmra.mrb[0].mxu0 %v2891
    %v2950 = vpop.f32.mrb[0].mxu0
    %v2951 = vadd.f32 0.0, %v2950
    %v2952 = vpop.f32.mrb[0].mxu0
    %v2953 = vadd.f32 0.0, %v2952
    %v2954 = vpop.f32.mrb[0].mxu0
    %v2955 = vadd.f32 0.0, %v2954
    %v2956 = vpop.f32.mrb[0].mxu0
    %v2957 = vadd.f32 0.0, %v2956
    %2958 = vmatprep.mubr.bf16.mxu0 0
    %2959 = vmatmul.mubr.bf16.gmra.mrb[0].mxu0 %v2894
    %v2960 = vpop.f32.mrb[0].mxu0
    %v2961 = vadd.f32 0.0, %v2960
    %v2962 = vpop.f32.mrb[0].mxu0
    %v2963 = vadd.f32 0.0, %v2962
    %v2964 = vpop.f32.mrb[0].mxu0
    %v2965 = vadd.f32 0.0, %v2964
    %v2966 = vpop.f32.mrb[0].mxu0
    %v2967 = vadd.f32 0.0, %v2966
    %2968 = vdwg.mxu0
    %v2969 = vmul.f32 %v2931, %v2864
    %v2970 = vmul.f32 %v2933, %v2864
    %v2971 = vmul.f32 %v2935, %v2865
    %v2972 = vmul.f32 %v2937, %v2865
    %v2973 = vmul.f32 %v2941, %v2866
    %v2974 = vmul.f32 %v2943, %v2866
    %v2975 = vmul.f32 %v2945, %v2867
    %v2976 = vmul.f32 %v2947, %v2867
    %v2977 = vmul.f32 %v2951, %v2868
    %v2978 = vmul.f32 %v2953, %v2868
    %v2979 = vmul.f32 %v2955, %v2869
    %v2980 = vmul.f32 %v2957, %v2869
    %v2981 = vmul.f32 %v2961, %v2870
    %v2982 = vmul.f32 %v2963, %v2870
    %v2983 = vmul.f32 %v2965, %v2871
    %v2984 = vmul.f32 %v2967, %v2871
    %s2985 = scalar_lea.vmem %s7, 6
    %v2986 = vld [vmem:[%s2985] sm:$0x3]
    %v2988 = vlaneseq
    %v2989 = vshrl.u32 %v2988, 7
    %v2990 = vsub.s32 0, %v2989
    %v2991 = vrot.slane %v2986, %v2990
    %v2992 = vlaneseq
    %v2993 = vshrl.u32 %v2992, 7
    %v2994 = vsub.s32 1, %v2993
    %v2995 = vrot.slane %v2986, %v2994
    %v2998 = vadd.f32 %v2969, %v2991
    %v2999 = vadd.f32 %v2970, %v2995
    %v3000 = vadd.f32 %v2971, %v2991
    %v3001 = vadd.f32 %v2972, %v2995
    %v3002 = vadd.f32 %v2973, %v2991
    %v3003 = vadd.f32 %v2974, %v2995
    %v3004 = vadd.f32 %v2975, %v2991
    %v3005 = vadd.f32 %v2976, %v2995
    %v3006 = vadd.f32 %v2977, %v2991
    %v3007 = vadd.f32 %v2978, %v2995
    %v3008 = vadd.f32 %v2979, %v2991
    %v3009 = vadd.f32 %v2980, %v2995
    %v3010 = vadd.f32 %v2981, %v2991
    %v3011 = vadd.f32 %v2982, %v2995
    %v3012 = vadd.f32 %v2983, %v2991
    %v3013 = vadd.f32 %v2984, %v2995
    %v3014 = vtanh.pop %v2998
    %v3015 = vtanh.pop %v2999
    %v3016 = vtanh.pop %v3000
    %v3017 = vtanh.pop %v3001
    %v3018 = vtanh.pop %v3002
    %v3019 = vtanh.pop %v3003
    %v3020 = vtanh.pop %v3004
    %v3021 = vtanh.pop %v3005
    %v3022 = vtanh.pop %v3006
    %v3023 = vtanh.pop %v3007
    %v3024 = vtanh.pop %v3008
    %v3025 = vtanh.pop %v3009
    %v3026 = vtanh.pop %v3010
    %v3027 = vtanh.pop %v3011
    %v3028 = vtanh.pop %v3012
    %v3029 = vtanh.pop %v3013
    %v3030 = vpack.c.bf16 %v1732, %v1730
    %v3031 = vpack.c.bf16 %v1733, %v1731
    %v3032 = vpack.c.bf16 %v1736, %v1734
    %v3033 = vpack.c.bf16 %v1737, %v1735
    %v3034 = vpack.c.bf16 %v1740, %v1738
    %v3035 = vpack.c.bf16 %v1741, %v1739
    %v3036 = vpack.c.bf16 %v1744, %v1742
    %v3037 = vpack.c.bf16 %v1745, %v1743
    %v3038 = vld [vmem:[%s8] sm:$0xff]
    %v3039 = vld [vmem:[%s8 + $0x10] sm:$0xff]
    %v3040 = vld [vmem:[%s8 + $0x18] sm:$0xff]
    %v3041 = vld [vmem:[%s8 + $0x20] sm:$0xff]
    %v3042 = vld [vmem:[%s8 + $0x30] sm:$0xff]
    %v3043 = vld [vmem:[%s8 + $0x38] sm:$0xff]
    %v3044 = vld [vmem:[%s8 + $0x40] sm:$0xff]
    %v3045 = vld [vmem:[%s8 + $0x50] sm:$0xff]
    %v3046 = vld [vmem:[%s8 + $0x58] sm:$0xff]
    %v3047 = vld [vmem:[%s8 + $0x60] sm:$0xff]
    %v3048 = vld [vmem:[%s8 + $0x70] sm:$0xff]
    %v3049 = vld [vmem:[%s8 + $0x78] sm:$0xff]
    %v3050 = vld [vmem:[%s8 + $0x80] sm:$0xff]
    %v3051 = vld [vmem:[%s8 + $0x90] sm:$0xff]
    %v3052 = vld [vmem:[%s8 + $0x98] sm:$0xff]
    %v3053 = vld [vmem:[%s8 + $0xa0] sm:$0xff]
    %v3054 = vld [vmem:[%s8 + $0xb0] sm:$0xff]
    %v3055 = vld [vmem:[%s8 + $0xb8] sm:$0xff]
    %v3056 = vld [vmem:[%s8 + $0xc0] sm:$0xff]
    %v3057 = vld [vmem:[%s8 + $0xd0] sm:$0xff]
    %v3058 = vld [vmem:[%s8 + $0xd8] sm:$0xff]
    %v3059 = vld [vmem:[%s8 + $0xe0] sm:$0xff]
    %v3060 = vld [vmem:[%s8 + $0xf0] sm:$0xff]
    %v3061 = vld [vmem:[%s8 + $0xf8] sm:$0xff]
    %v3062 = vld [vmem:[%s8 + $0x100] sm:$0xff]
    %v3063 = vld [vmem:[%s8 + $0x110] sm:$0xff]
    %v3064 = vld [vmem:[%s8 + $0x118] sm:$0xff]
    %v3065 = vld [vmem:[%s8 + $0x120] sm:$0xff]
    %v3066 = vld [vmem:[%s8 + $0x130] sm:$0xff]
    %v3067 = vld [vmem:[%s8 + $0x138] sm:$0xff]
    %v3068 = vld [vmem:[%s8 + $0x140] sm:$0xff]
    %v3069 = vld [vmem:[%s8 + $0x150] sm:$0xff]
    %v3070 = vld [vmem:[%s8 + $0x158] sm:$0xff]
    %v3071 = vld [vmem:[%s8 + $0x160] sm:$0xff]
    %v3072 = vld [vmem:[%s8 + $0x170] sm:$0xff]
    %v3073 = vld [vmem:[%s8 + $0x178] sm:$0xff]
    %v3074 = vld [vmem:[%s8 + $0x180] sm:$0xff]
    %v3075 = vld [vmem:[%s8 + $0x190] sm:$0xff]
    %v3076 = vld [vmem:[%s8 + $0x198] sm:$0xff]
    %v3077 = vld [vmem:[%s8 + $0x1a0] sm:$0xff]
    %v3078 = vld [vmem:[%s8 + $0x1b0] sm:$0xff]
    %v3079 = vld [vmem:[%s8 + $0x1b8] sm:$0xff]
    %v3080 = vld [vmem:[%s8 + $0x1c0] sm:$0xff]
    %v3081 = vld [vmem:[%s8 + $0x1d0] sm:$0xff]
    %v3082 = vld [vmem:[%s8 + $0x1d8] sm:$0xff]
    %v3083 = vld [vmem:[%s8 + $0x1e0] sm:$0xff]
    %v3084 = vld [vmem:[%s8 + $0x1f0] sm:$0xff]
    %v3085 = vld [vmem:[%s8 + $0x1f8] sm:$0xff]
    %v3086 = vld [vmem:[%s8 + $0x200] sm:$0xff]
    %v3087 = vld [vmem:[%s8 + $0x210] sm:$0xff]
    %v3088 = vld [vmem:[%s8 + $0x218] sm:$0xff]
    %v3089 = vld [vmem:[%s8 + $0x220] sm:$0xff]
    %v3090 = vld [vmem:[%s8 + $0x230] sm:$0xff]
    %v3091 = vld [vmem:[%s8 + $0x238] sm:$0xff]
    %v3092 = vld [vmem:[%s8 + $0x240] sm:$0xff]
    %v3093 = vld [vmem:[%s8 + $0x250] sm:$0xff]
    %v3094 = vld [vmem:[%s8 + $0x258] sm:$0xff]
    %v3095 = vld [vmem:[%s8 + $0x260] sm:$0xff]
    %v3096 = vld [vmem:[%s8 + $0x270] sm:$0xff]
    %v3097 = vld [vmem:[%s8 + $0x278] sm:$0xff]
    %v3098 = vld [vmem:[%s8 + $0x280] sm:$0xff]
    %v3099 = vld [vmem:[%s8 + $0x290] sm:$0xff]
    %v3100 = vld [vmem:[%s8 + $0x298] sm:$0xff]
    %v3101 = vld [vmem:[%s8 + $0x2a0] sm:$0xff]
    %v3102 = vld [vmem:[%s8 + $0x2b0] sm:$0xff]
    %v3103 = vld [vmem:[%s8 + $0x2b8] sm:$0xff]
    %v3104 = vld [vmem:[%s8 + $0x2c0] sm:$0xff]
    %v3105 = vld [vmem:[%s8 + $0x2d0] sm:$0xff]
    %v3106 = vld [vmem:[%s8 + $0x2d8] sm:$0xff]
    %v3107 = vld [vmem:[%s8 + $0x2e0] sm:$0xff]
    %v3108 = vld [vmem:[%s8 + $0x2f0] sm:$0xff]
    %v3109 = vld [vmem:[%s8 + $0x2f8] sm:$0xff]
    %v3110 = vld [vmem:[%s8 + $0x300] sm:$0xff]
    %v3111 = vld [vmem:[%s8 + $0x310] sm:$0xff]
    %v3112 = vld [vmem:[%s8 + $0x318] sm:$0xff]
    %v3113 = vld [vmem:[%s8 + $0x320] sm:$0xff]
    %v3114 = vld [vmem:[%s8 + $0x330] sm:$0xff]
    %v3115 = vld [vmem:[%s8 + $0x338] sm:$0xff]
    %v3116 = vld [vmem:[%s8 + $0x340] sm:$0xff]
    %v3117 = vld [vmem:[%s8 + $0x350] sm:$0xff]
    %v3118 = vld [vmem:[%s8 + $0x358] sm:$0xff]
    %v3119 = vld [vmem:[%s8 + $0x360] sm:$0xff]
    %v3120 = vld [vmem:[%s8 + $0x370] sm:$0xff]
    %v3121 = vld [vmem:[%s8 + $0x378] sm:$0xff]
    %v3122 = vld [vmem:[%s8 + $0x380] sm:$0xff]
    %v3123 = vld [vmem:[%s8 + $0x390] sm:$0xff]
    %v3124 = vld [vmem:[%s8 + $0x398] sm:$0xff]
    %v3125 = vld [vmem:[%s8 + $0x3a0] sm:$0xff]
    %v3126 = vld [vmem:[%s8 + $0x3b0] sm:$0xff]
    %v3127 = vld [vmem:[%s8 + $0x3b8] sm:$0xff]
    %v3128 = vld [vmem:[%s8 + $0x3c0] sm:$0xff]
    %v3129 = vld [vmem:[%s8 + $0x3d0] sm:$0xff]
    %v3130 = vld [vmem:[%s8 + $0x3d8] sm:$0xff]
    %v3131 = vld [vmem:[%s8 + $0x3e0] sm:$0xff]
    %v3132 = vld [vmem:[%s8 + $0x3f0] sm:$0xff]
    %v3133 = vld [vmem:[%s8 + $0x3f8] sm:$0xff]
    %v3134 = vpack.c.bf16 %v2160, %v2158
    %v3135 = vpack.c.bf16 %v2161, %v2159
    %v3136 = vpack.c.bf16 %v2164, %v2162
    %v3137 = vpack.c.bf16 %v2165, %v2163
    %v3138 = vpack.c.bf16 %v2168, %v2166
    %v3139 = vpack.c.bf16 %v2169, %v2167
    %v3140 = vpack.c.bf16 %v2172, %v2170
    %v3141 = vpack.c.bf16 %v2173, %v2171
    %s3142 = scalar_lea.vmem %s8, 1024
    %v3143 = vld [vmem:[%s3142] sm:$0xff]
    %v3144 = vld [vmem:[%s3142 + $0x8] sm:$0xff]
    %v3145 = vld [vmem:[%s3142 + $0x10] sm:$0xff]
    %v3146 = vld [vmem:[%s3142 + $0x18] sm:$0xff]
    %v3147 = vld [vmem:[%s3142 + $0x20] sm:$0xff]
    %v3148 = vld [vmem:[%s3142 + $0x28] sm:$0xff]
    %v3149 = vld [vmem:[%s3142 + $0x30] sm:$0xff]
    %v3150 = vld [vmem:[%s3142 + $0x38] sm:$0xff]
    %v3151 = vld [vmem:[%s3142 + $0x40] sm:$0xff]
    %v3152 = vld [vmem:[%s3142 + $0x48] sm:$0xff]
    %v3153 = vld [vmem:[%s3142 + $0x50] sm:$0xff]
    %v3154 = vld [vmem:[%s3142 + $0x58] sm:$0xff]
    %v3155 = vld [vmem:[%s3142 + $0x60] sm:$0xff]
    %v3156 = vld [vmem:[%s3142 + $0x68] sm:$0xff]
    %v3157 = vld [vmem:[%s3142 + $0x70] sm:$0xff]
    %v3158 = vld [vmem:[%s3142 + $0x78] sm:$0xff]
    %v3159 = vld [vmem:[%s3142 + $0x80] sm:$0xff]
    %v3160 = vld [vmem:[%s3142 + $0x88] sm:$0xff]
    %v3161 = vld [vmem:[%s3142 + $0x90] sm:$0xff]
    %v3162 = vld [vmem:[%s3142 + $0x98] sm:$0xff]
    %v3163 = vld [vmem:[%s3142 + $0xa0] sm:$0xff]
    %v3164 = vld [vmem:[%s3142 + $0xa8] sm:$0xff]
    %v3165 = vld [vmem:[%s3142 + $0xb0] sm:$0xff]
    %v3166 = vld [vmem:[%s3142 + $0xb8] sm:$0xff]
    %v3167 = vld [vmem:[%s3142 + $0xc0] sm:$0xff]
    %v3168 = vld [vmem:[%s3142 + $0xc8] sm:$0xff]
    %v3169 = vld [vmem:[%s3142 + $0xd0] sm:$0xff]
    %v3170 = vld [vmem:[%s3142 + $0xd8] sm:$0xff]
    %v3171 = vld [vmem:[%s3142 + $0xe0] sm:$0xff]
    %v3172 = vld [vmem:[%s3142 + $0xe8] sm:$0xff]
    %v3173 = vld [vmem:[%s3142 + $0xf0] sm:$0xff]
    %v3174 = vld [vmem:[%s3142 + $0xf8] sm:$0xff]
    %v3175 = vld [vmem:[%s3142 + $0x100] sm:$0xff]
    %v3176 = vld [vmem:[%s3142 + $0x108] sm:$0xff]
    %v3177 = vld [vmem:[%s3142 + $0x110] sm:$0xff]
    %v3178 = vld [vmem:[%s3142 + $0x118] sm:$0xff]
    %v3179 = vld [vmem:[%s3142 + $0x120] sm:$0xff]
    %v3180 = vld [vmem:[%s3142 + $0x128] sm:$0xff]
    %v3181 = vld [vmem:[%s3142 + $0x130] sm:$0xff]
    %v3182 = vld [vmem:[%s3142 + $0x138] sm:$0xff]
    %v3183 = vld [vmem:[%s3142 + $0x140] sm:$0xff]
    %v3184 = vld [vmem:[%s3142 + $0x148] sm:$0xff]
    %v3185 = vld [vmem:[%s3142 + $0x150] sm:$0xff]
    %v3186 = vld [vmem:[%s3142 + $0x158] sm:$0xff]
    %v3187 = vld [vmem:[%s3142 + $0x160] sm:$0xff]
    %v3188 = vld [vmem:[%s3142 + $0x168] sm:$0xff]
    %v3189 = vld [vmem:[%s3142 + $0x170] sm:$0xff]
    %v3190 = vld [vmem:[%s3142 + $0x178] sm:$0xff]
    %v3191 = vld [vmem:[%s3142 + $0x180] sm:$0xff]
    %v3192 = vld [vmem:[%s3142 + $0x188] sm:$0xff]
    %v3193 = vld [vmem:[%s3142 + $0x190] sm:$0xff]
    %v3194 = vld [vmem:[%s3142 + $0x198] sm:$0xff]
    %v3195 = vld [vmem:[%s3142 + $0x1a0] sm:$0xff]
    %v3196 = vld [vmem:[%s3142 + $0x1a8] sm:$0xff]
    %v3197 = vld [vmem:[%s3142 + $0x1b0] sm:$0xff]
    %v3198 = vld [vmem:[%s3142 + $0x1b8] sm:$0xff]
    %v3199 = vld [vmem:[%s3142 + $0x1c0] sm:$0xff]
    %v3200 = vld [vmem:[%s3142 + $0x1c8] sm:$0xff]
    %v3201 = vld [vmem:[%s3142 + $0x1d0] sm:$0xff]
    %v3202 = vld [vmem:[%s3142 + $0x1d8] sm:$0xff]
    %v3203 = vld [vmem:[%s3142 + $0x1e0] sm:$0xff]
    %v3204 = vld [vmem:[%s3142 + $0x1e8] sm:$0xff]
    %v3205 = vld [vmem:[%s3142 + $0x1f0] sm:$0xff]
    %v3206 = vld [vmem:[%s3142 + $0x1f8] sm:$0xff]
    %v3207 = vld [vmem:[%s3142 + $0x200] sm:$0xff]
    %v3208 = vld [vmem:[%s3142 + $0x208] sm:$0xff]
    %v3209 = vld [vmem:[%s3142 + $0x210] sm:$0xff]
    %v3210 = vld [vmem:[%s3142 + $0x218] sm:$0xff]
    %v3211 = vld [vmem:[%s3142 + $0x220] sm:$0xff]
    %v3212 = vld [vmem:[%s3142 + $0x228] sm:$0xff]
    %v3213 = vld [vmem:[%s3142 + $0x230] sm:$0xff]
    %v3214 = vld [vmem:[%s3142 + $0x238] sm:$0xff]
    %v3215 = vld [vmem:[%s3142 + $0x240] sm:$0xff]
    %v3216 = vld [vmem:[%s3142 + $0x248] sm:$0xff]
    %v3217 = vld [vmem:[%s3142 + $0x250] sm:$0xff]
    %v3218 = vld [vmem:[%s3142 + $0x258] sm:$0xff]
    %v3219 = vld [vmem:[%s3142 + $0x260] sm:$0xff]
    %v3220 = vld [vmem:[%s3142 + $0x268] sm:$0xff]
    %v3221 = vld [vmem:[%s3142 + $0x270] sm:$0xff]
    %v3222 = vld [vmem:[%s3142 + $0x278] sm:$0xff]
    %v3223 = vld [vmem:[%s3142 + $0x280] sm:$0xff]
    %v3224 = vld [vmem:[%s3142 + $0x288] sm:$0xff]
    %v3225 = vld [vmem:[%s3142 + $0x290] sm:$0xff]
    %v3226 = vld [vmem:[%s3142 + $0x298] sm:$0xff]
    %v3227 = vld [vmem:[%s3142 + $0x2a0] sm:$0xff]
    %v3228 = vld [vmem:[%s3142 + $0x2a8] sm:$0xff]
    %v3229 = vld [vmem:[%s3142 + $0x2b0] sm:$0xff]
    %v3230 = vld [vmem:[%s3142 + $0x2b8] sm:$0xff]
    %v3231 = vld [vmem:[%s3142 + $0x2c0] sm:$0xff]
    %v3232 = vld [vmem:[%s3142 + $0x2c8] sm:$0xff]
    %v3233 = vld [vmem:[%s3142 + $0x2d0] sm:$0xff]
    %v3234 = vld [vmem:[%s3142 + $0x2d8] sm:$0xff]
    %v3235 = vld [vmem:[%s3142 + $0x2e0] sm:$0xff]
    %v3236 = vld [vmem:[%s3142 + $0x2e8] sm:$0xff]
    %v3237 = vld [vmem:[%s3142 + $0x2f0] sm:$0xff]
    %v3238 = vld [vmem:[%s3142 + $0x2f8] sm:$0xff]
    %v3239 = vld [vmem:[%s3142 + $0x300] sm:$0xff]
    %v3240 = vld [vmem:[%s3142 + $0x308] sm:$0xff]
    %v3241 = vld [vmem:[%s3142 + $0x310] sm:$0xff]
    %v3242 = vld [vmem:[%s3142 + $0x318] sm:$0xff]
    %v3243 = vld [vmem:[%s3142 + $0x320] sm:$0xff]
    %v3244 = vld [vmem:[%s3142 + $0x328] sm:$0xff]
    %v3245 = vld [vmem:[%s3142 + $0x330] sm:$0xff]
    %v3246 = vld [vmem:[%s3142 + $0x338] sm:$0xff]
    %v3247 = vld [vmem:[%s3142 + $0x340] sm:$0xff]
    %v3248 = vld [vmem:[%s3142 + $0x348] sm:$0xff]
    %v3249 = vld [vmem:[%s3142 + $0x350] sm:$0xff]
    %v3250 = vld [vmem:[%s3142 + $0x358] sm:$0xff]
    %v3251 = vld [vmem:[%s3142 + $0x360] sm:$0xff]
    %v3252 = vld [vmem:[%s3142 + $0x368] sm:$0xff]
    %v3253 = vld [vmem:[%s3142 + $0x370] sm:$0xff]
    %v3254 = vld [vmem:[%s3142 + $0x378] sm:$0xff]
    %v3255 = vld [vmem:[%s3142 + $0x380] sm:$0xff]
    %v3256 = vld [vmem:[%s3142 + $0x388] sm:$0xff]
    %v3257 = vld [vmem:[%s3142 + $0x390] sm:$0xff]
    %v3258 = vld [vmem:[%s3142 + $0x398] sm:$0xff]
    %v3259 = vld [vmem:[%s3142 + $0x3a0] sm:$0xff]
    %v3260 = vld [vmem:[%s3142 + $0x3a8] sm:$0xff]
    %v3261 = vld [vmem:[%s3142 + $0x3b0] sm:$0xff]
    %v3262 = vld [vmem:[%s3142 + $0x3b8] sm:$0xff]
    %v3263 = vld [vmem:[%s3142 + $0x3c0] sm:$0xff]
    %v3264 = vld [vmem:[%s3142 + $0x3c8] sm:$0xff]
    %v3265 = vld [vmem:[%s3142 + $0x3d0] sm:$0xff]
    %v3266 = vld [vmem:[%s3142 + $0x3d8] sm:$0xff]
    %v3267 = vld [vmem:[%s3142 + $0x3e0] sm:$0xff]
    %v3268 = vld [vmem:[%s3142 + $0x3e8] sm:$0xff]
    %v3269 = vld [vmem:[%s3142 + $0x3f0] sm:$0xff]
    %v3270 = vld [vmem:[%s3142 + $0x3f8] sm:$0xff]
    %v3271 = vpack.c.bf16 %v2588, %v2586
    %v3272 = vpack.c.bf16 %v2589, %v2587
    %v3273 = vpack.c.bf16 %v2592, %v2590
    %v3274 = vpack.c.bf16 %v2593, %v2591
    %v3275 = vpack.c.bf16 %v2596, %v2594
    %v3276 = vpack.c.bf16 %v2597, %v2595
    %v3277 = vpack.c.bf16 %v2600, %v2598
    %v3278 = vpack.c.bf16 %v2601, %v2599
    %s3279 = scalar_lea.vmem %s8, 2048
    %v3280 = vld [vmem:[%s3279] sm:$0xff]
    %v3281 = vld [vmem:[%s3279 + $0x8] sm:$0xff]
    %v3282 = vld [vmem:[%s3279 + $0x10] sm:$0xff]
    %v3283 = vld [vmem:[%s3279 + $0x18] sm:$0xff]
    %v3284 = vld [vmem:[%s3279 + $0x20] sm:$0xff]
    %v3285 = vld [vmem:[%s3279 + $0x28] sm:$0xff]
    %v3286 = vld [vmem:[%s3279 + $0x30] sm:$0xff]
    %v3287 = vld [vmem:[%s3279 + $0x38] sm:$0xff]
    %v3288 = vld [vmem:[%s3279 + $0x40] sm:$0xff]
    %v3289 = vld [vmem:[%s3279 + $0x48] sm:$0xff]
    %v3290 = vld [vmem:[%s3279 + $0x50] sm:$0xff]
    %v3291 = vld [vmem:[%s3279 + $0x58] sm:$0xff]
    %v3292 = vld [vmem:[%s3279 + $0x60] sm:$0xff]
    %v3293 = vld [vmem:[%s3279 + $0x68] sm:$0xff]
    %v3294 = vld [vmem:[%s3279 + $0x70] sm:$0xff]
    %v3295 = vld [vmem:[%s3279 + $0x78] sm:$0xff]
    %v3296 = vld [vmem:[%s3279 + $0x80] sm:$0xff]
    %v3297 = vld [vmem:[%s3279 + $0x88] sm:$0xff]
    %v3298 = vld [vmem:[%s3279 + $0x90] sm:$0xff]
    %v3299 = vld [vmem:[%s3279 + $0x98] sm:$0xff]
    %v3300 = vld [vmem:[%s3279 + $0xa0] sm:$0xff]
    %v3301 = vld [vmem:[%s3279 + $0xa8] sm:$0xff]
    %v3302 = vld [vmem:[%s3279 + $0xb0] sm:$0xff]
    %v3303 = vld [vmem:[%s3279 + $0xb8] sm:$0xff]
    %v3304 = vld [vmem:[%s3279 + $0xc0] sm:$0xff]
    %v3305 = vld [vmem:[%s3279 + $0xc8] sm:$0xff]
    %v3306 = vld [vmem:[%s3279 + $0xd0] sm:$0xff]
    %v3307 = vld [vmem:[%s3279 + $0xd8] sm:$0xff]
    %v3308 = vld [vmem:[%s3279 + $0xe0] sm:$0xff]
    %v3309 = vld [vmem:[%s3279 + $0xe8] sm:$0xff]
    %v3310 = vld [vmem:[%s3279 + $0xf0] sm:$0xff]
    %v3311 = vld [vmem:[%s3279 + $0xf8] sm:$0xff]
    %v3312 = vld [vmem:[%s3279 + $0x100] sm:$0xff]
    %v3313 = vld [vmem:[%s3279 + $0x108] sm:$0xff]
    %v3314 = vld [vmem:[%s3279 + $0x110] sm:$0xff]
    %v3315 = vld [vmem:[%s3279 + $0x118] sm:$0xff]
    %v3316 = vld [vmem:[%s3279 + $0x120] sm:$0xff]
    %v3317 = vld [vmem:[%s3279 + $0x128] sm:$0xff]
    %v3318 = vld [vmem:[%s3279 + $0x130] sm:$0xff]
    %v3319 = vld [vmem:[%s3279 + $0x138] sm:$0xff]
    %v3320 = vld [vmem:[%s3279 + $0x140] sm:$0xff]
    %v3321 = vld [vmem:[%s3279 + $0x148] sm:$0xff]
    %v3322 = vld [vmem:[%s3279 + $0x150] sm:$0xff]
    %v3323 = vld [vmem:[%s3279 + $0x158] sm:$0xff]
    %v3324 = vld [vmem:[%s3279 + $0x160] sm:$0xff]
    %v3325 = vld [vmem:[%s3279 + $0x168] sm:$0xff]
    %v3326 = vld [vmem:[%s3279 + $0x170] sm:$0xff]
    %v3327 = vld [vmem:[%s3279 + $0x178] sm:$0xff]
    %v3328 = vld [vmem:[%s3279 + $0x180] sm:$0xff]
    %v3329 = vld [vmem:[%s3279 + $0x188] sm:$0xff]
    %v3330 = vld [vmem:[%s3279 + $0x190] sm:$0xff]
    %v3331 = vld [vmem:[%s3279 + $0x198] sm:$0xff]
    %v3332 = vld [vmem:[%s3279 + $0x1a0] sm:$0xff]
    %v3333 = vld [vmem:[%s3279 + $0x1a8] sm:$0xff]
    %v3334 = vld [vmem:[%s3279 + $0x1b0] sm:$0xff]
    %v3335 = vld [vmem:[%s3279 + $0x1b8] sm:$0xff]
    %v3336 = vld [vmem:[%s3279 + $0x1c0] sm:$0xff]
    %v3337 = vld [vmem:[%s3279 + $0x1c8] sm:$0xff]
    %v3338 = vld [vmem:[%s3279 + $0x1d0] sm:$0xff]
    %v3339 = vld [vmem:[%s3279 + $0x1d8] sm:$0xff]
    %v3340 = vld [vmem:[%s3279 + $0x1e0] sm:$0xff]
    %v3341 = vld [vmem:[%s3279 + $0x1e8] sm:$0xff]
    %v3342 = vld [vmem:[%s3279 + $0x1f0] sm:$0xff]
    %v3343 = vld [vmem:[%s3279 + $0x1f8] sm:$0xff]
    %v3344 = vld [vmem:[%s3279 + $0x200] sm:$0xff]
    %v3345 = vld [vmem:[%s3279 + $0x208] sm:$0xff]
    %v3346 = vld [vmem:[%s3279 + $0x210] sm:$0xff]
    %v3347 = vld [vmem:[%s3279 + $0x218] sm:$0xff]
    %v3348 = vld [vmem:[%s3279 + $0x220] sm:$0xff]
    %v3349 = vld [vmem:[%s3279 + $0x228] sm:$0xff]
    %v3350 = vld [vmem:[%s3279 + $0x230] sm:$0xff]
    %v3351 = vld [vmem:[%s3279 + $0x238] sm:$0xff]
    %v3352 = vld [vmem:[%s3279 + $0x240] sm:$0xff]
    %v3353 = vld [vmem:[%s3279 + $0x248] sm:$0xff]
    %v3354 = vld [vmem:[%s3279 + $0x250] sm:$0xff]
    %v3355 = vld [vmem:[%s3279 + $0x258] sm:$0xff]
    %v3356 = vld [vmem:[%s3279 + $0x260] sm:$0xff]
    %v3357 = vld [vmem:[%s3279 + $0x268] sm:$0xff]
    %v3358 = vld [vmem:[%s3279 + $0x270] sm:$0xff]
    %v3359 = vld [vmem:[%s3279 + $0x278] sm:$0xff]
    %v3360 = vld [vmem:[%s3279 + $0x280] sm:$0xff]
    %v3361 = vld [vmem:[%s3279 + $0x288] sm:$0xff]
    %v3362 = vld [vmem:[%s3279 + $0x290] sm:$0xff]
    %v3363 = vld [vmem:[%s3279 + $0x298] sm:$0xff]
    %v3364 = vld [vmem:[%s3279 + $0x2a0] sm:$0xff]
    %v3365 = vld [vmem:[%s3279 + $0x2a8] sm:$0xff]
    %v3366 = vld [vmem:[%s3279 + $0x2b0] sm:$0xff]
    %v3367 = vld [vmem:[%s3279 + $0x2b8] sm:$0xff]
    %v3368 = vld [vmem:[%s3279 + $0x2c0] sm:$0xff]
    %v3369 = vld [vmem:[%s3279 + $0x2c8] sm:$0xff]
    %v3370 = vld [vmem:[%s3279 + $0x2d0] sm:$0xff]
    %v3371 = vld [vmem:[%s3279 + $0x2d8] sm:$0xff]
    %v3372 = vld [vmem:[%s3279 + $0x2e0] sm:$0xff]
    %v3373 = vld [vmem:[%s3279 + $0x2e8] sm:$0xff]
    %v3374 = vld [vmem:[%s3279 + $0x2f0] sm:$0xff]
    %v3375 = vld [vmem:[%s3279 + $0x2f8] sm:$0xff]
    %v3376 = vld [vmem:[%s3279 + $0x300] sm:$0xff]
    %v3377 = vld [vmem:[%s3279 + $0x308] sm:$0xff]
    %v3378 = vld [vmem:[%s3279 + $0x310] sm:$0xff]
    %v3379 = vld [vmem:[%s3279 + $0x318] sm:$0xff]
    %v3380 = vld [vmem:[%s3279 + $0x320] sm:$0xff]
    %v3381 = vld [vmem:[%s3279 + $0x328] sm:$0xff]
    %v3382 = vld [vmem:[%s3279 + $0x330] sm:$0xff]
    %v3383 = vld [vmem:[%s3279 + $0x338] sm:$0xff]
    %v3384 = vld [vmem:[%s3279 + $0x340] sm:$0xff]
    %v3385 = vld [vmem:[%s3279 + $0x348] sm:$0xff]
    %v3386 = vld [vmem:[%s3279 + $0x350] sm:$0xff]
    %v3387 = vld [vmem:[%s3279 + $0x358] sm:$0xff]
    %v3388 = vld [vmem:[%s3279 + $0x360] sm:$0xff]
    %v3389 = vld [vmem:[%s3279 + $0x368] sm:$0xff]
    %v3390 = vld [vmem:[%s3279 + $0x370] sm:$0xff]
    %v3391 = vld [vmem:[%s3279 + $0x378] sm:$0xff]
    %v3392 = vld [vmem:[%s3279 + $0x380] sm:$0xff]
    %v3393 = vld [vmem:[%s3279 + $0x388] sm:$0xff]
    %v3394 = vld [vmem:[%s3279 + $0x390] sm:$0xff]
    %v3395 = vld [vmem:[%s3279 + $0x398] sm:$0xff]
    %v3396 = vld [vmem:[%s3279 + $0x3a0] sm:$0xff]
    %v3397 = vld [vmem:[%s3279 + $0x3a8] sm:$0xff]
    %v3398 = vld [vmem:[%s3279 + $0x3b0] sm:$0xff]
    %v3399 = vld [vmem:[%s3279 + $0x3b8] sm:$0xff]
    %v3400 = vld [vmem:[%s3279 + $0x3c0] sm:$0xff]
    %v3401 = vld [vmem:[%s3279 + $0x3c8] sm:$0xff]
    %v3402 = vld [vmem:[%s3279 + $0x3d0] sm:$0xff]
    %v3403 = vld [vmem:[%s3279 + $0x3d8] sm:$0xff]
    %v3404 = vld [vmem:[%s3279 + $0x3e0] sm:$0xff]
    %v3405 = vld [vmem:[%s3279 + $0x3e8] sm:$0xff]
    %v3406 = vld [vmem:[%s3279 + $0x3f0] sm:$0xff]
    %v3407 = vld [vmem:[%s3279 + $0x3f8] sm:$0xff]
    %v3408 = vpack.c.bf16 %v3016, %v3014
    %v3409 = vpack.c.bf16 %v3017, %v3015
    %v3410 = vpack.c.bf16 %v3020, %v3018
    %v3411 = vpack.c.bf16 %v3021, %v3019
    %v3412 = vpack.c.bf16 %v3024, %v3022
    %v3413 = vpack.c.bf16 %v3025, %v3023
    %v3414 = vpack.c.bf16 %v3028, %v3026
    %v3415 = vpack.c.bf16 %v3029, %v3027
    %s3416 = scalar_lea.vmem %s8, 3072
    %v3417 = vld [vmem:[%s3416] sm:$0xff]
    %v3418 = vld [vmem:[%s3416 + $0x8] sm:$0xff]
    %v3419 = vld [vmem:[%s3416 + $0x10] sm:$0xff]
    %v3420 = vld [vmem:[%s3416 + $0x18] sm:$0xff]
    %v3421 = vld [vmem:[%s3416 + $0x20] sm:$0xff]
    %v3422 = vld [vmem:[%s3416 + $0x28] sm:$0xff]
    %v3423 = vld [vmem:[%s3416 + $0x30] sm:$0xff]
    %v3424 = vld [vmem:[%s3416 + $0x38] sm:$0xff]
    %v3425 = vld [vmem:[%s3416 + $0x40] sm:$0xff]
    %v3426 = vld [vmem:[%s3416 + $0x48] sm:$0xff]
    %v3427 = vld [vmem:[%s3416 + $0x50] sm:$0xff]
    %v3428 = vld [vmem:[%s3416 + $0x58] sm:$0xff]
    %v3429 = vld [vmem:[%s3416 + $0x60] sm:$0xff]
    %v3430 = vld [vmem:[%s3416 + $0x68] sm:$0xff]
    %v3431 = vld [vmem:[%s3416 + $0x70] sm:$0xff]
    %v3432 = vld [vmem:[%s3416 + $0x78] sm:$0xff]
    %v3433 = vld [vmem:[%s3416 + $0x80] sm:$0xff]
    %v3434 = vld [vmem:[%s3416 + $0x88] sm:$0xff]
    %v3435 = vld [vmem:[%s3416 + $0x90] sm:$0xff]
    %v3436 = vld [vmem:[%s3416 + $0x98] sm:$0xff]
    %v3437 = vld [vmem:[%s3416 + $0xa0] sm:$0xff]
    %v3438 = vld [vmem:[%s3416 + $0xa8] sm:$0xff]
    %v3439 = vld [vmem:[%s3416 + $0xb0] sm:$0xff]
    %v3440 = vld [vmem:[%s3416 + $0xb8] sm:$0xff]
    %v3441 = vld [vmem:[%s3416 + $0xc0] sm:$0xff]
    %v3442 = vld [vmem:[%s3416 + $0xc8] sm:$0xff]
    %v3443 = vld [vmem:[%s3416 + $0xd0] sm:$0xff]
    %v3444 = vld [vmem:[%s3416 + $0xd8] sm:$0xff]
    %v3445 = vld [vmem:[%s3416 + $0xe0] sm:$0xff]
    %v3446 = vld [vmem:[%s3416 + $0xe8] sm:$0xff]
    %v3447 = vld [vmem:[%s3416 + $0xf0] sm:$0xff]
    %v3448 = vld [vmem:[%s3416 + $0xf8] sm:$0xff]
    %v3449 = vld [vmem:[%s3416 + $0x100] sm:$0xff]
    %v3450 = vld [vmem:[%s3416 + $0x108] sm:$0xff]
    %v3451 = vld [vmem:[%s3416 + $0x110] sm:$0xff]
    %v3452 = vld [vmem:[%s3416 + $0x118] sm:$0xff]
    %v3453 = vld [vmem:[%s3416 + $0x120] sm:$0xff]
    %v3454 = vld [vmem:[%s3416 + $0x128] sm:$0xff]
    %v3455 = vld [vmem:[%s3416 + $0x130] sm:$0xff]
    %v3456 = vld [vmem:[%s3416 + $0x138] sm:$0xff]
    %v3457 = vld [vmem:[%s3416 + $0x140] sm:$0xff]
    %v3458 = vld [vmem:[%s3416 + $0x148] sm:$0xff]
    %v3459 = vld [vmem:[%s3416 + $0x150] sm:$0xff]
    %v3460 = vld [vmem:[%s3416 + $0x158] sm:$0xff]
    %v3461 = vld [vmem:[%s3416 + $0x160] sm:$0xff]
    %v3462 = vld [vmem:[%s3416 + $0x168] sm:$0xff]
    %v3463 = vld [vmem:[%s3416 + $0x170] sm:$0xff]
    %v3464 = vld [vmem:[%s3416 + $0x178] sm:$0xff]
    %v3465 = vld [vmem:[%s3416 + $0x180] sm:$0xff]
    %v3466 = vld [vmem:[%s3416 + $0x188] sm:$0xff]
    %v3467 = vld [vmem:[%s3416 + $0x190] sm:$0xff]
    %v3468 = vld [vmem:[%s3416 + $0x198] sm:$0xff]
    %v3469 = vld [vmem:[%s3416 + $0x1a0] sm:$0xff]
    %v3470 = vld [vmem:[%s3416 + $0x1a8] sm:$0xff]
    %v3471 = vld [vmem:[%s3416 + $0x1b0] sm:$0xff]
    %v3472 = vld [vmem:[%s3416 + $0x1b8] sm:$0xff]
    %v3473 = vld [vmem:[%s3416 + $0x1c0] sm:$0xff]
    %v3474 = vld [vmem:[%s3416 + $0x1c8] sm:$0xff]
    %v3475 = vld [vmem:[%s3416 + $0x1d0] sm:$0xff]
    %v3476 = vld [vmem:[%s3416 + $0x1d8] sm:$0xff]
    %v3477 = vld [vmem:[%s3416 + $0x1e0] sm:$0xff]
    %v3478 = vld [vmem:[%s3416 + $0x1e8] sm:$0xff]
    %v3479 = vld [vmem:[%s3416 + $0x1f0] sm:$0xff]
    %v3480 = vld [vmem:[%s3416 + $0x1f8] sm:$0xff]
    %v3481 = vld [vmem:[%s3416 + $0x200] sm:$0xff]
    %v3482 = vld [vmem:[%s3416 + $0x208] sm:$0xff]
    %v3483 = vld [vmem:[%s3416 + $0x210] sm:$0xff]
    %v3484 = vld [vmem:[%s3416 + $0x218] sm:$0xff]
    %v3485 = vld [vmem:[%s3416 + $0x220] sm:$0xff]
    %v3486 = vld [vmem:[%s3416 + $0x228] sm:$0xff]
    %v3487 = vld [vmem:[%s3416 + $0x230] sm:$0xff]
    %v3488 = vld [vmem:[%s3416 + $0x238] sm:$0xff]
    %v3489 = vld [vmem:[%s3416 + $0x240] sm:$0xff]
    %v3490 = vld [vmem:[%s3416 + $0x248] sm:$0xff]
    %v3491 = vld [vmem:[%s3416 + $0x250] sm:$0xff]
    %v3492 = vld [vmem:[%s3416 + $0x258] sm:$0xff]
    %v3493 = vld [vmem:[%s3416 + $0x260] sm:$0xff]
    %v3494 = vld [vmem:[%s3416 + $0x268] sm:$0xff]
    %v3495 = vld [vmem:[%s3416 + $0x270] sm:$0xff]
    %v3496 = vld [vmem:[%s3416 + $0x278] sm:$0xff]
    %v3497 = vld [vmem:[%s3416 + $0x280] sm:$0xff]
    %v3498 = vld [vmem:[%s3416 + $0x288] sm:$0xff]
    %v3499 = vld [vmem:[%s3416 + $0x290] sm:$0xff]
    %v3500 = vld [vmem:[%s3416 + $0x298] sm:$0xff]
    %v3501 = vld [vmem:[%s3416 + $0x2a0] sm:$0xff]
    %v3502 = vld [vmem:[%s3416 + $0x2a8] sm:$0xff]
    %v3503 = vld [vmem:[%s3416 + $0x2b0] sm:$0xff]
    %v3504 = vld [vmem:[%s3416 + $0x2b8] sm:$0xff]
    %v3505 = vld [vmem:[%s3416 + $0x2c0] sm:$0xff]
    %v3506 = vld [vmem:[%s3416 + $0x2c8] sm:$0xff]
    %v3507 = vld [vmem:[%s3416 + $0x2d0] sm:$0xff]
    %v3508 = vld [vmem:[%s3416 + $0x2d8] sm:$0xff]
    %v3509 = vld [vmem:[%s3416 + $0x2e0] sm:$0xff]
    %v3510 = vld [vmem:[%s3416 + $0x2e8] sm:$0xff]
    %v3511 = vld [vmem:[%s3416 + $0x2f0] sm:$0xff]
    %v3512 = vld [vmem:[%s3416 + $0x2f8] sm:$0xff]
    %v3513 = vld [vmem:[%s3416 + $0x300] sm:$0xff]
    %v3514 = vld [vmem:[%s3416 + $0x308] sm:$0xff]
    %v3515 = vld [vmem:[%s3416 + $0x310] sm:$0xff]
    %v3516 = vld [vmem:[%s3416 + $0x318] sm:$0xff]
    %v3517 = vld [vmem:[%s3416 + $0x320] sm:$0xff]
    %v3518 = vld [vmem:[%s3416 + $0x328] sm:$0xff]
    %v3519 = vld [vmem:[%s3416 + $0x330] sm:$0xff]
    %v3520 = vld [vmem:[%s3416 + $0x338] sm:$0xff]
    %v3521 = vld [vmem:[%s3416 + $0x340] sm:$0xff]
    %v3522 = vld [vmem:[%s3416 + $0x348] sm:$0xff]
    %v3523 = vld [vmem:[%s3416 + $0x350] sm:$0xff]
    %v3524 = vld [vmem:[%s3416 + $0x358] sm:$0xff]
    %v3525 = vld [vmem:[%s3416 + $0x360] sm:$0xff]
    %v3526 = vld [vmem:[%s3416 + $0x368] sm:$0xff]
    %v3527 = vld [vmem:[%s3416 + $0x370] sm:$0xff]
    %v3528 = vld [vmem:[%s3416 + $0x378] sm:$0xff]
    %v3529 = vld [vmem:[%s3416 + $0x380] sm:$0xff]
    %v3530 = vld [vmem:[%s3416 + $0x388] sm:$0xff]
    %v3531 = vld [vmem:[%s3416 + $0x390] sm:$0xff]
    %v3532 = vld [vmem:[%s3416 + $0x398] sm:$0xff]
    %v3533 = vld [vmem:[%s3416 + $0x3a0] sm:$0xff]
    %v3534 = vld [vmem:[%s3416 + $0x3a8] sm:$0xff]
    %v3535 = vld [vmem:[%s3416 + $0x3b0] sm:$0xff]
    %v3536 = vld [vmem:[%s3416 + $0x3b8] sm:$0xff]
    %v3537 = vld [vmem:[%s3416 + $0x3c0] sm:$0xff]
    %v3538 = vld [vmem:[%s3416 + $0x3c8] sm:$0xff]
    %v3539 = vld [vmem:[%s3416 + $0x3d0] sm:$0xff]
    %v3540 = vld [vmem:[%s3416 + $0x3d8] sm:$0xff]
    %v3541 = vld [vmem:[%s3416 + $0x3e0] sm:$0xff]
    %v3542 = vld [vmem:[%s3416 + $0x3e8] sm:$0xff]
    %v3543 = vld [vmem:[%s3416 + $0x3f0] sm:$0xff]
    %v3544 = vld [vmem:[%s3416 + $0x3f8] sm:$0xff]
    %v3545 = vld [vmem:[%s9] sm:$0xff]
    %v3546 = vld [vmem:[%s9 + $0x10] sm:$0xff]
    %v3547 = vld [vmem:[%s9 + $0x18] sm:$0xff]
    %v3548 = vld [vmem:[%s9 + $0x20] sm:$0xff]
    %v3549 = vld [vmem:[%s9 + $0x30] sm:$0xff]
    %v3550 = vld [vmem:[%s9 + $0x38] sm:$0xff]
    %v3551 = vld [vmem:[%s9 + $0x40] sm:$0xff]
    %v3552 = vld [vmem:[%s9 + $0x50] sm:$0xff]
    %v3553 = vld [vmem:[%s9 + $0x58] sm:$0xff]
    %v3554 = vld [vmem:[%s9 + $0x60] sm:$0xff]
    %v3555 = vld [vmem:[%s9 + $0x70] sm:$0xff]
    %v3556 = vld [vmem:[%s9 + $0x78] sm:$0xff]
    %v3557 = vld [vmem:[%s9 + $0x80] sm:$0xff]
    %v3558 = vld [vmem:[%s9 + $0x90] sm:$0xff]
    %v3559 = vld [vmem:[%s9 + $0x98] sm:$0xff]
    %v3560 = vld [vmem:[%s9 + $0xa0] sm:$0xff]
    %v3561 = vld [vmem:[%s9 + $0xb0] sm:$0xff]
    %v3562 = vld [vmem:[%s9 + $0xb8] sm:$0xff]
    %v3563 = vld [vmem:[%s9 + $0xc0] sm:$0xff]
    %v3564 = vld [vmem:[%s9 + $0xd0] sm:$0xff]
    %v3565 = vld [vmem:[%s9 + $0xd8] sm:$0xff]
    %v3566 = vld [vmem:[%s9 + $0xe0] sm:$0xff]
    %v3567 = vld [vmem:[%s9 + $0xf0] sm:$0xff]
    %v3568 = vld [vmem:[%s9 + $0xf8] sm:$0xff]
    %v3569 = vld [vmem:[%s9 + $0x100] sm:$0xff]
    %v3570 = vld [vmem:[%s9 + $0x110] sm:$0xff]
    %v3571 = vld [vmem:[%s9 + $0x118] sm:$0xff]
    %v3572 = vld [vmem:[%s9 + $0x120] sm:$0xff]
    %v3573 = vld [vmem:[%s9 + $0x130] sm:$0xff]
    %v3574 = vld [vmem:[%s9 + $0x138] sm:$0xff]
    %v3575 = vld [vmem:[%s9 + $0x140] sm:$0xff]
    %v3576 = vld [vmem:[%s9 + $0x150] sm:$0xff]
    %v3577 = vld [vmem:[%s9 + $0x158] sm:$0xff]
    %v3578 = vld [vmem:[%s9 + $0x160] sm:$0xff]
    %v3579 = vld [vmem:[%s9 + $0x170] sm:$0xff]
    %v3580 = vld [vmem:[%s9 + $0x178] sm:$0xff]
    %v3581 = vld [vmem:[%s9 + $0x180] sm:$0xff]
    %v3582 = vld [vmem:[%s9 + $0x190] sm:$0xff]
    %v3583 = vld [vmem:[%s9 + $0x198] sm:$0xff]
    %v3584 = vld [vmem:[%s9 + $0x1a0] sm:$0xff]
    %v3585 = vld [vmem:[%s9 + $0x1b0] sm:$0xff]
    %v3586 = vld [vmem:[%s9 + $0x1b8] sm:$0xff]
    %v3587 = vld [vmem:[%s9 + $0x1c0] sm:$0xff]
    %v3588 = vld [vmem:[%s9 + $0x1d0] sm:$0xff]
    %v3589 = vld [vmem:[%s9 + $0x1d8] sm:$0xff]
    %v3590 = vld [vmem:[%s9 + $0x1e0] sm:$0xff]
    %v3591 = vld [vmem:[%s9 + $0x1f0] sm:$0xff]
    %v3592 = vld [vmem:[%s9 + $0x1f8] sm:$0xff]
    %v3593 = vld [vmem:[%s9 + $0x200] sm:$0xff]
    %v3594 = vld [vmem:[%s9 + $0x210] sm:$0xff]
    %v3595 = vld [vmem:[%s9 + $0x218] sm:$0xff]
    %v3596 = vld [vmem:[%s9 + $0x220] sm:$0xff]
    %v3597 = vld [vmem:[%s9 + $0x230] sm:$0xff]
    %v3598 = vld [vmem:[%s9 + $0x238] sm:$0xff]
    %v3599 = vld [vmem:[%s9 + $0x240] sm:$0xff]
    %v3600 = vld [vmem:[%s9 + $0x250] sm:$0xff]
    %v3601 = vld [vmem:[%s9 + $0x258] sm:$0xff]
    %v3602 = vld [vmem:[%s9 + $0x260] sm:$0xff]
    %v3603 = vld [vmem:[%s9 + $0x270] sm:$0xff]
    %v3604 = vld [vmem:[%s9 + $0x278] sm:$0xff]
    %v3605 = vld [vmem:[%s9 + $0x280] sm:$0xff]
    %v3606 = vld [vmem:[%s9 + $0x290] sm:$0xff]
    %v3607 = vld [vmem:[%s9 + $0x298] sm:$0xff]
    %v3608 = vld [vmem:[%s9 + $0x2a0] sm:$0xff]
    %v3609 = vld [vmem:[%s9 + $0x2b0] sm:$0xff]
    %v3610 = vld [vmem:[%s9 + $0x2b8] sm:$0xff]
    %v3611 = vld [vmem:[%s9 + $0x2c0] sm:$0xff]
    %v3612 = vld [vmem:[%s9 + $0x2d0] sm:$0xff]
    %v3613 = vld [vmem:[%s9 + $0x2d8] sm:$0xff]
    %v3614 = vld [vmem:[%s9 + $0x2e0] sm:$0xff]
    %v3615 = vld [vmem:[%s9 + $0x2f0] sm:$0xff]
    %v3616 = vld [vmem:[%s9 + $0x2f8] sm:$0xff]
    %v3617 = vld [vmem:[%s9 + $0x300] sm:$0xff]
    %v3618 = vld [vmem:[%s9 + $0x310] sm:$0xff]
    %v3619 = vld [vmem:[%s9 + $0x318] sm:$0xff]
    %v3620 = vld [vmem:[%s9 + $0x320] sm:$0xff]
    %v3621 = vld [vmem:[%s9 + $0x330] sm:$0xff]
    %v3622 = vld [vmem:[%s9 + $0x338] sm:$0xff]
    %v3623 = vld [vmem:[%s9 + $0x340] sm:$0xff]
    %v3624 = vld [vmem:[%s9 + $0x350] sm:$0xff]
    %v3625 = vld [vmem:[%s9 + $0x358] sm:$0xff]
    %v3626 = vld [vmem:[%s9 + $0x360] sm:$0xff]
    %v3627 = vld [vmem:[%s9 + $0x370] sm:$0xff]
    %v3628 = vld [vmem:[%s9 + $0x378] sm:$0xff]
    %v3629 = vld [vmem:[%s9 + $0x380] sm:$0xff]
    %v3630 = vld [vmem:[%s9 + $0x390] sm:$0xff]
    %v3631 = vld [vmem:[%s9 + $0x398] sm:$0xff]
    %v3632 = vld [vmem:[%s9 + $0x3a0] sm:$0xff]
    %v3633 = vld [vmem:[%s9 + $0x3b0] sm:$0xff]
    %v3634 = vld [vmem:[%s9 + $0x3b8] sm:$0xff]
    %v3635 = vld [vmem:[%s9 + $0x3c0] sm:$0xff]
    %v3636 = vld [vmem:[%s9 + $0x3d0] sm:$0xff]
    %v3637 = vld [vmem:[%s9 + $0x3d8] sm:$0xff]
    %v3638 = vld [vmem:[%s9 + $0x3e0] sm:$0xff]
    %v3639 = vld [vmem:[%s9 + $0x3f0] sm:$0xff]
    %v3640 = vld [vmem:[%s9 + $0x3f8] sm:$0xff]
    %v3737 = vunpack.c.l.b16 %v3545
    %v3738 = vunpack.c.h.b16 %v3545
    %v3739 = vunpack.c.l.b16 %v3546
    %v3740 = vunpack.c.h.b16 %v3546
    %v3741 = vunpack.c.l.b16 %v3547
    %v3742 = vunpack.c.h.b16 %v3547
    %v3743 = vunpack.c.l.b16 %v3548
    %v3744 = vunpack.c.h.b16 %v3548
    %v3745 = vunpack.c.l.b16 %v3549
    %v3746 = vunpack.c.h.b16 %v3549
    %v3747 = vunpack.c.l.b16 %v3550
    %v3748 = vunpack.c.h.b16 %v3550
    %v3749 = vunpack.c.l.b16 %v3551
    %v3750 = vunpack.c.h.b16 %v3551
    %v3751 = vunpack.c.l.b16 %v3552
    %v3752 = vunpack.c.h.b16 %v3552
    %v3753 = vunpack.c.l.b16 %v3553
    %v3754 = vunpack.c.h.b16 %v3553
    %v3755 = vunpack.c.l.b16 %v3554
    %v3756 = vunpack.c.h.b16 %v3554
    %v3757 = vunpack.c.l.b16 %v3555
    %v3758 = vunpack.c.h.b16 %v3555
    %v3759 = vunpack.c.l.b16 %v3556
    %v3760 = vunpack.c.h.b16 %v3556
    %v3761 = vunpack.c.l.b16 %v3557
    %v3762 = vunpack.c.h.b16 %v3557
    %v3763 = vunpack.c.l.b16 %v3558
    %v3764 = vunpack.c.h.b16 %v3558
    %v3765 = vunpack.c.l.b16 %v3559
    %v3766 = vunpack.c.h.b16 %v3559
    %v3767 = vunpack.c.l.b16 %v3560
    %v3768 = vunpack.c.h.b16 %v3560
    %v3769 = vunpack.c.l.b16 %v3561
    %v3770 = vunpack.c.h.b16 %v3561
    %v3771 = vunpack.c.l.b16 %v3562
    %v3772 = vunpack.c.h.b16 %v3562
    %v3773 = vunpack.c.l.b16 %v3563
    %v3774 = vunpack.c.h.b16 %v3563
    %v3775 = vunpack.c.l.b16 %v3564
    %v3776 = vunpack.c.h.b16 %v3564
    %v3777 = vunpack.c.l.b16 %v3565
    %v3778 = vunpack.c.h.b16 %v3565
    %v3779 = vunpack.c.l.b16 %v3566
    %v3780 = vunpack.c.h.b16 %v3566
    %v3781 = vunpack.c.l.b16 %v3567
    %v3782 = vunpack.c.h.b16 %v3567
    %v3783 = vunpack.c.l.b16 %v3568
    %v3784 = vunpack.c.h.b16 %v3568
    %v3785 = vunpack.c.l.b16 %v3569
    %v3786 = vunpack.c.h.b16 %v3569
    %v3787 = vunpack.c.l.b16 %v3570
    %v3788 = vunpack.c.h.b16 %v3570
    %v3789 = vunpack.c.l.b16 %v3571
    %v3790 = vunpack.c.h.b16 %v3571
    %v3791 = vunpack.c.l.b16 %v3572
    %v3792 = vunpack.c.h.b16 %v3572
    %v3793 = vunpack.c.l.b16 %v3573
    %v3794 = vunpack.c.h.b16 %v3573
    %v3795 = vunpack.c.l.b16 %v3574
    %v3796 = vunpack.c.h.b16 %v3574
    %v3797 = vunpack.c.l.b16 %v3575
    %v3798 = vunpack.c.h.b16 %v3575
    %v3799 = vunpack.c.l.b16 %v3576
    %v3800 = vunpack.c.h.b16 %v3576
    %v3801 = vunpack.c.l.b16 %v3577
    %v3802 = vunpack.c.h.b16 %v3577
    %v3803 = vunpack.c.l.b16 %v3578
    %v3804 = vunpack.c.h.b16 %v3578
    %v3805 = vunpack.c.l.b16 %v3579
    %v3806 = vunpack.c.h.b16 %v3579
    %v3807 = vunpack.c.l.b16 %v3580
    %v3808 = vunpack.c.h.b16 %v3580
    %v3809 = vunpack.c.l.b16 %v3581
    %v3810 = vunpack.c.h.b16 %v3581
    %v3811 = vunpack.c.l.b16 %v3582
    %v3812 = vunpack.c.h.b16 %v3582
    %v3813 = vunpack.c.l.b16 %v3583
    %v3814 = vunpack.c.h.b16 %v3583
    %v3815 = vunpack.c.l.b16 %v3584
    %v3816 = vunpack.c.h.b16 %v3584
    %v3817 = vunpack.c.l.b16 %v3585
    %v3818 = vunpack.c.h.b16 %v3585
    %v3819 = vunpack.c.l.b16 %v3586
    %v3820 = vunpack.c.h.b16 %v3586
    %v3821 = vunpack.c.l.b16 %v3587
    %v3822 = vunpack.c.h.b16 %v3587
    %v3823 = vunpack.c.l.b16 %v3588
    %v3824 = vunpack.c.h.b16 %v3588
    %v3825 = vunpack.c.l.b16 %v3589
    %v3826 = vunpack.c.h.b16 %v3589
    %v3827 = vunpack.c.l.b16 %v3590
    %v3828 = vunpack.c.h.b16 %v3590
    %v3829 = vunpack.c.l.b16 %v3591
    %v3830 = vunpack.c.h.b16 %v3591
    %v3831 = vunpack.c.l.b16 %v3592
    %v3832 = vunpack.c.h.b16 %v3592
    %v3833 = vunpack.c.l.b16 %v3593
    %v3834 = vunpack.c.h.b16 %v3593
    %v3835 = vunpack.c.l.b16 %v3594
    %v3836 = vunpack.c.h.b16 %v3594
    %v3837 = vunpack.c.l.b16 %v3595
    %v3838 = vunpack.c.h.b16 %v3595
    %v3839 = vunpack.c.l.b16 %v3596
    %v3840 = vunpack.c.h.b16 %v3596
    %v3841 = vunpack.c.l.b16 %v3597
    %v3842 = vunpack.c.h.b16 %v3597
    %v3843 = vunpack.c.l.b16 %v3598
    %v3844 = vunpack.c.h.b16 %v3598
    %v3845 = vunpack.c.l.b16 %v3599
    %v3846 = vunpack.c.h.b16 %v3599
    %v3847 = vunpack.c.l.b16 %v3600
    %v3848 = vunpack.c.h.b16 %v3600
    %v3849 = vunpack.c.l.b16 %v3601
    %v3850 = vunpack.c.h.b16 %v3601
    %v3851 = vunpack.c.l.b16 %v3602
    %v3852 = vunpack.c.h.b16 %v3602
    %v3853 = vunpack.c.l.b16 %v3603
    %v3854 = vunpack.c.h.b16 %v3603
    %v3855 = vunpack.c.l.b16 %v3604
    %v3856 = vunpack.c.h.b16 %v3604
    %v3857 = vunpack.c.l.b16 %v3605
    %v3858 = vunpack.c.h.b16 %v3605
    %v3859 = vunpack.c.l.b16 %v3606
    %v3860 = vunpack.c.h.b16 %v3606
    %v3861 = vunpack.c.l.b16 %v3607
    %v3862 = vunpack.c.h.b16 %v3607
    %v3863 = vunpack.c.l.b16 %v3608
    %v3864 = vunpack.c.h.b16 %v3608
    %v3865 = vunpack.c.l.b16 %v3609
    %v3866 = vunpack.c.h.b16 %v3609
    %v3867 = vunpack.c.l.b16 %v3610
    %v3868 = vunpack.c.h.b16 %v3610
    %v3869 = vunpack.c.l.b16 %v3611
    %v3870 = vunpack.c.h.b16 %v3611
    %v3871 = vunpack.c.l.b16 %v3612
    %v3872 = vunpack.c.h.b16 %v3612
    %v3873 = vunpack.c.l.b16 %v3613
    %v3874 = vunpack.c.h.b16 %v3613
    %v3875 = vunpack.c.l.b16 %v3614
    %v3876 = vunpack.c.h.b16 %v3614
    %v3877 = vunpack.c.l.b16 %v3615
    %v3878 = vunpack.c.h.b16 %v3615
    %v3879 = vunpack.c.l.b16 %v3616
    %v3880 = vunpack.c.h.b16 %v3616
    %v3881 = vunpack.c.l.b16 %v3617
    %v3882 = vunpack.c.h.b16 %v3617
    %v3883 = vunpack.c.l.b16 %v3618
    %v3884 = vunpack.c.h.b16 %v3618
    %v3885 = vunpack.c.l.b16 %v3619
    %v3886 = vunpack.c.h.b16 %v3619
    %v3887 = vunpack.c.l.b16 %v3620
    %v3888 = vunpack.c.h.b16 %v3620
    %v3889 = vunpack.c.l.b16 %v3621
    %v3890 = vunpack.c.h.b16 %v3621
    %v3891 = vunpack.c.l.b16 %v3622
    %v3892 = vunpack.c.h.b16 %v3622
    %v3893 = vunpack.c.l.b16 %v3623
    %v3894 = vunpack.c.h.b16 %v3623
    %v3895 = vunpack.c.l.b16 %v3624
    %v3896 = vunpack.c.h.b16 %v3624
    %v3897 = vunpack.c.l.b16 %v3625
    %v3898 = vunpack.c.h.b16 %v3625
    %v3899 = vunpack.c.l.b16 %v3626
    %v3900 = vunpack.c.h.b16 %v3626
    %v3901 = vunpack.c.l.b16 %v3627
    %v3902 = vunpack.c.h.b16 %v3627
    %v3903 = vunpack.c.l.b16 %v3628
    %v3904 = vunpack.c.h.b16 %v3628
    %v3905 = vunpack.c.l.b16 %v3629
    %v3906 = vunpack.c.h.b16 %v3629
    %v3907 = vunpack.c.l.b16 %v3630
    %v3908 = vunpack.c.h.b16 %v3630
    %v3909 = vunpack.c.l.b16 %v3631
    %v3910 = vunpack.c.h.b16 %v3631
    %v3911 = vunpack.c.l.b16 %v3632
    %v3912 = vunpack.c.h.b16 %v3632
    %v3913 = vunpack.c.l.b16 %v3633
    %v3914 = vunpack.c.h.b16 %v3633
    %v3915 = vunpack.c.l.b16 %v3634
    %v3916 = vunpack.c.h.b16 %v3634
    %v3917 = vunpack.c.l.b16 %v3635
    %v3918 = vunpack.c.h.b16 %v3635
    %v3919 = vunpack.c.l.b16 %v3636
    %v3920 = vunpack.c.h.b16 %v3636
    %v3921 = vunpack.c.l.b16 %v3637
    %v3922 = vunpack.c.h.b16 %v3637
    %v3923 = vunpack.c.l.b16 %v3638
    %v3924 = vunpack.c.h.b16 %v3638
    %v3925 = vunpack.c.l.b16 %v3639
    %v3926 = vunpack.c.h.b16 %v3639
    %v3927 = vunpack.c.l.b16 %v3640
    %v3928 = vunpack.c.h.b16 %v3640
    %v3929 = vpack.c.b16 %v3743, %v3737
    %v3930 = vpack.c.b16 %v3744, %v3738
    %v3931 = vpack.c.b16 %v3745, %v3739
    %v3932 = vpack.c.b16 %v3746, %v3740
    %v3933 = vpack.c.b16 %v3747, %v3741
    %v3934 = vpack.c.b16 %v3748, %v3742
    %v3935 = vpack.c.b16 %v3755, %v3749
    %v3936 = vpack.c.b16 %v3756, %v3750
    %v3937 = vpack.c.b16 %v3757, %v3751
    %v3938 = vpack.c.b16 %v3758, %v3752
    %v3939 = vpack.c.b16 %v3759, %v3753
    %v3940 = vpack.c.b16 %v3760, %v3754
    %v3941 = vpack.c.b16 %v3767, %v3761
    %v3942 = vpack.c.b16 %v3768, %v3762
    %v3943 = vpack.c.b16 %v3769, %v3763
    %v3944 = vpack.c.b16 %v3770, %v3764
    %v3945 = vpack.c.b16 %v3771, %v3765
    %v3946 = vpack.c.b16 %v3772, %v3766
    %v3947 = vpack.c.b16 %v3779, %v3773
    %v3948 = vpack.c.b16 %v3780, %v3774
    %v3949 = vpack.c.b16 %v3781, %v3775
    %v3950 = vpack.c.b16 %v3782, %v3776
    %v3951 = vpack.c.b16 %v3783, %v3777
    %v3952 = vpack.c.b16 %v3784, %v3778
    %v3953 = vpack.c.b16 %v3791, %v3785
    %v3954 = vpack.c.b16 %v3792, %v3786
    %v3955 = vpack.c.b16 %v3793, %v3787
    %v3956 = vpack.c.b16 %v3794, %v3788
    %v3957 = vpack.c.b16 %v3795, %v3789
    %v3958 = vpack.c.b16 %v3796, %v3790
    %v3959 = vpack.c.b16 %v3803, %v3797
    %v3960 = vpack.c.b16 %v3804, %v3798
    %v3961 = vpack.c.b16 %v3805, %v3799
    %v3962 = vpack.c.b16 %v3806, %v3800
    %v3963 = vpack.c.b16 %v3807, %v3801
    %v3964 = vpack.c.b16 %v3808, %v3802
    %v3965 = vpack.c.b16 %v3815, %v3809
    %v3966 = vpack.c.b16 %v3816, %v3810
    %v3967 = vpack.c.b16 %v3817, %v3811
    %v3968 = vpack.c.b16 %v3818, %v3812
    %v3969 = vpack.c.b16 %v3819, %v3813
    %v3970 = vpack.c.b16 %v3820, %v3814
    %v3971 = vpack.c.b16 %v3827, %v3821
    %v3972 = vpack.c.b16 %v3828, %v3822
    %v3973 = vpack.c.b16 %v3829, %v3823
    %v3974 = vpack.c.b16 %v3830, %v3824
    %v3975 = vpack.c.b16 %v3831, %v3825
    %v3976 = vpack.c.b16 %v3832, %v3826
    %v3977 = vpack.c.b16 %v3839, %v3833
    %v3978 = vpack.c.b16 %v3840, %v3834
    %v3979 = vpack.c.b16 %v3841, %v3835
    %v3980 = vpack.c.b16 %v3842, %v3836
    %v3981 = vpack.c.b16 %v3843, %v3837
    %v3982 = vpack.c.b16 %v3844, %v3838
    %v3983 = vpack.c.b16 %v3851, %v3845
    %v3984 = vpack.c.b16 %v3852, %v3846
    %v3985 = vpack.c.b16 %v3853, %v3847
    %v3986 = vpack.c.b16 %v3854, %v3848
    %v3987 = vpack.c.b16 %v3855, %v3849
    %v3988 = vpack.c.b16 %v3856, %v3850
    %v3989 = vpack.c.b16 %v3863, %v3857
    %v3990 = vpack.c.b16 %v3864, %v3858
    %v3991 = vpack.c.b16 %v3865, %v3859
    %v3992 = vpack.c.b16 %v3866, %v3860
    %v3993 = vpack.c.b16 %v3867, %v3861
    %v3994 = vpack.c.b16 %v3868, %v3862
    %v3995 = vpack.c.b16 %v3875, %v3869
    %v3996 = vpack.c.b16 %v3876, %v3870
    %v3997 = vpack.c.b16 %v3877, %v3871
    %v3998 = vpack.c.b16 %v3878, %v3872
    %v3999 = vpack.c.b16 %v3879, %v3873
    %v4000 = vpack.c.b16 %v3880, %v3874
    %v4001 = vpack.c.b16 %v3887, %v3881
    %v4002 = vpack.c.b16 %v3888, %v3882
    %v4003 = vpack.c.b16 %v3889, %v3883
    %v4004 = vpack.c.b16 %v3890, %v3884
    %v4005 = vpack.c.b16 %v3891, %v3885
    %v4006 = vpack.c.b16 %v3892, %v3886
    %v4007 = vpack.c.b16 %v3899, %v3893
    %v4008 = vpack.c.b16 %v3900, %v3894
    %v4009 = vpack.c.b16 %v3901, %v3895
    %v4010 = vpack.c.b16 %v3902, %v3896
    %v4011 = vpack.c.b16 %v3903, %v3897
    %v4012 = vpack.c.b16 %v3904, %v3898
    %v4013 = vpack.c.b16 %v3911, %v3905
    %v4014 = vpack.c.b16 %v3912, %v3906
    %v4015 = vpack.c.b16 %v3913, %v3907
    %v4016 = vpack.c.b16 %v3914, %v3908
    %v4017 = vpack.c.b16 %v3915, %v3909
    %v4018 = vpack.c.b16 %v3916, %v3910
    %v4019 = vpack.c.b16 %v3923, %v3917
    %v4020 = vpack.c.b16 %v3924, %v3918
    %v4021 = vpack.c.b16 %v3925, %v3919
    %v4022 = vpack.c.b16 %v3926, %v3920
    %v4023 = vpack.c.b16 %v3927, %v3921
    %v4024 = vpack.c.b16 %v3928, %v3922
    %4121 = vmatprep.subr.bf16.mxu0 %v3930
    %4122 = vmatpush1.bf16.msra.mxu0 %v3929
    %4123 = vmatprep.subr.bf16.mxu0 %v3936
    %4124 = vmatpush1.bf16.msra.mxu0 %v3935
    %4125 = vmatprep.subr.bf16.mxu0 %v3942
    %4126 = vmatpush1.bf16.msra.mxu0 %v3941
    %4127 = vmatprep.subr.bf16.mxu0 %v3948
    %4128 = vmatpush1.bf16.msra.mxu0 %v3947
    %4129 = vmatprep.subr.bf16.mxu0 %v3954
    %4130 = vmatpush1.bf16.msra.mxu0 %v3953
    %4131 = vmatprep.subr.bf16.mxu0 %v3960
    %4132 = vmatpush1.bf16.msra.mxu0 %v3959
    %4133 = vmatprep.subr.bf16.mxu0 %v3966
    %4134 = vmatpush1.bf16.msra.mxu0 %v3965
    %4135 = vmatprep.subr.bf16.mxu0 %v3972
    %4136 = vmatpush1.bf16.msra.mxu0 %v3971
    %4137 = vmatprep.subr.bf16.mxu0 %v3978
    %4138 = vmatpush1.bf16.msra.mxu0 %v3977
    %4139 = vmatprep.subr.bf16.mxu0 %v3984
    %4140 = vmatpush1.bf16.msra.mxu0 %v3983
    %4141 = vmatprep.subr.bf16.mxu0 %v3990
    %4142 = vmatpush1.bf16.msra.mxu0 %v3989
    %4143 = vmatprep.subr.bf16.mxu0 %v3996
    %4144 = vmatpush1.bf16.msra.mxu0 %v3995
    %4145 = vmatprep.subr.bf16.mxu0 %v4002
    %4146 = vmatpush1.bf16.msra.mxu0 %v4001
    %4147 = vmatprep.subr.bf16.mxu0 %v4008
    %4148 = vmatpush1.bf16.msra.mxu0 %v4007
    %4149 = vmatprep.subr.bf16.mxu0 %v4014
    %4150 = vmatpush1.bf16.msra.mxu0 %v4013
    %4151 = vmatprep.subr.bf16.mxu0 %v4020
    %4152 = vmatpush1.bf16.msra.mxu0 %v4019
    %4153 = vmatprep.mubr.bf16.mxu0 %v245
    %4154 = vmatmul.mubr.bf16.gmra.mrb[0].mxu0 %v244
    %v4155 = vpop.f32.mrb[0].mxu0
    %v4156 = vadd.f32 0.0, %v4155
    %v4157 = vpop.f32.mrb[0].mxu0
    %v4158 = vadd.f32 0.0, %v4157
    %v4159 = vpop.f32.mrb[0].mxu0
    %v4160 = vadd.f32 0.0, %v4159
    %v4161 = vpop.f32.mrb[0].mxu0
    %v4162 = vadd.f32 0.0, %v4161
    %4163 = vmatprep.mubr.bf16.mxu0 %v247
    %4164 = vmatmul.mubr.bf16.gmra.mrb[0].mxu0 %v246
    %v4165 = vpop.f32.mrb[0].mxu0
    %v4166 = vadd.f32 0.0, %v4165
    %v4167 = vpop.f32.mrb[0].mxu0
    %v4168 = vadd.f32 0.0, %v4167
    %v4169 = vpop.f32.mrb[0].mxu0
    %v4170 = vadd.f32 0.0, %v4169
    %v4171 = vpop.f32.mrb[0].mxu0
    %v4172 = vadd.f32 0.0, %v4171
    %4173 = vmatprep.mubr.bf16.mxu0 %v249
    %4174 = vmatmul.mubr.bf16.gmra.mrb[0].mxu0 %v248
    %v4175 = vpop.f32.mrb[0].mxu0
    %v4176 = vadd.f32 0.0, %v4175
    %v4177 = vpop.f32.mrb[0].mxu0
    %v4178 = vadd.f32 0.0, %v4177
    %v4179 = vpop.f32.mrb[0].mxu0
    %v4180 = vadd.f32 0.0, %v4179
    %v4181 = vpop.f32.mrb[0].mxu0
    %v4182 = vadd.f32 0.0, %v4181
    %4183 = vmatprep.mubr.bf16.mxu0 %v251
    %4184 = vmatmul.mubr.bf16.gmra.mrb[0].mxu0 %v250
    %v4185 = vpop.f32.mrb[0].mxu0
    %v4186 = vadd.f32 0.0, %v4185
    %v4187 = vpop.f32.mrb[0].mxu0
    %v4188 = vadd.f32 0.0, %v4187
    %v4189 = vpop.f32.mrb[0].mxu0
    %v4190 = vadd.f32 0.0, %v4189
    %v4191 = vpop.f32.mrb[0].mxu0
    %v4192 = vadd.f32 0.0, %v4191
    %4193 = vdwg.mxu0
    %4194 = vmatprep.subr.bf16.mxu0 %v3932
    %4195 = vmatpush1.bf16.msra.mxu0 %v3931
    %4196 = vmatprep.subr.bf16.mxu0 %v3938
    %4197 = vmatpush1.bf16.msra.mxu0 %v3937
    %4198 = vmatprep.subr.bf16.mxu0 %v3944
    %4199 = vmatpush1.bf16.msra.mxu0 %v3943
    %4200 = vmatprep.subr.bf16.mxu0 %v3950
    %4201 = vmatpush1.bf16.msra.mxu0 %v3949
    %4202 = vmatprep.subr.bf16.mxu0 %v3956
    %4203 = vmatpush1.bf16.msra.mxu0 %v3955
    %4204 = vmatprep.subr.bf16.mxu0 %v3962
    %4205 = vmatpush1.bf16.msra.mxu0 %v3961
    %4206 = vmatprep.subr.bf16.mxu0 %v3968
    %4207 = vmatpush1.bf16.msra.mxu0 %v3967
    %4208 = vmatprep.subr.bf16.mxu0 %v3974
    %4209 = vmatpush1.bf16.msra.mxu0 %v3973
    %4210 = vmatprep.subr.bf16.mxu0 %v3980
    %4211 = vmatpush1.bf16.msra.mxu0 %v3979
    %4212 = vmatprep.subr.bf16.mxu0 %v3986
    %4213 = vmatpush1.bf16.msra.mxu0 %v3985
    %4214 = vmatprep.subr.bf16.mxu0 %v3992
    %4215 = vmatpush1.bf16.msra.mxu0 %v3991
    %4216 = vmatprep.subr.bf16.mxu0 %v3998
    %4217 = vmatpush1.bf16.msra.mxu0 %v3997
    %4218 = vmatprep.subr.bf16.mxu0 %v4004
    %4219 = vmatpush1.bf16.msra.mxu0 %v4003
    %4220 = vmatprep.subr.bf16.mxu0 %v4010
    %4221 = vmatpush1.bf16.msra.mxu0 %v4009
    %4222 = vmatprep.subr.bf16.mxu0 %v4016
    %4223 = vmatpush1.bf16.msra.mxu0 %v4015
    %4224 = vmatprep.subr.bf16.mxu0 %v4022
    %4225 = vmatpush1.bf16.msra.mxu0 %v4021
    %4226 = vmatprep.mubr.bf16.mxu0 %v245
    %4227 = vmatmul.mubr.bf16.gmra.mrb[0].mxu0 %v244
    %v4228 = vpop.f32.mrb[0].mxu0
    %v4229 = vadd.f32 0.0, %v4228
    %v4230 = vpop.f32.mrb[0].mxu0
    %v4231 = vadd.f32 0.0, %v4230
    %v4232 = vpop.f32.mrb[0].mxu0
    %v4233 = vadd.f32 0.0, %v4232
    %v4234 = vpop.f32.mrb[0].mxu0
    %v4235 = vadd.f32 0.0, %v4234
    %4236 = vmatprep.mubr.bf16.mxu0 %v247
    %4237 = vmatmul.mubr.bf16.gmra.mrb[0].mxu0 %v246
    %v4238 = vpop.f32.mrb[0].mxu0
    %v4239 = vadd.f32 0.0, %v4238
    %v4240 = vpop.f32.mrb[0].mxu0
    %v4241 = vadd.f32 0.0, %v4240
    %v4242 = vpop.f32.mrb[0].mxu0
    %v4243 = vadd.f32 0.0, %v4242
    %v4244 = vpop.f32.mrb[0].mxu0
    %v4245 = vadd.f32 0.0, %v4244
    %4246 = vmatprep.mubr.bf16.mxu0 %v249
    %4247 = vmatmul.mubr.bf16.gmra.mrb[0].mxu0 %v248
    %v4248 = vpop.f32.mrb[0].mxu0
    %v4249 = vadd.f32 0.0, %v4248
    %v4250 = vpop.f32.mrb[0].mxu0
    %v4251 = vadd.f32 0.0, %v4250
    %v4252 = vpop.f32.mrb[0].mxu0
    %v4253 = vadd.f32 0.0, %v4252
    %v4254 = vpop.f32.mrb[0].mxu0
    %v4255 = vadd.f32 0.0, %v4254
    %4256 = vmatprep.mubr.bf16.mxu0 %v251
    %4257 = vmatmul.mubr.bf16.gmra.mrb[0].mxu0 %v250
    %v4258 = vpop.f32.mrb[0].mxu0
    %v4259 = vadd.f32 0.0, %v4258
    %v4260 = vpop.f32.mrb[0].mxu0
    %v4261 = vadd.f32 0.0, %v4260
    %v4262 = vpop.f32.mrb[0].mxu0
    %v4263 = vadd.f32 0.0, %v4262
    %v4264 = vpop.f32.mrb[0].mxu0
    %v4265 = vadd.f32 0.0, %v4264
    %4266 = vdwg.mxu0
    %4267 = vmatprep.subr.bf16.mxu0 %v3934
    %4268 = vmatpush1.bf16.msra.mxu0 %v3933
    %4269 = vmatprep.subr.bf16.mxu0 %v3940
    %4270 = vmatpush1.bf16.msra.mxu0 %v3939
    %4271 = vmatprep.subr.bf16.mxu0 %v3946
    %4272 = vmatpush1.bf16.msra.mxu0 %v3945
    %4273 = vmatprep.subr.bf16.mxu0 %v3952
    %4274 = vmatpush1.bf16.msra.mxu0 %v3951
    %4275 = vmatprep.subr.bf16.mxu0 %v3958
    %4276 = vmatpush1.bf16.msra.mxu0 %v3957
    %4277 = vmatprep.subr.bf16.mxu0 %v3964
    %4278 = vmatpush1.bf16.msra.mxu0 %v3963
    %4279 = vmatprep.subr.bf16.mxu0 %v3970
    %4280 = vmatpush1.bf16.msra.mxu0 %v3969
    %4281 = vmatprep.subr.bf16.mxu0 %v3976
    %4282 = vmatpush1.bf16.msra.mxu0 %v3975
    %4283 = vmatprep.subr.bf16.mxu0 %v3982
    %4284 = vmatpush1.bf16.msra.mxu0 %v3981
    %4285 = vmatprep.subr.bf16.mxu0 %v3988
    %4286 = vmatpush1.bf16.msra.mxu0 %v3987
    %4287 = vmatprep.subr.bf16.mxu0 %v3994
    %4288 = vmatpush1.bf16.msra.mxu0 %v3993
    %4289 = vmatprep.subr.bf16.mxu0 %v4000
    %4290 = vmatpush1.bf16.msra.mxu0 %v3999
    %4291 = vmatprep.subr.bf16.mxu0 %v4006
    %4292 = vmatpush1.bf16.msra.mxu0 %v4005
    %4293 = vmatprep.subr.bf16.mxu0 %v4012
    %4294 = vmatpush1.bf16.msra.mxu0 %v4011
    %4295 = vmatprep.subr.bf16.mxu0 %v4018
    %4296 = vmatpush1.bf16.msra.mxu0 %v4017
    %4297 = vmatprep.subr.bf16.mxu0 %v4024
    %4298 = vmatpush1.bf16.msra.mxu0 %v4023
    %4299 = vmatprep.mubr.bf16.mxu0 %v245
    %4300 = vmatmul.mubr.bf16.gmra.mrb[0].mxu0 %v244
    %v4301 = vpop.f32.mrb[0].mxu0
    %v4302 = vadd.f32 0.0, %v4301
    %v4303 = vpop.f32.mrb[0].mxu0
    %v4304 = vadd.f32 0.0, %v4303
    %v4305 = vpop.f32.mrb[0].mxu0
    %v4306 = vadd.f32 0.0, %v4305
    %v4307 = vpop.f32.mrb[0].mxu0
    %v4308 = vadd.f32 0.0, %v4307
    %4309 = vmatprep.mubr.bf16.mxu0 %v247
    %4310 = vmatmul.mubr.bf16.gmra.mrb[0].mxu0 %v246
    %v4311 = vpop.f32.mrb[0].mxu0
    %v4312 = vadd.f32 0.0, %v4311
    %v4313 = vpop.f32.mrb[0].mxu0
    %v4314 = vadd.f32 0.0, %v4313
    %v4315 = vpop.f32.mrb[0].mxu0
    %v4316 = vadd.f32 0.0, %v4315
    %v4317 = vpop.f32.mrb[0].mxu0
    %v4318 = vadd.f32 0.0, %v4317
    %4319 = vmatprep.mubr.bf16.mxu0 %v249
    %4320 = vmatmul.mubr.bf16.gmra.mrb[0].mxu0 %v248
    %v4321 = vpop.f32.mrb[0].mxu0
    %v4322 = vadd.f32 0.0, %v4321
    %v4323 = vpop.f32.mrb[0].mxu0
    %v4324 = vadd.f32 0.0, %v4323
    %v4325 = vpop.f32.mrb[0].mxu0
    %v4326 = vadd.f32 0.0, %v4325
    %v4327 = vpop.f32.mrb[0].mxu0
    %v4328 = vadd.f32 0.0, %v4327
    %4329 = vmatprep.mubr.bf16.mxu0 %v251
    %4330 = vmatmul.mubr.bf16.gmra.mrb[0].mxu0 %v250
    %v4331 = vpop.f32.mrb[0].mxu0
    %v4332 = vadd.f32 0.0, %v4331
    %v4333 = vpop.f32.mrb[0].mxu0
    %v4334 = vadd.f32 0.0, %v4333
    %v4335 = vpop.f32.mrb[0].mxu0
    %v4336 = vadd.f32 0.0, %v4335
    %v4337 = vpop.f32.mrb[0].mxu0
    %v4338 = vadd.f32 0.0, %v4337
    %4339 = vdwg.mxu0
    %v4436 = vunpack.c.l.b16 %v3038
    %v4437 = vunpack.c.h.b16 %v3038
    %v4438 = vunpack.c.l.b16 %v3039
    %v4439 = vunpack.c.h.b16 %v3039
    %v4440 = vunpack.c.l.b16 %v3040
    %v4441 = vunpack.c.h.b16 %v3040
    %v4442 = vunpack.c.l.b16 %v3041
    %v4443 = vunpack.c.h.b16 %v3041
    %v4444 = vunpack.c.l.b16 %v3042
    %v4445 = vunpack.c.h.b16 %v3042
    %v4446 = vunpack.c.l.b16 %v3043
    %v4447 = vunpack.c.h.b16 %v3043
    %v4448 = vunpack.c.l.b16 %v3044
    %v4449 = vunpack.c.h.b16 %v3044
    %v4450 = vunpack.c.l.b16 %v3045
    %v4451 = vunpack.c.h.b16 %v3045
    %v4452 = vunpack.c.l.b16 %v3046
    %v4453 = vunpack.c.h.b16 %v3046
    %v4454 = vunpack.c.l.b16 %v3047
    %v4455 = vunpack.c.h.b16 %v3047
    %v4456 = vunpack.c.l.b16 %v3048
    %v4457 = vunpack.c.h.b16 %v3048
    %v4458 = vunpack.c.l.b16 %v3049
    %v4459 = vunpack.c.h.b16 %v3049
    %v4460 = vunpack.c.l.b16 %v3050
    %v4461 = vunpack.c.h.b16 %v3050
    %v4462 = vunpack.c.l.b16 %v3051
    %v4463 = vunpack.c.h.b16 %v3051
    %v4464 = vunpack.c.l.b16 %v3052
    %v4465 = vunpack.c.h.b16 %v3052
    %v4466 = vunpack.c.l.b16 %v3053
    %v4467 = vunpack.c.h.b16 %v3053
    %v4468 = vunpack.c.l.b16 %v3054
    %v4469 = vunpack.c.h.b16 %v3054
    %v4470 = vunpack.c.l.b16 %v3055
    %v4471 = vunpack.c.h.b16 %v3055
    %v4472 = vunpack.c.l.b16 %v3056
    %v4473 = vunpack.c.h.b16 %v3056
    %v4474 = vunpack.c.l.b16 %v3057
    %v4475 = vunpack.c.h.b16 %v3057
    %v4476 = vunpack.c.l.b16 %v3058
    %v4477 = vunpack.c.h.b16 %v3058
    %v4478 = vunpack.c.l.b16 %v3059
    %v4479 = vunpack.c.h.b16 %v3059
    %v4480 = vunpack.c.l.b16 %v3060
    %v4481 = vunpack.c.h.b16 %v3060
    %v4482 = vunpack.c.l.b16 %v3061
    %v4483 = vunpack.c.h.b16 %v3061
    %v4484 = vunpack.c.l.b16 %v3062
    %v4485 = vunpack.c.h.b16 %v3062
    %v4486 = vunpack.c.l.b16 %v3063
    %v4487 = vunpack.c.h.b16 %v3063
    %v4488 = vunpack.c.l.b16 %v3064
    %v4489 = vunpack.c.h.b16 %v3064
    %v4490 = vunpack.c.l.b16 %v3065
    %v4491 = vunpack.c.h.b16 %v3065
    %v4492 = vunpack.c.l.b16 %v3066
    %v4493 = vunpack.c.h.b16 %v3066
    %v4494 = vunpack.c.l.b16 %v3067
    %v4495 = vunpack.c.h.b16 %v3067
    %v4496 = vunpack.c.l.b16 %v3068
    %v4497 = vunpack.c.h.b16 %v3068
    %v4498 = vunpack.c.l.b16 %v3069
    %v4499 = vunpack.c.h.b16 %v3069
    %v4500 = vunpack.c.l.b16 %v3070
    %v4501 = vunpack.c.h.b16 %v3070
    %v4502 = vunpack.c.l.b16 %v3071
    %v4503 = vunpack.c.h.b16 %v3071
    %v4504 = vunpack.c.l.b16 %v3072
    %v4505 = vunpack.c.h.b16 %v3072
    %v4506 = vunpack.c.l.b16 %v3073
    %v4507 = vunpack.c.h.b16 %v3073
    %v4508 = vunpack.c.l.b16 %v3074
    %v4509 = vunpack.c.h.b16 %v3074
    %v4510 = vunpack.c.l.b16 %v3075
    %v4511 = vunpack.c.h.b16 %v3075
    %v4512 = vunpack.c.l.b16 %v3076
    %v4513 = vunpack.c.h.b16 %v3076
    %v4514 = vunpack.c.l.b16 %v3077
    %v4515 = vunpack.c.h.b16 %v3077
    %v4516 = vunpack.c.l.b16 %v3078
    %v4517 = vunpack.c.h.b16 %v3078
    %v4518 = vunpack.c.l.b16 %v3079
    %v4519 = vunpack.c.h.b16 %v3079
    %v4520 = vunpack.c.l.b16 %v3080
    %v4521 = vunpack.c.h.b16 %v3080
    %v4522 = vunpack.c.l.b16 %v3081
    %v4523 = vunpack.c.h.b16 %v3081
    %v4524 = vunpack.c.l.b16 %v3082
    %v4525 = vunpack.c.h.b16 %v3082
    %v4526 = vunpack.c.l.b16 %v3083
    %v4527 = vunpack.c.h.b16 %v3083
    %v4528 = vunpack.c.l.b16 %v3084
    %v4529 = vunpack.c.h.b16 %v3084
    %v4530 = vunpack.c.l.b16 %v3085
    %v4531 = vunpack.c.h.b16 %v3085
    %v4532 = vunpack.c.l.b16 %v3086
    %v4533 = vunpack.c.h.b16 %v3086
    %v4534 = vunpack.c.l.b16 %v3087
    %v4535 = vunpack.c.h.b16 %v3087
    %v4536 = vunpack.c.l.b16 %v3088
    %v4537 = vunpack.c.h.b16 %v3088
    %v4538 = vunpack.c.l.b16 %v3089
    %v4539 = vunpack.c.h.b16 %v3089
    %v4540 = vunpack.c.l.b16 %v3090
    %v4541 = vunpack.c.h.b16 %v3090
    %v4542 = vunpack.c.l.b16 %v3091
    %v4543 = vunpack.c.h.b16 %v3091
    %v4544 = vunpack.c.l.b16 %v3092
    %v4545 = vunpack.c.h.b16 %v3092
    %v4546 = vunpack.c.l.b16 %v3093
    %v4547 = vunpack.c.h.b16 %v3093
    %v4548 = vunpack.c.l.b16 %v3094
    %v4549 = vunpack.c.h.b16 %v3094
    %v4550 = vunpack.c.l.b16 %v3095
    %v4551 = vunpack.c.h.b16 %v3095
    %v4552 = vunpack.c.l.b16 %v3096
    %v4553 = vunpack.c.h.b16 %v3096
    %v4554 = vunpack.c.l.b16 %v3097
    %v4555 = vunpack.c.h.b16 %v3097
    %v4556 = vunpack.c.l.b16 %v3098
    %v4557 = vunpack.c.h.b16 %v3098
    %v4558 = vunpack.c.l.b16 %v3099
    %v4559 = vunpack.c.h.b16 %v3099
    %v4560 = vunpack.c.l.b16 %v3100
    %v4561 = vunpack.c.h.b16 %v3100
    %v4562 = vunpack.c.l.b16 %v3101
    %v4563 = vunpack.c.h.b16 %v3101
    %v4564 = vunpack.c.l.b16 %v3102
    %v4565 = vunpack.c.h.b16 %v3102
    %v4566 = vunpack.c.l.b16 %v3103
    %v4567 = vunpack.c.h.b16 %v3103
    %v4568 = vunpack.c.l.b16 %v3104
    %v4569 = vunpack.c.h.b16 %v3104
    %v4570 = vunpack.c.l.b16 %v3105
    %v4571 = vunpack.c.h.b16 %v3105
    %v4572 = vunpack.c.l.b16 %v3106
    %v4573 = vunpack.c.h.b16 %v3106
    %v4574 = vunpack.c.l.b16 %v3107
    %v4575 = vunpack.c.h.b16 %v3107
    %v4576 = vunpack.c.l.b16 %v3108
    %v4577 = vunpack.c.h.b16 %v3108
    %v4578 = vunpack.c.l.b16 %v3109
    %v4579 = vunpack.c.h.b16 %v3109
    %v4580 = vunpack.c.l.b16 %v3110
    %v4581 = vunpack.c.h.b16 %v3110
    %v4582 = vunpack.c.l.b16 %v3111
    %v4583 = vunpack.c.h.b16 %v3111
    %v4584 = vunpack.c.l.b16 %v3112
    %v4585 = vunpack.c.h.b16 %v3112
    %v4586 = vunpack.c.l.b16 %v3113
    %v4587 = vunpack.c.h.b16 %v3113
    %v4588 = vunpack.c.l.b16 %v3114
    %v4589 = vunpack.c.h.b16 %v3114
    %v4590 = vunpack.c.l.b16 %v3115
    %v4591 = vunpack.c.h.b16 %v3115
    %v4592 = vunpack.c.l.b16 %v3116
    %v4593 = vunpack.c.h.b16 %v3116
    %v4594 = vunpack.c.l.b16 %v3117
    %v4595 = vunpack.c.h.b16 %v3117
    %v4596 = vunpack.c.l.b16 %v3118
    %v4597 = vunpack.c.h.b16 %v3118
    %v4598 = vunpack.c.l.b16 %v3119
    %v4599 = vunpack.c.h.b16 %v3119
    %v4600 = vunpack.c.l.b16 %v3120
    %v4601 = vunpack.c.h.b16 %v3120
    %v4602 = vunpack.c.l.b16 %v3121
    %v4603 = vunpack.c.h.b16 %v3121
    %v4604 = vunpack.c.l.b16 %v3122
    %v4605 = vunpack.c.h.b16 %v3122
    %v4606 = vunpack.c.l.b16 %v3123
    %v4607 = vunpack.c.h.b16 %v3123
    %v4608 = vunpack.c.l.b16 %v3124
    %v4609 = vunpack.c.h.b16 %v3124
    %v4610 = vunpack.c.l.b16 %v3125
    %v4611 = vunpack.c.h.b16 %v3125
    %v4612 = vunpack.c.l.b16 %v3126
    %v4613 = vunpack.c.h.b16 %v3126
    %v4614 = vunpack.c.l.b16 %v3127
    %v4615 = vunpack.c.h.b16 %v3127
    %v4616 = vunpack.c.l.b16 %v3128
    %v4617 = vunpack.c.h.b16 %v3128
    %v4618 = vunpack.c.l.b16 %v3129
    %v4619 = vunpack.c.h.b16 %v3129
    %v4620 = vunpack.c.l.b16 %v3130
    %v4621 = vunpack.c.h.b16 %v3130
    %v4622 = vunpack.c.l.b16 %v3131
    %v4623 = vunpack.c.h.b16 %v3131
    %v4624 = vunpack.c.l.b16 %v3132
    %v4625 = vunpack.c.h.b16 %v3132
    %v4626 = vunpack.c.l.b16 %v3133
    %v4627 = vunpack.c.h.b16 %v3133
    %v4628 = vpack.c.b16 %v4442, %v4436
    %v4629 = vpack.c.b16 %v4443, %v4437
    %v4630 = vpack.c.b16 %v4444, %v4438
    %v4631 = vpack.c.b16 %v4445, %v4439
    %v4632 = vpack.c.b16 %v4446, %v4440
    %v4633 = vpack.c.b16 %v4447, %v4441
    %v4634 = vpack.c.b16 %v4454, %v4448
    %v4635 = vpack.c.b16 %v4455, %v4449
    %v4636 = vpack.c.b16 %v4456, %v4450
    %v4637 = vpack.c.b16 %v4457, %v4451
    %v4638 = vpack.c.b16 %v4458, %v4452
    %v4639 = vpack.c.b16 %v4459, %v4453
    %v4640 = vpack.c.b16 %v4466, %v4460
    %v4641 = vpack.c.b16 %v4467, %v4461
    %v4642 = vpack.c.b16 %v4468, %v4462
    %v4643 = vpack.c.b16 %v4469, %v4463
    %v4644 = vpack.c.b16 %v4470, %v4464
    %v4645 = vpack.c.b16 %v4471, %v4465
    %v4646 = vpack.c.b16 %v4478, %v4472
    %v4647 = vpack.c.b16 %v4479, %v4473
    %v4648 = vpack.c.b16 %v4480, %v4474
    %v4649 = vpack.c.b16 %v4481, %v4475
    %v4650 = vpack.c.b16 %v4482, %v4476
    %v4651 = vpack.c.b16 %v4483, %v4477
    %v4652 = vpack.c.b16 %v4490, %v4484
    %v4653 = vpack.c.b16 %v4491, %v4485
    %v4654 = vpack.c.b16 %v4492, %v4486
    %v4655 = vpack.c.b16 %v4493, %v4487
    %v4656 = vpack.c.b16 %v4494, %v4488
    %v4657 = vpack.c.b16 %v4495, %v4489
    %v4658 = vpack.c.b16 %v4502, %v4496
    %v4659 = vpack.c.b16 %v4503, %v4497
    %v4660 = vpack.c.b16 %v4504, %v4498
    %v4661 = vpack.c.b16 %v4505, %v4499
    %v4662 = vpack.c.b16 %v4506, %v4500
    %v4663 = vpack.c.b16 %v4507, %v4501
    %v4664 = vpack.c.b16 %v4514, %v4508
    %v4665 = vpack.c.b16 %v4515, %v4509
    %v4666 = vpack.c.b16 %v4516, %v4510
    %v4667 = vpack.c.b16 %v4517, %v4511
    %v4668 = vpack.c.b16 %v4518, %v4512
    %v4669 = vpack.c.b16 %v4519, %v4513
    %v4670 = vpack.c.b16 %v4526, %v4520
    %v4671 = vpack.c.b16 %v4527, %v4521
    %v4672 = vpack.c.b16 %v4528, %v4522
    %v4673 = vpack.c.b16 %v4529, %v4523
    %v4674 = vpack.c.b16 %v4530, %v4524
    %v4675 = vpack.c.b16 %v4531, %v4525
    %v4676 = vpack.c.b16 %v4538, %v4532
    %v4677 = vpack.c.b16 %v4539, %v4533
    %v4678 = vpack.c.b16 %v4540, %v4534
    %v4679 = vpack.c.b16 %v4541, %v4535
    %v4680 = vpack.c.b16 %v4542, %v4536
    %v4681 = vpack.c.b16 %v4543, %v4537
    %v4682 = vpack.c.b16 %v4550, %v4544
    %v4683 = vpack.c.b16 %v4551, %v4545
    %v4684 = vpack.c.b16 %v4552, %v4546
    %v4685 = vpack.c.b16 %v4553, %v4547
    %v4686 = vpack.c.b16 %v4554, %v4548
    %v4687 = vpack.c.b16 %v4555, %v4549
    %v4688 = vpack.c.b16 %v4562, %v4556
    %v4689 = vpack.c.b16 %v4563, %v4557
    %v4690 = vpack.c.b16 %v4564, %v4558
    %v4691 = vpack.c.b16 %v4565, %v4559
    %v4692 = vpack.c.b16 %v4566, %v4560
    %v4693 = vpack.c.b16 %v4567, %v4561
    %v4694 = vpack.c.b16 %v4574, %v4568
    %v4695 = vpack.c.b16 %v4575, %v4569
    %v4696 = vpack.c.b16 %v4576, %v4570
    %v4697 = vpack.c.b16 %v4577, %v4571
    %v4698 = vpack.c.b16 %v4578, %v4572
    %v4699 = vpack.c.b16 %v4579, %v4573
    %v4700 = vpack.c.b16 %v4586, %v4580
    %v4701 = vpack.c.b16 %v4587, %v4581
    %v4702 = vpack.c.b16 %v4588, %v4582
    %v4703 = vpack.c.b16 %v4589, %v4583
    %v4704 = vpack.c.b16 %v4590, %v4584
    %v4705 = vpack.c.b16 %v4591, %v4585
    %v4706 = vpack.c.b16 %v4598, %v4592
    %v4707 = vpack.c.b16 %v4599, %v4593
    %v4708 = vpack.c.b16 %v4600, %v4594
    %v4709 = vpack.c.b16 %v4601, %v4595
    %v4710 = vpack.c.b16 %v4602, %v4596
    %v4711 = vpack.c.b16 %v4603, %v4597
    %v4712 = vpack.c.b16 %v4610, %v4604
    %v4713 = vpack.c.b16 %v4611, %v4605
    %v4714 = vpack.c.b16 %v4612, %v4606
    %v4715 = vpack.c.b16 %v4613, %v4607
    %v4716 = vpack.c.b16 %v4614, %v4608
    %v4717 = vpack.c.b16 %v4615, %v4609
    %v4718 = vpack.c.b16 %v4622, %v4616
    %v4719 = vpack.c.b16 %v4623, %v4617
    %v4720 = vpack.c.b16 %v4624, %v4618
    %v4721 = vpack.c.b16 %v4625, %v4619
    %v4722 = vpack.c.b16 %v4626, %v4620
    %v4723 = vpack.c.b16 %v4627, %v4621
    %4820 = vmatprep.subr.bf16.mxu0 %v4629
    %4821 = vmatpush1.bf16.msra.mxu0 %v4628
    %4822 = vmatprep.subr.bf16.mxu0 %v4635
    %4823 = vmatpush1.bf16.msra.mxu0 %v4634
    %4824 = vmatprep.subr.bf16.mxu0 %v4641
    %4825 = vmatpush1.bf16.msra.mxu0 %v4640
    %4826 = vmatprep.subr.bf16.mxu0 %v4647
    %4827 = vmatpush1.bf16.msra.mxu0 %v4646
    %4828 = vmatprep.subr.bf16.mxu0 %v4653
    %4829 = vmatpush1.bf16.msra.mxu0 %v4652
    %4830 = vmatprep.subr.bf16.mxu0 %v4659
    %4831 = vmatpush1.bf16.msra.mxu0 %v4658
    %4832 = vmatprep.subr.bf16.mxu0 %v4665
    %4833 = vmatpush1.bf16.msra.mxu0 %v4664
    %4834 = vmatprep.subr.bf16.mxu0 %v4671
    %4835 = vmatpush1.bf16.msra.mxu0 %v4670
    %4836 = vmatprep.subr.bf16.mxu0 %v4677
    %4837 = vmatpush1.bf16.msra.mxu0 %v4676
    %4838 = vmatprep.subr.bf16.mxu0 %v4683
    %4839 = vmatpush1.bf16.msra.mxu0 %v4682
    %4840 = vmatprep.subr.bf16.mxu0 %v4689
    %4841 = vmatpush1.bf16.msra.mxu0 %v4688
    %4842 = vmatprep.subr.bf16.mxu0 %v4695
    %4843 = vmatpush1.bf16.msra.mxu0 %v4694
    %4844 = vmatprep.subr.bf16.mxu0 %v4701
    %4845 = vmatpush1.bf16.msra.mxu0 %v4700
    %4846 = vmatprep.subr.bf16.mxu0 %v4707
    %4847 = vmatpush1.bf16.msra.mxu0 %v4706
    %4848 = vmatprep.subr.bf16.mxu0 %v4713
    %4849 = vmatpush1.bf16.msra.mxu0 %v4712
    %4850 = vmatprep.subr.bf16.mxu0 %v4719
    %4851 = vmatpush1.bf16.msra.mxu0 %v4718
    %4852 = vmatprep.mubr.bf16.mxu0 %v3031
    %4853 = vmatmul.mubr.bf16.gmra.mrb[0].mxu0 %v3030
    %v4854 = vpop.f32.mrb[0].mxu0
    %v4855 = vadd.f32 %v4156, %v4854
    %v4856 = vpop.f32.mrb[0].mxu0
    %v4857 = vadd.f32 %v4158, %v4856
    %v4858 = vpop.f32.mrb[0].mxu0
    %v4859 = vadd.f32 %v4160, %v4858
    %v4860 = vpop.f32.mrb[0].mxu0
    %v4861 = vadd.f32 %v4162, %v4860
    %4862 = vmatprep.mubr.bf16.mxu0 %v3033
    %4863 = vmatmul.mubr.bf16.gmra.mrb[0].mxu0 %v3032
    %v4864 = vpop.f32.mrb[0].mxu0
    %v4865 = vadd.f32 %v4166, %v4864
    %v4866 = vpop.f32.mrb[0].mxu0
    %v4867 = vadd.f32 %v4168, %v4866
    %v4868 = vpop.f32.mrb[0].mxu0
    %v4869 = vadd.f32 %v4170, %v4868
    %v4870 = vpop.f32.mrb[0].mxu0
    %v4871 = vadd.f32 %v4172, %v4870
    %4872 = vmatprep.mubr.bf16.mxu0 %v3035
    %4873 = vmatmul.mubr.bf16.gmra.mrb[0].mxu0 %v3034
    %v4874 = vpop.f32.mrb[0].mxu0
    %v4875 = vadd.f32 %v4176, %v4874
    %v4876 = vpop.f32.mrb[0].mxu0
    %v4877 = vadd.f32 %v4178, %v4876
    %v4878 = vpop.f32.mrb[0].mxu0
    %v4879 = vadd.f32 %v4180, %v4878
    %v4880 = vpop.f32.mrb[0].mxu0
    %v4881 = vadd.f32 %v4182, %v4880
    %4882 = vmatprep.mubr.bf16.mxu0 %v3037
    %4883 = vmatmul.mubr.bf16.gmra.mrb[0].mxu0 %v3036
    %v4884 = vpop.f32.mrb[0].mxu0
    %v4885 = vadd.f32 %v4186, %v4884
    %v4886 = vpop.f32.mrb[0].mxu0
    %v4887 = vadd.f32 %v4188, %v4886
    %v4888 = vpop.f32.mrb[0].mxu0
    %v4889 = vadd.f32 %v4190, %v4888
    %v4890 = vpop.f32.mrb[0].mxu0
    %v4891 = vadd.f32 %v4192, %v4890
    %4892 = vdwg.mxu0
    %4893 = vmatprep.subr.bf16.mxu0 %v4631
    %4894 = vmatpush1.bf16.msra.mxu0 %v4630
    %4895 = vmatprep.subr.bf16.mxu0 %v4637
    %4896 = vmatpush1.bf16.msra.mxu0 %v4636
    %4897 = vmatprep.subr.bf16.mxu0 %v4643
    %4898 = vmatpush1.bf16.msra.mxu0 %v4642
    %4899 = vmatprep.subr.bf16.mxu0 %v4649
    %4900 = vmatpush1.bf16.msra.mxu0 %v4648
    %4901 = vmatprep.subr.bf16.mxu0 %v4655
    %4902 = vmatpush1.bf16.msra.mxu0 %v4654
    %4903 = vmatprep.subr.bf16.mxu0 %v4661
    %4904 = vmatpush1.bf16.msra.mxu0 %v4660
    %4905 = vmatprep.subr.bf16.mxu0 %v4667
    %4906 = vmatpush1.bf16.msra.mxu0 %v4666
    %4907 = vmatprep.subr.bf16.mxu0 %v4673
    %4908 = vmatpush1.bf16.msra.mxu0 %v4672
    %4909 = vmatprep.subr.bf16.mxu0 %v4679
    %4910 = vmatpush1.bf16.msra.mxu0 %v4678
    %4911 = vmatprep.subr.bf16.mxu0 %v4685
    %4912 = vmatpush1.bf16.msra.mxu0 %v4684
    %4913 = vmatprep.subr.bf16.mxu0 %v4691
    %4914 = vmatpush1.bf16.msra.mxu0 %v4690
    %4915 = vmatprep.subr.bf16.mxu0 %v4697
    %4916 = vmatpush1.bf16.msra.mxu0 %v4696
    %4917 = vmatprep.subr.bf16.mxu0 %v4703
    %4918 = vmatpush1.bf16.msra.mxu0 %v4702
    %4919 = vmatprep.subr.bf16.mxu0 %v4709
    %4920 = vmatpush1.bf16.msra.mxu0 %v4708
    %4921 = vmatprep.subr.bf16.mxu0 %v4715
    %4922 = vmatpush1.bf16.msra.mxu0 %v4714
    %4923 = vmatprep.subr.bf16.mxu0 %v4721
    %4924 = vmatpush1.bf16.msra.mxu0 %v4720
    %4925 = vmatprep.mubr.bf16.mxu0 %v3031
    %4926 = vmatmul.mubr.bf16.gmra.mrb[0].mxu0 %v3030
    %v4927 = vpop.f32.mrb[0].mxu0
    %v4928 = vadd.f32 %v4229, %v4927
    %v4929 = vpop.f32.mrb[0].mxu0
    %v4930 = vadd.f32 %v4231, %v4929
    %v4931 = vpop.f32.mrb[0].mxu0
    %v4932 = vadd.f32 %v4233, %v4931
    %v4933 = vpop.f32.mrb[0].mxu0
    %v4934 = vadd.f32 %v4235, %v4933
    %4935 = vmatprep.mubr.bf16.mxu0 %v3033
    %4936 = vmatmul.mubr.bf16.gmra.mrb[0].mxu0 %v3032
    %v4937 = vpop.f32.mrb[0].mxu0
    %v4938 = vadd.f32 %v4239, %v4937
    %v4939 = vpop.f32.mrb[0].mxu0
    %v4940 = vadd.f32 %v4241, %v4939
    %v4941 = vpop.f32.mrb[0].mxu0
    %v4942 = vadd.f32 %v4243, %v4941
    %v4943 = vpop.f32.mrb[0].mxu0
    %v4944 = vadd.f32 %v4245, %v4943
    %4945 = vmatprep.mubr.bf16.mxu0 %v3035
    %4946 = vmatmul.mubr.bf16.gmra.mrb[0].mxu0 %v3034
    %v4947 = vpop.f32.mrb[0].mxu0
    %v4948 = vadd.f32 %v4249, %v4947
    %v4949 = vpop.f32.mrb[0].mxu0
    %v4950 = vadd.f32 %v4251, %v4949
    %v4951 = vpop.f32.mrb[0].mxu0
    %v4952 = vadd.f32 %v4253, %v4951
    %v4953 = vpop.f32.mrb[0].mxu0
    %v4954 = vadd.f32 %v4255, %v4953
    %4955 = vmatprep.mubr.bf16.mxu0 %v3037
    %4956 = vmatmul.mubr.bf16.gmra.mrb[0].mxu0 %v3036
    %v4957 = vpop.f32.mrb[0].mxu0
    %v4958 = vadd.f32 %v4259, %v4957
    %v4959 = vpop.f32.mrb[0].mxu0
    %v4960 = vadd.f32 %v4261, %v4959
    %v4961 = vpop.f32.mrb[0].mxu0
    %v4962 = vadd.f32 %v4263, %v4961
    %v4963 = vpop.f32.mrb[0].mxu0
    %v4964 = vadd.f32 %v4265, %v4963
    %4965 = vdwg.mxu0
    %4966 = vmatprep.subr.bf16.mxu0 %v4633
    %4967 = vmatpush1.bf16.msra.mxu0 %v4632
    %4968 = vmatprep.subr.bf16.mxu0 %v4639
    %4969 = vmatpush1.bf16.msra.mxu0 %v4638
    %4970 = vmatprep.subr.bf16.mxu0 %v4645
    %4971 = vmatpush1.bf16.msra.mxu0 %v4644
    %4972 = vmatprep.subr.bf16.mxu0 %v4651
    %4973 = vmatpush1.bf16.msra.mxu0 %v4650
    %4974 = vmatprep.subr.bf16.mxu0 %v4657
    %4975 = vmatpush1.bf16.msra.mxu0 %v4656
    %4976 = vmatprep.subr.bf16.mxu0 %v4663
    %4977 = vmatpush1.bf16.msra.mxu0 %v4662
    %4978 = vmatprep.subr.bf16.mxu0 %v4669
    %4979 = vmatpush1.bf16.msra.mxu0 %v4668
    %4980 = vmatprep.subr.bf16.mxu0 %v4675
    %4981 = vmatpush1.bf16.msra.mxu0 %v4674
    %4982 = vmatprep.subr.bf16.mxu0 %v4681
    %4983 = vmatpush1.bf16.msra.mxu0 %v4680
    %4984 = vmatprep.subr.bf16.mxu0 %v4687
    %4985 = vmatpush1.bf16.msra.mxu0 %v4686
    %4986 = vmatprep.subr.bf16.mxu0 %v4693
    %4987 = vmatpush1.bf16.msra.mxu0 %v4692
    %4988 = vmatprep.subr.bf16.mxu0 %v4699
    %4989 = vmatpush1.bf16.msra.mxu0 %v4698
    %4990 = vmatprep.subr.bf16.mxu0 %v4705
    %4991 = vmatpush1.bf16.msra.mxu0 %v4704
    %4992 = vmatprep.subr.bf16.mxu0 %v4711
    %4993 = vmatpush1.bf16.msra.mxu0 %v4710
    %4994 = vmatprep.subr.bf16.mxu0 %v4717
    %4995 = vmatpush1.bf16.msra.mxu0 %v4716
    %4996 = vmatprep.subr.bf16.mxu0 %v4723
    %4997 = vmatpush1.bf16.msra.mxu0 %v4722
    %4998 = vmatprep.mubr.bf16.mxu0 %v3031
    %4999 = vmatmul.mubr.bf16.gmra.mrb[0].mxu0 %v3030
    %v5000 = vpop.f32.mrb[0].mxu0
    %v5001 = vadd.f32 %v4302, %v5000
    %v5002 = vpop.f32.mrb[0].mxu0
    %v5003 = vadd.f32 %v4304, %v5002
    %v5004 = vpop.f32.mrb[0].mxu0
    %v5005 = vadd.f32 %v4306, %v5004
    %v5006 = vpop.f32.mrb[0].mxu0
    %v5007 = vadd.f32 %v4308, %v5006
    %5008 = vmatprep.mubr.bf16.mxu0 %v3033
    %5009 = vmatmul.mubr.bf16.gmra.mrb[0].mxu0 %v3032
    %v5010 = vpop.f32.mrb[0].mxu0
    %v5011 = vadd.f32 %v4312, %v5010
    %v5012 = vpop.f32.mrb[0].mxu0
    %v5013 = vadd.f32 %v4314, %v5012
    %v5014 = vpop.f32.mrb[0].mxu0
    %v5015 = vadd.f32 %v4316, %v5014
    %v5016 = vpop.f32.mrb[0].mxu0
    %v5017 = vadd.f32 %v4318, %v5016
    %5018 = vmatprep.mubr.bf16.mxu0 %v3035
    %5019 = vmatmul.mubr.bf16.gmra.mrb[0].mxu0 %v3034
    %v5020 = vpop.f32.mrb[0].mxu0
    %v5021 = vadd.f32 %v4322, %v5020
    %v5022 = vpop.f32.mrb[0].mxu0
    %v5023 = vadd.f32 %v4324, %v5022
    %v5024 = vpop.f32.mrb[0].mxu0
    %v5025 = vadd.f32 %v4326, %v5024
    %v5026 = vpop.f32.mrb[0].mxu0
    %v5027 = vadd.f32 %v4328, %v5026
    %5028 = vmatprep.mubr.bf16.mxu0 %v3037
    %5029 = vmatmul.mubr.bf16.gmra.mrb[0].mxu0 %v3036
    %v5030 = vpop.f32.mrb[0].mxu0
    %v5031 = vadd.f32 %v4332, %v5030
    %v5032 = vpop.f32.mrb[0].mxu0
    %v5033 = vadd.f32 %v4334, %v5032
    %v5034 = vpop.f32.mrb[0].mxu0
    %v5035 = vadd.f32 %v4336, %v5034
    %v5036 = vpop.f32.mrb[0].mxu0
    %v5037 = vadd.f32 %v4338, %v5036
    %5038 = vdwg.mxu0
    %v5039 = vxor.u32 %v4855, 2147483648
    %v5040 = vxor.u32 %v4857, 2147483648
    %v5041 = vxor.u32 %v4859, 2147483648
    %v5042 = vxor.u32 %v4861, 2147483648
    %v5043 = vxor.u32 %v4865, 2147483648
    %v5044 = vxor.u32 %v4867, 2147483648
    %v5045 = vxor.u32 %v4869, 2147483648
    %v5046 = vxor.u32 %v4871, 2147483648
    %v5047 = vxor.u32 %v4875, 2147483648
    %v5048 = vxor.u32 %v4877, 2147483648
    %v5049 = vxor.u32 %v4879, 2147483648
    %v5050 = vxor.u32 %v4881, 2147483648
    %v5051 = vxor.u32 %v4885, 2147483648
    %v5052 = vxor.u32 %v4887, 2147483648
    %v5053 = vxor.u32 %v4889, 2147483648
    %v5054 = vxor.u32 %v4891, 2147483648
    %v5055 = vmul.f32 %v5039, 1.442695
    %v5056 = vpow.pop %v5055
    %v5057 = vmul.f32 %v5040, 1.442695
    %v5058 = vpow.pop %v5057
    %v5059 = vmul.f32 %v5041, 1.442695
    %v5060 = vpow.pop %v5059
    %v5061 = vmul.f32 %v5042, 1.442695
    %v5062 = vpow.pop %v5061
    %v5063 = vmul.f32 %v5043, 1.442695
    %v5064 = vpow.pop %v5063
    %v5065 = vmul.f32 %v5044, 1.442695
    %v5066 = vpow.pop %v5065
    %v5067 = vmul.f32 %v5045, 1.442695
    %v5068 = vpow.pop %v5067
    %v5069 = vmul.f32 %v5046, 1.442695
    %v5070 = vpow.pop %v5069
    %v5071 = vmul.f32 %v5047, 1.442695
    %v5072 = vpow.pop %v5071
    %v5073 = vmul.f32 %v5048, 1.442695
    %v5074 = vpow.pop %v5073
    %v5075 = vmul.f32 %v5049, 1.442695
    %v5076 = vpow.pop %v5075
    %v5077 = vmul.f32 %v5050, 1.442695
    %v5078 = vpow.pop %v5077
    %v5079 = vmul.f32 %v5051, 1.442695
    %v5080 = vpow.pop %v5079
    %v5081 = vmul.f32 %v5052, 1.442695
    %v5082 = vpow.pop %v5081
    %v5083 = vmul.f32 %v5053, 1.442695
    %v5084 = vpow.pop %v5083
    %v5085 = vmul.f32 %v5054, 1.442695
    %v5086 = vpow.pop %v5085
    %v5087 = vadd.f32 %v5056, 1.0
    %v5088 = vadd.f32 %v5058, 1.0
    %v5089 = vadd.f32 %v5060, 1.0
    %v5090 = vadd.f32 %v5062, 1.0
    %v5091 = vadd.f32 %v5064, 1.0
    %v5092 = vadd.f32 %v5066, 1.0
    %v5093 = vadd.f32 %v5068, 1.0
    %v5094 = vadd.f32 %v5070, 1.0
    %v5095 = vadd.f32 %v5072, 1.0
    %v5096 = vadd.f32 %v5074, 1.0
    %v5097 = vadd.f32 %v5076, 1.0
    %v5098 = vadd.f32 %v5078, 1.0
    %v5099 = vadd.f32 %v5080, 1.0
    %v5100 = vadd.f32 %v5082, 1.0
    %v5101 = vadd.f32 %v5084, 1.0
    %v5102 = vadd.f32 %v5086, 1.0
    %v5103 = vrcp.pop %v5087
    %v5104 = vmul.f32 1.0, %v5103
    %v5105 = vrcp.pop %v5088
    %v5106 = vmul.f32 1.0, %v5105
    %v5107 = vrcp.pop %v5089
    %v5108 = vmul.f32 1.0, %v5107
    %v5109 = vrcp.pop %v5090
    %v5110 = vmul.f32 1.0, %v5109
    %v5111 = vrcp.pop %v5091
    %v5112 = vmul.f32 1.0, %v5111
    %v5113 = vrcp.pop %v5092
    %v5114 = vmul.f32 1.0, %v5113
    %v5115 = vrcp.pop %v5093
    %v5116 = vmul.f32 1.0, %v5115
    %v5117 = vrcp.pop %v5094
    %v5118 = vmul.f32 1.0, %v5117
    %v5119 = vrcp.pop %v5095
    %v5120 = vmul.f32 1.0, %v5119
    %v5121 = vrcp.pop %v5096
    %v5122 = vmul.f32 1.0, %v5121
    %v5123 = vrcp.pop %v5097
    %v5124 = vmul.f32 1.0, %v5123
    %v5125 = vrcp.pop %v5098
    %v5126 = vmul.f32 1.0, %v5125
    %v5127 = vrcp.pop %v5099
    %v5128 = vmul.f32 1.0, %v5127
    %v5129 = vrcp.pop %v5100
    %v5130 = vmul.f32 1.0, %v5129
    %v5131 = vrcp.pop %v5101
    %v5132 = vmul.f32 1.0, %v5131
    %v5133 = vrcp.pop %v5102
    %v5134 = vmul.f32 1.0, %v5133
    %v5135 = vtanh.pop %v4928
    %v5136 = vtanh.pop %v4930
    %v5137 = vtanh.pop %v4932
    %v5138 = vtanh.pop %v4934
    %v5139 = vtanh.pop %v4938
    %v5140 = vtanh.pop %v4940
    %v5141 = vtanh.pop %v4942
    %v5142 = vtanh.pop %v4944
    %v5143 = vtanh.pop %v4948
    %v5144 = vtanh.pop %v4950
    %v5145 = vtanh.pop %v4952
    %v5146 = vtanh.pop %v4954
    %v5147 = vtanh.pop %v4958
    %v5148 = vtanh.pop %v4960
    %v5149 = vtanh.pop %v4962
    %v5150 = vtanh.pop %v4964
    %v5151 = vxor.u32 %v5001, 2147483648
    %v5152 = vxor.u32 %v5003, 2147483648
    %v5153 = vxor.u32 %v5005, 2147483648
    %v5154 = vxor.u32 %v5007, 2147483648
    %v5155 = vxor.u32 %v5011, 2147483648
    %v5156 = vxor.u32 %v5013, 2147483648
    %v5157 = vxor.u32 %v5015, 2147483648
    %v5158 = vxor.u32 %v5017, 2147483648
    %v5159 = vxor.u32 %v5021, 2147483648
    %v5160 = vxor.u32 %v5023, 2147483648
    %v5161 = vxor.u32 %v5025, 2147483648
    %v5162 = vxor.u32 %v5027, 2147483648
    %v5163 = vxor.u32 %v5031, 2147483648
    %v5164 = vxor.u32 %v5033, 2147483648
    %v5165 = vxor.u32 %v5035, 2147483648
    %v5166 = vxor.u32 %v5037, 2147483648
    %v5167 = vmul.f32 %v5151, 1.442695
    %v5168 = vpow.pop %v5167
    %v5169 = vmul.f32 %v5152, 1.442695
    %v5170 = vpow.pop %v5169
    %v5171 = vmul.f32 %v5153, 1.442695
    %v5172 = vpow.pop %v5171
    %v5173 = vmul.f32 %v5154, 1.442695
    %v5174 = vpow.pop %v5173
    %v5175 = vmul.f32 %v5155, 1.442695
    %v5176 = vpow.pop %v5175
    %v5177 = vmul.f32 %v5156, 1.442695
    %v5178 = vpow.pop %v5177
    %v5179 = vmul.f32 %v5157, 1.442695
    %v5180 = vpow.pop %v5179
    %v5181 = vmul.f32 %v5158, 1.442695
    %v5182 = vpow.pop %v5181
    %v5183 = vmul.f32 %v5159, 1.442695
    %v5184 = vpow.pop %v5183
    %v5185 = vmul.f32 %v5160, 1.442695
    %v5186 = vpow.pop %v5185
    %v5187 = vmul.f32 %v5161, 1.442695
    %v5188 = vpow.pop %v5187
    %v5189 = vmul.f32 %v5162, 1.442695
    %v5190 = vpow.pop %v5189
    %v5191 = vmul.f32 %v5163, 1.442695
    %v5192 = vpow.pop %v5191
    %v5193 = vmul.f32 %v5164, 1.442695
    %v5194 = vpow.pop %v5193
    %v5195 = vmul.f32 %v5165, 1.442695
    %v5196 = vpow.pop %v5195
    %v5197 = vmul.f32 %v5166, 1.442695
    %v5198 = vpow.pop %v5197
    %v5199 = vadd.f32 %v5168, 1.0
    %v5200 = vadd.f32 %v5170, 1.0
    %v5201 = vadd.f32 %v5172, 1.0
    %v5202 = vadd.f32 %v5174, 1.0
    %v5203 = vadd.f32 %v5176, 1.0
    %v5204 = vadd.f32 %v5178, 1.0
    %v5205 = vadd.f32 %v5180, 1.0
    %v5206 = vadd.f32 %v5182, 1.0
    %v5207 = vadd.f32 %v5184, 1.0
    %v5208 = vadd.f32 %v5186, 1.0
    %v5209 = vadd.f32 %v5188, 1.0
    %v5210 = vadd.f32 %v5190, 1.0
    %v5211 = vadd.f32 %v5192, 1.0
    %v5212 = vadd.f32 %v5194, 1.0
    %v5213 = vadd.f32 %v5196, 1.0
    %v5214 = vadd.f32 %v5198, 1.0
    %v5215 = vrcp.pop %v5199
    %v5216 = vmul.f32 1.0, %v5215
    %v5217 = vrcp.pop %v5200
    %v5218 = vmul.f32 1.0, %v5217
    %v5219 = vrcp.pop %v5201
    %v5220 = vmul.f32 1.0, %v5219
    %v5221 = vrcp.pop %v5202
    %v5222 = vmul.f32 1.0, %v5221
    %v5223 = vrcp.pop %v5203
    %v5224 = vmul.f32 1.0, %v5223
    %v5225 = vrcp.pop %v5204
    %v5226 = vmul.f32 1.0, %v5225
    %v5227 = vrcp.pop %v5205
    %v5228 = vmul.f32 1.0, %v5227
    %v5229 = vrcp.pop %v5206
    %v5230 = vmul.f32 1.0, %v5229
    %v5231 = vrcp.pop %v5207
    %v5232 = vmul.f32 1.0, %v5231
    %v5233 = vrcp.pop %v5208
    %v5234 = vmul.f32 1.0, %v5233
    %v5235 = vrcp.pop %v5209
    %v5236 = vmul.f32 1.0, %v5235
    %v5237 = vrcp.pop %v5210
    %v5238 = vmul.f32 1.0, %v5237
    %v5239 = vrcp.pop %v5211
    %v5240 = vmul.f32 1.0, %v5239
    %v5241 = vrcp.pop %v5212
    %v5242 = vmul.f32 1.0, %v5241
    %v5243 = vrcp.pop %v5213
    %v5244 = vmul.f32 1.0, %v5243
    %v5245 = vrcp.pop %v5214
    %v5246 = vmul.f32 1.0, %v5245
    %v5247 = vmul.f32 %v5104, %v5135
    %v5248 = vmul.f32 %v5106, %v5136
    %v5249 = vmul.f32 %v5108, %v5137
    %v5250 = vmul.f32 %v5110, %v5138
    %v5251 = vmul.f32 %v5112, %v5139
    %v5252 = vmul.f32 %v5114, %v5140
    %v5253 = vmul.f32 %v5116, %v5141
    %v5254 = vmul.f32 %v5118, %v5142
    %v5255 = vmul.f32 %v5120, %v5143
    %v5256 = vmul.f32 %v5122, %v5144
    %v5257 = vmul.f32 %v5124, %v5145
    %v5258 = vmul.f32 %v5126, %v5146
    %v5259 = vmul.f32 %v5128, %v5147
    %v5260 = vmul.f32 %v5130, %v5148
    %v5261 = vmul.f32 %v5132, %v5149
    %v5262 = vmul.f32 %v5134, %v5150
    %v5263 = vtanh.pop %v5247
    %v5264 = vtanh.pop %v5248
    %v5265 = vtanh.pop %v5249
    %v5266 = vtanh.pop %v5250
    %v5267 = vtanh.pop %v5251
    %v5268 = vtanh.pop %v5252
    %v5269 = vtanh.pop %v5253
    %v5270 = vtanh.pop %v5254
    %v5271 = vtanh.pop %v5255
    %v5272 = vtanh.pop %v5256
    %v5273 = vtanh.pop %v5257
    %v5274 = vtanh.pop %v5258
    %v5275 = vtanh.pop %v5259
    %v5276 = vtanh.pop %v5260
    %v5277 = vtanh.pop %v5261
    %v5278 = vtanh.pop %v5262
    %v5279 = vmul.f32 %v5216, %v5263
    %v5280 = vmul.f32 %v5218, %v5264
    %v5281 = vmul.f32 %v5220, %v5265
    %v5282 = vmul.f32 %v5222, %v5266
    %v5283 = vmul.f32 %v5224, %v5267
    %v5284 = vmul.f32 %v5226, %v5268
    %v5285 = vmul.f32 %v5228, %v5269
    %v5286 = vmul.f32 %v5230, %v5270
    %v5287 = vmul.f32 %v5232, %v5271
    %v5288 = vmul.f32 %v5234, %v5272
    %v5289 = vmul.f32 %v5236, %v5273
    %v5290 = vmul.f32 %v5238, %v5274
    %v5291 = vmul.f32 %v5240, %v5275
    %v5292 = vmul.f32 %v5242, %v5276
    %v5293 = vmul.f32 %v5244, %v5277
    %v5294 = vmul.f32 %v5246, %v5278
    %v5295 = vpack.c.bf16 %v5281, %v5279
    %v5296 = vpack.c.bf16 %v5282, %v5280
    %v5297 = vpack.c.bf16 %v5285, %v5283
    %v5298 = vpack.c.bf16 %v5286, %v5284
    %v5299 = vpack.c.bf16 %v5289, %v5287
    %v5300 = vpack.c.bf16 %v5290, %v5288
    %v5301 = vpack.c.bf16 %v5293, %v5291
    %v5302 = vpack.c.bf16 %v5294, %v5292
    %s5303 = scalar_lea.vmem %s9, 1024
    %v5304 = vld [vmem:[%s5303] sm:$0xff]
    %v5305 = vld [vmem:[%s5303 + $0x8] sm:$0xff]
    %v5306 = vld [vmem:[%s5303 + $0x10] sm:$0xff]
    %v5307 = vld [vmem:[%s5303 + $0x18] sm:$0xff]
    %v5308 = vld [vmem:[%s5303 + $0x20] sm:$0xff]
    %v5309 = vld [vmem:[%s5303 + $0x28] sm:$0xff]
    %v5310 = vld [vmem:[%s5303 + $0x30] sm:$0xff]
    %v5311 = vld [vmem:[%s5303 + $0x38] sm:$0xff]
    %v5312 = vld [vmem:[%s5303 + $0x40] sm:$0xff]
    %v5313 = vld [vmem:[%s5303 + $0x48] sm:$0xff]
    %v5314 = vld [vmem:[%s5303 + $0x50] sm:$0xff]
    %v5315 = vld [vmem:[%s5303 + $0x58] sm:$0xff]
    %v5316 = vld [vmem:[%s5303 + $0x60] sm:$0xff]
    %v5317 = vld [vmem:[%s5303 + $0x68] sm:$0xff]
    %v5318 = vld [vmem:[%s5303 + $0x70] sm:$0xff]
    %v5319 = vld [vmem:[%s5303 + $0x78] sm:$0xff]
    %v5320 = vld [vmem:[%s5303 + $0x80] sm:$0xff]
    %v5321 = vld [vmem:[%s5303 + $0x88] sm:$0xff]
    %v5322 = vld [vmem:[%s5303 + $0x90] sm:$0xff]
    %v5323 = vld [vmem:[%s5303 + $0x98] sm:$0xff]
    %v5324 = vld [vmem:[%s5303 + $0xa0] sm:$0xff]
    %v5325 = vld [vmem:[%s5303 + $0xa8] sm:$0xff]
    %v5326 = vld [vmem:[%s5303 + $0xb0] sm:$0xff]
    %v5327 = vld [vmem:[%s5303 + $0xb8] sm:$0xff]
    %v5328 = vld [vmem:[%s5303 + $0xc0] sm:$0xff]
    %v5329 = vld [vmem:[%s5303 + $0xc8] sm:$0xff]
    %v5330 = vld [vmem:[%s5303 + $0xd0] sm:$0xff]
    %v5331 = vld [vmem:[%s5303 + $0xd8] sm:$0xff]
    %v5332 = vld [vmem:[%s5303 + $0xe0] sm:$0xff]
    %v5333 = vld [vmem:[%s5303 + $0xe8] sm:$0xff]
    %v5334 = vld [vmem:[%s5303 + $0xf0] sm:$0xff]
    %v5335 = vld [vmem:[%s5303 + $0xf8] sm:$0xff]
    %v5336 = vld [vmem:[%s5303 + $0x100] sm:$0xff]
    %v5337 = vld [vmem:[%s5303 + $0x108] sm:$0xff]
    %v5338 = vld [vmem:[%s5303 + $0x110] sm:$0xff]
    %v5339 = vld [vmem:[%s5303 + $0x118] sm:$0xff]
    %v5340 = vld [vmem:[%s5303 + $0x120] sm:$0xff]
    %v5341 = vld [vmem:[%s5303 + $0x128] sm:$0xff]
    %v5342 = vld [vmem:[%s5303 + $0x130] sm:$0xff]
    %v5343 = vld [vmem:[%s5303 + $0x138] sm:$0xff]
    %v5344 = vld [vmem:[%s5303 + $0x140] sm:$0xff]
    %v5345 = vld [vmem:[%s5303 + $0x148] sm:$0xff]
    %v5346 = vld [vmem:[%s5303 + $0x150] sm:$0xff]
    %v5347 = vld [vmem:[%s5303 + $0x158] sm:$0xff]
    %v5348 = vld [vmem:[%s5303 + $0x160] sm:$0xff]
    %v5349 = vld [vmem:[%s5303 + $0x168] sm:$0xff]
    %v5350 = vld [vmem:[%s5303 + $0x170] sm:$0xff]
    %v5351 = vld [vmem:[%s5303 + $0x178] sm:$0xff]
    %v5352 = vld [vmem:[%s5303 + $0x180] sm:$0xff]
    %v5353 = vld [vmem:[%s5303 + $0x188] sm:$0xff]
    %v5354 = vld [vmem:[%s5303 + $0x190] sm:$0xff]
    %v5355 = vld [vmem:[%s5303 + $0x198] sm:$0xff]
    %v5356 = vld [vmem:[%s5303 + $0x1a0] sm:$0xff]
    %v5357 = vld [vmem:[%s5303 + $0x1a8] sm:$0xff]
    %v5358 = vld [vmem:[%s5303 + $0x1b0] sm:$0xff]
    %v5359 = vld [vmem:[%s5303 + $0x1b8] sm:$0xff]
    %v5360 = vld [vmem:[%s5303 + $0x1c0] sm:$0xff]
    %v5361 = vld [vmem:[%s5303 + $0x1c8] sm:$0xff]
    %v5362 = vld [vmem:[%s5303 + $0x1d0] sm:$0xff]
    %v5363 = vld [vmem:[%s5303 + $0x1d8] sm:$0xff]
    %v5364 = vld [vmem:[%s5303 + $0x1e0] sm:$0xff]
    %v5365 = vld [vmem:[%s5303 + $0x1e8] sm:$0xff]
    %v5366 = vld [vmem:[%s5303 + $0x1f0] sm:$0xff]
    %v5367 = vld [vmem:[%s5303 + $0x1f8] sm:$0xff]
    %v5368 = vld [vmem:[%s5303 + $0x200] sm:$0xff]
    %v5369 = vld [vmem:[%s5303 + $0x208] sm:$0xff]
    %v5370 = vld [vmem:[%s5303 + $0x210] sm:$0xff]
    %v5371 = vld [vmem:[%s5303 + $0x218] sm:$0xff]
    %v5372 = vld [vmem:[%s5303 + $0x220] sm:$0xff]
    %v5373 = vld [vmem:[%s5303 + $0x228] sm:$0xff]
    %v5374 = vld [vmem:[%s5303 + $0x230] sm:$0xff]
    %v5375 = vld [vmem:[%s5303 + $0x238] sm:$0xff]
    %v5376 = vld [vmem:[%s5303 + $0x240] sm:$0xff]
    %v5377 = vld [vmem:[%s5303 + $0x248] sm:$0xff]
    %v5378 = vld [vmem:[%s5303 + $0x250] sm:$0xff]
    %v5379 = vld [vmem:[%s5303 + $0x258] sm:$0xff]
    %v5380 = vld [vmem:[%s5303 + $0x260] sm:$0xff]
    %v5381 = vld [vmem:[%s5303 + $0x268] sm:$0xff]
    %v5382 = vld [vmem:[%s5303 + $0x270] sm:$0xff]
    %v5383 = vld [vmem:[%s5303 + $0x278] sm:$0xff]
    %v5384 = vld [vmem:[%s5303 + $0x280] sm:$0xff]
    %v5385 = vld [vmem:[%s5303 + $0x288] sm:$0xff]
    %v5386 = vld [vmem:[%s5303 + $0x290] sm:$0xff]
    %v5387 = vld [vmem:[%s5303 + $0x298] sm:$0xff]
    %v5388 = vld [vmem:[%s5303 + $0x2a0] sm:$0xff]
    %v5389 = vld [vmem:[%s5303 + $0x2a8] sm:$0xff]
    %v5390 = vld [vmem:[%s5303 + $0x2b0] sm:$0xff]
    %v5391 = vld [vmem:[%s5303 + $0x2b8] sm:$0xff]
    %v5392 = vld [vmem:[%s5303 + $0x2c0] sm:$0xff]
    %v5393 = vld [vmem:[%s5303 + $0x2c8] sm:$0xff]
    %v5394 = vld [vmem:[%s5303 + $0x2d0] sm:$0xff]
    %v5395 = vld [vmem:[%s5303 + $0x2d8] sm:$0xff]
    %v5396 = vld [vmem:[%s5303 + $0x2e0] sm:$0xff]
    %v5397 = vld [vmem:[%s5303 + $0x2e8] sm:$0xff]
    %v5398 = vld [vmem:[%s5303 + $0x2f0] sm:$0xff]
    %v5399 = vld [vmem:[%s5303 + $0x2f8] sm:$0xff]
    %v5400 = vld [vmem:[%s5303 + $0x300] sm:$0xff]
    %v5401 = vld [vmem:[%s5303 + $0x308] sm:$0xff]
    %v5402 = vld [vmem:[%s5303 + $0x310] sm:$0xff]
    %v5403 = vld [vmem:[%s5303 + $0x318] sm:$0xff]
    %v5404 = vld [vmem:[%s5303 + $0x320] sm:$0xff]
    %v5405 = vld [vmem:[%s5303 + $0x328] sm:$0xff]
    %v5406 = vld [vmem:[%s5303 + $0x330] sm:$0xff]
    %v5407 = vld [vmem:[%s5303 + $0x338] sm:$0xff]
    %v5408 = vld [vmem:[%s5303 + $0x340] sm:$0xff]
    %v5409 = vld [vmem:[%s5303 + $0x348] sm:$0xff]
    %v5410 = vld [vmem:[%s5303 + $0x350] sm:$0xff]
    %v5411 = vld [vmem:[%s5303 + $0x358] sm:$0xff]
    %v5412 = vld [vmem:[%s5303 + $0x360] sm:$0xff]
    %v5413 = vld [vmem:[%s5303 + $0x368] sm:$0xff]
    %v5414 = vld [vmem:[%s5303 + $0x370] sm:$0xff]
    %v5415 = vld [vmem:[%s5303 + $0x378] sm:$0xff]
    %v5416 = vld [vmem:[%s5303 + $0x380] sm:$0xff]
    %v5417 = vld [vmem:[%s5303 + $0x388] sm:$0xff]
    %v5418 = vld [vmem:[%s5303 + $0x390] sm:$0xff]
    %v5419 = vld [vmem:[%s5303 + $0x398] sm:$0xff]
    %v5420 = vld [vmem:[%s5303 + $0x3a0] sm:$0xff]
    %v5421 = vld [vmem:[%s5303 + $0x3a8] sm:$0xff]
    %v5422 = vld [vmem:[%s5303 + $0x3b0] sm:$0xff]
    %v5423 = vld [vmem:[%s5303 + $0x3b8] sm:$0xff]
    %v5424 = vld [vmem:[%s5303 + $0x3c0] sm:$0xff]
    %v5425 = vld [vmem:[%s5303 + $0x3c8] sm:$0xff]
    %v5426 = vld [vmem:[%s5303 + $0x3d0] sm:$0xff]
    %v5427 = vld [vmem:[%s5303 + $0x3d8] sm:$0xff]
    %v5428 = vld [vmem:[%s5303 + $0x3e0] sm:$0xff]
    %v5429 = vld [vmem:[%s5303 + $0x3e8] sm:$0xff]
    %v5430 = vld [vmem:[%s5303 + $0x3f0] sm:$0xff]
    %v5431 = vld [vmem:[%s5303 + $0x3f8] sm:$0xff]
    %v5560 = vunpack.c.l.b16 %v5304
    %v5561 = vunpack.c.h.b16 %v5304
    %v5562 = vunpack.c.l.b16 %v5305
    %v5563 = vunpack.c.h.b16 %v5305
    %v5564 = vunpack.c.l.b16 %v5306
    %v5565 = vunpack.c.h.b16 %v5306
    %v5566 = vunpack.c.l.b16 %v5307
    %v5567 = vunpack.c.h.b16 %v5307
    %v5568 = vunpack.c.l.b16 %v5308
    %v5569 = vunpack.c.h.b16 %v5308
    %v5570 = vunpack.c.l.b16 %v5309
    %v5571 = vunpack.c.h.b16 %v5309
    %v5572 = vunpack.c.l.b16 %v5310
    %v5573 = vunpack.c.h.b16 %v5310
    %v5574 = vunpack.c.l.b16 %v5311
    %v5575 = vunpack.c.h.b16 %v5311
    %v5576 = vunpack.c.l.b16 %v5312
    %v5577 = vunpack.c.h.b16 %v5312
    %v5578 = vunpack.c.l.b16 %v5313
    %v5579 = vunpack.c.h.b16 %v5313
    %v5580 = vunpack.c.l.b16 %v5314
    %v5581 = vunpack.c.h.b16 %v5314
    %v5582 = vunpack.c.l.b16 %v5315
    %v5583 = vunpack.c.h.b16 %v5315
    %v5584 = vunpack.c.l.b16 %v5316
    %v5585 = vunpack.c.h.b16 %v5316
    %v5586 = vunpack.c.l.b16 %v5317
    %v5587 = vunpack.c.h.b16 %v5317
    %v5588 = vunpack.c.l.b16 %v5318
    %v5589 = vunpack.c.h.b16 %v5318
    %v5590 = vunpack.c.l.b16 %v5319
    %v5591 = vunpack.c.h.b16 %v5319
    %v5592 = vunpack.c.l.b16 %v5320
    %v5593 = vunpack.c.h.b16 %v5320
    %v5594 = vunpack.c.l.b16 %v5321
    %v5595 = vunpack.c.h.b16 %v5321
    %v5596 = vunpack.c.l.b16 %v5322
    %v5597 = vunpack.c.h.b16 %v5322
    %v5598 = vunpack.c.l.b16 %v5323
    %v5599 = vunpack.c.h.b16 %v5323
    %v5600 = vunpack.c.l.b16 %v5324
    %v5601 = vunpack.c.h.b16 %v5324
    %v5602 = vunpack.c.l.b16 %v5325
    %v5603 = vunpack.c.h.b16 %v5325
    %v5604 = vunpack.c.l.b16 %v5326
    %v5605 = vunpack.c.h.b16 %v5326
    %v5606 = vunpack.c.l.b16 %v5327
    %v5607 = vunpack.c.h.b16 %v5327
    %v5608 = vunpack.c.l.b16 %v5328
    %v5609 = vunpack.c.h.b16 %v5328
    %v5610 = vunpack.c.l.b16 %v5329
    %v5611 = vunpack.c.h.b16 %v5329
    %v5612 = vunpack.c.l.b16 %v5330
    %v5613 = vunpack.c.h.b16 %v5330
    %v5614 = vunpack.c.l.b16 %v5331
    %v5615 = vunpack.c.h.b16 %v5331
    %v5616 = vunpack.c.l.b16 %v5332
    %v5617 = vunpack.c.h.b16 %v5332
    %v5618 = vunpack.c.l.b16 %v5333
    %v5619 = vunpack.c.h.b16 %v5333
    %v5620 = vunpack.c.l.b16 %v5334
    %v5621 = vunpack.c.h.b16 %v5334
    %v5622 = vunpack.c.l.b16 %v5335
    %v5623 = vunpack.c.h.b16 %v5335
    %v5624 = vunpack.c.l.b16 %v5336
    %v5625 = vunpack.c.h.b16 %v5336
    %v5626 = vunpack.c.l.b16 %v5337
    %v5627 = vunpack.c.h.b16 %v5337
    %v5628 = vunpack.c.l.b16 %v5338
    %v5629 = vunpack.c.h.b16 %v5338
    %v5630 = vunpack.c.l.b16 %v5339
    %v5631 = vunpack.c.h.b16 %v5339
    %v5632 = vunpack.c.l.b16 %v5340
    %v5633 = vunpack.c.h.b16 %v5340
    %v5634 = vunpack.c.l.b16 %v5341
    %v5635 = vunpack.c.h.b16 %v5341
    %v5636 = vunpack.c.l.b16 %v5342
    %v5637 = vunpack.c.h.b16 %v5342
    %v5638 = vunpack.c.l.b16 %v5343
    %v5639 = vunpack.c.h.b16 %v5343
    %v5640 = vunpack.c.l.b16 %v5344
    %v5641 = vunpack.c.h.b16 %v5344
    %v5642 = vunpack.c.l.b16 %v5345
    %v5643 = vunpack.c.h.b16 %v5345
    %v5644 = vunpack.c.l.b16 %v5346
    %v5645 = vunpack.c.h.b16 %v5346
    %v5646 = vunpack.c.l.b16 %v5347
    %v5647 = vunpack.c.h.b16 %v5347
    %v5648 = vunpack.c.l.b16 %v5348
    %v5649 = vunpack.c.h.b16 %v5348
    %v5650 = vunpack.c.l.b16 %v5349
    %v5651 = vunpack.c.h.b16 %v5349
    %v5652 = vunpack.c.l.b16 %v5350
    %v5653 = vunpack.c.h.b16 %v5350
    %v5654 = vunpack.c.l.b16 %v5351
    %v5655 = vunpack.c.h.b16 %v5351
    %v5656 = vunpack.c.l.b16 %v5352
    %v5657 = vunpack.c.h.b16 %v5352
    %v5658 = vunpack.c.l.b16 %v5353
    %v5659 = vunpack.c.h.b16 %v5353
    %v5660 = vunpack.c.l.b16 %v5354
    %v5661 = vunpack.c.h.b16 %v5354
    %v5662 = vunpack.c.l.b16 %v5355
    %v5663 = vunpack.c.h.b16 %v5355
    %v5664 = vunpack.c.l.b16 %v5356
    %v5665 = vunpack.c.h.b16 %v5356
    %v5666 = vunpack.c.l.b16 %v5357
    %v5667 = vunpack.c.h.b16 %v5357
    %v5668 = vunpack.c.l.b16 %v5358
    %v5669 = vunpack.c.h.b16 %v5358
    %v5670 = vunpack.c.l.b16 %v5359
    %v5671 = vunpack.c.h.b16 %v5359
    %v5672 = vunpack.c.l.b16 %v5360
    %v5673 = vunpack.c.h.b16 %v5360
    %v5674 = vunpack.c.l.b16 %v5361
    %v5675 = vunpack.c.h.b16 %v5361
    %v5676 = vunpack.c.l.b16 %v5362
    %v5677 = vunpack.c.h.b16 %v5362
    %v5678 = vunpack.c.l.b16 %v5363
    %v5679 = vunpack.c.h.b16 %v5363
    %v5680 = vunpack.c.l.b16 %v5364
    %v5681 = vunpack.c.h.b16 %v5364
    %v5682 = vunpack.c.l.b16 %v5365
    %v5683 = vunpack.c.h.b16 %v5365
    %v5684 = vunpack.c.l.b16 %v5366
    %v5685 = vunpack.c.h.b16 %v5366
    %v5686 = vunpack.c.l.b16 %v5367
    %v5687 = vunpack.c.h.b16 %v5367
    %v5688 = vunpack.c.l.b16 %v5368
    %v5689 = vunpack.c.h.b16 %v5368
    %v5690 = vunpack.c.l.b16 %v5369
    %v5691 = vunpack.c.h.b16 %v5369
    %v5692 = vunpack.c.l.b16 %v5370
    %v5693 = vunpack.c.h.b16 %v5370
    %v5694 = vunpack.c.l.b16 %v5371
    %v5695 = vunpack.c.h.b16 %v5371
    %v5696 = vunpack.c.l.b16 %v5372
    %v5697 = vunpack.c.h.b16 %v5372
    %v5698 = vunpack.c.l.b16 %v5373
    %v5699 = vunpack.c.h.b16 %v5373
    %v5700 = vunpack.c.l.b16 %v5374
    %v5701 = vunpack.c.h.b16 %v5374
    %v5702 = vunpack.c.l.b16 %v5375
    %v5703 = vunpack.c.h.b16 %v5375
    %v5704 = vunpack.c.l.b16 %v5376
    %v5705 = vunpack.c.h.b16 %v5376
    %v5706 = vunpack.c.l.b16 %v5377
    %v5707 = vunpack.c.h.b16 %v5377
    %v5708 = vunpack.c.l.b16 %v5378
    %v5709 = vunpack.c.h.b16 %v5378
    %v5710 = vunpack.c.l.b16 %v5379
    %v5711 = vunpack.c.h.b16 %v5379
    %v5712 = vunpack.c.l.b16 %v5380
    %v5713 = vunpack.c.h.b16 %v5380
    %v5714 = vunpack.c.l.b16 %v5381
    %v5715 = vunpack.c.h.b16 %v5381
    %v5716 = vunpack.c.l.b16 %v5382
    %v5717 = vunpack.c.h.b16 %v5382
    %v5718 = vunpack.c.l.b16 %v5383
    %v5719 = vunpack.c.h.b16 %v5383
    %v5720 = vunpack.c.l.b16 %v5384
    %v5721 = vunpack.c.h.b16 %v5384
    %v5722 = vunpack.c.l.b16 %v5385
    %v5723 = vunpack.c.h.b16 %v5385
    %v5724 = vunpack.c.l.b16 %v5386
    %v5725 = vunpack.c.h.b16 %v5386
    %v5726 = vunpack.c.l.b16 %v5387
    %v5727 = vunpack.c.h.b16 %v5387
    %v5728 = vunpack.c.l.b16 %v5388
    %v5729 = vunpack.c.h.b16 %v5388
    %v5730 = vunpack.c.l.b16 %v5389
    %v5731 = vunpack.c.h.b16 %v5389
    %v5732 = vunpack.c.l.b16 %v5390
    %v5733 = vunpack.c.h.b16 %v5390
    %v5734 = vunpack.c.l.b16 %v5391
    %v5735 = vunpack.c.h.b16 %v5391
    %v5736 = vunpack.c.l.b16 %v5392
    %v5737 = vunpack.c.h.b16 %v5392
    %v5738 = vunpack.c.l.b16 %v5393
    %v5739 = vunpack.c.h.b16 %v5393
    %v5740 = vunpack.c.l.b16 %v5394
    %v5741 = vunpack.c.h.b16 %v5394
    %v5742 = vunpack.c.l.b16 %v5395
    %v5743 = vunpack.c.h.b16 %v5395
    %v5744 = vunpack.c.l.b16 %v5396
    %v5745 = vunpack.c.h.b16 %v5396
    %v5746 = vunpack.c.l.b16 %v5397
    %v5747 = vunpack.c.h.b16 %v5397
    %v5748 = vunpack.c.l.b16 %v5398
    %v5749 = vunpack.c.h.b16 %v5398
    %v5750 = vunpack.c.l.b16 %v5399
    %v5751 = vunpack.c.h.b16 %v5399
    %v5752 = vunpack.c.l.b16 %v5400
    %v5753 = vunpack.c.h.b16 %v5400
    %v5754 = vunpack.c.l.b16 %v5401
    %v5755 = vunpack.c.h.b16 %v5401
    %v5756 = vunpack.c.l.b16 %v5402
    %v5757 = vunpack.c.h.b16 %v5402
    %v5758 = vunpack.c.l.b16 %v5403
    %v5759 = vunpack.c.h.b16 %v5403
    %v5760 = vunpack.c.l.b16 %v5404
    %v5761 = vunpack.c.h.b16 %v5404
    %v5762 = vunpack.c.l.b16 %v5405
    %v5763 = vunpack.c.h.b16 %v5405
    %v5764 = vunpack.c.l.b16 %v5406
    %v5765 = vunpack.c.h.b16 %v5406
    %v5766 = vunpack.c.l.b16 %v5407
    %v5767 = vunpack.c.h.b16 %v5407
    %v5768 = vunpack.c.l.b16 %v5408
    %v5769 = vunpack.c.h.b16 %v5408
    %v5770 = vunpack.c.l.b16 %v5409
    %v5771 = vunpack.c.h.b16 %v5409
    %v5772 = vunpack.c.l.b16 %v5410
    %v5773 = vunpack.c.h.b16 %v5410
    %v5774 = vunpack.c.l.b16 %v5411
    %v5775 = vunpack.c.h.b16 %v5411
    %v5776 = vunpack.c.l.b16 %v5412
    %v5777 = vunpack.c.h.b16 %v5412
    %v5778 = vunpack.c.l.b16 %v5413
    %v5779 = vunpack.c.h.b16 %v5413
    %v5780 = vunpack.c.l.b16 %v5414
    %v5781 = vunpack.c.h.b16 %v5414
    %v5782 = vunpack.c.l.b16 %v5415
    %v5783 = vunpack.c.h.b16 %v5415
    %v5784 = vunpack.c.l.b16 %v5416
    %v5785 = vunpack.c.h.b16 %v5416
    %v5786 = vunpack.c.l.b16 %v5417
    %v5787 = vunpack.c.h.b16 %v5417
    %v5788 = vunpack.c.l.b16 %v5418
    %v5789 = vunpack.c.h.b16 %v5418
    %v5790 = vunpack.c.l.b16 %v5419
    %v5791 = vunpack.c.h.b16 %v5419
    %v5792 = vunpack.c.l.b16 %v5420
    %v5793 = vunpack.c.h.b16 %v5420
    %v5794 = vunpack.c.l.b16 %v5421
    %v5795 = vunpack.c.h.b16 %v5421
    %v5796 = vunpack.c.l.b16 %v5422
    %v5797 = vunpack.c.h.b16 %v5422
    %v5798 = vunpack.c.l.b16 %v5423
    %v5799 = vunpack.c.h.b16 %v5423
    %v5800 = vunpack.c.l.b16 %v5424
    %v5801 = vunpack.c.h.b16 %v5424
    %v5802 = vunpack.c.l.b16 %v5425
    %v5803 = vunpack.c.h.b16 %v5425
    %v5804 = vunpack.c.l.b16 %v5426
    %v5805 = vunpack.c.h.b16 %v5426
    %v5806 = vunpack.c.l.b16 %v5427
    %v5807 = vunpack.c.h.b16 %v5427
    %v5808 = vunpack.c.l.b16 %v5428
    %v5809 = vunpack.c.h.b16 %v5428
    %v5810 = vunpack.c.l.b16 %v5429
    %v5811 = vunpack.c.h.b16 %v5429
    %v5812 = vunpack.c.l.b16 %v5430
    %v5813 = vunpack.c.h.b16 %v5430
    %v5814 = vunpack.c.l.b16 %v5431
    %v5815 = vunpack.c.h.b16 %v5431
    %v5816 = vpack.c.b16 %v5568, %v5560
    %v5817 = vpack.c.b16 %v5569, %v5561
    %v5818 = vpack.c.b16 %v5570, %v5562
    %v5819 = vpack.c.b16 %v5571, %v5563
    %v5820 = vpack.c.b16 %v5572, %v5564
    %v5821 = vpack.c.b16 %v5573, %v5565
    %v5822 = vpack.c.b16 %v5574, %v5566
    %v5823 = vpack.c.b16 %v5575, %v5567
    %v5824 = vpack.c.b16 %v5584, %v5576
    %v5825 = vpack.c.b16 %v5585, %v5577
    %v5826 = vpack.c.b16 %v5586, %v5578
    %v5827 = vpack.c.b16 %v5587, %v5579
    %v5828 = vpack.c.b16 %v5588, %v5580
    %v5829 = vpack.c.b16 %v5589, %v5581
    %v5830 = vpack.c.b16 %v5590, %v5582
    %v5831 = vpack.c.b16 %v5591, %v5583
    %v5832 = vpack.c.b16 %v5600, %v5592
    %v5833 = vpack.c.b16 %v5601, %v5593
    %v5834 = vpack.c.b16 %v5602, %v5594
    %v5835 = vpack.c.b16 %v5603, %v5595
    %v5836 = vpack.c.b16 %v5604, %v5596
    %v5837 = vpack.c.b16 %v5605, %v5597
    %v5838 = vpack.c.b16 %v5606, %v5598
    %v5839 = vpack.c.b16 %v5607, %v5599
    %v5840 = vpack.c.b16 %v5616, %v5608
    %v5841 = vpack.c.b16 %v5617, %v5609
    %v5842 = vpack.c.b16 %v5618, %v5610
    %v5843 = vpack.c.b16 %v5619, %v5611
    %v5844 = vpack.c.b16 %v5620, %v5612
    %v5845 = vpack.c.b16 %v5621, %v5613
    %v5846 = vpack.c.b16 %v5622, %v5614
    %v5847 = vpack.c.b16 %v5623, %v5615
    %v5848 = vpack.c.b16 %v5632, %v5624
    %v5849 = vpack.c.b16 %v5633, %v5625
    %v5850 = vpack.c.b16 %v5634, %v5626
    %v5851 = vpack.c.b16 %v5635, %v5627
    %v5852 = vpack.c.b16 %v5636, %v5628
    %v5853 = vpack.c.b16 %v5637, %v5629
    %v5854 = vpack.c.b16 %v5638, %v5630
    %v5855 = vpack.c.b16 %v5639, %v5631
    %v5856 = vpack.c.b16 %v5648, %v5640
    %v5857 = vpack.c.b16 %v5649, %v5641
    %v5858 = vpack.c.b16 %v5650, %v5642
    %v5859 = vpack.c.b16 %v5651, %v5643
    %v5860 = vpack.c.b16 %v5652, %v5644
    %v5861 = vpack.c.b16 %v5653, %v5645
    %v5862 = vpack.c.b16 %v5654, %v5646
    %v5863 = vpack.c.b16 %v5655, %v5647
    %v5864 = vpack.c.b16 %v5664, %v5656
    %v5865 = vpack.c.b16 %v5665, %v5657
    %v5866 = vpack.c.b16 %v5666, %v5658
    %v5867 = vpack.c.b16 %v5667, %v5659
    %v5868 = vpack.c.b16 %v5668, %v5660
    %v5869 = vpack.c.b16 %v5669, %v5661
    %v5870 = vpack.c.b16 %v5670, %v5662
    %v5871 = vpack.c.b16 %v5671, %v5663
    %v5872 = vpack.c.b16 %v5680, %v5672
    %v5873 = vpack.c.b16 %v5681, %v5673
    %v5874 = vpack.c.b16 %v5682, %v5674
    %v5875 = vpack.c.b16 %v5683, %v5675
    %v5876 = vpack.c.b16 %v5684, %v5676
    %v5877 = vpack.c.b16 %v5685, %v5677
    %v5878 = vpack.c.b16 %v5686, %v5678
    %v5879 = vpack.c.b16 %v5687, %v5679
    %v5880 = vpack.c.b16 %v5696, %v5688
    %v5881 = vpack.c.b16 %v5697, %v5689
    %v5882 = vpack.c.b16 %v5698, %v5690
    %v5883 = vpack.c.b16 %v5699, %v5691
    %v5884 = vpack.c.b16 %v5700, %v5692
    %v5885 = vpack.c.b16 %v5701, %v5693
    %v5886 = vpack.c.b16 %v5702, %v5694
    %v5887 = vpack.c.b16 %v5703, %v5695
    %v5888 = vpack.c.b16 %v5712, %v5704
    %v5889 = vpack.c.b16 %v5713, %v5705
    %v5890 = vpack.c.b16 %v5714, %v5706
    %v5891 = vpack.c.b16 %v5715, %v5707
    %v5892 = vpack.c.b16 %v5716, %v5708
    %v5893 = vpack.c.b16 %v5717, %v5709
    %v5894 = vpack.c.b16 %v5718, %v5710
    %v5895 = vpack.c.b16 %v5719, %v5711
    %v5896 = vpack.c.b16 %v5728, %v5720
    %v5897 = vpack.c.b16 %v5729, %v5721
    %v5898 = vpack.c.b16 %v5730, %v5722
    %v5899 = vpack.c.b16 %v5731, %v5723
    %v5900 = vpack.c.b16 %v5732, %v5724
    %v5901 = vpack.c.b16 %v5733, %v5725
    %v5902 = vpack.c.b16 %v5734, %v5726
    %v5903 = vpack.c.b16 %v5735, %v5727
    %v5904 = vpack.c.b16 %v5744, %v5736
    %v5905 = vpack.c.b16 %v5745, %v5737
    %v5906 = vpack.c.b16 %v5746, %v5738
    %v5907 = vpack.c.b16 %v5747, %v5739
    %v5908 = vpack.c.b16 %v5748, %v5740
    %v5909 = vpack.c.b16 %v5749, %v5741
    %v5910 = vpack.c.b16 %v5750, %v5742
    %v5911 = vpack.c.b16 %v5751, %v5743
    %v5912 = vpack.c.b16 %v5760, %v5752
    %v5913 = vpack.c.b16 %v5761, %v5753
    %v5914 = vpack.c.b16 %v5762, %v5754
    %v5915 = vpack.c.b16 %v5763, %v5755
    %v5916 = vpack.c.b16 %v5764, %v5756
    %v5917 = vpack.c.b16 %v5765, %v5757
    %v5918 = vpack.c.b16 %v5766, %v5758
    %v5919 = vpack.c.b16 %v5767, %v5759
    %v5920 = vpack.c.b16 %v5776, %v5768
    %v5921 = vpack.c.b16 %v5777, %v5769
    %v5922 = vpack.c.b16 %v5778, %v5770
    %v5923 = vpack.c.b16 %v5779, %v5771
    %v5924 = vpack.c.b16 %v5780, %v5772
    %v5925 = vpack.c.b16 %v5781, %v5773
    %v5926 = vpack.c.b16 %v5782, %v5774
    %v5927 = vpack.c.b16 %v5783, %v5775
    %v5928 = vpack.c.b16 %v5792, %v5784
    %v5929 = vpack.c.b16 %v5793, %v5785
    %v5930 = vpack.c.b16 %v5794, %v5786
    %v5931 = vpack.c.b16 %v5795, %v5787
    %v5932 = vpack.c.b16 %v5796, %v5788
    %v5933 = vpack.c.b16 %v5797, %v5789
    %v5934 = vpack.c.b16 %v5798, %v5790
    %v5935 = vpack.c.b16 %v5799, %v5791
    %v5936 = vpack.c.b16 %v5808, %v5800
    %v5937 = vpack.c.b16 %v5809, %v5801
    %v5938 = vpack.c.b16 %v5810, %v5802
    %v5939 = vpack.c.b16 %v5811, %v5803
    %v5940 = vpack.c.b16 %v5812, %v5804
    %v5941 = vpack.c.b16 %v5813, %v5805
    %v5942 = vpack.c.b16 %v5814, %v5806
    %v5943 = vpack.c.b16 %v5815, %v5807
    %6072 = vmatprep.subr.bf16.mxu0 %v5817
    %6073 = vmatpush1.bf16.msra.mxu0 %v5816
    %6074 = vmatprep.subr.bf16.mxu0 %v5825
    %6075 = vmatpush1.bf16.msra.mxu0 %v5824
    %6076 = vmatprep.subr.bf16.mxu0 %v5833
    %6077 = vmatpush1.bf16.msra.mxu0 %v5832
    %6078 = vmatprep.subr.bf16.mxu0 %v5841
    %6079 = vmatpush1.bf16.msra.mxu0 %v5840
    %6080 = vmatprep.subr.bf16.mxu0 %v5849
    %6081 = vmatpush1.bf16.msra.mxu0 %v5848
    %6082 = vmatprep.subr.bf16.mxu0 %v5857
    %6083 = vmatpush1.bf16.msra.mxu0 %v5856
    %6084 = vmatprep.subr.bf16.mxu0 %v5865
    %6085 = vmatpush1.bf16.msra.mxu0 %v5864
    %6086 = vmatprep.subr.bf16.mxu0 %v5873
    %6087 = vmatpush1.bf16.msra.mxu0 %v5872
    %6088 = vmatprep.subr.bf16.mxu0 %v5881
    %6089 = vmatpush1.bf16.msra.mxu0 %v5880
    %6090 = vmatprep.subr.bf16.mxu0 %v5889
    %6091 = vmatpush1.bf16.msra.mxu0 %v5888
    %6092 = vmatprep.subr.bf16.mxu0 %v5897
    %6093 = vmatpush1.bf16.msra.mxu0 %v5896
    %6094 = vmatprep.subr.bf16.mxu0 %v5905
    %6095 = vmatpush1.bf16.msra.mxu0 %v5904
    %6096 = vmatprep.subr.bf16.mxu0 %v5913
    %6097 = vmatpush1.bf16.msra.mxu0 %v5912
    %6098 = vmatprep.subr.bf16.mxu0 %v5921
    %6099 = vmatpush1.bf16.msra.mxu0 %v5920
    %6100 = vmatprep.subr.bf16.mxu0 %v5929
    %6101 = vmatpush1.bf16.msra.mxu0 %v5928
    %6102 = vmatprep.subr.bf16.mxu0 %v5937
    %6103 = vmatpush1.bf16.msra.mxu0 %v5936
    %6104 = vmatprep.mubr.bf16.mxu0 %v5296
    %6105 = vmatmul.mubr.bf16.gmra.mrb[0].mxu0 %v5295
    %v6106 = vpop.f32.mrb[0].mxu0
    %v6107 = vadd.f32 0.0, %v6106
    %v6108 = vpop.f32.mrb[0].mxu0
    %v6109 = vadd.f32 0.0, %v6108
    %v6110 = vpop.f32.mrb[0].mxu0
    %v6111 = vadd.f32 0.0, %v6110
    %v6112 = vpop.f32.mrb[0].mxu0
    %v6113 = vadd.f32 0.0, %v6112
    %6114 = vmatprep.mubr.bf16.mxu0 %v5298
    %6115 = vmatmul.mubr.bf16.gmra.mrb[0].mxu0 %v5297
    %v6116 = vpop.f32.mrb[0].mxu0
    %v6117 = vadd.f32 0.0, %v6116
    %v6118 = vpop.f32.mrb[0].mxu0
    %v6119 = vadd.f32 0.0, %v6118
    %v6120 = vpop.f32.mrb[0].mxu0
    %v6121 = vadd.f32 0.0, %v6120
    %v6122 = vpop.f32.mrb[0].mxu0
    %v6123 = vadd.f32 0.0, %v6122
    %6124 = vmatprep.mubr.bf16.mxu0 %v5300
    %6125 = vmatmul.mubr.bf16.gmra.mrb[0].mxu0 %v5299
    %v6126 = vpop.f32.mrb[0].mxu0
    %v6127 = vadd.f32 0.0, %v6126
    %v6128 = vpop.f32.mrb[0].mxu0
    %v6129 = vadd.f32 0.0, %v6128
    %v6130 = vpop.f32.mrb[0].mxu0
    %v6131 = vadd.f32 0.0, %v6130
    %v6132 = vpop.f32.mrb[0].mxu0
    %v6133 = vadd.f32 0.0, %v6132
    %6134 = vmatprep.mubr.bf16.mxu0 %v5302
    %6135 = vmatmul.mubr.bf16.gmra.mrb[0].mxu0 %v5301
    %v6136 = vpop.f32.mrb[0].mxu0
    %v6137 = vadd.f32 0.0, %v6136
    %v6138 = vpop.f32.mrb[0].mxu0
    %v6139 = vadd.f32 0.0, %v6138
    %v6140 = vpop.f32.mrb[0].mxu0
    %v6141 = vadd.f32 0.0, %v6140
    %v6142 = vpop.f32.mrb[0].mxu0
    %v6143 = vadd.f32 0.0, %v6142
    %6144 = vdwg.mxu0
    %6145 = vmatprep.subr.bf16.mxu0 %v5819
    %6146 = vmatpush1.bf16.msra.mxu0 %v5818
    %6147 = vmatprep.subr.bf16.mxu0 %v5827
    %6148 = vmatpush1.bf16.msra.mxu0 %v5826
    %6149 = vmatprep.subr.bf16.mxu0 %v5835
    %6150 = vmatpush1.bf16.msra.mxu0 %v5834
    %6151 = vmatprep.subr.bf16.mxu0 %v5843
    %6152 = vmatpush1.bf16.msra.mxu0 %v5842
    %6153 = vmatprep.subr.bf16.mxu0 %v5851
    %6154 = vmatpush1.bf16.msra.mxu0 %v5850
    %6155 = vmatprep.subr.bf16.mxu0 %v5859
    %6156 = vmatpush1.bf16.msra.mxu0 %v5858
    %6157 = vmatprep.subr.bf16.mxu0 %v5867
    %6158 = vmatpush1.bf16.msra.mxu0 %v5866
    %6159 = vmatprep.subr.bf16.mxu0 %v5875
    %6160 = vmatpush1.bf16.msra.mxu0 %v5874
    %6161 = vmatprep.subr.bf16.mxu0 %v5883
    %6162 = vmatpush1.bf16.msra.mxu0 %v5882
    %6163 = vmatprep.subr.bf16.mxu0 %v5891
    %6164 = vmatpush1.bf16.msra.mxu0 %v5890
    %6165 = vmatprep.subr.bf16.mxu0 %v5899
    %6166 = vmatpush1.bf16.msra.mxu0 %v5898
    %6167 = vmatprep.subr.bf16.mxu0 %v5907
    %6168 = vmatpush1.bf16.msra.mxu0 %v5906
    %6169 = vmatprep.subr.bf16.mxu0 %v5915
    %6170 = vmatpush1.bf16.msra.mxu0 %v5914
    %6171 = vmatprep.subr.bf16.mxu0 %v5923
    %6172 = vmatpush1.bf16.msra.mxu0 %v5922
    %6173 = vmatprep.subr.bf16.mxu0 %v5931
    %6174 = vmatpush1.bf16.msra.mxu0 %v5930
    %6175 = vmatprep.subr.bf16.mxu0 %v5939
    %6176 = vmatpush1.bf16.msra.mxu0 %v5938
    %6177 = vmatprep.mubr.bf16.mxu0 %v5296
    %6178 = vmatmul.mubr.bf16.gmra.mrb[0].mxu0 %v5295
    %v6179 = vpop.f32.mrb[0].mxu0
    %v6180 = vadd.f32 0.0, %v6179
    %v6181 = vpop.f32.mrb[0].mxu0
    %v6182 = vadd.f32 0.0, %v6181
    %v6183 = vpop.f32.mrb[0].mxu0
    %v6184 = vadd.f32 0.0, %v6183
    %v6185 = vpop.f32.mrb[0].mxu0
    %v6186 = vadd.f32 0.0, %v6185
    %6187 = vmatprep.mubr.bf16.mxu0 %v5298
    %6188 = vmatmul.mubr.bf16.gmra.mrb[0].mxu0 %v5297
    %v6189 = vpop.f32.mrb[0].mxu0
    %v6190 = vadd.f32 0.0, %v6189
    %v6191 = vpop.f32.mrb[0].mxu0
    %v6192 = vadd.f32 0.0, %v6191
    %v6193 = vpop.f32.mrb[0].mxu0
    %v6194 = vadd.f32 0.0, %v6193
    %v6195 = vpop.f32.mrb[0].mxu0
    %v6196 = vadd.f32 0.0, %v6195
    %6197 = vmatprep.mubr.bf16.mxu0 %v5300
    %6198 = vmatmul.mubr.bf16.gmra.mrb[0].mxu0 %v5299
    %v6199 = vpop.f32.mrb[0].mxu0
    %v6200 = vadd.f32 0.0, %v6199
    %v6201 = vpop.f32.mrb[0].mxu0
    %v6202 = vadd.f32 0.0, %v6201
    %v6203 = vpop.f32.mrb[0].mxu0
    %v6204 = vadd.f32 0.0, %v6203
    %v6205 = vpop.f32.mrb[0].mxu0
    %v6206 = vadd.f32 0.0, %v6205
    %6207 = vmatprep.mubr.bf16.mxu0 %v5302
    %6208 = vmatmul.mubr.bf16.gmra.mrb[0].mxu0 %v5301
    %v6209 = vpop.f32.mrb[0].mxu0
    %v6210 = vadd.f32 0.0, %v6209
    %v6211 = vpop.f32.mrb[0].mxu0
    %v6212 = vadd.f32 0.0, %v6211
    %v6213 = vpop.f32.mrb[0].mxu0
    %v6214 = vadd.f32 0.0, %v6213
    %v6215 = vpop.f32.mrb[0].mxu0
    %v6216 = vadd.f32 0.0, %v6215
    %6217 = vdwg.mxu0
    %6218 = vmatprep.subr.bf16.mxu0 %v5821
    %6219 = vmatpush1.bf16.msra.mxu0 %v5820
    %6220 = vmatprep.subr.bf16.mxu0 %v5829
    %6221 = vmatpush1.bf16.msra.mxu0 %v5828
    %6222 = vmatprep.subr.bf16.mxu0 %v5837
    %6223 = vmatpush1.bf16.msra.mxu0 %v5836
    %6224 = vmatprep.subr.bf16.mxu0 %v5845
    %6225 = vmatpush1.bf16.msra.mxu0 %v5844
    %6226 = vmatprep.subr.bf16.mxu0 %v5853
    %6227 = vmatpush1.bf16.msra.mxu0 %v5852
    %6228 = vmatprep.subr.bf16.mxu0 %v5861
    %6229 = vmatpush1.bf16.msra.mxu0 %v5860
    %6230 = vmatprep.subr.bf16.mxu0 %v5869
    %6231 = vmatpush1.bf16.msra.mxu0 %v5868
    %6232 = vmatprep.subr.bf16.mxu0 %v5877
    %6233 = vmatpush1.bf16.msra.mxu0 %v5876
    %6234 = vmatprep.subr.bf16.mxu0 %v5885
    %6235 = vmatpush1.bf16.msra.mxu0 %v5884
    %6236 = vmatprep.subr.bf16.mxu0 %v5893
    %6237 = vmatpush1.bf16.msra.mxu0 %v5892
    %6238 = vmatprep.subr.bf16.mxu0 %v5901
    %6239 = vmatpush1.bf16.msra.mxu0 %v5900
    %6240 = vmatprep.subr.bf16.mxu0 %v5909
    %6241 = vmatpush1.bf16.msra.mxu0 %v5908
    %6242 = vmatprep.subr.bf16.mxu0 %v5917
    %6243 = vmatpush1.bf16.msra.mxu0 %v5916
    %6244 = vmatprep.subr.bf16.mxu0 %v5925
    %6245 = vmatpush1.bf16.msra.mxu0 %v5924
    %6246 = vmatprep.subr.bf16.mxu0 %v5933
    %6247 = vmatpush1.bf16.msra.mxu0 %v5932
    %6248 = vmatprep.subr.bf16.mxu0 %v5941
    %6249 = vmatpush1.bf16.msra.mxu0 %v5940
    %6250 = vmatprep.mubr.bf16.mxu0 %v5296
    %6251 = vmatmul.mubr.bf16.gmra.mrb[0].mxu0 %v5295
    %v6252 = vpop.f32.mrb[0].mxu0
    %v6253 = vadd.f32 0.0, %v6252
    %v6254 = vpop.f32.mrb[0].mxu0
    %v6255 = vadd.f32 0.0, %v6254
    %v6256 = vpop.f32.mrb[0].mxu0
    %v6257 = vadd.f32 0.0, %v6256
    %v6258 = vpop.f32.mrb[0].mxu0
    %v6259 = vadd.f32 0.0, %v6258
    %6260 = vmatprep.mubr.bf16.mxu0 %v5298
    %6261 = vmatmul.mubr.bf16.gmra.mrb[0].mxu0 %v5297
    %v6262 = vpop.f32.mrb[0].mxu0
    %v6263 = vadd.f32 0.0, %v6262
    %v6264 = vpop.f32.mrb[0].mxu0
    %v6265 = vadd.f32 0.0, %v6264
    %v6266 = vpop.f32.mrb[0].mxu0
    %v6267 = vadd.f32 0.0, %v6266
    %v6268 = vpop.f32.mrb[0].mxu0
    %v6269 = vadd.f32 0.0, %v6268
    %6270 = vmatprep.mubr.bf16.mxu0 %v5300
    %6271 = vmatmul.mubr.bf16.gmra.mrb[0].mxu0 %v5299
    %v6272 = vpop.f32.mrb[0].mxu0
    %v6273 = vadd.f32 0.0, %v6272
    %v6274 = vpop.f32.mrb[0].mxu0
    %v6275 = vadd.f32 0.0, %v6274
    %v6276 = vpop.f32.mrb[0].mxu0
    %v6277 = vadd.f32 0.0, %v6276
    %v6278 = vpop.f32.mrb[0].mxu0
    %v6279 = vadd.f32 0.0, %v6278
    %6280 = vmatprep.mubr.bf16.mxu0 %v5302
    %6281 = vmatmul.mubr.bf16.gmra.mrb[0].mxu0 %v5301
    %v6282 = vpop.f32.mrb[0].mxu0
    %v6283 = vadd.f32 0.0, %v6282
    %v6284 = vpop.f32.mrb[0].mxu0
    %v6285 = vadd.f32 0.0, %v6284
    %v6286 = vpop.f32.mrb[0].mxu0
    %v6287 = vadd.f32 0.0, %v6286
    %v6288 = vpop.f32.mrb[0].mxu0
    %v6289 = vadd.f32 0.0, %v6288
    %6290 = vdwg.mxu0
    %6291 = vmatprep.subr.bf16.mxu0 %v5823
    %6292 = vmatpush1.bf16.msra.mxu0 %v5822
    %6293 = vmatprep.subr.bf16.mxu0 %v5831
    %6294 = vmatpush1.bf16.msra.mxu0 %v5830
    %6295 = vmatprep.subr.bf16.mxu0 %v5839
    %6296 = vmatpush1.bf16.msra.mxu0 %v5838
    %6297 = vmatprep.subr.bf16.mxu0 %v5847
    %6298 = vmatpush1.bf16.msra.mxu0 %v5846
    %6299 = vmatprep.subr.bf16.mxu0 %v5855
    %6300 = vmatpush1.bf16.msra.mxu0 %v5854
    %6301 = vmatprep.subr.bf16.mxu0 %v5863
    %6302 = vmatpush1.bf16.msra.mxu0 %v5862
    %6303 = vmatprep.subr.bf16.mxu0 %v5871
    %6304 = vmatpush1.bf16.msra.mxu0 %v5870
    %6305 = vmatprep.subr.bf16.mxu0 %v5879
    %6306 = vmatpush1.bf16.msra.mxu0 %v5878
    %6307 = vmatprep.subr.bf16.mxu0 %v5887
    %6308 = vmatpush1.bf16.msra.mxu0 %v5886
    %6309 = vmatprep.subr.bf16.mxu0 %v5895
    %6310 = vmatpush1.bf16.msra.mxu0 %v5894
    %6311 = vmatprep.subr.bf16.mxu0 %v5903
    %6312 = vmatpush1.bf16.msra.mxu0 %v5902
    %6313 = vmatprep.subr.bf16.mxu0 %v5911
    %6314 = vmatpush1.bf16.msra.mxu0 %v5910
    %6315 = vmatprep.subr.bf16.mxu0 %v5919
    %6316 = vmatpush1.bf16.msra.mxu0 %v5918
    %6317 = vmatprep.subr.bf16.mxu0 %v5927
    %6318 = vmatpush1.bf16.msra.mxu0 %v5926
    %6319 = vmatprep.subr.bf16.mxu0 %v5935
    %6320 = vmatpush1.bf16.msra.mxu0 %v5934
    %6321 = vmatprep.subr.bf16.mxu0 %v5943
    %6322 = vmatpush1.bf16.msra.mxu0 %v5942
    %6323 = vmatprep.mubr.bf16.mxu0 %v5296
    %6324 = vmatmul.mubr.bf16.gmra.mrb[0].mxu0 %v5295
    %v6325 = vpop.f32.mrb[0].mxu0
    %v6326 = vadd.f32 0.0, %v6325
    %v6327 = vpop.f32.mrb[0].mxu0
    %v6328 = vadd.f32 0.0, %v6327
    %v6329 = vpop.f32.mrb[0].mxu0
    %v6330 = vadd.f32 0.0, %v6329
    %v6331 = vpop.f32.mrb[0].mxu0
    %v6332 = vadd.f32 0.0, %v6331
    %6333 = vmatprep.mubr.bf16.mxu0 %v5298
    %6334 = vmatmul.mubr.bf16.gmra.mrb[0].mxu0 %v5297
    %v6335 = vpop.f32.mrb[0].mxu0
    %v6336 = vadd.f32 0.0, %v6335
    %v6337 = vpop.f32.mrb[0].mxu0
    %v6338 = vadd.f32 0.0, %v6337
    %v6339 = vpop.f32.mrb[0].mxu0
    %v6340 = vadd.f32 0.0, %v6339
    %v6341 = vpop.f32.mrb[0].mxu0
    %v6342 = vadd.f32 0.0, %v6341
    %6343 = vmatprep.mubr.bf16.mxu0 %v5300
    %6344 = vmatmul.mubr.bf16.gmra.mrb[0].mxu0 %v5299
    %v6345 = vpop.f32.mrb[0].mxu0
    %v6346 = vadd.f32 0.0, %v6345
    %v6347 = vpop.f32.mrb[0].mxu0
    %v6348 = vadd.f32 0.0, %v6347
    %v6349 = vpop.f32.mrb[0].mxu0
    %v6350 = vadd.f32 0.0, %v6349
    %v6351 = vpop.f32.mrb[0].mxu0
    %v6352 = vadd.f32 0.0, %v6351
    %6353 = vmatprep.mubr.bf16.mxu0 %v5302
    %6354 = vmatmul.mubr.bf16.gmra.mrb[0].mxu0 %v5301
    %v6355 = vpop.f32.mrb[0].mxu0
    %v6356 = vadd.f32 0.0, %v6355
    %v6357 = vpop.f32.mrb[0].mxu0
    %v6358 = vadd.f32 0.0, %v6357
    %v6359 = vpop.f32.mrb[0].mxu0
    %v6360 = vadd.f32 0.0, %v6359
    %v6361 = vpop.f32.mrb[0].mxu0
    %v6362 = vadd.f32 0.0, %v6361
    %6363 = vdwg.mxu0
    %v6492 = vunpack.c.l.b16 %v3143
    %v6493 = vunpack.c.h.b16 %v3143
    %v6494 = vunpack.c.l.b16 %v3144
    %v6495 = vunpack.c.h.b16 %v3144
    %v6496 = vunpack.c.l.b16 %v3145
    %v6497 = vunpack.c.h.b16 %v3145
    %v6498 = vunpack.c.l.b16 %v3146
    %v6499 = vunpack.c.h.b16 %v3146
    %v6500 = vunpack.c.l.b16 %v3147
    %v6501 = vunpack.c.h.b16 %v3147
    %v6502 = vunpack.c.l.b16 %v3148
    %v6503 = vunpack.c.h.b16 %v3148
    %v6504 = vunpack.c.l.b16 %v3149
    %v6505 = vunpack.c.h.b16 %v3149
    %v6506 = vunpack.c.l.b16 %v3150
    %v6507 = vunpack.c.h.b16 %v3150
    %v6508 = vunpack.c.l.b16 %v3151
    %v6509 = vunpack.c.h.b16 %v3151
    %v6510 = vunpack.c.l.b16 %v3152
    %v6511 = vunpack.c.h.b16 %v3152
    %v6512 = vunpack.c.l.b16 %v3153
    %v6513 = vunpack.c.h.b16 %v3153
    %v6514 = vunpack.c.l.b16 %v3154
    %v6515 = vunpack.c.h.b16 %v3154
    %v6516 = vunpack.c.l.b16 %v3155
    %v6517 = vunpack.c.h.b16 %v3155
    %v6518 = vunpack.c.l.b16 %v3156
    %v6519 = vunpack.c.h.b16 %v3156
    %v6520 = vunpack.c.l.b16 %v3157
    %v6521 = vunpack.c.h.b16 %v3157
    %v6522 = vunpack.c.l.b16 %v3158
    %v6523 = vunpack.c.h.b16 %v3158
    %v6524 = vunpack.c.l.b16 %v3159
    %v6525 = vunpack.c.h.b16 %v3159
    %v6526 = vunpack.c.l.b16 %v3160
    %v6527 = vunpack.c.h.b16 %v3160
    %v6528 = vunpack.c.l.b16 %v3161
    %v6529 = vunpack.c.h.b16 %v3161
    %v6530 = vunpack.c.l.b16 %v3162
    %v6531 = vunpack.c.h.b16 %v3162
    %v6532 = vunpack.c.l.b16 %v3163
    %v6533 = vunpack.c.h.b16 %v3163
    %v6534 = vunpack.c.l.b16 %v3164
    %v6535 = vunpack.c.h.b16 %v3164
    %v6536 = vunpack.c.l.b16 %v3165
    %v6537 = vunpack.c.h.b16 %v3165
    %v6538 = vunpack.c.l.b16 %v3166
    %v6539 = vunpack.c.h.b16 %v3166
    %v6540 = vunpack.c.l.b16 %v3167
    %v6541 = vunpack.c.h.b16 %v3167
    %v6542 = vunpack.c.l.b16 %v3168
    %v6543 = vunpack.c.h.b16 %v3168
    %v6544 = vunpack.c.l.b16 %v3169
    %v6545 = vunpack.c.h.b16 %v3169
    %v6546 = vunpack.c.l.b16 %v3170
    %v6547 = vunpack.c.h.b16 %v3170
    %v6548 = vunpack.c.l.b16 %v3171
    %v6549 = vunpack.c.h.b16 %v3171
    %v6550 = vunpack.c.l.b16 %v3172
    %v6551 = vunpack.c.h.b16 %v3172
    %v6552 = vunpack.c.l.b16 %v3173
    %v6553 = vunpack.c.h.b16 %v3173
    %v6554 = vunpack.c.l.b16 %v3174
    %v6555 = vunpack.c.h.b16 %v3174
    %v6556 = vunpack.c.l.b16 %v3175
    %v6557 = vunpack.c.h.b16 %v3175
    %v6558 = vunpack.c.l.b16 %v3176
    %v6559 = vunpack.c.h.b16 %v3176
    %v6560 = vunpack.c.l.b16 %v3177
    %v6561 = vunpack.c.h.b16 %v3177
    %v6562 = vunpack.c.l.b16 %v3178
    %v6563 = vunpack.c.h.b16 %v3178
    %v6564 = vunpack.c.l.b16 %v3179
    %v6565 = vunpack.c.h.b16 %v3179
    %v6566 = vunpack.c.l.b16 %v3180
    %v6567 = vunpack.c.h.b16 %v3180
    %v6568 = vunpack.c.l.b16 %v3181
    %v6569 = vunpack.c.h.b16 %v3181
    %v6570 = vunpack.c.l.b16 %v3182
    %v6571 = vunpack.c.h.b16 %v3182
    %v6572 = vunpack.c.l.b16 %v3183
    %v6573 = vunpack.c.h.b16 %v3183
    %v6574 = vunpack.c.l.b16 %v3184
    %v6575 = vunpack.c.h.b16 %v3184
    %v6576 = vunpack.c.l.b16 %v3185
    %v6577 = vunpack.c.h.b16 %v3185
    %v6578 = vunpack.c.l.b16 %v3186
    %v6579 = vunpack.c.h.b16 %v3186
    %v6580 = vunpack.c.l.b16 %v3187
    %v6581 = vunpack.c.h.b16 %v3187
    %v6582 = vunpack.c.l.b16 %v3188
    %v6583 = vunpack.c.h.b16 %v3188
    %v6584 = vunpack.c.l.b16 %v3189
    %v6585 = vunpack.c.h.b16 %v3189
    %v6586 = vunpack.c.l.b16 %v3190
    %v6587 = vunpack.c.h.b16 %v3190
    %v6588 = vunpack.c.l.b16 %v3191
    %v6589 = vunpack.c.h.b16 %v3191
    %v6590 = vunpack.c.l.b16 %v3192
    %v6591 = vunpack.c.h.b16 %v3192
    %v6592 = vunpack.c.l.b16 %v3193
    %v6593 = vunpack.c.h.b16 %v3193
    %v6594 = vunpack.c.l.b16 %v3194
    %v6595 = vunpack.c.h.b16 %v3194
    %v6596 = vunpack.c.l.b16 %v3195
    %v6597 = vunpack.c.h.b16 %v3195
    %v6598 = vunpack.c.l.b16 %v3196
    %v6599 = vunpack.c.h.b16 %v3196
    %v6600 = vunpack.c.l.b16 %v3197
    %v6601 = vunpack.c.h.b16 %v3197
    %v6602 = vunpack.c.l.b16 %v3198
    %v6603 = vunpack.c.h.b16 %v3198
    %v6604 = vunpack.c.l.b16 %v3199
    %v6605 = vunpack.c.h.b16 %v3199
    %v6606 = vunpack.c.l.b16 %v3200
    %v6607 = vunpack.c.h.b16 %v3200
    %v6608 = vunpack.c.l.b16 %v3201
    %v6609 = vunpack.c.h.b16 %v3201
    %v6610 = vunpack.c.l.b16 %v3202
    %v6611 = vunpack.c.h.b16 %v3202
    %v6612 = vunpack.c.l.b16 %v3203
    %v6613 = vunpack.c.h.b16 %v3203
    %v6614 = vunpack.c.l.b16 %v3204
    %v6615 = vunpack.c.h.b16 %v3204
    %v6616 = vunpack.c.l.b16 %v3205
    %v6617 = vunpack.c.h.b16 %v3205
    %v6618 = vunpack.c.l.b16 %v3206
    %v6619 = vunpack.c.h.b16 %v3206
    %v6620 = vunpack.c.l.b16 %v3207
    %v6621 = vunpack.c.h.b16 %v3207
    %v6622 = vunpack.c.l.b16 %v3208
    %v6623 = vunpack.c.h.b16 %v3208
    %v6624 = vunpack.c.l.b16 %v3209
    %v6625 = vunpack.c.h.b16 %v3209
    %v6626 = vunpack.c.l.b16 %v3210
    %v6627 = vunpack.c.h.b16 %v3210
    %v6628 = vunpack.c.l.b16 %v3211
    %v6629 = vunpack.c.h.b16 %v3211
    %v6630 = vunpack.c.l.b16 %v3212
    %v6631 = vunpack.c.h.b16 %v3212
    %v6632 = vunpack.c.l.b16 %v3213
    %v6633 = vunpack.c.h.b16 %v3213
    %v6634 = vunpack.c.l.b16 %v3214
    %v6635 = vunpack.c.h.b16 %v3214
    %v6636 = vunpack.c.l.b16 %v3215
    %v6637 = vunpack.c.h.b16 %v3215
    %v6638 = vunpack.c.l.b16 %v3216
    %v6639 = vunpack.c.h.b16 %v3216
    %v6640 = vunpack.c.l.b16 %v3217
    %v6641 = vunpack.c.h.b16 %v3217
    %v6642 = vunpack.c.l.b16 %v3218
    %v6643 = vunpack.c.h.b16 %v3218
    %v6644 = vunpack.c.l.b16 %v3219
    %v6645 = vunpack.c.h.b16 %v3219
    %v6646 = vunpack.c.l.b16 %v3220
    %v6647 = vunpack.c.h.b16 %v3220
    %v6648 = vunpack.c.l.b16 %v3221
    %v6649 = vunpack.c.h.b16 %v3221
    %v6650 = vunpack.c.l.b16 %v3222
    %v6651 = vunpack.c.h.b16 %v3222
    %v6652 = vunpack.c.l.b16 %v3223
    %v6653 = vunpack.c.h.b16 %v3223
    %v6654 = vunpack.c.l.b16 %v3224
    %v6655 = vunpack.c.h.b16 %v3224
    %v6656 = vunpack.c.l.b16 %v3225
    %v6657 = vunpack.c.h.b16 %v3225
    %v6658 = vunpack.c.l.b16 %v3226
    %v6659 = vunpack.c.h.b16 %v3226
    %v6660 = vunpack.c.l.b16 %v3227
    %v6661 = vunpack.c.h.b16 %v3227
    %v6662 = vunpack.c.l.b16 %v3228
    %v6663 = vunpack.c.h.b16 %v3228
    %v6664 = vunpack.c.l.b16 %v3229
    %v6665 = vunpack.c.h.b16 %v3229
    %v6666 = vunpack.c.l.b16 %v3230
    %v6667 = vunpack.c.h.b16 %v3230
    %v6668 = vunpack.c.l.b16 %v3231
    %v6669 = vunpack.c.h.b16 %v3231
    %v6670 = vunpack.c.l.b16 %v3232
    %v6671 = vunpack.c.h.b16 %v3232
    %v6672 = vunpack.c.l.b16 %v3233
    %v6673 = vunpack.c.h.b16 %v3233
    %v6674 = vunpack.c.l.b16 %v3234
    %v6675 = vunpack.c.h.b16 %v3234
    %v6676 = vunpack.c.l.b16 %v3235
    %v6677 = vunpack.c.h.b16 %v3235
    %v6678 = vunpack.c.l.b16 %v3236
    %v6679 = vunpack.c.h.b16 %v3236
    %v6680 = vunpack.c.l.b16 %v3237
    %v6681 = vunpack.c.h.b16 %v3237
    %v6682 = vunpack.c.l.b16 %v3238
    %v6683 = vunpack.c.h.b16 %v3238
    %v6684 = vunpack.c.l.b16 %v3239
    %v6685 = vunpack.c.h.b16 %v3239
    %v6686 = vunpack.c.l.b16 %v3240
    %v6687 = vunpack.c.h.b16 %v3240
    %v6688 = vunpack.c.l.b16 %v3241
    %v6689 = vunpack.c.h.b16 %v3241
    %v6690 = vunpack.c.l.b16 %v3242
    %v6691 = vunpack.c.h.b16 %v3242
    %v6692 = vunpack.c.l.b16 %v3243
    %v6693 = vunpack.c.h.b16 %v3243
    %v6694 = vunpack.c.l.b16 %v3244
    %v6695 = vunpack.c.h.b16 %v3244
    %v6696 = vunpack.c.l.b16 %v3245
    %v6697 = vunpack.c.h.b16 %v3245
    %v6698 = vunpack.c.l.b16 %v3246
    %v6699 = vunpack.c.h.b16 %v3246
    %v6700 = vunpack.c.l.b16 %v3247
    %v6701 = vunpack.c.h.b16 %v3247
    %v6702 = vunpack.c.l.b16 %v3248
    %v6703 = vunpack.c.h.b16 %v3248
    %v6704 = vunpack.c.l.b16 %v3249
    %v6705 = vunpack.c.h.b16 %v3249
    %v6706 = vunpack.c.l.b16 %v3250
    %v6707 = vunpack.c.h.b16 %v3250
    %v6708 = vunpack.c.l.b16 %v3251
    %v6709 = vunpack.c.h.b16 %v3251
    %v6710 = vunpack.c.l.b16 %v3252
    %v6711 = vunpack.c.h.b16 %v3252
    %v6712 = vunpack.c.l.b16 %v3253
    %v6713 = vunpack.c.h.b16 %v3253
    %v6714 = vunpack.c.l.b16 %v3254
    %v6715 = vunpack.c.h.b16 %v3254
    %v6716 = vunpack.c.l.b16 %v3255
    %v6717 = vunpack.c.h.b16 %v3255
    %v6718 = vunpack.c.l.b16 %v3256
    %v6719 = vunpack.c.h.b16 %v3256
    %v6720 = vunpack.c.l.b16 %v3257
    %v6721 = vunpack.c.h.b16 %v3257
    %v6722 = vunpack.c.l.b16 %v3258
    %v6723 = vunpack.c.h.b16 %v3258
    %v6724 = vunpack.c.l.b16 %v3259
    %v6725 = vunpack.c.h.b16 %v3259
    %v6726 = vunpack.c.l.b16 %v3260
    %v6727 = vunpack.c.h.b16 %v3260
    %v6728 = vunpack.c.l.b16 %v3261
    %v6729 = vunpack.c.h.b16 %v3261
    %v6730 = vunpack.c.l.b16 %v3262
    %v6731 = vunpack.c.h.b16 %v3262
    %v6732 = vunpack.c.l.b16 %v3263
    %v6733 = vunpack.c.h.b16 %v3263
    %v6734 = vunpack.c.l.b16 %v3264
    %v6735 = vunpack.c.h.b16 %v3264
    %v6736 = vunpack.c.l.b16 %v3265
    %v6737 = vunpack.c.h.b16 %v3265
    %v6738 = vunpack.c.l.b16 %v3266
    %v6739 = vunpack.c.h.b16 %v3266
    %v6740 = vunpack.c.l.b16 %v3267
    %v6741 = vunpack.c.h.b16 %v3267
    %v6742 = vunpack.c.l.b16 %v3268
    %v6743 = vunpack.c.h.b16 %v3268
    %v6744 = vunpack.c.l.b16 %v3269
    %v6745 = vunpack.c.h.b16 %v3269
    %v6746 = vunpack.c.l.b16 %v3270
    %v6747 = vunpack.c.h.b16 %v3270
    %v6748 = vpack.c.b16 %v6500, %v6492
    %v6749 = vpack.c.b16 %v6501, %v6493
    %v6750 = vpack.c.b16 %v6502, %v6494
    %v6751 = vpack.c.b16 %v6503, %v6495
    %v6752 = vpack.c.b16 %v6504, %v6496
    %v6753 = vpack.c.b16 %v6505, %v6497
    %v6754 = vpack.c.b16 %v6506, %v6498
    %v6755 = vpack.c.b16 %v6507, %v6499
    %v6756 = vpack.c.b16 %v6516, %v6508
    %v6757 = vpack.c.b16 %v6517, %v6509
    %v6758 = vpack.c.b16 %v6518, %v6510
    %v6759 = vpack.c.b16 %v6519, %v6511
    %v6760 = vpack.c.b16 %v6520, %v6512
    %v6761 = vpack.c.b16 %v6521, %v6513
    %v6762 = vpack.c.b16 %v6522, %v6514
    %v6763 = vpack.c.b16 %v6523, %v6515
    %v6764 = vpack.c.b16 %v6532, %v6524
    %v6765 = vpack.c.b16 %v6533, %v6525
    %v6766 = vpack.c.b16 %v6534, %v6526
    %v6767 = vpack.c.b16 %v6535, %v6527
    %v6768 = vpack.c.b16 %v6536, %v6528
    %v6769 = vpack.c.b16 %v6537, %v6529
    %v6770 = vpack.c.b16 %v6538, %v6530
    %v6771 = vpack.c.b16 %v6539, %v6531
    %v6772 = vpack.c.b16 %v6548, %v6540
    %v6773 = vpack.c.b16 %v6549, %v6541
    %v6774 = vpack.c.b16 %v6550, %v6542
    %v6775 = vpack.c.b16 %v6551, %v6543
    %v6776 = vpack.c.b16 %v6552, %v6544
    %v6777 = vpack.c.b16 %v6553, %v6545
    %v6778 = vpack.c.b16 %v6554, %v6546
    %v6779 = vpack.c.b16 %v6555, %v6547
    %v6780 = vpack.c.b16 %v6564, %v6556
    %v6781 = vpack.c.b16 %v6565, %v6557
    %v6782 = vpack.c.b16 %v6566, %v6558
    %v6783 = vpack.c.b16 %v6567, %v6559
    %v6784 = vpack.c.b16 %v6568, %v6560
    %v6785 = vpack.c.b16 %v6569, %v6561
    %v6786 = vpack.c.b16 %v6570, %v6562
    %v6787 = vpack.c.b16 %v6571, %v6563
    %v6788 = vpack.c.b16 %v6580, %v6572
    %v6789 = vpack.c.b16 %v6581, %v6573
    %v6790 = vpack.c.b16 %v6582, %v6574
    %v6791 = vpack.c.b16 %v6583, %v6575
    %v6792 = vpack.c.b16 %v6584, %v6576
    %v6793 = vpack.c.b16 %v6585, %v6577
    %v6794 = vpack.c.b16 %v6586, %v6578
    %v6795 = vpack.c.b16 %v6587, %v6579
    %v6796 = vpack.c.b16 %v6596, %v6588
    %v6797 = vpack.c.b16 %v6597, %v6589
    %v6798 = vpack.c.b16 %v6598, %v6590
    %v6799 = vpack.c.b16 %v6599, %v6591
    %v6800 = vpack.c.b16 %v6600, %v6592
    %v6801 = vpack.c.b16 %v6601, %v6593
    %v6802 = vpack.c.b16 %v6602, %v6594
    %v6803 = vpack.c.b16 %v6603, %v6595
    %v6804 = vpack.c.b16 %v6612, %v6604
    %v6805 = vpack.c.b16 %v6613, %v6605
    %v6806 = vpack.c.b16 %v6614, %v6606
    %v6807 = vpack.c.b16 %v6615, %v6607
    %v6808 = vpack.c.b16 %v6616, %v6608
    %v6809 = vpack.c.b16 %v6617, %v6609
    %v6810 = vpack.c.b16 %v6618, %v6610
    %v6811 = vpack.c.b16 %v6619, %v6611
    %v6812 = vpack.c.b16 %v6628, %v6620
    %v6813 = vpack.c.b16 %v6629, %v6621
    %v6814 = vpack.c.b16 %v6630, %v6622
    %v6815 = vpack.c.b16 %v6631, %v6623
    %v6816 = vpack.c.b16 %v6632, %v6624
    %v6817 = vpack.c.b16 %v6633, %v6625
    %v6818 = vpack.c.b16 %v6634, %v6626
    %v6819 = vpack.c.b16 %v6635, %v6627
    %v6820 = vpack.c.b16 %v6644, %v6636
    %v6821 = vpack.c.b16 %v6645, %v6637
    %v6822 = vpack.c.b16 %v6646, %v6638
    %v6823 = vpack.c.b16 %v6647, %v6639
    %v6824 = vpack.c.b16 %v6648, %v6640
    %v6825 = vpack.c.b16 %v6649, %v6641
    %v6826 = vpack.c.b16 %v6650, %v6642
    %v6827 = vpack.c.b16 %v6651, %v6643
    %v6828 = vpack.c.b16 %v6660, %v6652
    %v6829 = vpack.c.b16 %v6661, %v6653
    %v6830 = vpack.c.b16 %v6662, %v6654
    %v6831 = vpack.c.b16 %v6663, %v6655
    %v6832 = vpack.c.b16 %v6664, %v6656
    %v6833 = vpack.c.b16 %v6665, %v6657
    %v6834 = vpack.c.b16 %v6666, %v6658
    %v6835 = vpack.c.b16 %v6667, %v6659
    %v6836 = vpack.c.b16 %v6676, %v6668
    %v6837 = vpack.c.b16 %v6677, %v6669
    %v6838 = vpack.c.b16 %v6678, %v6670
    %v6839 = vpack.c.b16 %v6679, %v6671
    %v6840 = vpack.c.b16 %v6680, %v6672
    %v6841 = vpack.c.b16 %v6681, %v6673
    %v6842 = vpack.c.b16 %v6682, %v6674
    %v6843 = vpack.c.b16 %v6683, %v6675
    %v6844 = vpack.c.b16 %v6692, %v6684
    %v6845 = vpack.c.b16 %v6693, %v6685
    %v6846 = vpack.c.b16 %v6694, %v6686
    %v6847 = vpack.c.b16 %v6695, %v6687
    %v6848 = vpack.c.b16 %v6696, %v6688
    %v6849 = vpack.c.b16 %v6697, %v6689
    %v6850 = vpack.c.b16 %v6698, %v6690
    %v6851 = vpack.c.b16 %v6699, %v6691
    %v6852 = vpack.c.b16 %v6708, %v6700
    %v6853 = vpack.c.b16 %v6709, %v6701
    %v6854 = vpack.c.b16 %v6710, %v6702
    %v6855 = vpack.c.b16 %v6711, %v6703
    %v6856 = vpack.c.b16 %v6712, %v6704
    %v6857 = vpack.c.b16 %v6713, %v6705
    %v6858 = vpack.c.b16 %v6714, %v6706
    %v6859 = vpack.c.b16 %v6715, %v6707
    %v6860 = vpack.c.b16 %v6724, %v6716
    %v6861 = vpack.c.b16 %v6725, %v6717
    %v6862 = vpack.c.b16 %v6726, %v6718
    %v6863 = vpack.c.b16 %v6727, %v6719
    %v6864 = vpack.c.b16 %v6728, %v6720
    %v6865 = vpack.c.b16 %v6729, %v6721
    %v6866 = vpack.c.b16 %v6730, %v6722
    %v6867 = vpack.c.b16 %v6731, %v6723
    %v6868 = vpack.c.b16 %v6740, %v6732
    %v6869 = vpack.c.b16 %v6741, %v6733
    %v6870 = vpack.c.b16 %v6742, %v6734
    %v6871 = vpack.c.b16 %v6743, %v6735
    %v6872 = vpack.c.b16 %v6744, %v6736
    %v6873 = vpack.c.b16 %v6745, %v6737
    %v6874 = vpack.c.b16 %v6746, %v6738
    %v6875 = vpack.c.b16 %v6747, %v6739
    %7004 = vmatprep.subr.bf16.mxu0 %v6749
    %7005 = vmatpush1.bf16.msra.mxu0 %v6748
    %7006 = vmatprep.subr.bf16.mxu0 %v6757
    %7007 = vmatpush1.bf16.msra.mxu0 %v6756
    %7008 = vmatprep.subr.bf16.mxu0 %v6765
    %7009 = vmatpush1.bf16.msra.mxu0 %v6764
    %7010 = vmatprep.subr.bf16.mxu0 %v6773
    %7011 = vmatpush1.bf16.msra.mxu0 %v6772
    %7012 = vmatprep.subr.bf16.mxu0 %v6781
    %7013 = vmatpush1.bf16.msra.mxu0 %v6780
    %7014 = vmatprep.subr.bf16.mxu0 %v6789
    %7015 = vmatpush1.bf16.msra.mxu0 %v6788
    %7016 = vmatprep.subr.bf16.mxu0 %v6797
    %7017 = vmatpush1.bf16.msra.mxu0 %v6796
    %7018 = vmatprep.subr.bf16.mxu0 %v6805
    %7019 = vmatpush1.bf16.msra.mxu0 %v6804
    %7020 = vmatprep.subr.bf16.mxu0 %v6813
    %7021 = vmatpush1.bf16.msra.mxu0 %v6812
    %7022 = vmatprep.subr.bf16.mxu0 %v6821
    %7023 = vmatpush1.bf16.msra.mxu0 %v6820
    %7024 = vmatprep.subr.bf16.mxu0 %v6829
    %7025 = vmatpush1.bf16.msra.mxu0 %v6828
    %7026 = vmatprep.subr.bf16.mxu0 %v6837
    %7027 = vmatpush1.bf16.msra.mxu0 %v6836
    %7028 = vmatprep.subr.bf16.mxu0 %v6845
    %7029 = vmatpush1.bf16.msra.mxu0 %v6844
    %7030 = vmatprep.subr.bf16.mxu0 %v6853
    %7031 = vmatpush1.bf16.msra.mxu0 %v6852
    %7032 = vmatprep.subr.bf16.mxu0 %v6861
    %7033 = vmatpush1.bf16.msra.mxu0 %v6860
    %7034 = vmatprep.subr.bf16.mxu0 %v6869
    %7035 = vmatpush1.bf16.msra.mxu0 %v6868
    %7036 = vmatprep.mubr.bf16.mxu0 %v3135
    %7037 = vmatmul.mubr.bf16.gmra.mrb[0].mxu0 %v3134
    %v7038 = vpop.f32.mrb[0].mxu0
    %v7039 = vadd.f32 %v6107, %v7038
    %v7040 = vpop.f32.mrb[0].mxu0
    %v7041 = vadd.f32 %v6109, %v7040
    %v7042 = vpop.f32.mrb[0].mxu0
    %v7043 = vadd.f32 %v6111, %v7042
    %v7044 = vpop.f32.mrb[0].mxu0
    %v7045 = vadd.f32 %v6113, %v7044
    %7046 = vmatprep.mubr.bf16.mxu0 %v3137
    %7047 = vmatmul.mubr.bf16.gmra.mrb[0].mxu0 %v3136
    %v7048 = vpop.f32.mrb[0].mxu0
    %v7049 = vadd.f32 %v6117, %v7048
    %v7050 = vpop.f32.mrb[0].mxu0
    %v7051 = vadd.f32 %v6119, %v7050
    %v7052 = vpop.f32.mrb[0].mxu0
    %v7053 = vadd.f32 %v6121, %v7052
    %v7054 = vpop.f32.mrb[0].mxu0
    %v7055 = vadd.f32 %v6123, %v7054
    %7056 = vmatprep.mubr.bf16.mxu0 %v3139
    %7057 = vmatmul.mubr.bf16.gmra.mrb[0].mxu0 %v3138
    %v7058 = vpop.f32.mrb[0].mxu0
    %v7059 = vadd.f32 %v6127, %v7058
    %v7060 = vpop.f32.mrb[0].mxu0
    %v7061 = vadd.f32 %v6129, %v7060
    %v7062 = vpop.f32.mrb[0].mxu0
    %v7063 = vadd.f32 %v6131, %v7062
    %v7064 = vpop.f32.mrb[0].mxu0
    %v7065 = vadd.f32 %v6133, %v7064
    %7066 = vmatprep.mubr.bf16.mxu0 %v3141
    %7067 = vmatmul.mubr.bf16.gmra.mrb[0].mxu0 %v3140
    %v7068 = vpop.f32.mrb[0].mxu0
    %v7069 = vadd.f32 %v6137, %v7068
    %v7070 = vpop.f32.mrb[0].mxu0
    %v7071 = vadd.f32 %v6139, %v7070
    %v7072 = vpop.f32.mrb[0].mxu0
    %v7073 = vadd.f32 %v6141, %v7072
    %v7074 = vpop.f32.mrb[0].mxu0
    %v7075 = vadd.f32 %v6143, %v7074
    %7076 = vdwg.mxu0
    %7077 = vmatprep.subr.bf16.mxu0 %v6751
    %7078 = vmatpush1.bf16.msra.mxu0 %v6750
    %7079 = vmatprep.subr.bf16.mxu0 %v6759
    %7080 = vmatpush1.bf16.msra.mxu0 %v6758
    %7081 = vmatprep.subr.bf16.mxu0 %v6767
    %7082 = vmatpush1.bf16.msra.mxu0 %v6766
    %7083 = vmatprep.subr.bf16.mxu0 %v6775
    %7084 = vmatpush1.bf16.msra.mxu0 %v6774
    %7085 = vmatprep.subr.bf16.mxu0 %v6783
    %7086 = vmatpush1.bf16.msra.mxu0 %v6782
    %7087 = vmatprep.subr.bf16.mxu0 %v6791
    %7088 = vmatpush1.bf16.msra.mxu0 %v6790
    %7089 = vmatprep.subr.bf16.mxu0 %v6799
    %7090 = vmatpush1.bf16.msra.mxu0 %v6798
    %7091 = vmatprep.subr.bf16.mxu0 %v6807
    %7092 = vmatpush1.bf16.msra.mxu0 %v6806
    %7093 = vmatprep.subr.bf16.mxu0 %v6815
    %7094 = vmatpush1.bf16.msra.mxu0 %v6814
    %7095 = vmatprep.subr.bf16.mxu0 %v6823
    %7096 = vmatpush1.bf16.msra.mxu0 %v6822
    %7097 = vmatprep.subr.bf16.mxu0 %v6831
    %7098 = vmatpush1.bf16.msra.mxu0 %v6830
    %7099 = vmatprep.subr.bf16.mxu0 %v6839
    %7100 = vmatpush1.bf16.msra.mxu0 %v6838
    %7101 = vmatprep.subr.bf16.mxu0 %v6847
    %7102 = vmatpush1.bf16.msra.mxu0 %v6846
    %7103 = vmatprep.subr.bf16.mxu0 %v6855
    %7104 = vmatpush1.bf16.msra.mxu0 %v6854
    %7105 = vmatprep.subr.bf16.mxu0 %v6863
    %7106 = vmatpush1.bf16.msra.mxu0 %v6862
    %7107 = vmatprep.subr.bf16.mxu0 %v6871
    %7108 = vmatpush1.bf16.msra.mxu0 %v6870
    %7109 = vmatprep.mubr.bf16.mxu0 %v3135
    %7110 = vmatmul.mubr.bf16.gmra.mrb[0].mxu0 %v3134
    %v7111 = vpop.f32.mrb[0].mxu0
    %v7112 = vadd.f32 %v6180, %v7111
    %v7113 = vpop.f32.mrb[0].mxu0
    %v7114 = vadd.f32 %v6182, %v7113
    %v7115 = vpop.f32.mrb[0].mxu0
    %v7116 = vadd.f32 %v6184, %v7115
    %v7117 = vpop.f32.mrb[0].mxu0
    %v7118 = vadd.f32 %v6186, %v7117
    %7119 = vmatprep.mubr.bf16.mxu0 %v3137
    %7120 = vmatmul.mubr.bf16.gmra.mrb[0].mxu0 %v3136
    %v7121 = vpop.f32.mrb[0].mxu0
    %v7122 = vadd.f32 %v6190, %v7121
    %v7123 = vpop.f32.mrb[0].mxu0
    %v7124 = vadd.f32 %v6192, %v7123
    %v7125 = vpop.f32.mrb[0].mxu0
    %v7126 = vadd.f32 %v6194, %v7125
    %v7127 = vpop.f32.mrb[0].mxu0
    %v7128 = vadd.f32 %v6196, %v7127
    %7129 = vmatprep.mubr.bf16.mxu0 %v3139
    %7130 = vmatmul.mubr.bf16.gmra.mrb[0].mxu0 %v3138
    %v7131 = vpop.f32.mrb[0].mxu0
    %v7132 = vadd.f32 %v6200, %v7131
    %v7133 = vpop.f32.mrb[0].mxu0
    %v7134 = vadd.f32 %v6202, %v7133
    %v7135 = vpop.f32.mrb[0].mxu0
    %v7136 = vadd.f32 %v6204, %v7135
    %v7137 = vpop.f32.mrb[0].mxu0
    %v7138 = vadd.f32 %v6206, %v7137
    %7139 = vmatprep.mubr.bf16.mxu0 %v3141
    %7140 = vmatmul.mubr.bf16.gmra.mrb[0].mxu0 %v3140
    %v7141 = vpop.f32.mrb[0].mxu0
    %v7142 = vadd.f32 %v6210, %v7141
    %v7143 = vpop.f32.mrb[0].mxu0
    %v7144 = vadd.f32 %v6212, %v7143
    %v7145 = vpop.f32.mrb[0].mxu0
    %v7146 = vadd.f32 %v6214, %v7145
    %v7147 = vpop.f32.mrb[0].mxu0
    %v7148 = vadd.f32 %v6216, %v7147
    %7149 = vdwg.mxu0
    %7150 = vmatprep.subr.bf16.mxu0 %v6753
    %7151 = vmatpush1.bf16.msra.mxu0 %v6752
    %7152 = vmatprep.subr.bf16.mxu0 %v6761
    %7153 = vmatpush1.bf16.msra.mxu0 %v6760
    %7154 = vmatprep.subr.bf16.mxu0 %v6769
    %7155 = vmatpush1.bf16.msra.mxu0 %v6768
    %7156 = vmatprep.subr.bf16.mxu0 %v6777
    %7157 = vmatpush1.bf16.msra.mxu0 %v6776
    %7158 = vmatprep.subr.bf16.mxu0 %v6785
    %7159 = vmatpush1.bf16.msra.mxu0 %v6784
    %7160 = vmatprep.subr.bf16.mxu0 %v6793
    %7161 = vmatpush1.bf16.msra.mxu0 %v6792
    %7162 = vmatprep.subr.bf16.mxu0 %v6801
    %7163 = vmatpush1.bf16.msra.mxu0 %v6800
    %7164 = vmatprep.subr.bf16.mxu0 %v6809
    %7165 = vmatpush1.bf16.msra.mxu0 %v6808
    %7166 = vmatprep.subr.bf16.mxu0 %v6817
    %7167 = vmatpush1.bf16.msra.mxu0 %v6816
    %7168 = vmatprep.subr.bf16.mxu0 %v6825
    %7169 = vmatpush1.bf16.msra.mxu0 %v6824
    %7170 = vmatprep.subr.bf16.mxu0 %v6833
    %7171 = vmatpush1.bf16.msra.mxu0 %v6832
    %7172 = vmatprep.subr.bf16.mxu0 %v6841
    %7173 = vmatpush1.bf16.msra.mxu0 %v6840
    %7174 = vmatprep.subr.bf16.mxu0 %v6849
    %7175 = vmatpush1.bf16.msra.mxu0 %v6848
    %7176 = vmatprep.subr.bf16.mxu0 %v6857
    %7177 = vmatpush1.bf16.msra.mxu0 %v6856
    %7178 = vmatprep.subr.bf16.mxu0 %v6865
    %7179 = vmatpush1.bf16.msra.mxu0 %v6864
    %7180 = vmatprep.subr.bf16.mxu0 %v6873
    %7181 = vmatpush1.bf16.msra.mxu0 %v6872
    %7182 = vmatprep.mubr.bf16.mxu0 %v3135
    %7183 = vmatmul.mubr.bf16.gmra.mrb[0].mxu0 %v3134
    %v7184 = vpop.f32.mrb[0].mxu0
    %v7185 = vadd.f32 %v6253, %v7184
    %v7186 = vpop.f32.mrb[0].mxu0
    %v7187 = vadd.f32 %v6255, %v7186
    %v7188 = vpop.f32.mrb[0].mxu0
    %v7189 = vadd.f32 %v6257, %v7188
    %v7190 = vpop.f32.mrb[0].mxu0
    %v7191 = vadd.f32 %v6259, %v7190
    %7192 = vmatprep.mubr.bf16.mxu0 %v3137
    %7193 = vmatmul.mubr.bf16.gmra.mrb[0].mxu0 %v3136
    %v7194 = vpop.f32.mrb[0].mxu0
    %v7195 = vadd.f32 %v6263, %v7194
    %v7196 = vpop.f32.mrb[0].mxu0
    %v7197 = vadd.f32 %v6265, %v7196
    %v7198 = vpop.f32.mrb[0].mxu0
    %v7199 = vadd.f32 %v6267, %v7198
    %v7200 = vpop.f32.mrb[0].mxu0
    %v7201 = vadd.f32 %v6269, %v7200
    %7202 = vmatprep.mubr.bf16.mxu0 %v3139
    %7203 = vmatmul.mubr.bf16.gmra.mrb[0].mxu0 %v3138
    %v7204 = vpop.f32.mrb[0].mxu0
    %v7205 = vadd.f32 %v6273, %v7204
    %v7206 = vpop.f32.mrb[0].mxu0
    %v7207 = vadd.f32 %v6275, %v7206
    %v7208 = vpop.f32.mrb[0].mxu0
    %v7209 = vadd.f32 %v6277, %v7208
    %v7210 = vpop.f32.mrb[0].mxu0
    %v7211 = vadd.f32 %v6279, %v7210
    %7212 = vmatprep.mubr.bf16.mxu0 %v3141
    %7213 = vmatmul.mubr.bf16.gmra.mrb[0].mxu0 %v3140
    %v7214 = vpop.f32.mrb[0].mxu0
    %v7215 = vadd.f32 %v6283, %v7214
    %v7216 = vpop.f32.mrb[0].mxu0
    %v7217 = vadd.f32 %v6285, %v7216
    %v7218 = vpop.f32.mrb[0].mxu0
    %v7219 = vadd.f32 %v6287, %v7218
    %v7220 = vpop.f32.mrb[0].mxu0
    %v7221 = vadd.f32 %v6289, %v7220
    %7222 = vdwg.mxu0
    %7223 = vmatprep.subr.bf16.mxu0 %v6755
    %7224 = vmatpush1.bf16.msra.mxu0 %v6754
    %7225 = vmatprep.subr.bf16.mxu0 %v6763
    %7226 = vmatpush1.bf16.msra.mxu0 %v6762
    %7227 = vmatprep.subr.bf16.mxu0 %v6771
    %7228 = vmatpush1.bf16.msra.mxu0 %v6770
    %7229 = vmatprep.subr.bf16.mxu0 %v6779
    %7230 = vmatpush1.bf16.msra.mxu0 %v6778
    %7231 = vmatprep.subr.bf16.mxu0 %v6787
    %7232 = vmatpush1.bf16.msra.mxu0 %v6786
    %7233 = vmatprep.subr.bf16.mxu0 %v6795
    %7234 = vmatpush1.bf16.msra.mxu0 %v6794
    %7235 = vmatprep.subr.bf16.mxu0 %v6803
    %7236 = vmatpush1.bf16.msra.mxu0 %v6802
    %7237 = vmatprep.subr.bf16.mxu0 %v6811
    %7238 = vmatpush1.bf16.msra.mxu0 %v6810
    %7239 = vmatprep.subr.bf16.mxu0 %v6819
    %7240 = vmatpush1.bf16.msra.mxu0 %v6818
    %7241 = vmatprep.subr.bf16.mxu0 %v6827
    %7242 = vmatpush1.bf16.msra.mxu0 %v6826
    %7243 = vmatprep.subr.bf16.mxu0 %v6835
    %7244 = vmatpush1.bf16.msra.mxu0 %v6834
    %7245 = vmatprep.subr.bf16.mxu0 %v6843
    %7246 = vmatpush1.bf16.msra.mxu0 %v6842
    %7247 = vmatprep.subr.bf16.mxu0 %v6851
    %7248 = vmatpush1.bf16.msra.mxu0 %v6850
    %7249 = vmatprep.subr.bf16.mxu0 %v6859
    %7250 = vmatpush1.bf16.msra.mxu0 %v6858
    %7251 = vmatprep.subr.bf16.mxu0 %v6867
    %7252 = vmatpush1.bf16.msra.mxu0 %v6866
    %7253 = vmatprep.subr.bf16.mxu0 %v6875
    %7254 = vmatpush1.bf16.msra.mxu0 %v6874
    %7255 = vmatprep.mubr.bf16.mxu0 %v3135
    %7256 = vmatmul.mubr.bf16.gmra.mrb[0].mxu0 %v3134
    %v7257 = vpop.f32.mrb[0].mxu0
    %v7258 = vadd.f32 %v6326, %v7257
    %v7259 = vpop.f32.mrb[0].mxu0
    %v7260 = vadd.f32 %v6328, %v7259
    %v7261 = vpop.f32.mrb[0].mxu0
    %v7262 = vadd.f32 %v6330, %v7261
    %v7263 = vpop.f32.mrb[0].mxu0
    %v7264 = vadd.f32 %v6332, %v7263
    %7265 = vmatprep.mubr.bf16.mxu0 %v3137
    %7266 = vmatmul.mubr.bf16.gmra.mrb[0].mxu0 %v3136
    %v7267 = vpop.f32.mrb[0].mxu0
    %v7268 = vadd.f32 %v6336, %v7267
    %v7269 = vpop.f32.mrb[0].mxu0
    %v7270 = vadd.f32 %v6338, %v7269
    %v7271 = vpop.f32.mrb[0].mxu0
    %v7272 = vadd.f32 %v6340, %v7271
    %v7273 = vpop.f32.mrb[0].mxu0
    %v7274 = vadd.f32 %v6342, %v7273
    %7275 = vmatprep.mubr.bf16.mxu0 %v3139
    %7276 = vmatmul.mubr.bf16.gmra.mrb[0].mxu0 %v3138
    %v7277 = vpop.f32.mrb[0].mxu0
    %v7278 = vadd.f32 %v6346, %v7277
    %v7279 = vpop.f32.mrb[0].mxu0
    %v7280 = vadd.f32 %v6348, %v7279
    %v7281 = vpop.f32.mrb[0].mxu0
    %v7282 = vadd.f32 %v6350, %v7281
    %v7283 = vpop.f32.mrb[0].mxu0
    %v7284 = vadd.f32 %v6352, %v7283
    %7285 = vmatprep.mubr.bf16.mxu0 %v3141
    %7286 = vmatmul.mubr.bf16.gmra.mrb[0].mxu0 %v3140
    %v7287 = vpop.f32.mrb[0].mxu0
    %v7288 = vadd.f32 %v6356, %v7287
    %v7289 = vpop.f32.mrb[0].mxu0
    %v7290 = vadd.f32 %v6358, %v7289
    %v7291 = vpop.f32.mrb[0].mxu0
    %v7292 = vadd.f32 %v6360, %v7291
    %v7293 = vpop.f32.mrb[0].mxu0
    %v7294 = vadd.f32 %v6362, %v7293
    %7295 = vdwg.mxu0
    %v7296 = vxor.u32 %v7039, 2147483648
    %v7297 = vxor.u32 %v7041, 2147483648
    %v7298 = vxor.u32 %v7043, 2147483648
    %v7299 = vxor.u32 %v7045, 2147483648
    %v7300 = vxor.u32 %v7049, 2147483648
    %v7301 = vxor.u32 %v7051, 2147483648
    %v7302 = vxor.u32 %v7053, 2147483648
    %v7303 = vxor.u32 %v7055, 2147483648
    %v7304 = vxor.u32 %v7059, 2147483648
    %v7305 = vxor.u32 %v7061, 2147483648
    %v7306 = vxor.u32 %v7063, 2147483648
    %v7307 = vxor.u32 %v7065, 2147483648
    %v7308 = vxor.u32 %v7069, 2147483648
    %v7309 = vxor.u32 %v7071, 2147483648
    %v7310 = vxor.u32 %v7073, 2147483648
    %v7311 = vxor.u32 %v7075, 2147483648
    %v7312 = vmul.f32 %v7296, 1.442695
    %v7313 = vpow.pop %v7312
    %v7314 = vmul.f32 %v7297, 1.442695
    %v7315 = vpow.pop %v7314
    %v7316 = vmul.f32 %v7298, 1.442695
    %v7317 = vpow.pop %v7316
    %v7318 = vmul.f32 %v7299, 1.442695
    %v7319 = vpow.pop %v7318
    %v7320 = vmul.f32 %v7300, 1.442695
    %v7321 = vpow.pop %v7320
    %v7322 = vmul.f32 %v7301, 1.442695
    %v7323 = vpow.pop %v7322
    %v7324 = vmul.f32 %v7302, 1.442695
    %v7325 = vpow.pop %v7324
    %v7326 = vmul.f32 %v7303, 1.442695
    %v7327 = vpow.pop %v7326
    %v7328 = vmul.f32 %v7304, 1.442695
    %v7329 = vpow.pop %v7328
    %v7330 = vmul.f32 %v7305, 1.442695
    %v7331 = vpow.pop %v7330
    %v7332 = vmul.f32 %v7306, 1.442695
    %v7333 = vpow.pop %v7332
    %v7334 = vmul.f32 %v7307, 1.442695
    %v7335 = vpow.pop %v7334
    %v7336 = vmul.f32 %v7308, 1.442695
    %v7337 = vpow.pop %v7336
    %v7338 = vmul.f32 %v7309, 1.442695
    %v7339 = vpow.pop %v7338
    %v7340 = vmul.f32 %v7310, 1.442695
    %v7341 = vpow.pop %v7340
    %v7342 = vmul.f32 %v7311, 1.442695
    %v7343 = vpow.pop %v7342
    %v7344 = vadd.f32 %v7313, 1.0
    %v7345 = vadd.f32 %v7315, 1.0
    %v7346 = vadd.f32 %v7317, 1.0
    %v7347 = vadd.f32 %v7319, 1.0
    %v7348 = vadd.f32 %v7321, 1.0
    %v7349 = vadd.f32 %v7323, 1.0
    %v7350 = vadd.f32 %v7325, 1.0
    %v7351 = vadd.f32 %v7327, 1.0
    %v7352 = vadd.f32 %v7329, 1.0
    %v7353 = vadd.f32 %v7331, 1.0
    %v7354 = vadd.f32 %v7333, 1.0
    %v7355 = vadd.f32 %v7335, 1.0
    %v7356 = vadd.f32 %v7337, 1.0
    %v7357 = vadd.f32 %v7339, 1.0
    %v7358 = vadd.f32 %v7341, 1.0
    %v7359 = vadd.f32 %v7343, 1.0
    %v7360 = vrcp.pop %v7344
    %v7361 = vmul.f32 1.0, %v7360
    %v7362 = vrcp.pop %v7345
    %v7363 = vmul.f32 1.0, %v7362
    %v7364 = vrcp.pop %v7346
    %v7365 = vmul.f32 1.0, %v7364
    %v7366 = vrcp.pop %v7347
    %v7367 = vmul.f32 1.0, %v7366
    %v7368 = vrcp.pop %v7348
    %v7369 = vmul.f32 1.0, %v7368
    %v7370 = vrcp.pop %v7349
    %v7371 = vmul.f32 1.0, %v7370
    %v7372 = vrcp.pop %v7350
    %v7373 = vmul.f32 1.0, %v7372
    %v7374 = vrcp.pop %v7351
    %v7375 = vmul.f32 1.0, %v7374
    %v7376 = vrcp.pop %v7352
    %v7377 = vmul.f32 1.0, %v7376
    %v7378 = vrcp.pop %v7353
    %v7379 = vmul.f32 1.0, %v7378
    %v7380 = vrcp.pop %v7354
    %v7381 = vmul.f32 1.0, %v7380
    %v7382 = vrcp.pop %v7355
    %v7383 = vmul.f32 1.0, %v7382
    %v7384 = vrcp.pop %v7356
    %v7385 = vmul.f32 1.0, %v7384
    %v7386 = vrcp.pop %v7357
    %v7387 = vmul.f32 1.0, %v7386
    %v7388 = vrcp.pop %v7358
    %v7389 = vmul.f32 1.0, %v7388
    %v7390 = vrcp.pop %v7359
    %v7391 = vmul.f32 1.0, %v7390
    %v7392 = vxor.u32 %v7112, 2147483648
    %v7393 = vxor.u32 %v7114, 2147483648
    %v7394 = vxor.u32 %v7116, 2147483648
    %v7395 = vxor.u32 %v7118, 2147483648
    %v7396 = vxor.u32 %v7122, 2147483648
    %v7397 = vxor.u32 %v7124, 2147483648
    %v7398 = vxor.u32 %v7126, 2147483648
    %v7399 = vxor.u32 %v7128, 2147483648
    %v7400 = vxor.u32 %v7132, 2147483648
    %v7401 = vxor.u32 %v7134, 2147483648
    %v7402 = vxor.u32 %v7136, 2147483648
    %v7403 = vxor.u32 %v7138, 2147483648
    %v7404 = vxor.u32 %v7142, 2147483648
    %v7405 = vxor.u32 %v7144, 2147483648
    %v7406 = vxor.u32 %v7146, 2147483648
    %v7407 = vxor.u32 %v7148, 2147483648
    %v7408 = vmul.f32 %v7392, 1.442695
    %v7409 = vpow.pop %v7408
    %v7410 = vmul.f32 %v7393, 1.442695
    %v7411 = vpow.pop %v7410
    %v7412 = vmul.f32 %v7394, 1.442695
    %v7413 = vpow.pop %v7412
    %v7414 = vmul.f32 %v7395, 1.442695
    %v7415 = vpow.pop %v7414
    %v7416 = vmul.f32 %v7396, 1.442695
    %v7417 = vpow.pop %v7416
    %v7418 = vmul.f32 %v7397, 1.442695
    %v7419 = vpow.pop %v7418
    %v7420 = vmul.f32 %v7398, 1.442695
    %v7421 = vpow.pop %v7420
    %v7422 = vmul.f32 %v7399, 1.442695
    %v7423 = vpow.pop %v7422
    %v7424 = vmul.f32 %v7400, 1.442695
    %v7425 = vpow.pop %v7424
    %v7426 = vmul.f32 %v7401, 1.442695
    %v7427 = vpow.pop %v7426
    %v7428 = vmul.f32 %v7402, 1.442695
    %v7429 = vpow.pop %v7428
    %v7430 = vmul.f32 %v7403, 1.442695
    %v7431 = vpow.pop %v7430
    %v7432 = vmul.f32 %v7404, 1.442695
    %v7433 = vpow.pop %v7432
    %v7434 = vmul.f32 %v7405, 1.442695
    %v7435 = vpow.pop %v7434
    %v7436 = vmul.f32 %v7406, 1.442695
    %v7437 = vpow.pop %v7436
    %v7438 = vmul.f32 %v7407, 1.442695
    %v7439 = vpow.pop %v7438
    %v7440 = vadd.f32 %v7409, 1.0
    %v7441 = vadd.f32 %v7411, 1.0
    %v7442 = vadd.f32 %v7413, 1.0
    %v7443 = vadd.f32 %v7415, 1.0
    %v7444 = vadd.f32 %v7417, 1.0
    %v7445 = vadd.f32 %v7419, 1.0
    %v7446 = vadd.f32 %v7421, 1.0
    %v7447 = vadd.f32 %v7423, 1.0
    %v7448 = vadd.f32 %v7425, 1.0
    %v7449 = vadd.f32 %v7427, 1.0
    %v7450 = vadd.f32 %v7429, 1.0
    %v7451 = vadd.f32 %v7431, 1.0
    %v7452 = vadd.f32 %v7433, 1.0
    %v7453 = vadd.f32 %v7435, 1.0
    %v7454 = vadd.f32 %v7437, 1.0
    %v7455 = vadd.f32 %v7439, 1.0
    %v7456 = vrcp.pop %v7440
    %v7457 = vmul.f32 1.0, %v7456
    %v7458 = vrcp.pop %v7441
    %v7459 = vmul.f32 1.0, %v7458
    %v7460 = vrcp.pop %v7442
    %v7461 = vmul.f32 1.0, %v7460
    %v7462 = vrcp.pop %v7443
    %v7463 = vmul.f32 1.0, %v7462
    %v7464 = vrcp.pop %v7444
    %v7465 = vmul.f32 1.0, %v7464
    %v7466 = vrcp.pop %v7445
    %v7467 = vmul.f32 1.0, %v7466
    %v7468 = vrcp.pop %v7446
    %v7469 = vmul.f32 1.0, %v7468
    %v7470 = vrcp.pop %v7447
    %v7471 = vmul.f32 1.0, %v7470
    %v7472 = vrcp.pop %v7448
    %v7473 = vmul.f32 1.0, %v7472
    %v7474 = vrcp.pop %v7449
    %v7475 = vmul.f32 1.0, %v7474
    %v7476 = vrcp.pop %v7450
    %v7477 = vmul.f32 1.0, %v7476
    %v7478 = vrcp.pop %v7451
    %v7479 = vmul.f32 1.0, %v7478
    %v7480 = vrcp.pop %v7452
    %v7481 = vmul.f32 1.0, %v7480
    %v7482 = vrcp.pop %v7453
    %v7483 = vmul.f32 1.0, %v7482
    %v7484 = vrcp.pop %v7454
    %v7485 = vmul.f32 1.0, %v7484
    %v7486 = vrcp.pop %v7455
    %v7487 = vmul.f32 1.0, %v7486
    %v7488 = vtanh.pop %v7185
    %v7489 = vtanh.pop %v7187
    %v7490 = vtanh.pop %v7189
    %v7491 = vtanh.pop %v7191
    %v7492 = vtanh.pop %v7195
    %v7493 = vtanh.pop %v7197
    %v7494 = vtanh.pop %v7199
    %v7495 = vtanh.pop %v7201
    %v7496 = vtanh.pop %v7205
    %v7497 = vtanh.pop %v7207
    %v7498 = vtanh.pop %v7209
    %v7499 = vtanh.pop %v7211
    %v7500 = vtanh.pop %v7215
    %v7501 = vtanh.pop %v7217
    %v7502 = vtanh.pop %v7219
    %v7503 = vtanh.pop %v7221
    %v7504 = vxor.u32 %v7258, 2147483648
    %v7505 = vxor.u32 %v7260, 2147483648
    %v7506 = vxor.u32 %v7262, 2147483648
    %v7507 = vxor.u32 %v7264, 2147483648
    %v7508 = vxor.u32 %v7268, 2147483648
    %v7509 = vxor.u32 %v7270, 2147483648
    %v7510 = vxor.u32 %v7272, 2147483648
    %v7511 = vxor.u32 %v7274, 2147483648
    %v7512 = vxor.u32 %v7278, 2147483648
    %v7513 = vxor.u32 %v7280, 2147483648
    %v7514 = vxor.u32 %v7282, 2147483648
    %v7515 = vxor.u32 %v7284, 2147483648
    %v7516 = vxor.u32 %v7288, 2147483648
    %v7517 = vxor.u32 %v7290, 2147483648
    %v7518 = vxor.u32 %v7292, 2147483648
    %v7519 = vxor.u32 %v7294, 2147483648
    %v7520 = vmul.f32 %v7504, 1.442695
    %v7521 = vpow.pop %v7520
    %v7522 = vmul.f32 %v7505, 1.442695
    %v7523 = vpow.pop %v7522
    %v7524 = vmul.f32 %v7506, 1.442695
    %v7525 = vpow.pop %v7524
    %v7526 = vmul.f32 %v7507, 1.442695
    %v7527 = vpow.pop %v7526
    %v7528 = vmul.f32 %v7508, 1.442695
    %v7529 = vpow.pop %v7528
    %v7530 = vmul.f32 %v7509, 1.442695
    %v7531 = vpow.pop %v7530
    %v7532 = vmul.f32 %v7510, 1.442695
    %v7533 = vpow.pop %v7532
    %v7534 = vmul.f32 %v7511, 1.442695
    %v7535 = vpow.pop %v7534
    %v7536 = vmul.f32 %v7512, 1.442695
    %v7537 = vpow.pop %v7536
    %v7538 = vmul.f32 %v7513, 1.442695
    %v7539 = vpow.pop %v7538
    %v7540 = vmul.f32 %v7514, 1.442695
    %v7541 = vpow.pop %v7540
    %v7542 = vmul.f32 %v7515, 1.442695
    %v7543 = vpow.pop %v7542
    %v7544 = vmul.f32 %v7516, 1.442695
    %v7545 = vpow.pop %v7544
    %v7546 = vmul.f32 %v7517, 1.442695
    %v7547 = vpow.pop %v7546
    %v7548 = vmul.f32 %v7518, 1.442695
    %v7549 = vpow.pop %v7548
    %v7550 = vmul.f32 %v7519, 1.442695
    %v7551 = vpow.pop %v7550
    %v7552 = vadd.f32 %v7521, 1.0
    %v7553 = vadd.f32 %v7523, 1.0
    %v7554 = vadd.f32 %v7525, 1.0
    %v7555 = vadd.f32 %v7527, 1.0
    %v7556 = vadd.f32 %v7529, 1.0
    %v7557 = vadd.f32 %v7531, 1.0
    %v7558 = vadd.f32 %v7533, 1.0
    %v7559 = vadd.f32 %v7535, 1.0
    %v7560 = vadd.f32 %v7537, 1.0
    %v7561 = vadd.f32 %v7539, 1.0
    %v7562 = vadd.f32 %v7541, 1.0
    %v7563 = vadd.f32 %v7543, 1.0
    %v7564 = vadd.f32 %v7545, 1.0
    %v7565 = vadd.f32 %v7547, 1.0
    %v7566 = vadd.f32 %v7549, 1.0
    %v7567 = vadd.f32 %v7551, 1.0
    %v7568 = vrcp.pop %v7552
    %v7569 = vmul.f32 1.0, %v7568
    %v7570 = vrcp.pop %v7553
    %v7571 = vmul.f32 1.0, %v7570
    %v7572 = vrcp.pop %v7554
    %v7573 = vmul.f32 1.0, %v7572
    %v7574 = vrcp.pop %v7555
    %v7575 = vmul.f32 1.0, %v7574
    %v7576 = vrcp.pop %v7556
    %v7577 = vmul.f32 1.0, %v7576
    %v7578 = vrcp.pop %v7557
    %v7579 = vmul.f32 1.0, %v7578
    %v7580 = vrcp.pop %v7558
    %v7581 = vmul.f32 1.0, %v7580
    %v7582 = vrcp.pop %v7559
    %v7583 = vmul.f32 1.0, %v7582
    %v7584 = vrcp.pop %v7560
    %v7585 = vmul.f32 1.0, %v7584
    %v7586 = vrcp.pop %v7561
    %v7587 = vmul.f32 1.0, %v7586
    %v7588 = vrcp.pop %v7562
    %v7589 = vmul.f32 1.0, %v7588
    %v7590 = vrcp.pop %v7563
    %v7591 = vmul.f32 1.0, %v7590
    %v7592 = vrcp.pop %v7564
    %v7593 = vmul.f32 1.0, %v7592
    %v7594 = vrcp.pop %v7565
    %v7595 = vmul.f32 1.0, %v7594
    %v7596 = vrcp.pop %v7566
    %v7597 = vmul.f32 1.0, %v7596
    %v7598 = vrcp.pop %v7567
    %v7599 = vmul.f32 1.0, %v7598
    %v7600 = vmul.f32 %v7457, %v5247
    %v7601 = vmul.f32 %v7459, %v5248
    %v7602 = vmul.f32 %v7461, %v5249
    %v7603 = vmul.f32 %v7463, %v5250
    %v7604 = vmul.f32 %v7465, %v5251
    %v7605 = vmul.f32 %v7467, %v5252
    %v7606 = vmul.f32 %v7469, %v5253
    %v7607 = vmul.f32 %v7471, %v5254
    %v7608 = vmul.f32 %v7473, %v5255
    %v7609 = vmul.f32 %v7475, %v5256
    %v7610 = vmul.f32 %v7477, %v5257
    %v7611 = vmul.f32 %v7479, %v5258
    %v7612 = vmul.f32 %v7481, %v5259
    %v7613 = vmul.f32 %v7483, %v5260
    %v7614 = vmul.f32 %v7485, %v5261
    %v7615 = vmul.f32 %v7487, %v5262
    %v7616 = vmul.f32 %v7361, %v7488
    %v7617 = vmul.f32 %v7363, %v7489
    %v7618 = vmul.f32 %v7365, %v7490
    %v7619 = vmul.f32 %v7367, %v7491
    %v7620 = vmul.f32 %v7369, %v7492
    %v7621 = vmul.f32 %v7371, %v7493
    %v7622 = vmul.f32 %v7373, %v7494
    %v7623 = vmul.f32 %v7375, %v7495
    %v7624 = vmul.f32 %v7377, %v7496
    %v7625 = vmul.f32 %v7379, %v7497
    %v7626 = vmul.f32 %v7381, %v7498
    %v7627 = vmul.f32 %v7383, %v7499
    %v7628 = vmul.f32 %v7385, %v7500
    %v7629 = vmul.f32 %v7387, %v7501
    %v7630 = vmul.f32 %v7389, %v7502
    %v7631 = vmul.f32 %v7391, %v7503
    %v7632 = vadd.f32 %v7600, %v7616
    %v7633 = vadd.f32 %v7601, %v7617
    %v7634 = vadd.f32 %v7602, %v7618
    %v7635 = vadd.f32 %v7603, %v7619
    %v7636 = vadd.f32 %v7604, %v7620
    %v7637 = vadd.f32 %v7605, %v7621
    %v7638 = vadd.f32 %v7606, %v7622
    %v7639 = vadd.f32 %v7607, %v7623
    %v7640 = vadd.f32 %v7608, %v7624
    %v7641 = vadd.f32 %v7609, %v7625
    %v7642 = vadd.f32 %v7610, %v7626
    %v7643 = vadd.f32 %v7611, %v7627
    %v7644 = vadd.f32 %v7612, %v7628
    %v7645 = vadd.f32 %v7613, %v7629
    %v7646 = vadd.f32 %v7614, %v7630
    %v7647 = vadd.f32 %v7615, %v7631
    %v7648 = vtanh.pop %v7632
    %v7649 = vtanh.pop %v7633
    %v7650 = vtanh.pop %v7634
    %v7651 = vtanh.pop %v7635
    %v7652 = vtanh.pop %v7636
    %v7653 = vtanh.pop %v7637
    %v7654 = vtanh.pop %v7638
    %v7655 = vtanh.pop %v7639
    %v7656 = vtanh.pop %v7640
    %v7657 = vtanh.pop %v7641
    %v7658 = vtanh.pop %v7642
    %v7659 = vtanh.pop %v7643
    %v7660 = vtanh.pop %v7644
    %v7661 = vtanh.pop %v7645
    %v7662 = vtanh.pop %v7646
    %v7663 = vtanh.pop %v7647
    %v7664 = vmul.f32 %v7569, %v7648
    %v7665 = vmul.f32 %v7571, %v7649
    %v7666 = vmul.f32 %v7573, %v7650
    %v7667 = vmul.f32 %v7575, %v7651
    %v7668 = vmul.f32 %v7577, %v7652
    %v7669 = vmul.f32 %v7579, %v7653
    %v7670 = vmul.f32 %v7581, %v7654
    %v7671 = vmul.f32 %v7583, %v7655
    %v7672 = vmul.f32 %v7585, %v7656
    %v7673 = vmul.f32 %v7587, %v7657
    %v7674 = vmul.f32 %v7589, %v7658
    %v7675 = vmul.f32 %v7591, %v7659
    %v7676 = vmul.f32 %v7593, %v7660
    %v7677 = vmul.f32 %v7595, %v7661
    %v7678 = vmul.f32 %v7597, %v7662
    %v7679 = vmul.f32 %v7599, %v7663
    %v7680 = vpack.c.bf16 %v7666, %v7664
    %v7681 = vpack.c.bf16 %v7667, %v7665
    %v7682 = vpack.c.bf16 %v7670, %v7668
    %v7683 = vpack.c.bf16 %v7671, %v7669
    %v7684 = vpack.c.bf16 %v7674, %v7672
    %v7685 = vpack.c.bf16 %v7675, %v7673
    %v7686 = vpack.c.bf16 %v7678, %v7676
    %v7687 = vpack.c.bf16 %v7679, %v7677
    %s7688 = scalar_lea.vmem %s9, 2048
    %v7689 = vld [vmem:[%s7688] sm:$0xff]
    %v7690 = vld [vmem:[%s7688 + $0x8] sm:$0xff]
    %v7691 = vld [vmem:[%s7688 + $0x10] sm:$0xff]
    %v7692 = vld [vmem:[%s7688 + $0x18] sm:$0xff]
    %v7693 = vld [vmem:[%s7688 + $0x20] sm:$0xff]
    %v7694 = vld [vmem:[%s7688 + $0x28] sm:$0xff]
    %v7695 = vld [vmem:[%s7688 + $0x30] sm:$0xff]
    %v7696 = vld [vmem:[%s7688 + $0x38] sm:$0xff]
    %v7697 = vld [vmem:[%s7688 + $0x40] sm:$0xff]
    %v7698 = vld [vmem:[%s7688 + $0x48] sm:$0xff]
    %v7699 = vld [vmem:[%s7688 + $0x50] sm:$0xff]
    %v7700 = vld [vmem:[%s7688 + $0x58] sm:$0xff]
    %v7701 = vld [vmem:[%s7688 + $0x60] sm:$0xff]
    %v7702 = vld [vmem:[%s7688 + $0x68] sm:$0xff]
    %v7703 = vld [vmem:[%s7688 + $0x70] sm:$0xff]
    %v7704 = vld [vmem:[%s7688 + $0x78] sm:$0xff]
    %v7705 = vld [vmem:[%s7688 + $0x80] sm:$0xff]
    %v7706 = vld [vmem:[%s7688 + $0x88] sm:$0xff]
    %v7707 = vld [vmem:[%s7688 + $0x90] sm:$0xff]
    %v7708 = vld [vmem:[%s7688 + $0x98] sm:$0xff]
    %v7709 = vld [vmem:[%s7688 + $0xa0] sm:$0xff]
    %v7710 = vld [vmem:[%s7688 + $0xa8] sm:$0xff]
    %v7711 = vld [vmem:[%s7688 + $0xb0] sm:$0xff]
    %v7712 = vld [vmem:[%s7688 + $0xb8] sm:$0xff]
    %v7713 = vld [vmem:[%s7688 + $0xc0] sm:$0xff]
    %v7714 = vld [vmem:[%s7688 + $0xc8] sm:$0xff]
    %v7715 = vld [vmem:[%s7688 + $0xd0] sm:$0xff]
    %v7716 = vld [vmem:[%s7688 + $0xd8] sm:$0xff]
    %v7717 = vld [vmem:[%s7688 + $0xe0] sm:$0xff]
    %v7718 = vld [vmem:[%s7688 + $0xe8] sm:$0xff]
    %v7719 = vld [vmem:[%s7688 + $0xf0] sm:$0xff]
    %v7720 = vld [vmem:[%s7688 + $0xf8] sm:$0xff]
    %v7721 = vld [vmem:[%s7688 + $0x100] sm:$0xff]
    %v7722 = vld [vmem:[%s7688 + $0x108] sm:$0xff]
    %v7723 = vld [vmem:[%s7688 + $0x110] sm:$0xff]
    %v7724 = vld [vmem:[%s7688 + $0x118] sm:$0xff]
    %v7725 = vld [vmem:[%s7688 + $0x120] sm:$0xff]
    %v7726 = vld [vmem:[%s7688 + $0x128] sm:$0xff]
    %v7727 = vld [vmem:[%s7688 + $0x130] sm:$0xff]
    %v7728 = vld [vmem:[%s7688 + $0x138] sm:$0xff]
    %v7729 = vld [vmem:[%s7688 + $0x140] sm:$0xff]
    %v7730 = vld [vmem:[%s7688 + $0x148] sm:$0xff]
    %v7731 = vld [vmem:[%s7688 + $0x150] sm:$0xff]
    %v7732 = vld [vmem:[%s7688 + $0x158] sm:$0xff]
    %v7733 = vld [vmem:[%s7688 + $0x160] sm:$0xff]
    %v7734 = vld [vmem:[%s7688 + $0x168] sm:$0xff]
    %v7735 = vld [vmem:[%s7688 + $0x170] sm:$0xff]
    %v7736 = vld [vmem:[%s7688 + $0x178] sm:$0xff]
    %v7737 = vld [vmem:[%s7688 + $0x180] sm:$0xff]
    %v7738 = vld [vmem:[%s7688 + $0x188] sm:$0xff]
    %v7739 = vld [vmem:[%s7688 + $0x190] sm:$0xff]
    %v7740 = vld [vmem:[%s7688 + $0x198] sm:$0xff]
    %v7741 = vld [vmem:[%s7688 + $0x1a0] sm:$0xff]
    %v7742 = vld [vmem:[%s7688 + $0x1a8] sm:$0xff]
    %v7743 = vld [vmem:[%s7688 + $0x1b0] sm:$0xff]
    %v7744 = vld [vmem:[%s7688 + $0x1b8] sm:$0xff]
    %v7745 = vld [vmem:[%s7688 + $0x1c0] sm:$0xff]
    %v7746 = vld [vmem:[%s7688 + $0x1c8] sm:$0xff]
    %v7747 = vld [vmem:[%s7688 + $0x1d0] sm:$0xff]
    %v7748 = vld [vmem:[%s7688 + $0x1d8] sm:$0xff]
    %v7749 = vld [vmem:[%s7688 + $0x1e0] sm:$0xff]
    %v7750 = vld [vmem:[%s7688 + $0x1e8] sm:$0xff]
    %v7751 = vld [vmem:[%s7688 + $0x1f0] sm:$0xff]
    %v7752 = vld [vmem:[%s7688 + $0x1f8] sm:$0xff]
    %v7753 = vld [vmem:[%s7688 + $0x200] sm:$0xff]
    %v7754 = vld [vmem:[%s7688 + $0x208] sm:$0xff]
    %v7755 = vld [vmem:[%s7688 + $0x210] sm:$0xff]
    %v7756 = vld [vmem:[%s7688 + $0x218] sm:$0xff]
    %v7757 = vld [vmem:[%s7688 + $0x220] sm:$0xff]
    %v7758 = vld [vmem:[%s7688 + $0x228] sm:$0xff]
    %v7759 = vld [vmem:[%s7688 + $0x230] sm:$0xff]
    %v7760 = vld [vmem:[%s7688 + $0x238] sm:$0xff]
    %v7761 = vld [vmem:[%s7688 + $0x240] sm:$0xff]
    %v7762 = vld [vmem:[%s7688 + $0x248] sm:$0xff]
    %v7763 = vld [vmem:[%s7688 + $0x250] sm:$0xff]
    %v7764 = vld [vmem:[%s7688 + $0x258] sm:$0xff]
    %v7765 = vld [vmem:[%s7688 + $0x260] sm:$0xff]
    %v7766 = vld [vmem:[%s7688 + $0x268] sm:$0xff]
    %v7767 = vld [vmem:[%s7688 + $0x270] sm:$0xff]
    %v7768 = vld [vmem:[%s7688 + $0x278] sm:$0xff]
    %v7769 = vld [vmem:[%s7688 + $0x280] sm:$0xff]
    %v7770 = vld [vmem:[%s7688 + $0x288] sm:$0xff]
    %v7771 = vld [vmem:[%s7688 + $0x290] sm:$0xff]
    %v7772 = vld [vmem:[%s7688 + $0x298] sm:$0xff]
    %v7773 = vld [vmem:[%s7688 + $0x2a0] sm:$0xff]
    %v7774 = vld [vmem:[%s7688 + $0x2a8] sm:$0xff]
    %v7775 = vld [vmem:[%s7688 + $0x2b0] sm:$0xff]
    %v7776 = vld [vmem:[%s7688 + $0x2b8] sm:$0xff]
    %v7777 = vld [vmem:[%s7688 + $0x2c0] sm:$0xff]
    %v7778 = vld [vmem:[%s7688 + $0x2c8] sm:$0xff]
    %v7779 = vld [vmem:[%s7688 + $0x2d0] sm:$0xff]
    %v7780 = vld [vmem:[%s7688 + $0x2d8] sm:$0xff]
    %v7781 = vld [vmem:[%s7688 + $0x2e0] sm:$0xff]
    %v7782 = vld [vmem:[%s7688 + $0x2e8] sm:$0xff]
    %v7783 = vld [vmem:[%s7688 + $0x2f0] sm:$0xff]
    %v7784 = vld [vmem:[%s7688 + $0x2f8] sm:$0xff]
    %v7785 = vld [vmem:[%s7688 + $0x300] sm:$0xff]
    %v7786 = vld [vmem:[%s7688 + $0x308] sm:$0xff]
    %v7787 = vld [vmem:[%s7688 + $0x310] sm:$0xff]
    %v7788 = vld [vmem:[%s7688 + $0x318] sm:$0xff]
    %v7789 = vld [vmem:[%s7688 + $0x320] sm:$0xff]
    %v7790 = vld [vmem:[%s7688 + $0x328] sm:$0xff]
    %v7791 = vld [vmem:[%s7688 + $0x330] sm:$0xff]
    %v7792 = vld [vmem:[%s7688 + $0x338] sm:$0xff]
    %v7793 = vld [vmem:[%s7688 + $0x340] sm:$0xff]
    %v7794 = vld [vmem:[%s7688 + $0x348] sm:$0xff]
    %v7795 = vld [vmem:[%s7688 + $0x350] sm:$0xff]
    %v7796 = vld [vmem:[%s7688 + $0x358] sm:$0xff]
    %v7797 = vld [vmem:[%s7688 + $0x360] sm:$0xff]
    %v7798 = vld [vmem:[%s7688 + $0x368] sm:$0xff]
    %v7799 = vld [vmem:[%s7688 + $0x370] sm:$0xff]
    %v7800 = vld [vmem:[%s7688 + $0x378] sm:$0xff]
    %v7801 = vld [vmem:[%s7688 + $0x380] sm:$0xff]
    %v7802 = vld [vmem:[%s7688 + $0x388] sm:$0xff]
    %v7803 = vld [vmem:[%s7688 + $0x390] sm:$0xff]
    %v7804 = vld [vmem:[%s7688 + $0x398] sm:$0xff]
    %v7805 = vld [vmem:[%s7688 + $0x3a0] sm:$0xff]
    %v7806 = vld [vmem:[%s7688 + $0x3a8] sm:$0xff]
    %v7807 = vld [vmem:[%s7688 + $0x3b0] sm:$0xff]
    %v7808 = vld [vmem:[%s7688 + $0x3b8] sm:$0xff]
    %v7809 = vld [vmem:[%s7688 + $0x3c0] sm:$0xff]
    %v7810 = vld [vmem:[%s7688 + $0x3c8] sm:$0xff]
    %v7811 = vld [vmem:[%s7688 + $0x3d0] sm:$0xff]
    %v7812 = vld [vmem:[%s7688 + $0x3d8] sm:$0xff]
    %v7813 = vld [vmem:[%s7688 + $0x3e0] sm:$0xff]
    %v7814 = vld [vmem:[%s7688 + $0x3e8] sm:$0xff]
    %v7815 = vld [vmem:[%s7688 + $0x3f0] sm:$0xff]
    %v7816 = vld [vmem:[%s7688 + $0x3f8] sm:$0xff]
    %v7945 = vunpack.c.l.b16 %v7689
    %v7946 = vunpack.c.h.b16 %v7689
    %v7947 = vunpack.c.l.b16 %v7690
    %v7948 = vunpack.c.h.b16 %v7690
    %v7949 = vunpack.c.l.b16 %v7691
    %v7950 = vunpack.c.h.b16 %v7691
    %v7951 = vunpack.c.l.b16 %v7692
    %v7952 = vunpack.c.h.b16 %v7692
    %v7953 = vunpack.c.l.b16 %v7693
    %v7954 = vunpack.c.h.b16 %v7693
    %v7955 = vunpack.c.l.b16 %v7694
    %v7956 = vunpack.c.h.b16 %v7694
    %v7957 = vunpack.c.l.b16 %v7695
    %v7958 = vunpack.c.h.b16 %v7695
    %v7959 = vunpack.c.l.b16 %v7696
    %v7960 = vunpack.c.h.b16 %v7696
    %v7961 = vunpack.c.l.b16 %v7697
    %v7962 = vunpack.c.h.b16 %v7697
    %v7963 = vunpack.c.l.b16 %v7698
    %v7964 = vunpack.c.h.b16 %v7698
    %v7965 = vunpack.c.l.b16 %v7699
    %v7966 = vunpack.c.h.b16 %v7699
    %v7967 = vunpack.c.l.b16 %v7700
    %v7968 = vunpack.c.h.b16 %v7700
    %v7969 = vunpack.c.l.b16 %v7701
    %v7970 = vunpack.c.h.b16 %v7701
    %v7971 = vunpack.c.l.b16 %v7702
    %v7972 = vunpack.c.h.b16 %v7702
    %v7973 = vunpack.c.l.b16 %v7703
    %v7974 = vunpack.c.h.b16 %v7703
    %v7975 = vunpack.c.l.b16 %v7704
    %v7976 = vunpack.c.h.b16 %v7704
    %v7977 = vunpack.c.l.b16 %v7705
    %v7978 = vunpack.c.h.b16 %v7705
    %v7979 = vunpack.c.l.b16 %v7706
    %v7980 = vunpack.c.h.b16 %v7706
    %v7981 = vunpack.c.l.b16 %v7707
    %v7982 = vunpack.c.h.b16 %v7707
    %v7983 = vunpack.c.l.b16 %v7708
    %v7984 = vunpack.c.h.b16 %v7708
    %v7985 = vunpack.c.l.b16 %v7709
    %v7986 = vunpack.c.h.b16 %v7709
    %v7987 = vunpack.c.l.b16 %v7710
    %v7988 = vunpack.c.h.b16 %v7710
    %v7989 = vunpack.c.l.b16 %v7711
    %v7990 = vunpack.c.h.b16 %v7711
    %v7991 = vunpack.c.l.b16 %v7712
    %v7992 = vunpack.c.h.b16 %v7712
    %v7993 = vunpack.c.l.b16 %v7713
    %v7994 = vunpack.c.h.b16 %v7713
    %v7995 = vunpack.c.l.b16 %v7714
    %v7996 = vunpack.c.h.b16 %v7714
    %v7997 = vunpack.c.l.b16 %v7715
    %v7998 = vunpack.c.h.b16 %v7715
    %v7999 = vunpack.c.l.b16 %v7716
    %v8000 = vunpack.c.h.b16 %v7716
    %v8001 = vunpack.c.l.b16 %v7717
    %v8002 = vunpack.c.h.b16 %v7717
    %v8003 = vunpack.c.l.b16 %v7718
    %v8004 = vunpack.c.h.b16 %v7718
    %v8005 = vunpack.c.l.b16 %v7719
    %v8006 = vunpack.c.h.b16 %v7719
    %v8007 = vunpack.c.l.b16 %v7720
    %v8008 = vunpack.c.h.b16 %v7720
    %v8009 = vunpack.c.l.b16 %v7721
    %v8010 = vunpack.c.h.b16 %v7721
    %v8011 = vunpack.c.l.b16 %v7722
    %v8012 = vunpack.c.h.b16 %v7722
    %v8013 = vunpack.c.l.b16 %v7723
    %v8014 = vunpack.c.h.b16 %v7723
    %v8015 = vunpack.c.l.b16 %v7724
    %v8016 = vunpack.c.h.b16 %v7724
    %v8017 = vunpack.c.l.b16 %v7725
    %v8018 = vunpack.c.h.b16 %v7725
    %v8019 = vunpack.c.l.b16 %v7726
    %v8020 = vunpack.c.h.b16 %v7726
    %v8021 = vunpack.c.l.b16 %v7727
    %v8022 = vunpack.c.h.b16 %v7727
    %v8023 = vunpack.c.l.b16 %v7728
    %v8024 = vunpack.c.h.b16 %v7728
    %v8025 = vunpack.c.l.b16 %v7729
    %v8026 = vunpack.c.h.b16 %v7729
    %v8027 = vunpack.c.l.b16 %v7730
    %v8028 = vunpack.c.h.b16 %v7730
    %v8029 = vunpack.c.l.b16 %v7731
    %v8030 = vunpack.c.h.b16 %v7731
    %v8031 = vunpack.c.l.b16 %v7732
    %v8032 = vunpack.c.h.b16 %v7732
    %v8033 = vunpack.c.l.b16 %v7733
    %v8034 = vunpack.c.h.b16 %v7733
    %v8035 = vunpack.c.l.b16 %v7734
    %v8036 = vunpack.c.h.b16 %v7734
    %v8037 = vunpack.c.l.b16 %v7735
    %v8038 = vunpack.c.h.b16 %v7735
    %v8039 = vunpack.c.l.b16 %v7736
    %v8040 = vunpack.c.h.b16 %v7736
    %v8041 = vunpack.c.l.b16 %v7737
    %v8042 = vunpack.c.h.b16 %v7737
    %v8043 = vunpack.c.l.b16 %v7738
    %v8044 = vunpack.c.h.b16 %v7738
    %v8045 = vunpack.c.l.b16 %v7739
    %v8046 = vunpack.c.h.b16 %v7739
    %v8047 = vunpack.c.l.b16 %v7740
    %v8048 = vunpack.c.h.b16 %v7740
    %v8049 = vunpack.c.l.b16 %v7741
    %v8050 = vunpack.c.h.b16 %v7741
    %v8051 = vunpack.c.l.b16 %v7742
    %v8052 = vunpack.c.h.b16 %v7742
    %v8053 = vunpack.c.l.b16 %v7743
    %v8054 = vunpack.c.h.b16 %v7743
    %v8055 = vunpack.c.l.b16 %v7744
    %v8056 = vunpack.c.h.b16 %v7744
    %v8057 = vunpack.c.l.b16 %v7745
    %v8058 = vunpack.c.h.b16 %v7745
    %v8059 = vunpack.c.l.b16 %v7746
    %v8060 = vunpack.c.h.b16 %v7746
    %v8061 = vunpack.c.l.b16 %v7747
    %v8062 = vunpack.c.h.b16 %v7747
    %v8063 = vunpack.c.l.b16 %v7748
    %v8064 = vunpack.c.h.b16 %v7748
    %v8065 = vunpack.c.l.b16 %v7749
    %v8066 = vunpack.c.h.b16 %v7749
    %v8067 = vunpack.c.l.b16 %v7750
    %v8068 = vunpack.c.h.b16 %v7750
    %v8069 = vunpack.c.l.b16 %v7751
    %v8070 = vunpack.c.h.b16 %v7751
    %v8071 = vunpack.c.l.b16 %v7752
    %v8072 = vunpack.c.h.b16 %v7752
    %v8073 = vunpack.c.l.b16 %v7753
    %v8074 = vunpack.c.h.b16 %v7753
    %v8075 = vunpack.c.l.b16 %v7754
    %v8076 = vunpack.c.h.b16 %v7754
    %v8077 = vunpack.c.l.b16 %v7755
    %v8078 = vunpack.c.h.b16 %v7755
    %v8079 = vunpack.c.l.b16 %v7756
    %v8080 = vunpack.c.h.b16 %v7756
    %v8081 = vunpack.c.l.b16 %v7757
    %v8082 = vunpack.c.h.b16 %v7757
    %v8083 = vunpack.c.l.b16 %v7758
    %v8084 = vunpack.c.h.b16 %v7758
    %v8085 = vunpack.c.l.b16 %v7759
    %v8086 = vunpack.c.h.b16 %v7759
    %v8087 = vunpack.c.l.b16 %v7760
    %v8088 = vunpack.c.h.b16 %v7760
    %v8089 = vunpack.c.l.b16 %v7761
    %v8090 = vunpack.c.h.b16 %v7761
    %v8091 = vunpack.c.l.b16 %v7762
    %v8092 = vunpack.c.h.b16 %v7762
    %v8093 = vunpack.c.l.b16 %v7763
    %v8094 = vunpack.c.h.b16 %v7763
    %v8095 = vunpack.c.l.b16 %v7764
    %v8096 = vunpack.c.h.b16 %v7764
    %v8097 = vunpack.c.l.b16 %v7765
    %v8098 = vunpack.c.h.b16 %v7765
    %v8099 = vunpack.c.l.b16 %v7766
    %v8100 = vunpack.c.h.b16 %v7766
    %v8101 = vunpack.c.l.b16 %v7767
    %v8102 = vunpack.c.h.b16 %v7767
    %v8103 = vunpack.c.l.b16 %v7768
    %v8104 = vunpack.c.h.b16 %v7768
    %v8105 = vunpack.c.l.b16 %v7769
    %v8106 = vunpack.c.h.b16 %v7769
    %v8107 = vunpack.c.l.b16 %v7770
    %v8108 = vunpack.c.h.b16 %v7770
    %v8109 = vunpack.c.l.b16 %v7771
    %v8110 = vunpack.c.h.b16 %v7771
    %v8111 = vunpack.c.l.b16 %v7772
    %v8112 = vunpack.c.h.b16 %v7772
    %v8113 = vunpack.c.l.b16 %v7773
    %v8114 = vunpack.c.h.b16 %v7773
    %v8115 = vunpack.c.l.b16 %v7774
    %v8116 = vunpack.c.h.b16 %v7774
    %v8117 = vunpack.c.l.b16 %v7775
    %v8118 = vunpack.c.h.b16 %v7775
    %v8119 = vunpack.c.l.b16 %v7776
    %v8120 = vunpack.c.h.b16 %v7776
    %v8121 = vunpack.c.l.b16 %v7777
    %v8122 = vunpack.c.h.b16 %v7777
    %v8123 = vunpack.c.l.b16 %v7778
    %v8124 = vunpack.c.h.b16 %v7778
    %v8125 = vunpack.c.l.b16 %v7779
    %v8126 = vunpack.c.h.b16 %v7779
    %v8127 = vunpack.c.l.b16 %v7780
    %v8128 = vunpack.c.h.b16 %v7780
    %v8129 = vunpack.c.l.b16 %v7781
    %v8130 = vunpack.c.h.b16 %v7781
    %v8131 = vunpack.c.l.b16 %v7782
    %v8132 = vunpack.c.h.b16 %v7782
    %v8133 = vunpack.c.l.b16 %v7783
    %v8134 = vunpack.c.h.b16 %v7783
    %v8135 = vunpack.c.l.b16 %v7784
    %v8136 = vunpack.c.h.b16 %v7784
    %v8137 = vunpack.c.l.b16 %v7785
    %v8138 = vunpack.c.h.b16 %v7785
    %v8139 = vunpack.c.l.b16 %v7786
    %v8140 = vunpack.c.h.b16 %v7786
    %v8141 = vunpack.c.l.b16 %v7787
    %v8142 = vunpack.c.h.b16 %v7787
    %v8143 = vunpack.c.l.b16 %v7788
    %v8144 = vunpack.c.h.b16 %v7788
    %v8145 = vunpack.c.l.b16 %v7789
    %v8146 = vunpack.c.h.b16 %v7789
    %v8147 = vunpack.c.l.b16 %v7790
    %v8148 = vunpack.c.h.b16 %v7790
    %v8149 = vunpack.c.l.b16 %v7791
    %v8150 = vunpack.c.h.b16 %v7791
    %v8151 = vunpack.c.l.b16 %v7792
    %v8152 = vunpack.c.h.b16 %v7792
    %v8153 = vunpack.c.l.b16 %v7793
    %v8154 = vunpack.c.h.b16 %v7793
    %v8155 = vunpack.c.l.b16 %v7794
    %v8156 = vunpack.c.h.b16 %v7794
    %v8157 = vunpack.c.l.b16 %v7795
    %v8158 = vunpack.c.h.b16 %v7795
    %v8159 = vunpack.c.l.b16 %v7796
    %v8160 = vunpack.c.h.b16 %v7796
    %v8161 = vunpack.c.l.b16 %v7797
    %v8162 = vunpack.c.h.b16 %v7797
    %v8163 = vunpack.c.l.b16 %v7798
    %v8164 = vunpack.c.h.b16 %v7798
    %v8165 = vunpack.c.l.b16 %v7799
    %v8166 = vunpack.c.h.b16 %v7799
    %v8167 = vunpack.c.l.b16 %v7800
    %v8168 = vunpack.c.h.b16 %v7800
    %v8169 = vunpack.c.l.b16 %v7801
    %v8170 = vunpack.c.h.b16 %v7801
    %v8171 = vunpack.c.l.b16 %v7802
    %v8172 = vunpack.c.h.b16 %v7802
    %v8173 = vunpack.c.l.b16 %v7803
    %v8174 = vunpack.c.h.b16 %v7803
    %v8175 = vunpack.c.l.b16 %v7804
    %v8176 = vunpack.c.h.b16 %v7804
    %v8177 = vunpack.c.l.b16 %v7805
    %v8178 = vunpack.c.h.b16 %v7805
    %v8179 = vunpack.c.l.b16 %v7806
    %v8180 = vunpack.c.h.b16 %v7806
    %v8181 = vunpack.c.l.b16 %v7807
    %v8182 = vunpack.c.h.b16 %v7807
    %v8183 = vunpack.c.l.b16 %v7808
    %v8184 = vunpack.c.h.b16 %v7808
    %v8185 = vunpack.c.l.b16 %v7809
    %v8186 = vunpack.c.h.b16 %v7809
    %v8187 = vunpack.c.l.b16 %v7810
    %v8188 = vunpack.c.h.b16 %v7810
    %v8189 = vunpack.c.l.b16 %v7811
    %v8190 = vunpack.c.h.b16 %v7811
    %v8191 = vunpack.c.l.b16 %v7812
    %v8192 = vunpack.c.h.b16 %v7812
    %v8193 = vunpack.c.l.b16 %v7813
    %v8194 = vunpack.c.h.b16 %v7813
    %v8195 = vunpack.c.l.b16 %v7814
    %v8196 = vunpack.c.h.b16 %v7814
    %v8197 = vunpack.c.l.b16 %v7815
    %v8198 = vunpack.c.h.b16 %v7815
    %v8199 = vunpack.c.l.b16 %v7816
    %v8200 = vunpack.c.h.b16 %v7816
    %v8201 = vpack.c.b16 %v7953, %v7945
    %v8202 = vpack.c.b16 %v7954, %v7946
    %v8203 = vpack.c.b16 %v7955, %v7947
    %v8204 = vpack.c.b16 %v7956, %v7948
    %v8205 = vpack.c.b16 %v7957, %v7949
    %v8206 = vpack.c.b16 %v7958, %v7950
    %v8207 = vpack.c.b16 %v7959, %v7951
    %v8208 = vpack.c.b16 %v7960, %v7952
    %v8209 = vpack.c.b16 %v7969, %v7961
    %v8210 = vpack.c.b16 %v7970, %v7962
    %v8211 = vpack.c.b16 %v7971, %v7963
    %v8212 = vpack.c.b16 %v7972, %v7964
    %v8213 = vpack.c.b16 %v7973, %v7965
    %v8214 = vpack.c.b16 %v7974, %v7966
    %v8215 = vpack.c.b16 %v7975, %v7967
    %v8216 = vpack.c.b16 %v7976, %v7968
    %v8217 = vpack.c.b16 %v7985, %v7977
    %v8218 = vpack.c.b16 %v7986, %v7978
    %v8219 = vpack.c.b16 %v7987, %v7979
    %v8220 = vpack.c.b16 %v7988, %v7980
    %v8221 = vpack.c.b16 %v7989, %v7981
    %v8222 = vpack.c.b16 %v7990, %v7982
    %v8223 = vpack.c.b16 %v7991, %v7983
    %v8224 = vpack.c.b16 %v7992, %v7984
    %v8225 = vpack.c.b16 %v8001, %v7993
    %v8226 = vpack.c.b16 %v8002, %v7994
    %v8227 = vpack.c.b16 %v8003, %v7995
    %v8228 = vpack.c.b16 %v8004, %v7996
    %v8229 = vpack.c.b16 %v8005, %v7997
    %v8230 = vpack.c.b16 %v8006, %v7998
    %v8231 = vpack.c.b16 %v8007, %v7999
    %v8232 = vpack.c.b16 %v8008, %v8000
    %v8233 = vpack.c.b16 %v8017, %v8009
    %v8234 = vpack.c.b16 %v8018, %v8010
    %v8235 = vpack.c.b16 %v8019, %v8011
    %v8236 = vpack.c.b16 %v8020, %v8012
    %v8237 = vpack.c.b16 %v8021, %v8013
    %v8238 = vpack.c.b16 %v8022, %v8014
    %v8239 = vpack.c.b16 %v8023, %v8015
    %v8240 = vpack.c.b16 %v8024, %v8016
    %v8241 = vpack.c.b16 %v8033, %v8025
    %v8242 = vpack.c.b16 %v8034, %v8026
    %v8243 = vpack.c.b16 %v8035, %v8027
    %v8244 = vpack.c.b16 %v8036, %v8028
    %v8245 = vpack.c.b16 %v8037, %v8029
    %v8246 = vpack.c.b16 %v8038, %v8030
    %v8247 = vpack.c.b16 %v8039, %v8031
    %v8248 = vpack.c.b16 %v8040, %v8032
    %v8249 = vpack.c.b16 %v8049, %v8041
    %v8250 = vpack.c.b16 %v8050, %v8042
    %v8251 = vpack.c.b16 %v8051, %v8043
    %v8252 = vpack.c.b16 %v8052, %v8044
    %v8253 = vpack.c.b16 %v8053, %v8045
    %v8254 = vpack.c.b16 %v8054, %v8046
    %v8255 = vpack.c.b16 %v8055, %v8047
    %v8256 = vpack.c.b16 %v8056, %v8048
    %v8257 = vpack.c.b16 %v8065, %v8057
    %v8258 = vpack.c.b16 %v8066, %v8058
    %v8259 = vpack.c.b16 %v8067, %v8059
    %v8260 = vpack.c.b16 %v8068, %v8060
    %v8261 = vpack.c.b16 %v8069, %v8061
    %v8262 = vpack.c.b16 %v8070, %v8062
    %v8263 = vpack.c.b16 %v8071, %v8063
    %v8264 = vpack.c.b16 %v8072, %v8064
    %v8265 = vpack.c.b16 %v8081, %v8073
    %v8266 = vpack.c.b16 %v8082, %v8074
    %v8267 = vpack.c.b16 %v8083, %v8075
    %v8268 = vpack.c.b16 %v8084, %v8076
    %v8269 = vpack.c.b16 %v8085, %v8077
    %v8270 = vpack.c.b16 %v8086, %v8078
    %v8271 = vpack.c.b16 %v8087, %v8079
    %v8272 = vpack.c.b16 %v8088, %v8080
    %v8273 = vpack.c.b16 %v8097, %v8089
    %v8274 = vpack.c.b16 %v8098, %v8090
    %v8275 = vpack.c.b16 %v8099, %v8091
    %v8276 = vpack.c.b16 %v8100, %v8092
    %v8277 = vpack.c.b16 %v8101, %v8093
    %v8278 = vpack.c.b16 %v8102, %v8094
    %v8279 = vpack.c.b16 %v8103, %v8095
    %v8280 = vpack.c.b16 %v8104, %v8096
    %v8281 = vpack.c.b16 %v8113, %v8105
    %v8282 = vpack.c.b16 %v8114, %v8106
    %v8283 = vpack.c.b16 %v8115, %v8107
    %v8284 = vpack.c.b16 %v8116, %v8108
    %v8285 = vpack.c.b16 %v8117, %v8109
    %v8286 = vpack.c.b16 %v8118, %v8110
    %v8287 = vpack.c.b16 %v8119, %v8111
    %v8288 = vpack.c.b16 %v8120, %v8112
    %v8289 = vpack.c.b16 %v8129, %v8121
    %v8290 = vpack.c.b16 %v8130, %v8122
    %v8291 = vpack.c.b16 %v8131, %v8123
    %v8292 = vpack.c.b16 %v8132, %v8124
    %v8293 = vpack.c.b16 %v8133, %v8125
    %v8294 = vpack.c.b16 %v8134, %v8126
    %v8295 = vpack.c.b16 %v8135, %v8127
    %v8296 = vpack.c.b16 %v8136, %v8128
    %v8297 = vpack.c.b16 %v8145, %v8137
    %v8298 = vpack.c.b16 %v8146, %v8138
    %v8299 = vpack.c.b16 %v8147, %v8139
    %v8300 = vpack.c.b16 %v8148, %v8140
    %v8301 = vpack.c.b16 %v8149, %v8141
    %v8302 = vpack.c.b16 %v8150, %v8142
    %v8303 = vpack.c.b16 %v8151, %v8143
    %v8304 = vpack.c.b16 %v8152, %v8144
    %v8305 = vpack.c.b16 %v8161, %v8153
    %v8306 = vpack.c.b16 %v8162, %v8154
    %v8307 = vpack.c.b16 %v8163, %v8155
    %v8308 = vpack.c.b16 %v8164, %v8156
    %v8309 = vpack.c.b16 %v8165, %v8157
    %v8310 = vpack.c.b16 %v8166, %v8158
    %v8311 = vpack.c.b16 %v8167, %v8159
    %v8312 = vpack.c.b16 %v8168, %v8160
    %v8313 = vpack.c.b16 %v8177, %v8169
    %v8314 = vpack.c.b16 %v8178, %v8170
    %v8315 = vpack.c.b16 %v8179, %v8171
    %v8316 = vpack.c.b16 %v8180, %v8172
    %v8317 = vpack.c.b16 %v8181, %v8173
    %v8318 = vpack.c.b16 %v8182, %v8174
    %v8319 = vpack.c.b16 %v8183, %v8175
    %v8320 = vpack.c.b16 %v8184, %v8176
    %v8321 = vpack.c.b16 %v8193, %v8185
    %v8322 = vpack.c.b16 %v8194, %v8186
    %v8323 = vpack.c.b16 %v8195, %v8187
    %v8324 = vpack.c.b16 %v8196, %v8188
    %v8325 = vpack.c.b16 %v8197, %v8189
    %v8326 = vpack.c.b16 %v8198, %v8190
    %v8327 = vpack.c.b16 %v8199, %v8191
    %v8328 = vpack.c.b16 %v8200, %v8192
    %8457 = vmatprep.subr.bf16.mxu0 %v8202
    %8458 = vmatpush1.bf16.msra.mxu0 %v8201
    %8459 = vmatprep.subr.bf16.mxu0 %v8210
    %8460 = vmatpush1.bf16.msra.mxu0 %v8209
    %8461 = vmatprep.subr.bf16.mxu0 %v8218
    %8462 = vmatpush1.bf16.msra.mxu0 %v8217
    %8463 = vmatprep.subr.bf16.mxu0 %v8226
    %8464 = vmatpush1.bf16.msra.mxu0 %v8225
    %8465 = vmatprep.subr.bf16.mxu0 %v8234
    %8466 = vmatpush1.bf16.msra.mxu0 %v8233
    %8467 = vmatprep.subr.bf16.mxu0 %v8242
    %8468 = vmatpush1.bf16.msra.mxu0 %v8241
    %8469 = vmatprep.subr.bf16.mxu0 %v8250
    %8470 = vmatpush1.bf16.msra.mxu0 %v8249
    %8471 = vmatprep.subr.bf16.mxu0 %v8258
    %8472 = vmatpush1.bf16.msra.mxu0 %v8257
    %8473 = vmatprep.subr.bf16.mxu0 %v8266
    %8474 = vmatpush1.bf16.msra.mxu0 %v8265
    %8475 = vmatprep.subr.bf16.mxu0 %v8274
    %8476 = vmatpush1.bf16.msra.mxu0 %v8273
    %8477 = vmatprep.subr.bf16.mxu0 %v8282
    %8478 = vmatpush1.bf16.msra.mxu0 %v8281
    %8479 = vmatprep.subr.bf16.mxu0 %v8290
    %8480 = vmatpush1.bf16.msra.mxu0 %v8289
    %8481 = vmatprep.subr.bf16.mxu0 %v8298
    %8482 = vmatpush1.bf16.msra.mxu0 %v8297
    %8483 = vmatprep.subr.bf16.mxu0 %v8306
    %8484 = vmatpush1.bf16.msra.mxu0 %v8305
    %8485 = vmatprep.subr.bf16.mxu0 %v8314
    %8486 = vmatpush1.bf16.msra.mxu0 %v8313
    %8487 = vmatprep.subr.bf16.mxu0 %v8322
    %8488 = vmatpush1.bf16.msra.mxu0 %v8321
    %8489 = vmatprep.mubr.bf16.mxu0 %v7681
    %8490 = vmatmul.mubr.bf16.gmra.mrb[0].mxu0 %v7680
    %v8491 = vpop.f32.mrb[0].mxu0
    %v8492 = vadd.f32 0.0, %v8491
    %v8493 = vpop.f32.mrb[0].mxu0
    %v8494 = vadd.f32 0.0, %v8493
    %v8495 = vpop.f32.mrb[0].mxu0
    %v8496 = vadd.f32 0.0, %v8495
    %v8497 = vpop.f32.mrb[0].mxu0
    %v8498 = vadd.f32 0.0, %v8497
    %8499 = vmatprep.mubr.bf16.mxu0 %v7683
    %8500 = vmatmul.mubr.bf16.gmra.mrb[0].mxu0 %v7682
    %v8501 = vpop.f32.mrb[0].mxu0
    %v8502 = vadd.f32 0.0, %v8501
    %v8503 = vpop.f32.mrb[0].mxu0
    %v8504 = vadd.f32 0.0, %v8503
    %v8505 = vpop.f32.mrb[0].mxu0
    %v8506 = vadd.f32 0.0, %v8505
    %v8507 = vpop.f32.mrb[0].mxu0
    %v8508 = vadd.f32 0.0, %v8507
    %8509 = vmatprep.mubr.bf16.mxu0 %v7685
    %8510 = vmatmul.mubr.bf16.gmra.mrb[0].mxu0 %v7684
    %v8511 = vpop.f32.mrb[0].mxu0
    %v8512 = vadd.f32 0.0, %v8511
    %v8513 = vpop.f32.mrb[0].mxu0
    %v8514 = vadd.f32 0.0, %v8513
    %v8515 = vpop.f32.mrb[0].mxu0
    %v8516 = vadd.f32 0.0, %v8515
    %v8517 = vpop.f32.mrb[0].mxu0
    %v8518 = vadd.f32 0.0, %v8517
    %8519 = vmatprep.mubr.bf16.mxu0 %v7687
    %8520 = vmatmul.mubr.bf16.gmra.mrb[0].mxu0 %v7686
    %v8521 = vpop.f32.mrb[0].mxu0
    %v8522 = vadd.f32 0.0, %v8521
    %v8523 = vpop.f32.mrb[0].mxu0
    %v8524 = vadd.f32 0.0, %v8523
    %v8525 = vpop.f32.mrb[0].mxu0
    %v8526 = vadd.f32 0.0, %v8525
    %v8527 = vpop.f32.mrb[0].mxu0
    %v8528 = vadd.f32 0.0, %v8527
    %8529 = vdwg.mxu0
    %8530 = vmatprep.subr.bf16.mxu0 %v8204
    %8531 = vmatpush1.bf16.msra.mxu0 %v8203
    %8532 = vmatprep.subr.bf16.mxu0 %v8212
    %8533 = vmatpush1.bf16.msra.mxu0 %v8211
    %8534 = vmatprep.subr.bf16.mxu0 %v8220
    %8535 = vmatpush1.bf16.msra.mxu0 %v8219
    %8536 = vmatprep.subr.bf16.mxu0 %v8228
    %8537 = vmatpush1.bf16.msra.mxu0 %v8227
    %8538 = vmatprep.subr.bf16.mxu0 %v8236
    %8539 = vmatpush1.bf16.msra.mxu0 %v8235
    %8540 = vmatprep.subr.bf16.mxu0 %v8244
    %8541 = vmatpush1.bf16.msra.mxu0 %v8243
    %8542 = vmatprep.subr.bf16.mxu0 %v8252
    %8543 = vmatpush1.bf16.msra.mxu0 %v8251
    %8544 = vmatprep.subr.bf16.mxu0 %v8260
    %8545 = vmatpush1.bf16.msra.mxu0 %v8259
    %8546 = vmatprep.subr.bf16.mxu0 %v8268
    %8547 = vmatpush1.bf16.msra.mxu0 %v8267
    %8548 = vmatprep.subr.bf16.mxu0 %v8276
    %8549 = vmatpush1.bf16.msra.mxu0 %v8275
    %8550 = vmatprep.subr.bf16.mxu0 %v8284
    %8551 = vmatpush1.bf16.msra.mxu0 %v8283
    %8552 = vmatprep.subr.bf16.mxu0 %v8292
    %8553 = vmatpush1.bf16.msra.mxu0 %v8291
    %8554 = vmatprep.subr.bf16.mxu0 %v8300
    %8555 = vmatpush1.bf16.msra.mxu0 %v8299
    %8556 = vmatprep.subr.bf16.mxu0 %v8308
    %8557 = vmatpush1.bf16.msra.mxu0 %v8307
    %8558 = vmatprep.subr.bf16.mxu0 %v8316
    %8559 = vmatpush1.bf16.msra.mxu0 %v8315
    %8560 = vmatprep.subr.bf16.mxu0 %v8324
    %8561 = vmatpush1.bf16.msra.mxu0 %v8323
    %8562 = vmatprep.mubr.bf16.mxu0 %v7681
    %8563 = vmatmul.mubr.bf16.gmra.mrb[0].mxu0 %v7680
    %v8564 = vpop.f32.mrb[0].mxu0
    %v8565 = vadd.f32 0.0, %v8564
    %v8566 = vpop.f32.mrb[0].mxu0
    %v8567 = vadd.f32 0.0, %v8566
    %v8568 = vpop.f32.mrb[0].mxu0
    %v8569 = vadd.f32 0.0, %v8568
    %v8570 = vpop.f32.mrb[0].mxu0
    %v8571 = vadd.f32 0.0, %v8570
    %8572 = vmatprep.mubr.bf16.mxu0 %v7683
    %8573 = vmatmul.mubr.bf16.gmra.mrb[0].mxu0 %v7682
    %v8574 = vpop.f32.mrb[0].mxu0
    %v8575 = vadd.f32 0.0, %v8574
    %v8576 = vpop.f32.mrb[0].mxu0
    %v8577 = vadd.f32 0.0, %v8576
    %v8578 = vpop.f32.mrb[0].mxu0
    %v8579 = vadd.f32 0.0, %v8578
    %v8580 = vpop.f32.mrb[0].mxu0
    %v8581 = vadd.f32 0.0, %v8580
    %8582 = vmatprep.mubr.bf16.mxu0 %v7685
    %8583 = vmatmul.mubr.bf16.gmra.mrb[0].mxu0 %v7684
    %v8584 = vpop.f32.mrb[0].mxu0
    %v8585 = vadd.f32 0.0, %v8584
    %v8586 = vpop.f32.mrb[0].mxu0
    %v8587 = vadd.f32 0.0, %v8586
    %v8588 = vpop.f32.mrb[0].mxu0
    %v8589 = vadd.f32 0.0, %v8588
    %v8590 = vpop.f32.mrb[0].mxu0
    %v8591 = vadd.f32 0.0, %v8590
    %8592 = vmatprep.mubr.bf16.mxu0 %v7687
    %8593 = vmatmul.mubr.bf16.gmra.mrb[0].mxu0 %v7686
    %v8594 = vpop.f32.mrb[0].mxu0
    %v8595 = vadd.f32 0.0, %v8594
    %v8596 = vpop.f32.mrb[0].mxu0
    %v8597 = vadd.f32 0.0, %v8596
    %v8598 = vpop.f32.mrb[0].mxu0
    %v8599 = vadd.f32 0.0, %v8598
    %v8600 = vpop.f32.mrb[0].mxu0
    %v8601 = vadd.f32 0.0, %v8600
    %8602 = vdwg.mxu0
    %8603 = vmatprep.subr.bf16.mxu0 %v8206
    %8604 = vmatpush1.bf16.msra.mxu0 %v8205
    %8605 = vmatprep.subr.bf16.mxu0 %v8214
    %8606 = vmatpush1.bf16.msra.mxu0 %v8213
    %8607 = vmatprep.subr.bf16.mxu0 %v8222
    %8608 = vmatpush1.bf16.msra.mxu0 %v8221
    %8609 = vmatprep.subr.bf16.mxu0 %v8230
    %8610 = vmatpush1.bf16.msra.mxu0 %v8229
    %8611 = vmatprep.subr.bf16.mxu0 %v8238
    %8612 = vmatpush1.bf16.msra.mxu0 %v8237
    %8613 = vmatprep.subr.bf16.mxu0 %v8246
    %8614 = vmatpush1.bf16.msra.mxu0 %v8245
    %8615 = vmatprep.subr.bf16.mxu0 %v8254
    %8616 = vmatpush1.bf16.msra.mxu0 %v8253
    %8617 = vmatprep.subr.bf16.mxu0 %v8262
    %8618 = vmatpush1.bf16.msra.mxu0 %v8261
    %8619 = vmatprep.subr.bf16.mxu0 %v8270
    %8620 = vmatpush1.bf16.msra.mxu0 %v8269
    %8621 = vmatprep.subr.bf16.mxu0 %v8278
    %8622 = vmatpush1.bf16.msra.mxu0 %v8277
    %8623 = vmatprep.subr.bf16.mxu0 %v8286
    %8624 = vmatpush1.bf16.msra.mxu0 %v8285
    %8625 = vmatprep.subr.bf16.mxu0 %v8294
    %8626 = vmatpush1.bf16.msra.mxu0 %v8293
    %8627 = vmatprep.subr.bf16.mxu0 %v8302
    %8628 = vmatpush1.bf16.msra.mxu0 %v8301
    %8629 = vmatprep.subr.bf16.mxu0 %v8310
    %8630 = vmatpush1.bf16.msra.mxu0 %v8309
    %8631 = vmatprep.subr.bf16.mxu0 %v8318
    %8632 = vmatpush1.bf16.msra.mxu0 %v8317
    %8633 = vmatprep.subr.bf16.mxu0 %v8326
    %8634 = vmatpush1.bf16.msra.mxu0 %v8325
    %8635 = vmatprep.mubr.bf16.mxu0 %v7681
    %8636 = vmatmul.mubr.bf16.gmra.mrb[0].mxu0 %v7680
    %v8637 = vpop.f32.mrb[0].mxu0
    %v8638 = vadd.f32 0.0, %v8637
    %v8639 = vpop.f32.mrb[0].mxu0
    %v8640 = vadd.f32 0.0, %v8639
    %v8641 = vpop.f32.mrb[0].mxu0
    %v8642 = vadd.f32 0.0, %v8641
    %v8643 = vpop.f32.mrb[0].mxu0
    %v8644 = vadd.f32 0.0, %v8643
    %8645 = vmatprep.mubr.bf16.mxu0 %v7683
    %8646 = vmatmul.mubr.bf16.gmra.mrb[0].mxu0 %v7682
    %v8647 = vpop.f32.mrb[0].mxu0
    %v8648 = vadd.f32 0.0, %v8647
    %v8649 = vpop.f32.mrb[0].mxu0
    %v8650 = vadd.f32 0.0, %v8649
    %v8651 = vpop.f32.mrb[0].mxu0
    %v8652 = vadd.f32 0.0, %v8651
    %v8653 = vpop.f32.mrb[0].mxu0
    %v8654 = vadd.f32 0.0, %v8653
    %8655 = vmatprep.mubr.bf16.mxu0 %v7685
    %8656 = vmatmul.mubr.bf16.gmra.mrb[0].mxu0 %v7684
    %v8657 = vpop.f32.mrb[0].mxu0
    %v8658 = vadd.f32 0.0, %v8657
    %v8659 = vpop.f32.mrb[0].mxu0
    %v8660 = vadd.f32 0.0, %v8659
    %v8661 = vpop.f32.mrb[0].mxu0
    %v8662 = vadd.f32 0.0, %v8661
    %v8663 = vpop.f32.mrb[0].mxu0
    %v8664 = vadd.f32 0.0, %v8663
    %8665 = vmatprep.mubr.bf16.mxu0 %v7687
    %8666 = vmatmul.mubr.bf16.gmra.mrb[0].mxu0 %v7686
    %v8667 = vpop.f32.mrb[0].mxu0
    %v8668 = vadd.f32 0.0, %v8667
    %v8669 = vpop.f32.mrb[0].mxu0
    %v8670 = vadd.f32 0.0, %v8669
    %v8671 = vpop.f32.mrb[0].mxu0
    %v8672 = vadd.f32 0.0, %v8671
    %v8673 = vpop.f32.mrb[0].mxu0
    %v8674 = vadd.f32 0.0, %v8673
    %8675 = vdwg.mxu0
    %8676 = vmatprep.subr.bf16.mxu0 %v8208
    %8677 = vmatpush1.bf16.msra.mxu0 %v8207
    %8678 = vmatprep.subr.bf16.mxu0 %v8216
    %8679 = vmatpush1.bf16.msra.mxu0 %v8215
    %8680 = vmatprep.subr.bf16.mxu0 %v8224
    %8681 = vmatpush1.bf16.msra.mxu0 %v8223
    %8682 = vmatprep.subr.bf16.mxu0 %v8232
    %8683 = vmatpush1.bf16.msra.mxu0 %v8231
    %8684 = vmatprep.subr.bf16.mxu0 %v8240
    %8685 = vmatpush1.bf16.msra.mxu0 %v8239
    %8686 = vmatprep.subr.bf16.mxu0 %v8248
    %8687 = vmatpush1.bf16.msra.mxu0 %v8247
    %8688 = vmatprep.subr.bf16.mxu0 %v8256
    %8689 = vmatpush1.bf16.msra.mxu0 %v8255
    %8690 = vmatprep.subr.bf16.mxu0 %v8264
    %8691 = vmatpush1.bf16.msra.mxu0 %v8263
    %8692 = vmatprep.subr.bf16.mxu0 %v8272
    %8693 = vmatpush1.bf16.msra.mxu0 %v8271
    %8694 = vmatprep.subr.bf16.mxu0 %v8280
    %8695 = vmatpush1.bf16.msra.mxu0 %v8279
    %8696 = vmatprep.subr.bf16.mxu0 %v8288
    %8697 = vmatpush1.bf16.msra.mxu0 %v8287
    %8698 = vmatprep.subr.bf16.mxu0 %v8296
    %8699 = vmatpush1.bf16.msra.mxu0 %v8295
    %8700 = vmatprep.subr.bf16.mxu0 %v8304
    %8701 = vmatpush1.bf16.msra.mxu0 %v8303
    %8702 = vmatprep.subr.bf16.mxu0 %v8312
    %8703 = vmatpush1.bf16.msra.mxu0 %v8311
    %8704 = vmatprep.subr.bf16.mxu0 %v8320
    %8705 = vmatpush1.bf16.msra.mxu0 %v8319
    %8706 = vmatprep.subr.bf16.mxu0 %v8328
    %8707 = vmatpush1.bf16.msra.mxu0 %v8327
    %8708 = vmatprep.mubr.bf16.mxu0 %v7681
    %8709 = vmatmul.mubr.bf16.gmra.mrb[0].mxu0 %v7680
    %v8710 = vpop.f32.mrb[0].mxu0
    %v8711 = vadd.f32 0.0, %v8710
    %v8712 = vpop.f32.mrb[0].mxu0
    %v8713 = vadd.f32 0.0, %v8712
    %v8714 = vpop.f32.mrb[0].mxu0
    %v8715 = vadd.f32 0.0, %v8714
    %v8716 = vpop.f32.mrb[0].mxu0
    %v8717 = vadd.f32 0.0, %v8716
    %8718 = vmatprep.mubr.bf16.mxu0 %v7683
    %8719 = vmatmul.mubr.bf16.gmra.mrb[0].mxu0 %v7682
    %v8720 = vpop.f32.mrb[0].mxu0
    %v8721 = vadd.f32 0.0, %v8720
    %v8722 = vpop.f32.mrb[0].mxu0
    %v8723 = vadd.f32 0.0, %v8722
    %v8724 = vpop.f32.mrb[0].mxu0
    %v8725 = vadd.f32 0.0, %v8724
    %v8726 = vpop.f32.mrb[0].mxu0
    %v8727 = vadd.f32 0.0, %v8726
    %8728 = vmatprep.mubr.bf16.mxu0 %v7685
    %8729 = vmatmul.mubr.bf16.gmra.mrb[0].mxu0 %v7684
    %v8730 = vpop.f32.mrb[0].mxu0
    %v8731 = vadd.f32 0.0, %v8730
    %v8732 = vpop.f32.mrb[0].mxu0
    %v8733 = vadd.f32 0.0, %v8732
    %v8734 = vpop.f32.mrb[0].mxu0
    %v8735 = vadd.f32 0.0, %v8734
    %v8736 = vpop.f32.mrb[0].mxu0
    %v8737 = vadd.f32 0.0, %v8736
    %8738 = vmatprep.mubr.bf16.mxu0 %v7687
    %8739 = vmatmul.mubr.bf16.gmra.mrb[0].mxu0 %v7686
    %v8740 = vpop.f32.mrb[0].mxu0
    %v8741 = vadd.f32 0.0, %v8740
    %v8742 = vpop.f32.mrb[0].mxu0
    %v8743 = vadd.f32 0.0, %v8742
    %v8744 = vpop.f32.mrb[0].mxu0
    %v8745 = vadd.f32 0.0, %v8744
    %v8746 = vpop.f32.mrb[0].mxu0
    %v8747 = vadd.f32 0.0, %v8746
    %8748 = vdwg.mxu0
    %v8877 = vunpack.c.l.b16 %v3280
    %v8878 = vunpack.c.h.b16 %v3280
    %v8879 = vunpack.c.l.b16 %v3281
    %v8880 = vunpack.c.h.b16 %v3281
    %v8881 = vunpack.c.l.b16 %v3282
    %v8882 = vunpack.c.h.b16 %v3282
    %v8883 = vunpack.c.l.b16 %v3283
    %v8884 = vunpack.c.h.b16 %v3283
    %v8885 = vunpack.c.l.b16 %v3284
    %v8886 = vunpack.c.h.b16 %v3284
    %v8887 = vunpack.c.l.b16 %v3285
    %v8888 = vunpack.c.h.b16 %v3285
    %v8889 = vunpack.c.l.b16 %v3286
    %v8890 = vunpack.c.h.b16 %v3286
    %v8891 = vunpack.c.l.b16 %v3287
    %v8892 = vunpack.c.h.b16 %v3287
    %v8893 = vunpack.c.l.b16 %v3288
    %v8894 = vunpack.c.h.b16 %v3288
    %v8895 = vunpack.c.l.b16 %v3289
    %v8896 = vunpack.c.h.b16 %v3289
    %v8897 = vunpack.c.l.b16 %v3290
    %v8898 = vunpack.c.h.b16 %v3290
    %v8899 = vunpack.c.l.b16 %v3291
    %v8900 = vunpack.c.h.b16 %v3291
    %v8901 = vunpack.c.l.b16 %v3292
    %v8902 = vunpack.c.h.b16 %v3292
    %v8903 = vunpack.c.l.b16 %v3293
    %v8904 = vunpack.c.h.b16 %v3293
    %v8905 = vunpack.c.l.b16 %v3294
    %v8906 = vunpack.c.h.b16 %v3294
    %v8907 = vunpack.c.l.b16 %v3295
    %v8908 = vunpack.c.h.b16 %v3295
    %v8909 = vunpack.c.l.b16 %v3296
    %v8910 = vunpack.c.h.b16 %v3296
    %v8911 = vunpack.c.l.b16 %v3297
    %v8912 = vunpack.c.h.b16 %v3297
    %v8913 = vunpack.c.l.b16 %v3298
    %v8914 = vunpack.c.h.b16 %v3298
    %v8915 = vunpack.c.l.b16 %v3299
    %v8916 = vunpack.c.h.b16 %v3299
    %v8917 = vunpack.c.l.b16 %v3300
    %v8918 = vunpack.c.h.b16 %v3300
    %v8919 = vunpack.c.l.b16 %v3301
    %v8920 = vunpack.c.h.b16 %v3301
    %v8921 = vunpack.c.l.b16 %v3302
    %v8922 = vunpack.c.h.b16 %v3302
    %v8923 = vunpack.c.l.b16 %v3303
    %v8924 = vunpack.c.h.b16 %v3303
    %v8925 = vunpack.c.l.b16 %v3304
    %v8926 = vunpack.c.h.b16 %v3304
    %v8927 = vunpack.c.l.b16 %v3305
    %v8928 = vunpack.c.h.b16 %v3305
    %v8929 = vunpack.c.l.b16 %v3306
    %v8930 = vunpack.c.h.b16 %v3306
    %v8931 = vunpack.c.l.b16 %v3307
    %v8932 = vunpack.c.h.b16 %v3307
    %v8933 = vunpack.c.l.b16 %v3308
    %v8934 = vunpack.c.h.b16 %v3308
    %v8935 = vunpack.c.l.b16 %v3309
    %v8936 = vunpack.c.h.b16 %v3309
    %v8937 = vunpack.c.l.b16 %v3310
    %v8938 = vunpack.c.h.b16 %v3310
    %v8939 = vunpack.c.l.b16 %v3311
    %v8940 = vunpack.c.h.b16 %v3311
    %v8941 = vunpack.c.l.b16 %v3312
    %v8942 = vunpack.c.h.b16 %v3312
    %v8943 = vunpack.c.l.b16 %v3313
    %v8944 = vunpack.c.h.b16 %v3313
    %v8945 = vunpack.c.l.b16 %v3314
    %v8946 = vunpack.c.h.b16 %v3314
    %v8947 = vunpack.c.l.b16 %v3315
    %v8948 = vunpack.c.h.b16 %v3315
    %v8949 = vunpack.c.l.b16 %v3316
    %v8950 = vunpack.c.h.b16 %v3316
    %v8951 = vunpack.c.l.b16 %v3317
    %v8952 = vunpack.c.h.b16 %v3317
    %v8953 = vunpack.c.l.b16 %v3318
    %v8954 = vunpack.c.h.b16 %v3318
    %v8955 = vunpack.c.l.b16 %v3319
    %v8956 = vunpack.c.h.b16 %v3319
    %v8957 = vunpack.c.l.b16 %v3320
    %v8958 = vunpack.c.h.b16 %v3320
    %v8959 = vunpack.c.l.b16 %v3321
    %v8960 = vunpack.c.h.b16 %v3321
    %v8961 = vunpack.c.l.b16 %v3322
    %v8962 = vunpack.c.h.b16 %v3322
    %v8963 = vunpack.c.l.b16 %v3323
    %v8964 = vunpack.c.h.b16 %v3323
    %v8965 = vunpack.c.l.b16 %v3324
    %v8966 = vunpack.c.h.b16 %v3324
    %v8967 = vunpack.c.l.b16 %v3325
    %v8968 = vunpack.c.h.b16 %v3325
    %v8969 = vunpack.c.l.b16 %v3326
    %v8970 = vunpack.c.h.b16 %v3326
    %v8971 = vunpack.c.l.b16 %v3327
    %v8972 = vunpack.c.h.b16 %v3327
    %v8973 = vunpack.c.l.b16 %v3328
    %v8974 = vunpack.c.h.b16 %v3328
    %v8975 = vunpack.c.l.b16 %v3329
    %v8976 = vunpack.c.h.b16 %v3329
    %v8977 = vunpack.c.l.b16 %v3330
    %v8978 = vunpack.c.h.b16 %v3330
    %v8979 = vunpack.c.l.b16 %v3331
    %v8980 = vunpack.c.h.b16 %v3331
    %v8981 = vunpack.c.l.b16 %v3332
    %v8982 = vunpack.c.h.b16 %v3332
    %v8983 = vunpack.c.l.b16 %v3333
    %v8984 = vunpack.c.h.b16 %v3333
    %v8985 = vunpack.c.l.b16 %v3334
    %v8986 = vunpack.c.h.b16 %v3334
    %v8987 = vunpack.c.l.b16 %v3335
    %v8988 = vunpack.c.h.b16 %v3335
    %v8989 = vunpack.c.l.b16 %v3336
    %v8990 = vunpack.c.h.b16 %v3336
    %v8991 = vunpack.c.l.b16 %v3337
    %v8992 = vunpack.c.h.b16 %v3337
    %v8993 = vunpack.c.l.b16 %v3338
    %v8994 = vunpack.c.h.b16 %v3338
    %v8995 = vunpack.c.l.b16 %v3339
    %v8996 = vunpack.c.h.b16 %v3339
    %v8997 = vunpack.c.l.b16 %v3340
    %v8998 = vunpack.c.h.b16 %v3340
    %v8999 = vunpack.c.l.b16 %v3341
    %v9000 = vunpack.c.h.b16 %v3341
    %v9001 = vunpack.c.l.b16 %v3342
    %v9002 = vunpack.c.h.b16 %v3342
    %v9003 = vunpack.c.l.b16 %v3343
    %v9004 = vunpack.c.h.b16 %v3343
    %v9005 = vunpack.c.l.b16 %v3344
    %v9006 = vunpack.c.h.b16 %v3344
    %v9007 = vunpack.c.l.b16 %v3345
    %v9008 = vunpack.c.h.b16 %v3345
    %v9009 = vunpack.c.l.b16 %v3346
    %v9010 = vunpack.c.h.b16 %v3346
    %v9011 = vunpack.c.l.b16 %v3347
    %v9012 = vunpack.c.h.b16 %v3347
    %v9013 = vunpack.c.l.b16 %v3348
    %v9014 = vunpack.c.h.b16 %v3348
    %v9015 = vunpack.c.l.b16 %v3349
    %v9016 = vunpack.c.h.b16 %v3349
    %v9017 = vunpack.c.l.b16 %v3350
    %v9018 = vunpack.c.h.b16 %v3350
    %v9019 = vunpack.c.l.b16 %v3351
    %v9020 = vunpack.c.h.b16 %v3351
    %v9021 = vunpack.c.l.b16 %v3352
    %v9022 = vunpack.c.h.b16 %v3352
    %v9023 = vunpack.c.l.b16 %v3353
    %v9024 = vunpack.c.h.b16 %v3353
    %v9025 = vunpack.c.l.b16 %v3354
    %v9026 = vunpack.c.h.b16 %v3354
    %v9027 = vunpack.c.l.b16 %v3355
    %v9028 = vunpack.c.h.b16 %v3355
    %v9029 = vunpack.c.l.b16 %v3356
    %v9030 = vunpack.c.h.b16 %v3356
    %v9031 = vunpack.c.l.b16 %v3357
    %v9032 = vunpack.c.h.b16 %v3357
    %v9033 = vunpack.c.l.b16 %v3358
    %v9034 = vunpack.c.h.b16 %v3358
    %v9035 = vunpack.c.l.b16 %v3359
    %v9036 = vunpack.c.h.b16 %v3359
    %v9037 = vunpack.c.l.b16 %v3360
    %v9038 = vunpack.c.h.b16 %v3360
    %v9039 = vunpack.c.l.b16 %v3361
    %v9040 = vunpack.c.h.b16 %v3361
    %v9041 = vunpack.c.l.b16 %v3362
    %v9042 = vunpack.c.h.b16 %v3362
    %v9043 = vunpack.c.l.b16 %v3363
    %v9044 = vunpack.c.h.b16 %v3363
    %v9045 = vunpack.c.l.b16 %v3364
    %v9046 = vunpack.c.h.b16 %v3364
    %v9047 = vunpack.c.l.b16 %v3365
    %v9048 = vunpack.c.h.b16 %v3365
    %v9049 = vunpack.c.l.b16 %v3366
    %v9050 = vunpack.c.h.b16 %v3366
    %v9051 = vunpack.c.l.b16 %v3367
    %v9052 = vunpack.c.h.b16 %v3367
    %v9053 = vunpack.c.l.b16 %v3368
    %v9054 = vunpack.c.h.b16 %v3368
    %v9055 = vunpack.c.l.b16 %v3369
    %v9056 = vunpack.c.h.b16 %v3369
    %v9057 = vunpack.c.l.b16 %v3370
    %v9058 = vunpack.c.h.b16 %v3370
    %v9059 = vunpack.c.l.b16 %v3371
    %v9060 = vunpack.c.h.b16 %v3371
    %v9061 = vunpack.c.l.b16 %v3372
    %v9062 = vunpack.c.h.b16 %v3372
    %v9063 = vunpack.c.l.b16 %v3373
    %v9064 = vunpack.c.h.b16 %v3373
    %v9065 = vunpack.c.l.b16 %v3374
    %v9066 = vunpack.c.h.b16 %v3374
    %v9067 = vunpack.c.l.b16 %v3375
    %v9068 = vunpack.c.h.b16 %v3375
    %v9069 = vunpack.c.l.b16 %v3376
    %v9070 = vunpack.c.h.b16 %v3376
    %v9071 = vunpack.c.l.b16 %v3377
    %v9072 = vunpack.c.h.b16 %v3377
    %v9073 = vunpack.c.l.b16 %v3378
    %v9074 = vunpack.c.h.b16 %v3378
    %v9075 = vunpack.c.l.b16 %v3379
    %v9076 = vunpack.c.h.b16 %v3379
    %v9077 = vunpack.c.l.b16 %v3380
    %v9078 = vunpack.c.h.b16 %v3380
    %v9079 = vunpack.c.l.b16 %v3381
    %v9080 = vunpack.c.h.b16 %v3381
    %v9081 = vunpack.c.l.b16 %v3382
    %v9082 = vunpack.c.h.b16 %v3382
    %v9083 = vunpack.c.l.b16 %v3383
    %v9084 = vunpack.c.h.b16 %v3383
    %v9085 = vunpack.c.l.b16 %v3384
    %v9086 = vunpack.c.h.b16 %v3384
    %v9087 = vunpack.c.l.b16 %v3385
    %v9088 = vunpack.c.h.b16 %v3385
    %v9089 = vunpack.c.l.b16 %v3386
    %v9090 = vunpack.c.h.b16 %v3386
    %v9091 = vunpack.c.l.b16 %v3387
    %v9092 = vunpack.c.h.b16 %v3387
    %v9093 = vunpack.c.l.b16 %v3388
    %v9094 = vunpack.c.h.b16 %v3388
    %v9095 = vunpack.c.l.b16 %v3389
    %v9096 = vunpack.c.h.b16 %v3389
    %v9097 = vunpack.c.l.b16 %v3390
    %v9098 = vunpack.c.h.b16 %v3390
    %v9099 = vunpack.c.l.b16 %v3391
    %v9100 = vunpack.c.h.b16 %v3391
    %v9101 = vunpack.c.l.b16 %v3392
    %v9102 = vunpack.c.h.b16 %v3392
    %v9103 = vunpack.c.l.b16 %v3393
    %v9104 = vunpack.c.h.b16 %v3393
    %v9105 = vunpack.c.l.b16 %v3394
    %v9106 = vunpack.c.h.b16 %v3394
    %v9107 = vunpack.c.l.b16 %v3395
    %v9108 = vunpack.c.h.b16 %v3395
    %v9109 = vunpack.c.l.b16 %v3396
    %v9110 = vunpack.c.h.b16 %v3396
    %v9111 = vunpack.c.l.b16 %v3397
    %v9112 = vunpack.c.h.b16 %v3397
    %v9113 = vunpack.c.l.b16 %v3398
    %v9114 = vunpack.c.h.b16 %v3398
    %v9115 = vunpack.c.l.b16 %v3399
    %v9116 = vunpack.c.h.b16 %v3399
    %v9117 = vunpack.c.l.b16 %v3400
    %v9118 = vunpack.c.h.b16 %v3400
    %v9119 = vunpack.c.l.b16 %v3401
    %v9120 = vunpack.c.h.b16 %v3401
    %v9121 = vunpack.c.l.b16 %v3402
    %v9122 = vunpack.c.h.b16 %v3402
    %v9123 = vunpack.c.l.b16 %v3403
    %v9124 = vunpack.c.h.b16 %v3403
    %v9125 = vunpack.c.l.b16 %v3404
    %v9126 = vunpack.c.h.b16 %v3404
    %v9127 = vunpack.c.l.b16 %v3405
    %v9128 = vunpack.c.h.b16 %v3405
    %v9129 = vunpack.c.l.b16 %v3406
    %v9130 = vunpack.c.h.b16 %v3406
    %v9131 = vunpack.c.l.b16 %v3407
    %v9132 = vunpack.c.h.b16 %v3407
    %v9133 = vpack.c.b16 %v8885, %v8877
    %v9134 = vpack.c.b16 %v8886, %v8878
    %v9135 = vpack.c.b16 %v8887, %v8879
    %v9136 = vpack.c.b16 %v8888, %v8880
    %v9137 = vpack.c.b16 %v8889, %v8881
    %v9138 = vpack.c.b16 %v8890, %v8882
    %v9139 = vpack.c.b16 %v8891, %v8883
    %v9140 = vpack.c.b16 %v8892, %v8884
    %v9141 = vpack.c.b16 %v8901, %v8893
    %v9142 = vpack.c.b16 %v8902, %v8894
    %v9143 = vpack.c.b16 %v8903, %v8895
    %v9144 = vpack.c.b16 %v8904, %v8896
    %v9145 = vpack.c.b16 %v8905, %v8897
    %v9146 = vpack.c.b16 %v8906, %v8898
    %v9147 = vpack.c.b16 %v8907, %v8899
    %v9148 = vpack.c.b16 %v8908, %v8900
    %v9149 = vpack.c.b16 %v8917, %v8909
    %v9150 = vpack.c.b16 %v8918, %v8910
    %v9151 = vpack.c.b16 %v8919, %v8911
    %v9152 = vpack.c.b16 %v8920, %v8912
    %v9153 = vpack.c.b16 %v8921, %v8913
    %v9154 = vpack.c.b16 %v8922, %v8914
    %v9155 = vpack.c.b16 %v8923, %v8915
    %v9156 = vpack.c.b16 %v8924, %v8916
    %v9157 = vpack.c.b16 %v8933, %v8925
    %v9158 = vpack.c.b16 %v8934, %v8926
    %v9159 = vpack.c.b16 %v8935, %v8927
    %v9160 = vpack.c.b16 %v8936, %v8928
    %v9161 = vpack.c.b16 %v8937, %v8929
    %v9162 = vpack.c.b16 %v8938, %v8930
    %v9163 = vpack.c.b16 %v8939, %v8931
    %v9164 = vpack.c.b16 %v8940, %v8932
    %v9165 = vpack.c.b16 %v8949, %v8941
    %v9166 = vpack.c.b16 %v8950, %v8942
    %v9167 = vpack.c.b16 %v8951, %v8943
    %v9168 = vpack.c.b16 %v8952, %v8944
    %v9169 = vpack.c.b16 %v8953, %v8945
    %v9170 = vpack.c.b16 %v8954, %v8946
    %v9171 = vpack.c.b16 %v8955, %v8947
    %v9172 = vpack.c.b16 %v8956, %v8948
    %v9173 = vpack.c.b16 %v8965, %v8957
    %v9174 = vpack.c.b16 %v8966, %v8958
    %v9175 = vpack.c.b16 %v8967, %v8959
    %v9176 = vpack.c.b16 %v8968, %v8960
    %v9177 = vpack.c.b16 %v8969, %v8961
    %v9178 = vpack.c.b16 %v8970, %v8962
    %v9179 = vpack.c.b16 %v8971, %v8963
    %v9180 = vpack.c.b16 %v8972, %v8964
    %v9181 = vpack.c.b16 %v8981, %v8973
    %v9182 = vpack.c.b16 %v8982, %v8974
    %v9183 = vpack.c.b16 %v8983, %v8975
    %v9184 = vpack.c.b16 %v8984, %v8976
    %v9185 = vpack.c.b16 %v8985, %v8977
    %v9186 = vpack.c.b16 %v8986, %v8978
    %v9187 = vpack.c.b16 %v8987, %v8979
    %v9188 = vpack.c.b16 %v8988, %v8980
    %v9189 = vpack.c.b16 %v8997, %v8989
    %v9190 = vpack.c.b16 %v8998, %v8990
    %v9191 = vpack.c.b16 %v8999, %v8991
    %v9192 = vpack.c.b16 %v9000, %v8992
    %v9193 = vpack.c.b16 %v9001, %v8993
    %v9194 = vpack.c.b16 %v9002, %v8994
    %v9195 = vpack.c.b16 %v9003, %v8995
    %v9196 = vpack.c.b16 %v9004, %v8996
    %v9197 = vpack.c.b16 %v9013, %v9005
    %v9198 = vpack.c.b16 %v9014, %v9006
    %v9199 = vpack.c.b16 %v9015, %v9007
    %v9200 = vpack.c.b16 %v9016, %v9008
    %v9201 = vpack.c.b16 %v9017, %v9009
    %v9202 = vpack.c.b16 %v9018, %v9010
    %v9203 = vpack.c.b16 %v9019, %v9011
    %v9204 = vpack.c.b16 %v9020, %v9012
    %v9205 = vpack.c.b16 %v9029, %v9021
    %v9206 = vpack.c.b16 %v9030, %v9022
    %v9207 = vpack.c.b16 %v9031, %v9023
    %v9208 = vpack.c.b16 %v9032, %v9024
    %v9209 = vpack.c.b16 %v9033, %v9025
    %v9210 = vpack.c.b16 %v9034, %v9026
    %v9211 = vpack.c.b16 %v9035, %v9027
    %v9212 = vpack.c.b16 %v9036, %v9028
    %v9213 = vpack.c.b16 %v9045, %v9037
    %v9214 = vpack.c.b16 %v9046, %v9038
    %v9215 = vpack.c.b16 %v9047, %v9039
    %v9216 = vpack.c.b16 %v9048, %v9040
    %v9217 = vpack.c.b16 %v9049, %v9041
    %v9218 = vpack.c.b16 %v9050, %v9042
    %v9219 = vpack.c.b16 %v9051, %v9043
    %v9220 = vpack.c.b16 %v9052, %v9044
    %v9221 = vpack.c.b16 %v9061, %v9053
    %v9222 = vpack.c.b16 %v9062, %v9054
    %v9223 = vpack.c.b16 %v9063, %v9055
    %v9224 = vpack.c.b16 %v9064, %v9056
    %v9225 = vpack.c.b16 %v9065, %v9057
    %v9226 = vpack.c.b16 %v9066, %v9058
    %v9227 = vpack.c.b16 %v9067, %v9059
    %v9228 = vpack.c.b16 %v9068, %v9060
    %v9229 = vpack.c.b16 %v9077, %v9069
    %v9230 = vpack.c.b16 %v9078, %v9070
    %v9231 = vpack.c.b16 %v9079, %v9071
    %v9232 = vpack.c.b16 %v9080, %v9072
    %v9233 = vpack.c.b16 %v9081, %v9073
    %v9234 = vpack.c.b16 %v9082, %v9074
    %v9235 = vpack.c.b16 %v9083, %v9075
    %v9236 = vpack.c.b16 %v9084, %v9076
    %v9237 = vpack.c.b16 %v9093, %v9085
    %v9238 = vpack.c.b16 %v9094, %v9086
    %v9239 = vpack.c.b16 %v9095, %v9087
    %v9240 = vpack.c.b16 %v9096, %v9088
    %v9241 = vpack.c.b16 %v9097, %v9089
    %v9242 = vpack.c.b16 %v9098, %v9090
    %v9243 = vpack.c.b16 %v9099, %v9091
    %v9244 = vpack.c.b16 %v9100, %v9092
    %v9245 = vpack.c.b16 %v9109, %v9101
    %v9246 = vpack.c.b16 %v9110, %v9102
    %v9247 = vpack.c.b16 %v9111, %v9103
    %v9248 = vpack.c.b16 %v9112, %v9104
    %v9249 = vpack.c.b16 %v9113, %v9105
    %v9250 = vpack.c.b16 %v9114, %v9106
    %v9251 = vpack.c.b16 %v9115, %v9107
    %v9252 = vpack.c.b16 %v9116, %v9108
    %v9253 = vpack.c.b16 %v9125, %v9117
    %v9254 = vpack.c.b16 %v9126, %v9118
    %v9255 = vpack.c.b16 %v9127, %v9119
    %v9256 = vpack.c.b16 %v9128, %v9120
    %v9257 = vpack.c.b16 %v9129, %v9121
    %v9258 = vpack.c.b16 %v9130, %v9122
    %v9259 = vpack.c.b16 %v9131, %v9123
    %v9260 = vpack.c.b16 %v9132, %v9124
    %9389 = vmatprep.subr.bf16.mxu0 %v9134
    %9390 = vmatpush1.bf16.msra.mxu0 %v9133
    %9391 = vmatprep.subr.bf16.mxu0 %v9142
    %9392 = vmatpush1.bf16.msra.mxu0 %v9141
    %9393 = vmatprep.subr.bf16.mxu0 %v9150
    %9394 = vmatpush1.bf16.msra.mxu0 %v9149
    %9395 = vmatprep.subr.bf16.mxu0 %v9158
    %9396 = vmatpush1.bf16.msra.mxu0 %v9157
    %9397 = vmatprep.subr.bf16.mxu0 %v9166
    %9398 = vmatpush1.bf16.msra.mxu0 %v9165
    %9399 = vmatprep.subr.bf16.mxu0 %v9174
    %9400 = vmatpush1.bf16.msra.mxu0 %v9173
    %9401 = vmatprep.subr.bf16.mxu0 %v9182
    %9402 = vmatpush1.bf16.msra.mxu0 %v9181
    %9403 = vmatprep.subr.bf16.mxu0 %v9190
    %9404 = vmatpush1.bf16.msra.mxu0 %v9189
    %9405 = vmatprep.subr.bf16.mxu0 %v9198
    %9406 = vmatpush1.bf16.msra.mxu0 %v9197
    %9407 = vmatprep.subr.bf16.mxu0 %v9206
    %9408 = vmatpush1.bf16.msra.mxu0 %v9205
    %9409 = vmatprep.subr.bf16.mxu0 %v9214
    %9410 = vmatpush1.bf16.msra.mxu0 %v9213
    %9411 = vmatprep.subr.bf16.mxu0 %v9222
    %9412 = vmatpush1.bf16.msra.mxu0 %v9221
    %9413 = vmatprep.subr.bf16.mxu0 %v9230
    %9414 = vmatpush1.bf16.msra.mxu0 %v9229
    %9415 = vmatprep.subr.bf16.mxu0 %v9238
    %9416 = vmatpush1.bf16.msra.mxu0 %v9237
    %9417 = vmatprep.subr.bf16.mxu0 %v9246
    %9418 = vmatpush1.bf16.msra.mxu0 %v9245
    %9419 = vmatprep.subr.bf16.mxu0 %v9254
    %9420 = vmatpush1.bf16.msra.mxu0 %v9253
    %9421 = vmatprep.mubr.bf16.mxu0 %v3272
    %9422 = vmatmul.mubr.bf16.gmra.mrb[0].mxu0 %v3271
    %v9423 = vpop.f32.mrb[0].mxu0
    %v9424 = vadd.f32 %v8492, %v9423
    %v9425 = vpop.f32.mrb[0].mxu0
    %v9426 = vadd.f32 %v8494, %v9425
    %v9427 = vpop.f32.mrb[0].mxu0
    %v9428 = vadd.f32 %v8496, %v9427
    %v9429 = vpop.f32.mrb[0].mxu0
    %v9430 = vadd.f32 %v8498, %v9429
    %9431 = vmatprep.mubr.bf16.mxu0 %v3274
    %9432 = vmatmul.mubr.bf16.gmra.mrb[0].mxu0 %v3273
    %v9433 = vpop.f32.mrb[0].mxu0
    %v9434 = vadd.f32 %v8502, %v9433
    %v9435 = vpop.f32.mrb[0].mxu0
    %v9436 = vadd.f32 %v8504, %v9435
    %v9437 = vpop.f32.mrb[0].mxu0
    %v9438 = vadd.f32 %v8506, %v9437
    %v9439 = vpop.f32.mrb[0].mxu0
    %v9440 = vadd.f32 %v8508, %v9439
    %9441 = vmatprep.mubr.bf16.mxu0 %v3276
    %9442 = vmatmul.mubr.bf16.gmra.mrb[0].mxu0 %v3275
    %v9443 = vpop.f32.mrb[0].mxu0
    %v9444 = vadd.f32 %v8512, %v9443
    %v9445 = vpop.f32.mrb[0].mxu0
    %v9446 = vadd.f32 %v8514, %v9445
    %v9447 = vpop.f32.mrb[0].mxu0
    %v9448 = vadd.f32 %v8516, %v9447
    %v9449 = vpop.f32.mrb[0].mxu0
    %v9450 = vadd.f32 %v8518, %v9449
    %9451 = vmatprep.mubr.bf16.mxu0 %v3278
    %9452 = vmatmul.mubr.bf16.gmra.mrb[0].mxu0 %v3277
    %v9453 = vpop.f32.mrb[0].mxu0
    %v9454 = vadd.f32 %v8522, %v9453
    %v9455 = vpop.f32.mrb[0].mxu0
    %v9456 = vadd.f32 %v8524, %v9455
    %v9457 = vpop.f32.mrb[0].mxu0
    %v9458 = vadd.f32 %v8526, %v9457
    %v9459 = vpop.f32.mrb[0].mxu0
    %v9460 = vadd.f32 %v8528, %v9459
    %9461 = vdwg.mxu0
    %9462 = vmatprep.subr.bf16.mxu0 %v9136
    %9463 = vmatpush1.bf16.msra.mxu0 %v9135
    %9464 = vmatprep.subr.bf16.mxu0 %v9144
    %9465 = vmatpush1.bf16.msra.mxu0 %v9143
    %9466 = vmatprep.subr.bf16.mxu0 %v9152
    %9467 = vmatpush1.bf16.msra.mxu0 %v9151
    %9468 = vmatprep.subr.bf16.mxu0 %v9160
    %9469 = vmatpush1.bf16.msra.mxu0 %v9159
    %9470 = vmatprep.subr.bf16.mxu0 %v9168
    %9471 = vmatpush1.bf16.msra.mxu0 %v9167
    %9472 = vmatprep.subr.bf16.mxu0 %v9176
    %9473 = vmatpush1.bf16.msra.mxu0 %v9175
    %9474 = vmatprep.subr.bf16.mxu0 %v9184
    %9475 = vmatpush1.bf16.msra.mxu0 %v9183
    %9476 = vmatprep.subr.bf16.mxu0 %v9192
    %9477 = vmatpush1.bf16.msra.mxu0 %v9191
    %9478 = vmatprep.subr.bf16.mxu0 %v9200
    %9479 = vmatpush1.bf16.msra.mxu0 %v9199
    %9480 = vmatprep.subr.bf16.mxu0 %v9208
    %9481 = vmatpush1.bf16.msra.mxu0 %v9207
    %9482 = vmatprep.subr.bf16.mxu0 %v9216
    %9483 = vmatpush1.bf16.msra.mxu0 %v9215
    %9484 = vmatprep.subr.bf16.mxu0 %v9224
    %9485 = vmatpush1.bf16.msra.mxu0 %v9223
    %9486 = vmatprep.subr.bf16.mxu0 %v9232
    %9487 = vmatpush1.bf16.msra.mxu0 %v9231
    %9488 = vmatprep.subr.bf16.mxu0 %v9240
    %9489 = vmatpush1.bf16.msra.mxu0 %v9239
    %9490 = vmatprep.subr.bf16.mxu0 %v9248
    %9491 = vmatpush1.bf16.msra.mxu0 %v9247
    %9492 = vmatprep.subr.bf16.mxu0 %v9256
    %9493 = vmatpush1.bf16.msra.mxu0 %v9255
    %9494 = vmatprep.mubr.bf16.mxu0 %v3272
    %9495 = vmatmul.mubr.bf16.gmra.mrb[0].mxu0 %v3271
    %v9496 = vpop.f32.mrb[0].mxu0
    %v9497 = vadd.f32 %v8565, %v9496
    %v9498 = vpop.f32.mrb[0].mxu0
    %v9499 = vadd.f32 %v8567, %v9498
    %v9500 = vpop.f32.mrb[0].mxu0
    %v9501 = vadd.f32 %v8569, %v9500
    %v9502 = vpop.f32.mrb[0].mxu0
    %v9503 = vadd.f32 %v8571, %v9502
    %9504 = vmatprep.mubr.bf16.mxu0 %v3274
    %9505 = vmatmul.mubr.bf16.gmra.mrb[0].mxu0 %v3273
    %v9506 = vpop.f32.mrb[0].mxu0
    %v9507 = vadd.f32 %v8575, %v9506
    %v9508 = vpop.f32.mrb[0].mxu0
    %v9509 = vadd.f32 %v8577, %v9508
    %v9510 = vpop.f32.mrb[0].mxu0
    %v9511 = vadd.f32 %v8579, %v9510
    %v9512 = vpop.f32.mrb[0].mxu0
    %v9513 = vadd.f32 %v8581, %v9512
    %9514 = vmatprep.mubr.bf16.mxu0 %v3276
    %9515 = vmatmul.mubr.bf16.gmra.mrb[0].mxu0 %v3275
    %v9516 = vpop.f32.mrb[0].mxu0
    %v9517 = vadd.f32 %v8585, %v9516
    %v9518 = vpop.f32.mrb[0].mxu0
    %v9519 = vadd.f32 %v8587, %v9518
    %v9520 = vpop.f32.mrb[0].mxu0
    %v9521 = vadd.f32 %v8589, %v9520
    %v9522 = vpop.f32.mrb[0].mxu0
    %v9523 = vadd.f32 %v8591, %v9522
    %9524 = vmatprep.mubr.bf16.mxu0 %v3278
    %9525 = vmatmul.mubr.bf16.gmra.mrb[0].mxu0 %v3277
    %v9526 = vpop.f32.mrb[0].mxu0
    %v9527 = vadd.f32 %v8595, %v9526
    %v9528 = vpop.f32.mrb[0].mxu0
    %v9529 = vadd.f32 %v8597, %v9528
    %v9530 = vpop.f32.mrb[0].mxu0
    %v9531 = vadd.f32 %v8599, %v9530
    %v9532 = vpop.f32.mrb[0].mxu0
    %v9533 = vadd.f32 %v8601, %v9532
    %9534 = vdwg.mxu0
    %9535 = vmatprep.subr.bf16.mxu0 %v9138
    %9536 = vmatpush1.bf16.msra.mxu0 %v9137
    %9537 = vmatprep.subr.bf16.mxu0 %v9146
    %9538 = vmatpush1.bf16.msra.mxu0 %v9145
    %9539 = vmatprep.subr.bf16.mxu0 %v9154
    %9540 = vmatpush1.bf16.msra.mxu0 %v9153
    %9541 = vmatprep.subr.bf16.mxu0 %v9162
    %9542 = vmatpush1.bf16.msra.mxu0 %v9161
    %9543 = vmatprep.subr.bf16.mxu0 %v9170
    %9544 = vmatpush1.bf16.msra.mxu0 %v9169
    %9545 = vmatprep.subr.bf16.mxu0 %v9178
    %9546 = vmatpush1.bf16.msra.mxu0 %v9177
    %9547 = vmatprep.subr.bf16.mxu0 %v9186
    %9548 = vmatpush1.bf16.msra.mxu0 %v9185
    %9549 = vmatprep.subr.bf16.mxu0 %v9194
    %9550 = vmatpush1.bf16.msra.mxu0 %v9193
    %9551 = vmatprep.subr.bf16.mxu0 %v9202
    %9552 = vmatpush1.bf16.msra.mxu0 %v9201
    %9553 = vmatprep.subr.bf16.mxu0 %v9210
    %9554 = vmatpush1.bf16.msra.mxu0 %v9209
    %9555 = vmatprep.subr.bf16.mxu0 %v9218
    %9556 = vmatpush1.bf16.msra.mxu0 %v9217
    %9557 = vmatprep.subr.bf16.mxu0 %v9226
    %9558 = vmatpush1.bf16.msra.mxu0 %v9225
    %9559 = vmatprep.subr.bf16.mxu0 %v9234
    %9560 = vmatpush1.bf16.msra.mxu0 %v9233
    %9561 = vmatprep.subr.bf16.mxu0 %v9242
    %9562 = vmatpush1.bf16.msra.mxu0 %v9241
    %9563 = vmatprep.subr.bf16.mxu0 %v9250
    %9564 = vmatpush1.bf16.msra.mxu0 %v9249
    %9565 = vmatprep.subr.bf16.mxu0 %v9258
    %9566 = vmatpush1.bf16.msra.mxu0 %v9257
    %9567 = vmatprep.mubr.bf16.mxu0 %v3272
    %9568 = vmatmul.mubr.bf16.gmra.mrb[0].mxu0 %v3271
    %v9569 = vpop.f32.mrb[0].mxu0
    %v9570 = vadd.f32 %v8638, %v9569
    %v9571 = vpop.f32.mrb[0].mxu0
    %v9572 = vadd.f32 %v8640, %v9571
    %v9573 = vpop.f32.mrb[0].mxu0
    %v9574 = vadd.f32 %v8642, %v9573
    %v9575 = vpop.f32.mrb[0].mxu0
    %v9576 = vadd.f32 %v8644, %v9575
    %9577 = vmatprep.mubr.bf16.mxu0 %v3274
    %9578 = vmatmul.mubr.bf16.gmra.mrb[0].mxu0 %v3273
    %v9579 = vpop.f32.mrb[0].mxu0
    %v9580 = vadd.f32 %v8648, %v9579
    %v9581 = vpop.f32.mrb[0].mxu0
    %v9582 = vadd.f32 %v8650, %v9581
    %v9583 = vpop.f32.mrb[0].mxu0
    %v9584 = vadd.f32 %v8652, %v9583
    %v9585 = vpop.f32.mrb[0].mxu0
    %v9586 = vadd.f32 %v8654, %v9585
    %9587 = vmatprep.mubr.bf16.mxu0 %v3276
    %9588 = vmatmul.mubr.bf16.gmra.mrb[0].mxu0 %v3275
    %v9589 = vpop.f32.mrb[0].mxu0
    %v9590 = vadd.f32 %v8658, %v9589
    %v9591 = vpop.f32.mrb[0].mxu0
    %v9592 = vadd.f32 %v8660, %v9591
    %v9593 = vpop.f32.mrb[0].mxu0
    %v9594 = vadd.f32 %v8662, %v9593
    %v9595 = vpop.f32.mrb[0].mxu0
    %v9596 = vadd.f32 %v8664, %v9595
    %9597 = vmatprep.mubr.bf16.mxu0 %v3278
    %9598 = vmatmul.mubr.bf16.gmra.mrb[0].mxu0 %v3277
    %v9599 = vpop.f32.mrb[0].mxu0
    %v9600 = vadd.f32 %v8668, %v9599
    %v9601 = vpop.f32.mrb[0].mxu0
    %v9602 = vadd.f32 %v8670, %v9601
    %v9603 = vpop.f32.mrb[0].mxu0
    %v9604 = vadd.f32 %v8672, %v9603
    %v9605 = vpop.f32.mrb[0].mxu0
    %v9606 = vadd.f32 %v8674, %v9605
    %9607 = vdwg.mxu0
    %9608 = vmatprep.subr.bf16.mxu0 %v9140
    %9609 = vmatpush1.bf16.msra.mxu0 %v9139
    %9610 = vmatprep.subr.bf16.mxu0 %v9148
    %9611 = vmatpush1.bf16.msra.mxu0 %v9147
    %9612 = vmatprep.subr.bf16.mxu0 %v9156
    %9613 = vmatpush1.bf16.msra.mxu0 %v9155
    %9614 = vmatprep.subr.bf16.mxu0 %v9164
    %9615 = vmatpush1.bf16.msra.mxu0 %v9163
    %9616 = vmatprep.subr.bf16.mxu0 %v9172
    %9617 = vmatpush1.bf16.msra.mxu0 %v9171
    %9618 = vmatprep.subr.bf16.mxu0 %v9180
    %9619 = vmatpush1.bf16.msra.mxu0 %v9179
    %9620 = vmatprep.subr.bf16.mxu0 %v9188
    %9621 = vmatpush1.bf16.msra.mxu0 %v9187
    %9622 = vmatprep.subr.bf16.mxu0 %v9196
    %9623 = vmatpush1.bf16.msra.mxu0 %v9195
    %9624 = vmatprep.subr.bf16.mxu0 %v9204
    %9625 = vmatpush1.bf16.msra.mxu0 %v9203
    %9626 = vmatprep.subr.bf16.mxu0 %v9212
    %9627 = vmatpush1.bf16.msra.mxu0 %v9211
    %9628 = vmatprep.subr.bf16.mxu0 %v9220
    %9629 = vmatpush1.bf16.msra.mxu0 %v9219
    %9630 = vmatprep.subr.bf16.mxu0 %v9228
    %9631 = vmatpush1.bf16.msra.mxu0 %v9227
    %9632 = vmatprep.subr.bf16.mxu0 %v9236
    %9633 = vmatpush1.bf16.msra.mxu0 %v9235
    %9634 = vmatprep.subr.bf16.mxu0 %v9244
    %9635 = vmatpush1.bf16.msra.mxu0 %v9243
    %9636 = vmatprep.subr.bf16.mxu0 %v9252
    %9637 = vmatpush1.bf16.msra.mxu0 %v9251
    %9638 = vmatprep.subr.bf16.mxu0 %v9260
    %9639 = vmatpush1.bf16.msra.mxu0 %v9259
    %9640 = vmatprep.mubr.bf16.mxu0 %v3272
    %9641 = vmatmul.mubr.bf16.gmra.mrb[0].mxu0 %v3271
    %v9642 = vpop.f32.mrb[0].mxu0
    %v9643 = vadd.f32 %v8711, %v9642
    %v9644 = vpop.f32.mrb[0].mxu0
    %v9645 = vadd.f32 %v8713, %v9644
    %v9646 = vpop.f32.mrb[0].mxu0
    %v9647 = vadd.f32 %v8715, %v9646
    %v9648 = vpop.f32.mrb[0].mxu0
    %v9649 = vadd.f32 %v8717, %v9648
    %9650 = vmatprep.mubr.bf16.mxu0 %v3274
    %9651 = vmatmul.mubr.bf16.gmra.mrb[0].mxu0 %v3273
    %v9652 = vpop.f32.mrb[0].mxu0
    %v9653 = vadd.f32 %v8721, %v9652
    %v9654 = vpop.f32.mrb[0].mxu0
    %v9655 = vadd.f32 %v8723, %v9654
    %v9656 = vpop.f32.mrb[0].mxu0
    %v9657 = vadd.f32 %v8725, %v9656
    %v9658 = vpop.f32.mrb[0].mxu0
    %v9659 = vadd.f32 %v8727, %v9658
    %9660 = vmatprep.mubr.bf16.mxu0 %v3276
    %9661 = vmatmul.mubr.bf16.gmra.mrb[0].mxu0 %v3275
    %v9662 = vpop.f32.mrb[0].mxu0
    %v9663 = vadd.f32 %v8731, %v9662
    %v9664 = vpop.f32.mrb[0].mxu0
    %v9665 = vadd.f32 %v8733, %v9664
    %v9666 = vpop.f32.mrb[0].mxu0
    %v9667 = vadd.f32 %v8735, %v9666
    %v9668 = vpop.f32.mrb[0].mxu0
    %v9669 = vadd.f32 %v8737, %v9668
    %9670 = vmatprep.mubr.bf16.mxu0 %v3278
    %9671 = vmatmul.mubr.bf16.gmra.mrb[0].mxu0 %v3277
    %v9672 = vpop.f32.mrb[0].mxu0
    %v9673 = vadd.f32 %v8741, %v9672
    %v9674 = vpop.f32.mrb[0].mxu0
    %v9675 = vadd.f32 %v8743, %v9674
    %v9676 = vpop.f32.mrb[0].mxu0
    %v9677 = vadd.f32 %v8745, %v9676
    %v9678 = vpop.f32.mrb[0].mxu0
    %v9679 = vadd.f32 %v8747, %v9678
    %9680 = vdwg.mxu0
    %v9681 = vxor.u32 %v9424, 2147483648
    %v9682 = vxor.u32 %v9426, 2147483648
    %v9683 = vxor.u32 %v9428, 2147483648
    %v9684 = vxor.u32 %v9430, 2147483648
    %v9685 = vxor.u32 %v9434, 2147483648
    %v9686 = vxor.u32 %v9436, 2147483648
    %v9687 = vxor.u32 %v9438, 2147483648
    %v9688 = vxor.u32 %v9440, 2147483648
    %v9689 = vxor.u32 %v9444, 2147483648
    %v9690 = vxor.u32 %v9446, 2147483648
    %v9691 = vxor.u32 %v9448, 2147483648
    %v9692 = vxor.u32 %v9450, 2147483648
    %v9693 = vxor.u32 %v9454, 2147483648
    %v9694 = vxor.u32 %v9456, 2147483648
    %v9695 = vxor.u32 %v9458, 2147483648
    %v9696 = vxor.u32 %v9460, 2147483648
    %v9697 = vmul.f32 %v9681, 1.442695
    %v9698 = vpow.pop %v9697
    %v9699 = vmul.f32 %v9682, 1.442695
    %v9700 = vpow.pop %v9699
    %v9701 = vmul.f32 %v9683, 1.442695
    %v9702 = vpow.pop %v9701
    %v9703 = vmul.f32 %v9684, 1.442695
    %v9704 = vpow.pop %v9703
    %v9705 = vmul.f32 %v9685, 1.442695
    %v9706 = vpow.pop %v9705
    %v9707 = vmul.f32 %v9686, 1.442695
    %v9708 = vpow.pop %v9707
    %v9709 = vmul.f32 %v9687, 1.442695
    %v9710 = vpow.pop %v9709
    %v9711 = vmul.f32 %v9688, 1.442695
    %v9712 = vpow.pop %v9711
    %v9713 = vmul.f32 %v9689, 1.442695
    %v9714 = vpow.pop %v9713
    %v9715 = vmul.f32 %v9690, 1.442695
    %v9716 = vpow.pop %v9715
    %v9717 = vmul.f32 %v9691, 1.442695
    %v9718 = vpow.pop %v9717
    %v9719 = vmul.f32 %v9692, 1.442695
    %v9720 = vpow.pop %v9719
    %v9721 = vmul.f32 %v9693, 1.442695
    %v9722 = vpow.pop %v9721
    %v9723 = vmul.f32 %v9694, 1.442695
    %v9724 = vpow.pop %v9723
    %v9725 = vmul.f32 %v9695, 1.442695
    %v9726 = vpow.pop %v9725
    %v9727 = vmul.f32 %v9696, 1.442695
    %v9728 = vpow.pop %v9727
    %v9729 = vadd.f32 %v9698, 1.0
    %v9730 = vadd.f32 %v9700, 1.0
    %v9731 = vadd.f32 %v9702, 1.0
    %v9732 = vadd.f32 %v9704, 1.0
    %v9733 = vadd.f32 %v9706, 1.0
    %v9734 = vadd.f32 %v9708, 1.0
    %v9735 = vadd.f32 %v9710, 1.0
    %v9736 = vadd.f32 %v9712, 1.0
    %v9737 = vadd.f32 %v9714, 1.0
    %v9738 = vadd.f32 %v9716, 1.0
    %v9739 = vadd.f32 %v9718, 1.0
    %v9740 = vadd.f32 %v9720, 1.0
    %v9741 = vadd.f32 %v9722, 1.0
    %v9742 = vadd.f32 %v9724, 1.0
    %v9743 = vadd.f32 %v9726, 1.0
    %v9744 = vadd.f32 %v9728, 1.0
    %v9745 = vrcp.pop %v9729
    %v9746 = vmul.f32 1.0, %v9745
    %v9747 = vrcp.pop %v9730
    %v9748 = vmul.f32 1.0, %v9747
    %v9749 = vrcp.pop %v9731
    %v9750 = vmul.f32 1.0, %v9749
    %v9751 = vrcp.pop %v9732
    %v9752 = vmul.f32 1.0, %v9751
    %v9753 = vrcp.pop %v9733
    %v9754 = vmul.f32 1.0, %v9753
    %v9755 = vrcp.pop %v9734
    %v9756 = vmul.f32 1.0, %v9755
    %v9757 = vrcp.pop %v9735
    %v9758 = vmul.f32 1.0, %v9757
    %v9759 = vrcp.pop %v9736
    %v9760 = vmul.f32 1.0, %v9759
    %v9761 = vrcp.pop %v9737
    %v9762 = vmul.f32 1.0, %v9761
    %v9763 = vrcp.pop %v9738
    %v9764 = vmul.f32 1.0, %v9763
    %v9765 = vrcp.pop %v9739
    %v9766 = vmul.f32 1.0, %v9765
    %v9767 = vrcp.pop %v9740
    %v9768 = vmul.f32 1.0, %v9767
    %v9769 = vrcp.pop %v9741
    %v9770 = vmul.f32 1.0, %v9769
    %v9771 = vrcp.pop %v9742
    %v9772 = vmul.f32 1.0, %v9771
    %v9773 = vrcp.pop %v9743
    %v9774 = vmul.f32 1.0, %v9773
    %v9775 = vrcp.pop %v9744
    %v9776 = vmul.f32 1.0, %v9775
    %v9777 = vxor.u32 %v9497, 2147483648
    %v9778 = vxor.u32 %v9499, 2147483648
    %v9779 = vxor.u32 %v9501, 2147483648
    %v9780 = vxor.u32 %v9503, 2147483648
    %v9781 = vxor.u32 %v9507, 2147483648
    %v9782 = vxor.u32 %v9509, 2147483648
    %v9783 = vxor.u32 %v9511, 2147483648
    %v9784 = vxor.u32 %v9513, 2147483648
    %v9785 = vxor.u32 %v9517, 2147483648
    %v9786 = vxor.u32 %v9519, 2147483648
    %v9787 = vxor.u32 %v9521, 2147483648
    %v9788 = vxor.u32 %v9523, 2147483648
    %v9789 = vxor.u32 %v9527, 2147483648
    %v9790 = vxor.u32 %v9529, 2147483648
    %v9791 = vxor.u32 %v9531, 2147483648
    %v9792 = vxor.u32 %v9533, 2147483648
    %v9793 = vmul.f32 %v9777, 1.442695
    %v9794 = vpow.pop %v9793
    %v9795 = vmul.f32 %v9778, 1.442695
    %v9796 = vpow.pop %v9795
    %v9797 = vmul.f32 %v9779, 1.442695
    %v9798 = vpow.pop %v9797
    %v9799 = vmul.f32 %v9780, 1.442695
    %v9800 = vpow.pop %v9799
    %v9801 = vmul.f32 %v9781, 1.442695
    %v9802 = vpow.pop %v9801
    %v9803 = vmul.f32 %v9782, 1.442695
    %v9804 = vpow.pop %v9803
    %v9805 = vmul.f32 %v9783, 1.442695
    %v9806 = vpow.pop %v9805
    %v9807 = vmul.f32 %v9784, 1.442695
    %v9808 = vpow.pop %v9807
    %v9809 = vmul.f32 %v9785, 1.442695
    %v9810 = vpow.pop %v9809
    %v9811 = vmul.f32 %v9786, 1.442695
    %v9812 = vpow.pop %v9811
    %v9813 = vmul.f32 %v9787, 1.442695
    %v9814 = vpow.pop %v9813
    %v9815 = vmul.f32 %v9788, 1.442695
    %v9816 = vpow.pop %v9815
    %v9817 = vmul.f32 %v9789, 1.442695
    %v9818 = vpow.pop %v9817
    %v9819 = vmul.f32 %v9790, 1.442695
    %v9820 = vpow.pop %v9819
    %v9821 = vmul.f32 %v9791, 1.442695
    %v9822 = vpow.pop %v9821
    %v9823 = vmul.f32 %v9792, 1.442695
    %v9824 = vpow.pop %v9823
    %v9825 = vadd.f32 %v9794, 1.0
    %v9826 = vadd.f32 %v9796, 1.0
    %v9827 = vadd.f32 %v9798, 1.0
    %v9828 = vadd.f32 %v9800, 1.0
    %v9829 = vadd.f32 %v9802, 1.0
    %v9830 = vadd.f32 %v9804, 1.0
    %v9831 = vadd.f32 %v9806, 1.0
    %v9832 = vadd.f32 %v9808, 1.0
    %v9833 = vadd.f32 %v9810, 1.0
    %v9834 = vadd.f32 %v9812, 1.0
    %v9835 = vadd.f32 %v9814, 1.0
    %v9836 = vadd.f32 %v9816, 1.0
    %v9837 = vadd.f32 %v9818, 1.0
    %v9838 = vadd.f32 %v9820, 1.0
    %v9839 = vadd.f32 %v9822, 1.0
    %v9840 = vadd.f32 %v9824, 1.0
    %v9841 = vrcp.pop %v9825
    %v9842 = vmul.f32 1.0, %v9841
    %v9843 = vrcp.pop %v9826
    %v9844 = vmul.f32 1.0, %v9843
    %v9845 = vrcp.pop %v9827
    %v9846 = vmul.f32 1.0, %v9845
    %v9847 = vrcp.pop %v9828
    %v9848 = vmul.f32 1.0, %v9847
    %v9849 = vrcp.pop %v9829
    %v9850 = vmul.f32 1.0, %v9849
    %v9851 = vrcp.pop %v9830
    %v9852 = vmul.f32 1.0, %v9851
    %v9853 = vrcp.pop %v9831
    %v9854 = vmul.f32 1.0, %v9853
    %v9855 = vrcp.pop %v9832
    %v9856 = vmul.f32 1.0, %v9855
    %v9857 = vrcp.pop %v9833
    %v9858 = vmul.f32 1.0, %v9857
    %v9859 = vrcp.pop %v9834
    %v9860 = vmul.f32 1.0, %v9859
    %v9861 = vrcp.pop %v9835
    %v9862 = vmul.f32 1.0, %v9861
    %v9863 = vrcp.pop %v9836
    %v9864 = vmul.f32 1.0, %v9863
    %v9865 = vrcp.pop %v9837
    %v9866 = vmul.f32 1.0, %v9865
    %v9867 = vrcp.pop %v9838
    %v9868 = vmul.f32 1.0, %v9867
    %v9869 = vrcp.pop %v9839
    %v9870 = vmul.f32 1.0, %v9869
    %v9871 = vrcp.pop %v9840
    %v9872 = vmul.f32 1.0, %v9871
    %v9873 = vtanh.pop %v9570
    %v9874 = vtanh.pop %v9572
    %v9875 = vtanh.pop %v9574
    %v9876 = vtanh.pop %v9576
    %v9877 = vtanh.pop %v9580
    %v9878 = vtanh.pop %v9582
    %v9879 = vtanh.pop %v9584
    %v9880 = vtanh.pop %v9586
    %v9881 = vtanh.pop %v9590
    %v9882 = vtanh.pop %v9592
    %v9883 = vtanh.pop %v9594
    %v9884 = vtanh.pop %v9596
    %v9885 = vtanh.pop %v9600
    %v9886 = vtanh.pop %v9602
    %v9887 = vtanh.pop %v9604
    %v9888 = vtanh.pop %v9606
    %v9889 = vxor.u32 %v9643, 2147483648
    %v9890 = vxor.u32 %v9645, 2147483648
    %v9891 = vxor.u32 %v9647, 2147483648
    %v9892 = vxor.u32 %v9649, 2147483648
    %v9893 = vxor.u32 %v9653, 2147483648
    %v9894 = vxor.u32 %v9655, 2147483648
    %v9895 = vxor.u32 %v9657, 2147483648
    %v9896 = vxor.u32 %v9659, 2147483648
    %v9897 = vxor.u32 %v9663, 2147483648
    %v9898 = vxor.u32 %v9665, 2147483648
    %v9899 = vxor.u32 %v9667, 2147483648
    %v9900 = vxor.u32 %v9669, 2147483648
    %v9901 = vxor.u32 %v9673, 2147483648
    %v9902 = vxor.u32 %v9675, 2147483648
    %v9903 = vxor.u32 %v9677, 2147483648
    %v9904 = vxor.u32 %v9679, 2147483648
    %v9905 = vmul.f32 %v9889, 1.442695
    %v9906 = vpow.pop %v9905
    %v9907 = vmul.f32 %v9890, 1.442695
    %v9908 = vpow.pop %v9907
    %v9909 = vmul.f32 %v9891, 1.442695
    %v9910 = vpow.pop %v9909
    %v9911 = vmul.f32 %v9892, 1.442695
    %v9912 = vpow.pop %v9911
    %v9913 = vmul.f32 %v9893, 1.442695
    %v9914 = vpow.pop %v9913
    %v9915 = vmul.f32 %v9894, 1.442695
    %v9916 = vpow.pop %v9915
    %v9917 = vmul.f32 %v9895, 1.442695
    %v9918 = vpow.pop %v9917
    %v9919 = vmul.f32 %v9896, 1.442695
    %v9920 = vpow.pop %v9919
    %v9921 = vmul.f32 %v9897, 1.442695
    %v9922 = vpow.pop %v9921
    %v9923 = vmul.f32 %v9898, 1.442695
    %v9924 = vpow.pop %v9923
    %v9925 = vmul.f32 %v9899, 1.442695
    %v9926 = vpow.pop %v9925
    %v9927 = vmul.f32 %v9900, 1.442695
    %v9928 = vpow.pop %v9927
    %v9929 = vmul.f32 %v9901, 1.442695
    %v9930 = vpow.pop %v9929
    %v9931 = vmul.f32 %v9902, 1.442695
    %v9932 = vpow.pop %v9931
    %v9933 = vmul.f32 %v9903, 1.442695
    %v9934 = vpow.pop %v9933
    %v9935 = vmul.f32 %v9904, 1.442695
    %v9936 = vpow.pop %v9935
    %v9937 = vadd.f32 %v9906, 1.0
    %v9938 = vadd.f32 %v9908, 1.0
    %v9939 = vadd.f32 %v9910, 1.0
    %v9940 = vadd.f32 %v9912, 1.0
    %v9941 = vadd.f32 %v9914, 1.0
    %v9942 = vadd.f32 %v9916, 1.0
    %v9943 = vadd.f32 %v9918, 1.0
    %v9944 = vadd.f32 %v9920, 1.0
    %v9945 = vadd.f32 %v9922, 1.0
    %v9946 = vadd.f32 %v9924, 1.0
    %v9947 = vadd.f32 %v9926, 1.0
    %v9948 = vadd.f32 %v9928, 1.0
    %v9949 = vadd.f32 %v9930, 1.0
    %v9950 = vadd.f32 %v9932, 1.0
    %v9951 = vadd.f32 %v9934, 1.0
    %v9952 = vadd.f32 %v9936, 1.0
    %v9953 = vrcp.pop %v9937
    %v9954 = vmul.f32 1.0, %v9953
    %v9955 = vrcp.pop %v9938
    %v9956 = vmul.f32 1.0, %v9955
    %v9957 = vrcp.pop %v9939
    %v9958 = vmul.f32 1.0, %v9957
    %v9959 = vrcp.pop %v9940
    %v9960 = vmul.f32 1.0, %v9959
    %v9961 = vrcp.pop %v9941
    %v9962 = vmul.f32 1.0, %v9961
    %v9963 = vrcp.pop %v9942
    %v9964 = vmul.f32 1.0, %v9963
    %v9965 = vrcp.pop %v9943
    %v9966 = vmul.f32 1.0, %v9965
    %v9967 = vrcp.pop %v9944
    %v9968 = vmul.f32 1.0, %v9967
    %v9969 = vrcp.pop %v9945
    %v9970 = vmul.f32 1.0, %v9969
    %v9971 = vrcp.pop %v9946
    %v9972 = vmul.f32 1.0, %v9971
    %v9973 = vrcp.pop %v9947
    %v9974 = vmul.f32 1.0, %v9973
    %v9975 = vrcp.pop %v9948
    %v9976 = vmul.f32 1.0, %v9975
    %v9977 = vrcp.pop %v9949
    %v9978 = vmul.f32 1.0, %v9977
    %v9979 = vrcp.pop %v9950
    %v9980 = vmul.f32 1.0, %v9979
    %v9981 = vrcp.pop %v9951
    %v9982 = vmul.f32 1.0, %v9981
    %v9983 = vrcp.pop %v9952
    %v9984 = vmul.f32 1.0, %v9983
    %v9985 = vmul.f32 %v9842, %v7632
    %v9986 = vmul.f32 %v9844, %v7633
    %v9987 = vmul.f32 %v9846, %v7634
    %v9988 = vmul.f32 %v9848, %v7635
    %v9989 = vmul.f32 %v9850, %v7636
    %v9990 = vmul.f32 %v9852, %v7637
    %v9991 = vmul.f32 %v9854, %v7638
    %v9992 = vmul.f32 %v9856, %v7639
    %v9993 = vmul.f32 %v9858, %v7640
    %v9994 = vmul.f32 %v9860, %v7641
    %v9995 = vmul.f32 %v9862, %v7642
    %v9996 = vmul.f32 %v9864, %v7643
    %v9997 = vmul.f32 %v9866, %v7644
    %v9998 = vmul.f32 %v9868, %v7645
    %v9999 = vmul.f32 %v9870, %v7646
    %v10000 = vmul.f32 %v9872, %v7647
    %v10001 = vmul.f32 %v9746, %v9873
    %v10002 = vmul.f32 %v9748, %v9874
    %v10003 = vmul.f32 %v9750, %v9875
    %v10004 = vmul.f32 %v9752, %v9876
    %v10005 = vmul.f32 %v9754, %v9877
    %v10006 = vmul.f32 %v9756, %v9878
    %v10007 = vmul.f32 %v9758, %v9879
    %v10008 = vmul.f32 %v9760, %v9880
    %v10009 = vmul.f32 %v9762, %v9881
    %v10010 = vmul.f32 %v9764, %v9882
    %v10011 = vmul.f32 %v9766, %v9883
    %v10012 = vmul.f32 %v9768, %v9884
    %v10013 = vmul.f32 %v9770, %v9885
    %v10014 = vmul.f32 %v9772, %v9886
    %v10015 = vmul.f32 %v9774, %v9887
    %v10016 = vmul.f32 %v9776, %v9888
    %v10017 = vadd.f32 %v9985, %v10001
    %v10018 = vadd.f32 %v9986, %v10002
    %v10019 = vadd.f32 %v9987, %v10003
    %v10020 = vadd.f32 %v9988, %v10004
    %v10021 = vadd.f32 %v9989, %v10005
    %v10022 = vadd.f32 %v9990, %v10006
    %v10023 = vadd.f32 %v9991, %v10007
    %v10024 = vadd.f32 %v9992, %v10008
    %v10025 = vadd.f32 %v9993, %v10009
    %v10026 = vadd.f32 %v9994, %v10010
    %v10027 = vadd.f32 %v9995, %v10011
    %v10028 = vadd.f32 %v9996, %v10012
    %v10029 = vadd.f32 %v9997, %v10013
    %v10030 = vadd.f32 %v9998, %v10014
    %v10031 = vadd.f32 %v9999, %v10015
    %v10032 = vadd.f32 %v10000, %v10016
    %v10033 = vtanh.pop %v10017
    %v10034 = vtanh.pop %v10018
    %v10035 = vtanh.pop %v10019
    %v10036 = vtanh.pop %v10020
    %v10037 = vtanh.pop %v10021
    %v10038 = vtanh.pop %v10022
    %v10039 = vtanh.pop %v10023
    %v10040 = vtanh.pop %v10024
    %v10041 = vtanh.pop %v10025
    %v10042 = vtanh.pop %v10026
    %v10043 = vtanh.pop %v10027
    %v10044 = vtanh.pop %v10028
    %v10045 = vtanh.pop %v10029
    %v10046 = vtanh.pop %v10030
    %v10047 = vtanh.pop %v10031
    %v10048 = vtanh.pop %v10032
    %v10049 = vmul.f32 %v9954, %v10033
    %v10050 = vmul.f32 %v9956, %v10034
    %v10051 = vmul.f32 %v9958, %v10035
    %v10052 = vmul.f32 %v9960, %v10036
    %v10053 = vmul.f32 %v9962, %v10037
    %v10054 = vmul.f32 %v9964, %v10038
    %v10055 = vmul.f32 %v9966, %v10039
    %v10056 = vmul.f32 %v9968, %v10040
    %v10057 = vmul.f32 %v9970, %v10041
    %v10058 = vmul.f32 %v9972, %v10042
    %v10059 = vmul.f32 %v9974, %v10043
    %v10060 = vmul.f32 %v9976, %v10044
    %v10061 = vmul.f32 %v9978, %v10045
    %v10062 = vmul.f32 %v9980, %v10046
    %v10063 = vmul.f32 %v9982, %v10047
    %v10064 = vmul.f32 %v9984, %v10048
    %v10065 = vpack.c.bf16 %v10051, %v10049
    %v10066 = vpack.c.bf16 %v10052, %v10050
    %v10067 = vpack.c.bf16 %v10055, %v10053
    %v10068 = vpack.c.bf16 %v10056, %v10054
    %v10069 = vpack.c.bf16 %v10059, %v10057
    %v10070 = vpack.c.bf16 %v10060, %v10058
    %v10071 = vpack.c.bf16 %v10063, %v10061
    %v10072 = vpack.c.bf16 %v10064, %v10062
    %s10073 = scalar_lea.vmem %s9, 3072
    %v10074 = vld [vmem:[%s10073] sm:$0xff]
    %v10075 = vld [vmem:[%s10073 + $0x8] sm:$0xff]
    %v10076 = vld [vmem:[%s10073 + $0x10] sm:$0xff]
    %v10077 = vld [vmem:[%s10073 + $0x18] sm:$0xff]
    %v10078 = vld [vmem:[%s10073 + $0x20] sm:$0xff]
    %v10079 = vld [vmem:[%s10073 + $0x28] sm:$0xff]
    %v10080 = vld [vmem:[%s10073 + $0x30] sm:$0xff]
    %v10081 = vld [vmem:[%s10073 + $0x38] sm:$0xff]
    %v10082 = vld [vmem:[%s10073 + $0x40] sm:$0xff]
    %v10083 = vld [vmem:[%s10073 + $0x48] sm:$0xff]
    %v10084 = vld [vmem:[%s10073 + $0x50] sm:$0xff]
    %v10085 = vld [vmem:[%s10073 + $0x58] sm:$0xff]
    %v10086 = vld [vmem:[%s10073 + $0x60] sm:$0xff]
    %v10087 = vld [vmem:[%s10073 + $0x68] sm:$0xff]
    %v10088 = vld [vmem:[%s10073 + $0x70] sm:$0xff]
    %v10089 = vld [vmem:[%s10073 + $0x78] sm:$0xff]
    %v10090 = vld [vmem:[%s10073 + $0x80] sm:$0xff]
    %v10091 = vld [vmem:[%s10073 + $0x88] sm:$0xff]
    %v10092 = vld [vmem:[%s10073 + $0x90] sm:$0xff]
    %v10093 = vld [vmem:[%s10073 + $0x98] sm:$0xff]
    %v10094 = vld [vmem:[%s10073 + $0xa0] sm:$0xff]
    %v10095 = vld [vmem:[%s10073 + $0xa8] sm:$0xff]
    %v10096 = vld [vmem:[%s10073 + $0xb0] sm:$0xff]
    %v10097 = vld [vmem:[%s10073 + $0xb8] sm:$0xff]
    %v10098 = vld [vmem:[%s10073 + $0xc0] sm:$0xff]
    %v10099 = vld [vmem:[%s10073 + $0xc8] sm:$0xff]
    %v10100 = vld [vmem:[%s10073 + $0xd0] sm:$0xff]
    %v10101 = vld [vmem:[%s10073 + $0xd8] sm:$0xff]
    %v10102 = vld [vmem:[%s10073 + $0xe0] sm:$0xff]
    %v10103 = vld [vmem:[%s10073 + $0xe8] sm:$0xff]
    %v10104 = vld [vmem:[%s10073 + $0xf0] sm:$0xff]
    %v10105 = vld [vmem:[%s10073 + $0xf8] sm:$0xff]
    %v10106 = vld [vmem:[%s10073 + $0x100] sm:$0xff]
    %v10107 = vld [vmem:[%s10073 + $0x108] sm:$0xff]
    %v10108 = vld [vmem:[%s10073 + $0x110] sm:$0xff]
    %v10109 = vld [vmem:[%s10073 + $0x118] sm:$0xff]
    %v10110 = vld [vmem:[%s10073 + $0x120] sm:$0xff]
    %v10111 = vld [vmem:[%s10073 + $0x128] sm:$0xff]
    %v10112 = vld [vmem:[%s10073 + $0x130] sm:$0xff]
    %v10113 = vld [vmem:[%s10073 + $0x138] sm:$0xff]
    %v10114 = vld [vmem:[%s10073 + $0x140] sm:$0xff]
    %v10115 = vld [vmem:[%s10073 + $0x148] sm:$0xff]
    %v10116 = vld [vmem:[%s10073 + $0x150] sm:$0xff]
    %v10117 = vld [vmem:[%s10073 + $0x158] sm:$0xff]
    %v10118 = vld [vmem:[%s10073 + $0x160] sm:$0xff]
    %v10119 = vld [vmem:[%s10073 + $0x168] sm:$0xff]
    %v10120 = vld [vmem:[%s10073 + $0x170] sm:$0xff]
    %v10121 = vld [vmem:[%s10073 + $0x178] sm:$0xff]
    %v10122 = vld [vmem:[%s10073 + $0x180] sm:$0xff]
    %v10123 = vld [vmem:[%s10073 + $0x188] sm:$0xff]
    %v10124 = vld [vmem:[%s10073 + $0x190] sm:$0xff]
    %v10125 = vld [vmem:[%s10073 + $0x198] sm:$0xff]
    %v10126 = vld [vmem:[%s10073 + $0x1a0] sm:$0xff]
    %v10127 = vld [vmem:[%s10073 + $0x1a8] sm:$0xff]
    %v10128 = vld [vmem:[%s10073 + $0x1b0] sm:$0xff]
    %v10129 = vld [vmem:[%s10073 + $0x1b8] sm:$0xff]
    %v10130 = vld [vmem:[%s10073 + $0x1c0] sm:$0xff]
    %v10131 = vld [vmem:[%s10073 + $0x1c8] sm:$0xff]
    %v10132 = vld [vmem:[%s10073 + $0x1d0] sm:$0xff]
    %v10133 = vld [vmem:[%s10073 + $0x1d8] sm:$0xff]
    %v10134 = vld [vmem:[%s10073 + $0x1e0] sm:$0xff]
    %v10135 = vld [vmem:[%s10073 + $0x1e8] sm:$0xff]
    %v10136 = vld [vmem:[%s10073 + $0x1f0] sm:$0xff]
    %v10137 = vld [vmem:[%s10073 + $0x1f8] sm:$0xff]
    %v10138 = vld [vmem:[%s10073 + $0x200] sm:$0xff]
    %v10139 = vld [vmem:[%s10073 + $0x208] sm:$0xff]
    %v10140 = vld [vmem:[%s10073 + $0x210] sm:$0xff]
    %v10141 = vld [vmem:[%s10073 + $0x218] sm:$0xff]
    %v10142 = vld [vmem:[%s10073 + $0x220] sm:$0xff]
    %v10143 = vld [vmem:[%s10073 + $0x228] sm:$0xff]
    %v10144 = vld [vmem:[%s10073 + $0x230] sm:$0xff]
    %v10145 = vld [vmem:[%s10073 + $0x238] sm:$0xff]
    %v10146 = vld [vmem:[%s10073 + $0x240] sm:$0xff]
    %v10147 = vld [vmem:[%s10073 + $0x248] sm:$0xff]
    %v10148 = vld [vmem:[%s10073 + $0x250] sm:$0xff]
    %v10149 = vld [vmem:[%s10073 + $0x258] sm:$0xff]
    %v10150 = vld [vmem:[%s10073 + $0x260] sm:$0xff]
    %v10151 = vld [vmem:[%s10073 + $0x268] sm:$0xff]
    %v10152 = vld [vmem:[%s10073 + $0x270] sm:$0xff]
    %v10153 = vld [vmem:[%s10073 + $0x278] sm:$0xff]
    %v10154 = vld [vmem:[%s10073 + $0x280] sm:$0xff]
    %v10155 = vld [vmem:[%s10073 + $0x288] sm:$0xff]
    %v10156 = vld [vmem:[%s10073 + $0x290] sm:$0xff]
    %v10157 = vld [vmem:[%s10073 + $0x298] sm:$0xff]
    %v10158 = vld [vmem:[%s10073 + $0x2a0] sm:$0xff]
    %v10159 = vld [vmem:[%s10073 + $0x2a8] sm:$0xff]
    %v10160 = vld [vmem:[%s10073 + $0x2b0] sm:$0xff]
    %v10161 = vld [vmem:[%s10073 + $0x2b8] sm:$0xff]
    %v10162 = vld [vmem:[%s10073 + $0x2c0] sm:$0xff]
    %v10163 = vld [vmem:[%s10073 + $0x2c8] sm:$0xff]
    %v10164 = vld [vmem:[%s10073 + $0x2d0] sm:$0xff]
    %v10165 = vld [vmem:[%s10073 + $0x2d8] sm:$0xff]
    %v10166 = vld [vmem:[%s10073 + $0x2e0] sm:$0xff]
    %v10167 = vld [vmem:[%s10073 + $0x2e8] sm:$0xff]
    %v10168 = vld [vmem:[%s10073 + $0x2f0] sm:$0xff]
    %v10169 = vld [vmem:[%s10073 + $0x2f8] sm:$0xff]
    %v10170 = vld [vmem:[%s10073 + $0x300] sm:$0xff]
    %v10171 = vld [vmem:[%s10073 + $0x308] sm:$0xff]
    %v10172 = vld [vmem:[%s10073 + $0x310] sm:$0xff]
    %v10173 = vld [vmem:[%s10073 + $0x318] sm:$0xff]
    %v10174 = vld [vmem:[%s10073 + $0x320] sm:$0xff]
    %v10175 = vld [vmem:[%s10073 + $0x328] sm:$0xff]
    %v10176 = vld [vmem:[%s10073 + $0x330] sm:$0xff]
    %v10177 = vld [vmem:[%s10073 + $0x338] sm:$0xff]
    %v10178 = vld [vmem:[%s10073 + $0x340] sm:$0xff]
    %v10179 = vld [vmem:[%s10073 + $0x348] sm:$0xff]
    %v10180 = vld [vmem:[%s10073 + $0x350] sm:$0xff]
    %v10181 = vld [vmem:[%s10073 + $0x358] sm:$0xff]
    %v10182 = vld [vmem:[%s10073 + $0x360] sm:$0xff]
    %v10183 = vld [vmem:[%s10073 + $0x368] sm:$0xff]
    %v10184 = vld [vmem:[%s10073 + $0x370] sm:$0xff]
    %v10185 = vld [vmem:[%s10073 + $0x378] sm:$0xff]
    %v10186 = vld [vmem:[%s10073 + $0x380] sm:$0xff]
    %v10187 = vld [vmem:[%s10073 + $0x388] sm:$0xff]
    %v10188 = vld [vmem:[%s10073 + $0x390] sm:$0xff]
    %v10189 = vld [vmem:[%s10073 + $0x398] sm:$0xff]
    %v10190 = vld [vmem:[%s10073 + $0x3a0] sm:$0xff]
    %v10191 = vld [vmem:[%s10073 + $0x3a8] sm:$0xff]
    %v10192 = vld [vmem:[%s10073 + $0x3b0] sm:$0xff]
    %v10193 = vld [vmem:[%s10073 + $0x3b8] sm:$0xff]
    %v10194 = vld [vmem:[%s10073 + $0x3c0] sm:$0xff]
    %v10195 = vld [vmem:[%s10073 + $0x3c8] sm:$0xff]
    %v10196 = vld [vmem:[%s10073 + $0x3d0] sm:$0xff]
    %v10197 = vld [vmem:[%s10073 + $0x3d8] sm:$0xff]
    %v10198 = vld [vmem:[%s10073 + $0x3e0] sm:$0xff]
    %v10199 = vld [vmem:[%s10073 + $0x3e8] sm:$0xff]
    %v10200 = vld [vmem:[%s10073 + $0x3f0] sm:$0xff]
    %v10201 = vld [vmem:[%s10073 + $0x3f8] sm:$0xff]
    %v10330 = vunpack.c.l.b16 %v10074
    %v10331 = vunpack.c.h.b16 %v10074
    %v10332 = vunpack.c.l.b16 %v10075
    %v10333 = vunpack.c.h.b16 %v10075
    %v10334 = vunpack.c.l.b16 %v10076
    %v10335 = vunpack.c.h.b16 %v10076
    %v10336 = vunpack.c.l.b16 %v10077
    %v10337 = vunpack.c.h.b16 %v10077
    %v10338 = vunpack.c.l.b16 %v10078
    %v10339 = vunpack.c.h.b16 %v10078
    %v10340 = vunpack.c.l.b16 %v10079
    %v10341 = vunpack.c.h.b16 %v10079
    %v10342 = vunpack.c.l.b16 %v10080
    %v10343 = vunpack.c.h.b16 %v10080
    %v10344 = vunpack.c.l.b16 %v10081
    %v10345 = vunpack.c.h.b16 %v10081
    %v10346 = vunpack.c.l.b16 %v10082
    %v10347 = vunpack.c.h.b16 %v10082
    %v10348 = vunpack.c.l.b16 %v10083
    %v10349 = vunpack.c.h.b16 %v10083
    %v10350 = vunpack.c.l.b16 %v10084
    %v10351 = vunpack.c.h.b16 %v10084
    %v10352 = vunpack.c.l.b16 %v10085
    %v10353 = vunpack.c.h.b16 %v10085
    %v10354 = vunpack.c.l.b16 %v10086
    %v10355 = vunpack.c.h.b16 %v10086
    %v10356 = vunpack.c.l.b16 %v10087
    %v10357 = vunpack.c.h.b16 %v10087
    %v10358 = vunpack.c.l.b16 %v10088
    %v10359 = vunpack.c.h.b16 %v10088
    %v10360 = vunpack.c.l.b16 %v10089
    %v10361 = vunpack.c.h.b16 %v10089
    %v10362 = vunpack.c.l.b16 %v10090
    %v10363 = vunpack.c.h.b16 %v10090
    %v10364 = vunpack.c.l.b16 %v10091
    %v10365 = vunpack.c.h.b16 %v10091
    %v10366 = vunpack.c.l.b16 %v10092
    %v10367 = vunpack.c.h.b16 %v10092
    %v10368 = vunpack.c.l.b16 %v10093
    %v10369 = vunpack.c.h.b16 %v10093
    %v10370 = vunpack.c.l.b16 %v10094
    %v10371 = vunpack.c.h.b16 %v10094
    %v10372 = vunpack.c.l.b16 %v10095
    %v10373 = vunpack.c.h.b16 %v10095
    %v10374 = vunpack.c.l.b16 %v10096
    %v10375 = vunpack.c.h.b16 %v10096
    %v10376 = vunpack.c.l.b16 %v10097
    %v10377 = vunpack.c.h.b16 %v10097
    %v10378 = vunpack.c.l.b16 %v10098
    %v10379 = vunpack.c.h.b16 %v10098
    %v10380 = vunpack.c.l.b16 %v10099
    %v10381 = vunpack.c.h.b16 %v10099
    %v10382 = vunpack.c.l.b16 %v10100
    %v10383 = vunpack.c.h.b16 %v10100
    %v10384 = vunpack.c.l.b16 %v10101
    %v10385 = vunpack.c.h.b16 %v10101
    %v10386 = vunpack.c.l.b16 %v10102
    %v10387 = vunpack.c.h.b16 %v10102
    %v10388 = vunpack.c.l.b16 %v10103
    %v10389 = vunpack.c.h.b16 %v10103
    %v10390 = vunpack.c.l.b16 %v10104
    %v10391 = vunpack.c.h.b16 %v10104
    %v10392 = vunpack.c.l.b16 %v10105
    %v10393 = vunpack.c.h.b16 %v10105
    %v10394 = vunpack.c.l.b16 %v10106
    %v10395 = vunpack.c.h.b16 %v10106
    %v10396 = vunpack.c.l.b16 %v10107
    %v10397 = vunpack.c.h.b16 %v10107
    %v10398 = vunpack.c.l.b16 %v10108
    %v10399 = vunpack.c.h.b16 %v10108
    %v10400 = vunpack.c.l.b16 %v10109
    %v10401 = vunpack.c.h.b16 %v10109
    %v10402 = vunpack.c.l.b16 %v10110
    %v10403 = vunpack.c.h.b16 %v10110
    %v10404 = vunpack.c.l.b16 %v10111
    %v10405 = vunpack.c.h.b16 %v10111
    %v10406 = vunpack.c.l.b16 %v10112
    %v10407 = vunpack.c.h.b16 %v10112
    %v10408 = vunpack.c.l.b16 %v10113
    %v10409 = vunpack.c.h.b16 %v10113
    %v10410 = vunpack.c.l.b16 %v10114
    %v10411 = vunpack.c.h.b16 %v10114
    %v10412 = vunpack.c.l.b16 %v10115
    %v10413 = vunpack.c.h.b16 %v10115
    %v10414 = vunpack.c.l.b16 %v10116
    %v10415 = vunpack.c.h.b16 %v10116
    %v10416 = vunpack.c.l.b16 %v10117
    %v10417 = vunpack.c.h.b16 %v10117
    %v10418 = vunpack.c.l.b16 %v10118
    %v10419 = vunpack.c.h.b16 %v10118
    %v10420 = vunpack.c.l.b16 %v10119
    %v10421 = vunpack.c.h.b16 %v10119
    %v10422 = vunpack.c.l.b16 %v10120
    %v10423 = vunpack.c.h.b16 %v10120
    %v10424 = vunpack.c.l.b16 %v10121
    %v10425 = vunpack.c.h.b16 %v10121
    %v10426 = vunpack.c.l.b16 %v10122
    %v10427 = vunpack.c.h.b16 %v10122
    %v10428 = vunpack.c.l.b16 %v10123
    %v10429 = vunpack.c.h.b16 %v10123
    %v10430 = vunpack.c.l.b16 %v10124
    %v10431 = vunpack.c.h.b16 %v10124
    %v10432 = vunpack.c.l.b16 %v10125
    %v10433 = vunpack.c.h.b16 %v10125
    %v10434 = vunpack.c.l.b16 %v10126
    %v10435 = vunpack.c.h.b16 %v10126
    %v10436 = vunpack.c.l.b16 %v10127
    %v10437 = vunpack.c.h.b16 %v10127
    %v10438 = vunpack.c.l.b16 %v10128
    %v10439 = vunpack.c.h.b16 %v10128
    %v10440 = vunpack.c.l.b16 %v10129
    %v10441 = vunpack.c.h.b16 %v10129
    %v10442 = vunpack.c.l.b16 %v10130
    %v10443 = vunpack.c.h.b16 %v10130
    %v10444 = vunpack.c.l.b16 %v10131
    %v10445 = vunpack.c.h.b16 %v10131
    %v10446 = vunpack.c.l.b16 %v10132
    %v10447 = vunpack.c.h.b16 %v10132
    %v10448 = vunpack.c.l.b16 %v10133
    %v10449 = vunpack.c.h.b16 %v10133
    %v10450 = vunpack.c.l.b16 %v10134
    %v10451 = vunpack.c.h.b16 %v10134
    %v10452 = vunpack.c.l.b16 %v10135
    %v10453 = vunpack.c.h.b16 %v10135
    %v10454 = vunpack.c.l.b16 %v10136
    %v10455 = vunpack.c.h.b16 %v10136
    %v10456 = vunpack.c.l.b16 %v10137
    %v10457 = vunpack.c.h.b16 %v10137
    %v10458 = vunpack.c.l.b16 %v10138
    %v10459 = vunpack.c.h.b16 %v10138
    %v10460 = vunpack.c.l.b16 %v10139
    %v10461 = vunpack.c.h.b16 %v10139
    %v10462 = vunpack.c.l.b16 %v10140
    %v10463 = vunpack.c.h.b16 %v10140
    %v10464 = vunpack.c.l.b16 %v10141
    %v10465 = vunpack.c.h.b16 %v10141
    %v10466 = vunpack.c.l.b16 %v10142
    %v10467 = vunpack.c.h.b16 %v10142
    %v10468 = vunpack.c.l.b16 %v10143
    %v10469 = vunpack.c.h.b16 %v10143
    %v10470 = vunpack.c.l.b16 %v10144
    %v10471 = vunpack.c.h.b16 %v10144
    %v10472 = vunpack.c.l.b16 %v10145
    %v10473 = vunpack.c.h.b16 %v10145
    %v10474 = vunpack.c.l.b16 %v10146
    %v10475 = vunpack.c.h.b16 %v10146
    %v10476 = vunpack.c.l.b16 %v10147
    %v10477 = vunpack.c.h.b16 %v10147
    %v10478 = vunpack.c.l.b16 %v10148
    %v10479 = vunpack.c.h.b16 %v10148
    %v10480 = vunpack.c.l.b16 %v10149
    %v10481 = vunpack.c.h.b16 %v10149
    %v10482 = vunpack.c.l.b16 %v10150
    %v10483 = vunpack.c.h.b16 %v10150
    %v10484 = vunpack.c.l.b16 %v10151
    %v10485 = vunpack.c.h.b16 %v10151
    %v10486 = vunpack.c.l.b16 %v10152
    %v10487 = vunpack.c.h.b16 %v10152
    %v10488 = vunpack.c.l.b16 %v10153
    %v10489 = vunpack.c.h.b16 %v10153
    %v10490 = vunpack.c.l.b16 %v10154
    %v10491 = vunpack.c.h.b16 %v10154
    %v10492 = vunpack.c.l.b16 %v10155
    %v10493 = vunpack.c.h.b16 %v10155
    %v10494 = vunpack.c.l.b16 %v10156
    %v10495 = vunpack.c.h.b16 %v10156
    %v10496 = vunpack.c.l.b16 %v10157
    %v10497 = vunpack.c.h.b16 %v10157
    %v10498 = vunpack.c.l.b16 %v10158
    %v10499 = vunpack.c.h.b16 %v10158
    %v10500 = vunpack.c.l.b16 %v10159
    %v10501 = vunpack.c.h.b16 %v10159
    %v10502 = vunpack.c.l.b16 %v10160
    %v10503 = vunpack.c.h.b16 %v10160
    %v10504 = vunpack.c.l.b16 %v10161
    %v10505 = vunpack.c.h.b16 %v10161
    %v10506 = vunpack.c.l.b16 %v10162
    %v10507 = vunpack.c.h.b16 %v10162
    %v10508 = vunpack.c.l.b16 %v10163
    %v10509 = vunpack.c.h.b16 %v10163
    %v10510 = vunpack.c.l.b16 %v10164
    %v10511 = vunpack.c.h.b16 %v10164
    %v10512 = vunpack.c.l.b16 %v10165
    %v10513 = vunpack.c.h.b16 %v10165
    %v10514 = vunpack.c.l.b16 %v10166
    %v10515 = vunpack.c.h.b16 %v10166
    %v10516 = vunpack.c.l.b16 %v10167
    %v10517 = vunpack.c.h.b16 %v10167
    %v10518 = vunpack.c.l.b16 %v10168
    %v10519 = vunpack.c.h.b16 %v10168
    %v10520 = vunpack.c.l.b16 %v10169
    %v10521 = vunpack.c.h.b16 %v10169
    %v10522 = vunpack.c.l.b16 %v10170
    %v10523 = vunpack.c.h.b16 %v10170
    %v10524 = vunpack.c.l.b16 %v10171
    %v10525 = vunpack.c.h.b16 %v10171
    %v10526 = vunpack.c.l.b16 %v10172
    %v10527 = vunpack.c.h.b16 %v10172
    %v10528 = vunpack.c.l.b16 %v10173
    %v10529 = vunpack.c.h.b16 %v10173
    %v10530 = vunpack.c.l.b16 %v10174
    %v10531 = vunpack.c.h.b16 %v10174
    %v10532 = vunpack.c.l.b16 %v10175
    %v10533 = vunpack.c.h.b16 %v10175
    %v10534 = vunpack.c.l.b16 %v10176
    %v10535 = vunpack.c.h.b16 %v10176
    %v10536 = vunpack.c.l.b16 %v10177
    %v10537 = vunpack.c.h.b16 %v10177
    %v10538 = vunpack.c.l.b16 %v10178
    %v10539 = vunpack.c.h.b16 %v10178
    %v10540 = vunpack.c.l.b16 %v10179
    %v10541 = vunpack.c.h.b16 %v10179
    %v10542 = vunpack.c.l.b16 %v10180
    %v10543 = vunpack.c.h.b16 %v10180
    %v10544 = vunpack.c.l.b16 %v10181
    %v10545 = vunpack.c.h.b16 %v10181
    %v10546 = vunpack.c.l.b16 %v10182
    %v10547 = vunpack.c.h.b16 %v10182
    %v10548 = vunpack.c.l.b16 %v10183
    %v10549 = vunpack.c.h.b16 %v10183
    %v10550 = vunpack.c.l.b16 %v10184
    %v10551 = vunpack.c.h.b16 %v10184
    %v10552 = vunpack.c.l.b16 %v10185
    %v10553 = vunpack.c.h.b16 %v10185
    %v10554 = vunpack.c.l.b16 %v10186
    %v10555 = vunpack.c.h.b16 %v10186
    %v10556 = vunpack.c.l.b16 %v10187
    %v10557 = vunpack.c.h.b16 %v10187
    %v10558 = vunpack.c.l.b16 %v10188
    %v10559 = vunpack.c.h.b16 %v10188
    %v10560 = vunpack.c.l.b16 %v10189
    %v10561 = vunpack.c.h.b16 %v10189
    %v10562 = vunpack.c.l.b16 %v10190
    %v10563 = vunpack.c.h.b16 %v10190
    %v10564 = vunpack.c.l.b16 %v10191
    %v10565 = vunpack.c.h.b16 %v10191
    %v10566 = vunpack.c.l.b16 %v10192
    %v10567 = vunpack.c.h.b16 %v10192
    %v10568 = vunpack.c.l.b16 %v10193
    %v10569 = vunpack.c.h.b16 %v10193
    %v10570 = vunpack.c.l.b16 %v10194
    %v10571 = vunpack.c.h.b16 %v10194
    %v10572 = vunpack.c.l.b16 %v10195
    %v10573 = vunpack.c.h.b16 %v10195
    %v10574 = vunpack.c.l.b16 %v10196
    %v10575 = vunpack.c.h.b16 %v10196
    %v10576 = vunpack.c.l.b16 %v10197
    %v10577 = vunpack.c.h.b16 %v10197
    %v10578 = vunpack.c.l.b16 %v10198
    %v10579 = vunpack.c.h.b16 %v10198
    %v10580 = vunpack.c.l.b16 %v10199
    %v10581 = vunpack.c.h.b16 %v10199
    %v10582 = vunpack.c.l.b16 %v10200
    %v10583 = vunpack.c.h.b16 %v10200
    %v10584 = vunpack.c.l.b16 %v10201
    %v10585 = vunpack.c.h.b16 %v10201
    %v10586 = vpack.c.b16 %v10338, %v10330
    %v10587 = vpack.c.b16 %v10339, %v10331
    %v10588 = vpack.c.b16 %v10340, %v10332
    %v10589 = vpack.c.b16 %v10341, %v10333
    %v10590 = vpack.c.b16 %v10342, %v10334
    %v10591 = vpack.c.b16 %v10343, %v10335
    %v10592 = vpack.c.b16 %v10344, %v10336
    %v10593 = vpack.c.b16 %v10345, %v10337
    %v10594 = vpack.c.b16 %v10354, %v10346
    %v10595 = vpack.c.b16 %v10355, %v10347
    %v10596 = vpack.c.b16 %v10356, %v10348
    %v10597 = vpack.c.b16 %v10357, %v10349
    %v10598 = vpack.c.b16 %v10358, %v10350
    %v10599 = vpack.c.b16 %v10359, %v10351
    %v10600 = vpack.c.b16 %v10360, %v10352
    %v10601 = vpack.c.b16 %v10361, %v10353
    %v10602 = vpack.c.b16 %v10370, %v10362
    %v10603 = vpack.c.b16 %v10371, %v10363
    %v10604 = vpack.c.b16 %v10372, %v10364
    %v10605 = vpack.c.b16 %v10373, %v10365
    %v10606 = vpack.c.b16 %v10374, %v10366
    %v10607 = vpack.c.b16 %v10375, %v10367
    %v10608 = vpack.c.b16 %v10376, %v10368
    %v10609 = vpack.c.b16 %v10377, %v10369
    %v10610 = vpack.c.b16 %v10386, %v10378
    %v10611 = vpack.c.b16 %v10387, %v10379
    %v10612 = vpack.c.b16 %v10388, %v10380
    %v10613 = vpack.c.b16 %v10389, %v10381
    %v10614 = vpack.c.b16 %v10390, %v10382
    %v10615 = vpack.c.b16 %v10391, %v10383
    %v10616 = vpack.c.b16 %v10392, %v10384
    %v10617 = vpack.c.b16 %v10393, %v10385
    %v10618 = vpack.c.b16 %v10402, %v10394
    %v10619 = vpack.c.b16 %v10403, %v10395
    %v10620 = vpack.c.b16 %v10404, %v10396
    %v10621 = vpack.c.b16 %v10405, %v10397
    %v10622 = vpack.c.b16 %v10406, %v10398
    %v10623 = vpack.c.b16 %v10407, %v10399
    %v10624 = vpack.c.b16 %v10408, %v10400
    %v10625 = vpack.c.b16 %v10409, %v10401
    %v10626 = vpack.c.b16 %v10418, %v10410
    %v10627 = vpack.c.b16 %v10419, %v10411
    %v10628 = vpack.c.b16 %v10420, %v10412
    %v10629 = vpack.c.b16 %v10421, %v10413
    %v10630 = vpack.c.b16 %v10422, %v10414
    %v10631 = vpack.c.b16 %v10423, %v10415
    %v10632 = vpack.c.b16 %v10424, %v10416
    %v10633 = vpack.c.b16 %v10425, %v10417
    %v10634 = vpack.c.b16 %v10434, %v10426
    %v10635 = vpack.c.b16 %v10435, %v10427
    %v10636 = vpack.c.b16 %v10436, %v10428
    %v10637 = vpack.c.b16 %v10437, %v10429
    %v10638 = vpack.c.b16 %v10438, %v10430
    %v10639 = vpack.c.b16 %v10439, %v10431
    %v10640 = vpack.c.b16 %v10440, %v10432
    %v10641 = vpack.c.b16 %v10441, %v10433
    %v10642 = vpack.c.b16 %v10450, %v10442
    %v10643 = vpack.c.b16 %v10451, %v10443
    %v10644 = vpack.c.b16 %v10452, %v10444
    %v10645 = vpack.c.b16 %v10453, %v10445
    %v10646 = vpack.c.b16 %v10454, %v10446
    %v10647 = vpack.c.b16 %v10455, %v10447
    %v10648 = vpack.c.b16 %v10456, %v10448
    %v10649 = vpack.c.b16 %v10457, %v10449
    %v10650 = vpack.c.b16 %v10466, %v10458
    %v10651 = vpack.c.b16 %v10467, %v10459
    %v10652 = vpack.c.b16 %v10468, %v10460
    %v10653 = vpack.c.b16 %v10469, %v10461
    %v10654 = vpack.c.b16 %v10470, %v10462
    %v10655 = vpack.c.b16 %v10471, %v10463
    %v10656 = vpack.c.b16 %v10472, %v10464
    %v10657 = vpack.c.b16 %v10473, %v10465
    %v10658 = vpack.c.b16 %v10482, %v10474
    %v10659 = vpack.c.b16 %v10483, %v10475
    %v10660 = vpack.c.b16 %v10484, %v10476
    %v10661 = vpack.c.b16 %v10485, %v10477
    %v10662 = vpack.c.b16 %v10486, %v10478
    %v10663 = vpack.c.b16 %v10487, %v10479
    %v10664 = vpack.c.b16 %v10488, %v10480
    %v10665 = vpack.c.b16 %v10489, %v10481
    %v10666 = vpack.c.b16 %v10498, %v10490
    %v10667 = vpack.c.b16 %v10499, %v10491
    %v10668 = vpack.c.b16 %v10500, %v10492
    %v10669 = vpack.c.b16 %v10501, %v10493
    %v10670 = vpack.c.b16 %v10502, %v10494
    %v10671 = vpack.c.b16 %v10503, %v10495
    %v10672 = vpack.c.b16 %v10504, %v10496
    %v10673 = vpack.c.b16 %v10505, %v10497
    %v10674 = vpack.c.b16 %v10514, %v10506
    %v10675 = vpack.c.b16 %v10515, %v10507
    %v10676 = vpack.c.b16 %v10516, %v10508
    %v10677 = vpack.c.b16 %v10517, %v10509
    %v10678 = vpack.c.b16 %v10518, %v10510
    %v10679 = vpack.c.b16 %v10519, %v10511
    %v10680 = vpack.c.b16 %v10520, %v10512
    %v10681 = vpack.c.b16 %v10521, %v10513
    %v10682 = vpack.c.b16 %v10530, %v10522
    %v10683 = vpack.c.b16 %v10531, %v10523
    %v10684 = vpack.c.b16 %v10532, %v10524
    %v10685 = vpack.c.b16 %v10533, %v10525
    %v10686 = vpack.c.b16 %v10534, %v10526
    %v10687 = vpack.c.b16 %v10535, %v10527
    %v10688 = vpack.c.b16 %v10536, %v10528
    %v10689 = vpack.c.b16 %v10537, %v10529
    %v10690 = vpack.c.b16 %v10546, %v10538
    %v10691 = vpack.c.b16 %v10547, %v10539
    %v10692 = vpack.c.b16 %v10548, %v10540
    %v10693 = vpack.c.b16 %v10549, %v10541
    %v10694 = vpack.c.b16 %v10550, %v10542
    %v10695 = vpack.c.b16 %v10551, %v10543
    %v10696 = vpack.c.b16 %v10552, %v10544
    %v10697 = vpack.c.b16 %v10553, %v10545
    %v10698 = vpack.c.b16 %v10562, %v10554
    %v10699 = vpack.c.b16 %v10563, %v10555
    %v10700 = vpack.c.b16 %v10564, %v10556
    %v10701 = vpack.c.b16 %v10565, %v10557
    %v10702 = vpack.c.b16 %v10566, %v10558
    %v10703 = vpack.c.b16 %v10567, %v10559
    %v10704 = vpack.c.b16 %v10568, %v10560
    %v10705 = vpack.c.b16 %v10569, %v10561
    %v10706 = vpack.c.b16 %v10578, %v10570
    %v10707 = vpack.c.b16 %v10579, %v10571
    %v10708 = vpack.c.b16 %v10580, %v10572
    %v10709 = vpack.c.b16 %v10581, %v10573
    %v10710 = vpack.c.b16 %v10582, %v10574
    %v10711 = vpack.c.b16 %v10583, %v10575
    %v10712 = vpack.c.b16 %v10584, %v10576
    %v10713 = vpack.c.b16 %v10585, %v10577
    %10842 = vmatprep.subr.bf16.mxu0 %v10587
    %10843 = vmatpush1.bf16.msra.mxu0 %v10586
    %10844 = vmatprep.subr.bf16.mxu0 %v10595
    %10845 = vmatpush1.bf16.msra.mxu0 %v10594
    %10846 = vmatprep.subr.bf16.mxu0 %v10603
    %10847 = vmatpush1.bf16.msra.mxu0 %v10602
    %10848 = vmatprep.subr.bf16.mxu0 %v10611
    %10849 = vmatpush1.bf16.msra.mxu0 %v10610
    %10850 = vmatprep.subr.bf16.mxu0 %v10619
    %10851 = vmatpush1.bf16.msra.mxu0 %v10618
    %10852 = vmatprep.subr.bf16.mxu0 %v10627
    %10853 = vmatpush1.bf16.msra.mxu0 %v10626
    %10854 = vmatprep.subr.bf16.mxu0 %v10635
    %10855 = vmatpush1.bf16.msra.mxu0 %v10634
    %10856 = vmatprep.subr.bf16.mxu0 %v10643
    %10857 = vmatpush1.bf16.msra.mxu0 %v10642
    %10858 = vmatprep.subr.bf16.mxu0 %v10651
    %10859 = vmatpush1.bf16.msra.mxu0 %v10650
    %10860 = vmatprep.subr.bf16.mxu0 %v10659
    %10861 = vmatpush1.bf16.msra.mxu0 %v10658
    %10862 = vmatprep.subr.bf16.mxu0 %v10667
    %10863 = vmatpush1.bf16.msra.mxu0 %v10666
    %10864 = vmatprep.subr.bf16.mxu0 %v10675
    %10865 = vmatpush1.bf16.msra.mxu0 %v10674
    %10866 = vmatprep.subr.bf16.mxu0 %v10683
    %10867 = vmatpush1.bf16.msra.mxu0 %v10682
    %10868 = vmatprep.subr.bf16.mxu0 %v10691
    %10869 = vmatpush1.bf16.msra.mxu0 %v10690
    %10870 = vmatprep.subr.bf16.mxu0 %v10699
    %10871 = vmatpush1.bf16.msra.mxu0 %v10698
    %10872 = vmatprep.subr.bf16.mxu0 %v10707
    %10873 = vmatpush1.bf16.msra.mxu0 %v10706
    %10874 = vmatprep.mubr.bf16.mxu0 %v10066
    %10875 = vmatmul.mubr.bf16.gmra.mrb[0].mxu0 %v10065
    %v10876 = vpop.f32.mrb[0].mxu0
    %v10877 = vadd.f32 0.0, %v10876
    %v10878 = vpop.f32.mrb[0].mxu0
    %v10879 = vadd.f32 0.0, %v10878
    %v10880 = vpop.f32.mrb[0].mxu0
    %v10881 = vadd.f32 0.0, %v10880
    %v10882 = vpop.f32.mrb[0].mxu0
    %v10883 = vadd.f32 0.0, %v10882
    %10884 = vmatprep.mubr.bf16.mxu0 %v10068
    %10885 = vmatmul.mubr.bf16.gmra.mrb[0].mxu0 %v10067
    %v10886 = vpop.f32.mrb[0].mxu0
    %v10887 = vadd.f32 0.0, %v10886
    %v10888 = vpop.f32.mrb[0].mxu0
    %v10889 = vadd.f32 0.0, %v10888
    %v10890 = vpop.f32.mrb[0].mxu0
    %v10891 = vadd.f32 0.0, %v10890
    %v10892 = vpop.f32.mrb[0].mxu0
    %v10893 = vadd.f32 0.0, %v10892
    %10894 = vmatprep.mubr.bf16.mxu0 %v10070
    %10895 = vmatmul.mubr.bf16.gmra.mrb[0].mxu0 %v10069
    %v10896 = vpop.f32.mrb[0].mxu0
    %v10897 = vadd.f32 0.0, %v10896
    %v10898 = vpop.f32.mrb[0].mxu0
    %v10899 = vadd.f32 0.0, %v10898
    %v10900 = vpop.f32.mrb[0].mxu0
    %v10901 = vadd.f32 0.0, %v10900
    %v10902 = vpop.f32.mrb[0].mxu0
    %v10903 = vadd.f32 0.0, %v10902
    %10904 = vmatprep.mubr.bf16.mxu0 %v10072
    %10905 = vmatmul.mubr.bf16.gmra.mrb[0].mxu0 %v10071
    %v10906 = vpop.f32.mrb[0].mxu0
    %v10907 = vadd.f32 0.0, %v10906
    %v10908 = vpop.f32.mrb[0].mxu0
    %v10909 = vadd.f32 0.0, %v10908
    %v10910 = vpop.f32.mrb[0].mxu0
    %v10911 = vadd.f32 0.0, %v10910
    %v10912 = vpop.f32.mrb[0].mxu0
    %v10913 = vadd.f32 0.0, %v10912
    %10914 = vdwg.mxu0
    %10915 = vmatprep.subr.bf16.mxu0 %v10589
    %10916 = vmatpush1.bf16.msra.mxu0 %v10588
    %10917 = vmatprep.subr.bf16.mxu0 %v10597
    %10918 = vmatpush1.bf16.msra.mxu0 %v10596
    %10919 = vmatprep.subr.bf16.mxu0 %v10605
    %10920 = vmatpush1.bf16.msra.mxu0 %v10604
    %10921 = vmatprep.subr.bf16.mxu0 %v10613
    %10922 = vmatpush1.bf16.msra.mxu0 %v10612
    %10923 = vmatprep.subr.bf16.mxu0 %v10621
    %10924 = vmatpush1.bf16.msra.mxu0 %v10620
    %10925 = vmatprep.subr.bf16.mxu0 %v10629
    %10926 = vmatpush1.bf16.msra.mxu0 %v10628
    %10927 = vmatprep.subr.bf16.mxu0 %v10637
    %10928 = vmatpush1.bf16.msra.mxu0 %v10636
    %10929 = vmatprep.subr.bf16.mxu0 %v10645
    %10930 = vmatpush1.bf16.msra.mxu0 %v10644
    %10931 = vmatprep.subr.bf16.mxu0 %v10653
    %10932 = vmatpush1.bf16.msra.mxu0 %v10652
    %10933 = vmatprep.subr.bf16.mxu0 %v10661
    %10934 = vmatpush1.bf16.msra.mxu0 %v10660
    %10935 = vmatprep.subr.bf16.mxu0 %v10669
    %10936 = vmatpush1.bf16.msra.mxu0 %v10668
    %10937 = vmatprep.subr.bf16.mxu0 %v10677
    %10938 = vmatpush1.bf16.msra.mxu0 %v10676
    %10939 = vmatprep.subr.bf16.mxu0 %v10685
    %10940 = vmatpush1.bf16.msra.mxu0 %v10684
    %10941 = vmatprep.subr.bf16.mxu0 %v10693
    %10942 = vmatpush1.bf16.msra.mxu0 %v10692
    %10943 = vmatprep.subr.bf16.mxu0 %v10701
    %10944 = vmatpush1.bf16.msra.mxu0 %v10700
    %10945 = vmatprep.subr.bf16.mxu0 %v10709
    %10946 = vmatpush1.bf16.msra.mxu0 %v10708
    %10947 = vmatprep.mubr.bf16.mxu0 %v10066
    %10948 = vmatmul.mubr.bf16.gmra.mrb[0].mxu0 %v10065
    %v10949 = vpop.f32.mrb[0].mxu0
    %v10950 = vadd.f32 0.0, %v10949
    %v10951 = vpop.f32.mrb[0].mxu0
    %v10952 = vadd.f32 0.0, %v10951
    %v10953 = vpop.f32.mrb[0].mxu0
    %v10954 = vadd.f32 0.0, %v10953
    %v10955 = vpop.f32.mrb[0].mxu0
    %v10956 = vadd.f32 0.0, %v10955
    %10957 = vmatprep.mubr.bf16.mxu0 %v10068
    %10958 = vmatmul.mubr.bf16.gmra.mrb[0].mxu0 %v10067
    %v10959 = vpop.f32.mrb[0].mxu0
    %v10960 = vadd.f32 0.0, %v10959
    %v10961 = vpop.f32.mrb[0].mxu0
    %v10962 = vadd.f32 0.0, %v10961
    %v10963 = vpop.f32.mrb[0].mxu0
    %v10964 = vadd.f32 0.0, %v10963
    %v10965 = vpop.f32.mrb[0].mxu0
    %v10966 = vadd.f32 0.0, %v10965
    %10967 = vmatprep.mubr.bf16.mxu0 %v10070
    %10968 = vmatmul.mubr.bf16.gmra.mrb[0].mxu0 %v10069
    %v10969 = vpop.f32.mrb[0].mxu0
    %v10970 = vadd.f32 0.0, %v10969
    %v10971 = vpop.f32.mrb[0].mxu0
    %v10972 = vadd.f32 0.0, %v10971
    %v10973 = vpop.f32.mrb[0].mxu0
    %v10974 = vadd.f32 0.0, %v10973
    %v10975 = vpop.f32.mrb[0].mxu0
    %v10976 = vadd.f32 0.0, %v10975
    %10977 = vmatprep.mubr.bf16.mxu0 %v10072
    %10978 = vmatmul.mubr.bf16.gmra.mrb[0].mxu0 %v10071
    %v10979 = vpop.f32.mrb[0].mxu0
    %v10980 = vadd.f32 0.0, %v10979
    %v10981 = vpop.f32.mrb[0].mxu0
    %v10982 = vadd.f32 0.0, %v10981
    %v10983 = vpop.f32.mrb[0].mxu0
    %v10984 = vadd.f32 0.0, %v10983
    %v10985 = vpop.f32.mrb[0].mxu0
    %v10986 = vadd.f32 0.0, %v10985
    %10987 = vdwg.mxu0
    %10988 = vmatprep.subr.bf16.mxu0 %v10591
    %10989 = vmatpush1.bf16.msra.mxu0 %v10590
    %10990 = vmatprep.subr.bf16.mxu0 %v10599
    %10991 = vmatpush1.bf16.msra.mxu0 %v10598
    %10992 = vmatprep.subr.bf16.mxu0 %v10607
    %10993 = vmatpush1.bf16.msra.mxu0 %v10606
    %10994 = vmatprep.subr.bf16.mxu0 %v10615
    %10995 = vmatpush1.bf16.msra.mxu0 %v10614
    %10996 = vmatprep.subr.bf16.mxu0 %v10623
    %10997 = vmatpush1.bf16.msra.mxu0 %v10622
    %10998 = vmatprep.subr.bf16.mxu0 %v10631
    %10999 = vmatpush1.bf16.msra.mxu0 %v10630
    %11000 = vmatprep.subr.bf16.mxu0 %v10639
    %11001 = vmatpush1.bf16.msra.mxu0 %v10638
    %11002 = vmatprep.subr.bf16.mxu0 %v10647
    %11003 = vmatpush1.bf16.msra.mxu0 %v10646
    %11004 = vmatprep.subr.bf16.mxu0 %v10655
    %11005 = vmatpush1.bf16.msra.mxu0 %v10654
    %11006 = vmatprep.subr.bf16.mxu0 %v10663
    %11007 = vmatpush1.bf16.msra.mxu0 %v10662
    %11008 = vmatprep.subr.bf16.mxu0 %v10671
    %11009 = vmatpush1.bf16.msra.mxu0 %v10670
    %11010 = vmatprep.subr.bf16.mxu0 %v10679
    %11011 = vmatpush1.bf16.msra.mxu0 %v10678
    %11012 = vmatprep.subr.bf16.mxu0 %v10687
    %11013 = vmatpush1.bf16.msra.mxu0 %v10686
    %11014 = vmatprep.subr.bf16.mxu0 %v10695
    %11015 = vmatpush1.bf16.msra.mxu0 %v10694
    %11016 = vmatprep.subr.bf16.mxu0 %v10703
    %11017 = vmatpush1.bf16.msra.mxu0 %v10702
    %11018 = vmatprep.subr.bf16.mxu0 %v10711
    %11019 = vmatpush1.bf16.msra.mxu0 %v10710
    %11020 = vmatprep.mubr.bf16.mxu0 %v10066
    %11021 = vmatmul.mubr.bf16.gmra.mrb[0].mxu0 %v10065
    %v11022 = vpop.f32.mrb[0].mxu0
    %v11023 = vadd.f32 0.0, %v11022
    %v11024 = vpop.f32.mrb[0].mxu0
    %v11025 = vadd.f32 0.0, %v11024
    %v11026 = vpop.f32.mrb[0].mxu0
    %v11027 = vadd.f32 0.0, %v11026
    %v11028 = vpop.f32.mrb[0].mxu0
    %v11029 = vadd.f32 0.0, %v11028
    %11030 = vmatprep.mubr.bf16.mxu0 %v10068
    %11031 = vmatmul.mubr.bf16.gmra.mrb[0].mxu0 %v10067
    %v11032 = vpop.f32.mrb[0].mxu0
    %v11033 = vadd.f32 0.0, %v11032
    %v11034 = vpop.f32.mrb[0].mxu0
    %v11035 = vadd.f32 0.0, %v11034
    %v11036 = vpop.f32.mrb[0].mxu0
    %v11037 = vadd.f32 0.0, %v11036
    %v11038 = vpop.f32.mrb[0].mxu0
    %v11039 = vadd.f32 0.0, %v11038
    %11040 = vmatprep.mubr.bf16.mxu0 %v10070
    %11041 = vmatmul.mubr.bf16.gmra.mrb[0].mxu0 %v10069
    %v11042 = vpop.f32.mrb[0].mxu0
    %v11043 = vadd.f32 0.0, %v11042
    %v11044 = vpop.f32.mrb[0].mxu0
    %v11045 = vadd.f32 0.0, %v11044
    %v11046 = vpop.f32.mrb[0].mxu0
    %v11047 = vadd.f32 0.0, %v11046
    %v11048 = vpop.f32.mrb[0].mxu0
    %v11049 = vadd.f32 0.0, %v11048
    %11050 = vmatprep.mubr.bf16.mxu0 %v10072
    %11051 = vmatmul.mubr.bf16.gmra.mrb[0].mxu0 %v10071
    %v11052 = vpop.f32.mrb[0].mxu0
    %v11053 = vadd.f32 0.0, %v11052
    %v11054 = vpop.f32.mrb[0].mxu0
    %v11055 = vadd.f32 0.0, %v11054
    %v11056 = vpop.f32.mrb[0].mxu0
    %v11057 = vadd.f32 0.0, %v11056
    %v11058 = vpop.f32.mrb[0].mxu0
    %v11059 = vadd.f32 0.0, %v11058
    %11060 = vdwg.mxu0
    %11061 = vmatprep.subr.bf16.mxu0 %v10593
    %11062 = vmatpush1.bf16.msra.mxu0 %v10592
    %11063 = vmatprep.subr.bf16.mxu0 %v10601
    %11064 = vmatpush1.bf16.msra.mxu0 %v10600
    %11065 = vmatprep.subr.bf16.mxu0 %v10609
    %11066 = vmatpush1.bf16.msra.mxu0 %v10608
    %11067 = vmatprep.subr.bf16.mxu0 %v10617
    %11068 = vmatpush1.bf16.msra.mxu0 %v10616
    %11069 = vmatprep.subr.bf16.mxu0 %v10625
    %11070 = vmatpush1.bf16.msra.mxu0 %v10624
    %11071 = vmatprep.subr.bf16.mxu0 %v10633
    %11072 = vmatpush1.bf16.msra.mxu0 %v10632
    %11073 = vmatprep.subr.bf16.mxu0 %v10641
    %11074 = vmatpush1.bf16.msra.mxu0 %v10640
    %11075 = vmatprep.subr.bf16.mxu0 %v10649
    %11076 = vmatpush1.bf16.msra.mxu0 %v10648
    %11077 = vmatprep.subr.bf16.mxu0 %v10657
    %11078 = vmatpush1.bf16.msra.mxu0 %v10656
    %11079 = vmatprep.subr.bf16.mxu0 %v10665
    %11080 = vmatpush1.bf16.msra.mxu0 %v10664
    %11081 = vmatprep.subr.bf16.mxu0 %v10673
    %11082 = vmatpush1.bf16.msra.mxu0 %v10672
    %11083 = vmatprep.subr.bf16.mxu0 %v10681
    %11084 = vmatpush1.bf16.msra.mxu0 %v10680
    %11085 = vmatprep.subr.bf16.mxu0 %v10689
    %11086 = vmatpush1.bf16.msra.mxu0 %v10688
    %11087 = vmatprep.subr.bf16.mxu0 %v10697
    %11088 = vmatpush1.bf16.msra.mxu0 %v10696
    %11089 = vmatprep.subr.bf16.mxu0 %v10705
    %11090 = vmatpush1.bf16.msra.mxu0 %v10704
    %11091 = vmatprep.subr.bf16.mxu0 %v10713
    %11092 = vmatpush1.bf16.msra.mxu0 %v10712
    %11093 = vmatprep.mubr.bf16.mxu0 %v10066
    %11094 = vmatmul.mubr.bf16.gmra.mrb[0].mxu0 %v10065
    %v11095 = vpop.f32.mrb[0].mxu0
    %v11096 = vadd.f32 0.0, %v11095
    %v11097 = vpop.f32.mrb[0].mxu0
    %v11098 = vadd.f32 0.0, %v11097
    %v11099 = vpop.f32.mrb[0].mxu0
    %v11100 = vadd.f32 0.0, %v11099
    %v11101 = vpop.f32.mrb[0].mxu0
    %v11102 = vadd.f32 0.0, %v11101
    %11103 = vmatprep.mubr.bf16.mxu0 %v10068
    %11104 = vmatmul.mubr.bf16.gmra.mrb[0].mxu0 %v10067
    %v11105 = vpop.f32.mrb[0].mxu0
    %v11106 = vadd.f32 0.0, %v11105
    %v11107 = vpop.f32.mrb[0].mxu0
    %v11108 = vadd.f32 0.0, %v11107
    %v11109 = vpop.f32.mrb[0].mxu0
    %v11110 = vadd.f32 0.0, %v11109
    %v11111 = vpop.f32.mrb[0].mxu0
    %v11112 = vadd.f32 0.0, %v11111
    %11113 = vmatprep.mubr.bf16.mxu0 %v10070
    %11114 = vmatmul.mubr.bf16.gmra.mrb[0].mxu0 %v10069
    %v11115 = vpop.f32.mrb[0].mxu0
    %v11116 = vadd.f32 0.0, %v11115
    %v11117 = vpop.f32.mrb[0].mxu0
    %v11118 = vadd.f32 0.0, %v11117
    %v11119 = vpop.f32.mrb[0].mxu0
    %v11120 = vadd.f32 0.0, %v11119
    %v11121 = vpop.f32.mrb[0].mxu0
    %v11122 = vadd.f32 0.0, %v11121
    %11123 = vmatprep.mubr.bf16.mxu0 %v10072
    %11124 = vmatmul.mubr.bf16.gmra.mrb[0].mxu0 %v10071
    %v11125 = vpop.f32.mrb[0].mxu0
    %v11126 = vadd.f32 0.0, %v11125
    %v11127 = vpop.f32.mrb[0].mxu0
    %v11128 = vadd.f32 0.0, %v11127
    %v11129 = vpop.f32.mrb[0].mxu0
    %v11130 = vadd.f32 0.0, %v11129
    %v11131 = vpop.f32.mrb[0].mxu0
    %v11132 = vadd.f32 0.0, %v11131
    %11133 = vdwg.mxu0
    %v11262 = vunpack.c.l.b16 %v3417
    %v11263 = vunpack.c.h.b16 %v3417
    %v11264 = vunpack.c.l.b16 %v3418
    %v11265 = vunpack.c.h.b16 %v3418
    %v11266 = vunpack.c.l.b16 %v3419
    %v11267 = vunpack.c.h.b16 %v3419
    %v11268 = vunpack.c.l.b16 %v3420
    %v11269 = vunpack.c.h.b16 %v3420
    %v11270 = vunpack.c.l.b16 %v3421
    %v11271 = vunpack.c.h.b16 %v3421
    %v11272 = vunpack.c.l.b16 %v3422
    %v11273 = vunpack.c.h.b16 %v3422
    %v11274 = vunpack.c.l.b16 %v3423
    %v11275 = vunpack.c.h.b16 %v3423
    %v11276 = vunpack.c.l.b16 %v3424
    %v11277 = vunpack.c.h.b16 %v3424
    %v11278 = vunpack.c.l.b16 %v3425
    %v11279 = vunpack.c.h.b16 %v3425
    %v11280 = vunpack.c.l.b16 %v3426
    %v11281 = vunpack.c.h.b16 %v3426
    %v11282 = vunpack.c.l.b16 %v3427
    %v11283 = vunpack.c.h.b16 %v3427
    %v11284 = vunpack.c.l.b16 %v3428
    %v11285 = vunpack.c.h.b16 %v3428
    %v11286 = vunpack.c.l.b16 %v3429
    %v11287 = vunpack.c.h.b16 %v3429
    %v11288 = vunpack.c.l.b16 %v3430
    %v11289 = vunpack.c.h.b16 %v3430
    %v11290 = vunpack.c.l.b16 %v3431
    %v11291 = vunpack.c.h.b16 %v3431
    %v11292 = vunpack.c.l.b16 %v3432
    %v11293 = vunpack.c.h.b16 %v3432
    %v11294 = vunpack.c.l.b16 %v3433
    %v11295 = vunpack.c.h.b16 %v3433
    %v11296 = vunpack.c.l.b16 %v3434
    %v11297 = vunpack.c.h.b16 %v3434
    %v11298 = vunpack.c.l.b16 %v3435
    %v11299 = vunpack.c.h.b16 %v3435
    %v11300 = vunpack.c.l.b16 %v3436
    %v11301 = vunpack.c.h.b16 %v3436
    %v11302 = vunpack.c.l.b16 %v3437
    %v11303 = vunpack.c.h.b16 %v3437
    %v11304 = vunpack.c.l.b16 %v3438
    %v11305 = vunpack.c.h.b16 %v3438
    %v11306 = vunpack.c.l.b16 %v3439
    %v11307 = vunpack.c.h.b16 %v3439
    %v11308 = vunpack.c.l.b16 %v3440
    %v11309 = vunpack.c.h.b16 %v3440
    %v11310 = vunpack.c.l.b16 %v3441
    %v11311 = vunpack.c.h.b16 %v3441
    %v11312 = vunpack.c.l.b16 %v3442
    %v11313 = vunpack.c.h.b16 %v3442
    %v11314 = vunpack.c.l.b16 %v3443
    %v11315 = vunpack.c.h.b16 %v3443
    %v11316 = vunpack.c.l.b16 %v3444
    %v11317 = vunpack.c.h.b16 %v3444
    %v11318 = vunpack.c.l.b16 %v3445
    %v11319 = vunpack.c.h.b16 %v3445
    %v11320 = vunpack.c.l.b16 %v3446
    %v11321 = vunpack.c.h.b16 %v3446
    %v11322 = vunpack.c.l.b16 %v3447
    %v11323 = vunpack.c.h.b16 %v3447
    %v11324 = vunpack.c.l.b16 %v3448
    %v11325 = vunpack.c.h.b16 %v3448
    %v11326 = vunpack.c.l.b16 %v3449
    %v11327 = vunpack.c.h.b16 %v3449
    %v11328 = vunpack.c.l.b16 %v3450
    %v11329 = vunpack.c.h.b16 %v3450
    %v11330 = vunpack.c.l.b16 %v3451
    %v11331 = vunpack.c.h.b16 %v3451
    %v11332 = vunpack.c.l.b16 %v3452
    %v11333 = vunpack.c.h.b16 %v3452
    %v11334 = vunpack.c.l.b16 %v3453
    %v11335 = vunpack.c.h.b16 %v3453
    %v11336 = vunpack.c.l.b16 %v3454
    %v11337 = vunpack.c.h.b16 %v3454
    %v11338 = vunpack.c.l.b16 %v3455
    %v11339 = vunpack.c.h.b16 %v3455
    %v11340 = vunpack.c.l.b16 %v3456
    %v11341 = vunpack.c.h.b16 %v3456
    %v11342 = vunpack.c.l.b16 %v3457
    %v11343 = vunpack.c.h.b16 %v3457
    %v11344 = vunpack.c.l.b16 %v3458
    %v11345 = vunpack.c.h.b16 %v3458
    %v11346 = vunpack.c.l.b16 %v3459
    %v11347 = vunpack.c.h.b16 %v3459
    %v11348 = vunpack.c.l.b16 %v3460
    %v11349 = vunpack.c.h.b16 %v3460
    %v11350 = vunpack.c.l.b16 %v3461
    %v11351 = vunpack.c.h.b16 %v3461
    %v11352 = vunpack.c.l.b16 %v3462
    %v11353 = vunpack.c.h.b16 %v3462
    %v11354 = vunpack.c.l.b16 %v3463
    %v11355 = vunpack.c.h.b16 %v3463
    %v11356 = vunpack.c.l.b16 %v3464
    %v11357 = vunpack.c.h.b16 %v3464
    %v11358 = vunpack.c.l.b16 %v3465
    %v11359 = vunpack.c.h.b16 %v3465
    %v11360 = vunpack.c.l.b16 %v3466
    %v11361 = vunpack.c.h.b16 %v3466
    %v11362 = vunpack.c.l.b16 %v3467
    %v11363 = vunpack.c.h.b16 %v3467
    %v11364 = vunpack.c.l.b16 %v3468
    %v11365 = vunpack.c.h.b16 %v3468
    %v11366 = vunpack.c.l.b16 %v3469
    %v11367 = vunpack.c.h.b16 %v3469
    %v11368 = vunpack.c.l.b16 %v3470
    %v11369 = vunpack.c.h.b16 %v3470
    %v11370 = vunpack.c.l.b16 %v3471
    %v11371 = vunpack.c.h.b16 %v3471
    %v11372 = vunpack.c.l.b16 %v3472
    %v11373 = vunpack.c.h.b16 %v3472
    %v11374 = vunpack.c.l.b16 %v3473
    %v11375 = vunpack.c.h.b16 %v3473
    %v11376 = vunpack.c.l.b16 %v3474
    %v11377 = vunpack.c.h.b16 %v3474
    %v11378 = vunpack.c.l.b16 %v3475
    %v11379 = vunpack.c.h.b16 %v3475
    %v11380 = vunpack.c.l.b16 %v3476
    %v11381 = vunpack.c.h.b16 %v3476
    %v11382 = vunpack.c.l.b16 %v3477
    %v11383 = vunpack.c.h.b16 %v3477
    %v11384 = vunpack.c.l.b16 %v3478
    %v11385 = vunpack.c.h.b16 %v3478
    %v11386 = vunpack.c.l.b16 %v3479
    %v11387 = vunpack.c.h.b16 %v3479
    %v11388 = vunpack.c.l.b16 %v3480
    %v11389 = vunpack.c.h.b16 %v3480
    %v11390 = vunpack.c.l.b16 %v3481
    %v11391 = vunpack.c.h.b16 %v3481
    %v11392 = vunpack.c.l.b16 %v3482
    %v11393 = vunpack.c.h.b16 %v3482
    %v11394 = vunpack.c.l.b16 %v3483
    %v11395 = vunpack.c.h.b16 %v3483
    %v11396 = vunpack.c.l.b16 %v3484
    %v11397 = vunpack.c.h.b16 %v3484
    %v11398 = vunpack.c.l.b16 %v3485
    %v11399 = vunpack.c.h.b16 %v3485
    %v11400 = vunpack.c.l.b16 %v3486
    %v11401 = vunpack.c.h.b16 %v3486
    %v11402 = vunpack.c.l.b16 %v3487
    %v11403 = vunpack.c.h.b16 %v3487
    %v11404 = vunpack.c.l.b16 %v3488
    %v11405 = vunpack.c.h.b16 %v3488
    %v11406 = vunpack.c.l.b16 %v3489
    %v11407 = vunpack.c.h.b16 %v3489
    %v11408 = vunpack.c.l.b16 %v3490
    %v11409 = vunpack.c.h.b16 %v3490
    %v11410 = vunpack.c.l.b16 %v3491
    %v11411 = vunpack.c.h.b16 %v3491
    %v11412 = vunpack.c.l.b16 %v3492
    %v11413 = vunpack.c.h.b16 %v3492
    %v11414 = vunpack.c.l.b16 %v3493
    %v11415 = vunpack.c.h.b16 %v3493
    %v11416 = vunpack.c.l.b16 %v3494
    %v11417 = vunpack.c.h.b16 %v3494
    %v11418 = vunpack.c.l.b16 %v3495
    %v11419 = vunpack.c.h.b16 %v3495
    %v11420 = vunpack.c.l.b16 %v3496
    %v11421 = vunpack.c.h.b16 %v3496
    %v11422 = vunpack.c.l.b16 %v3497
    %v11423 = vunpack.c.h.b16 %v3497
    %v11424 = vunpack.c.l.b16 %v3498
    %v11425 = vunpack.c.h.b16 %v3498
    %v11426 = vunpack.c.l.b16 %v3499
    %v11427 = vunpack.c.h.b16 %v3499
    %v11428 = vunpack.c.l.b16 %v3500
    %v11429 = vunpack.c.h.b16 %v3500
    %v11430 = vunpack.c.l.b16 %v3501
    %v11431 = vunpack.c.h.b16 %v3501
    %v11432 = vunpack.c.l.b16 %v3502
    %v11433 = vunpack.c.h.b16 %v3502
    %v11434 = vunpack.c.l.b16 %v3503
    %v11435 = vunpack.c.h.b16 %v3503
    %v11436 = vunpack.c.l.b16 %v3504
    %v11437 = vunpack.c.h.b16 %v3504
    %v11438 = vunpack.c.l.b16 %v3505
    %v11439 = vunpack.c.h.b16 %v3505
    %v11440 = vunpack.c.l.b16 %v3506
    %v11441 = vunpack.c.h.b16 %v3506
    %v11442 = vunpack.c.l.b16 %v3507
    %v11443 = vunpack.c.h.b16 %v3507
    %v11444 = vunpack.c.l.b16 %v3508
    %v11445 = vunpack.c.h.b16 %v3508
    %v11446 = vunpack.c.l.b16 %v3509
    %v11447 = vunpack.c.h.b16 %v3509
    %v11448 = vunpack.c.l.b16 %v3510
    %v11449 = vunpack.c.h.b16 %v3510
    %v11450 = vunpack.c.l.b16 %v3511
    %v11451 = vunpack.c.h.b16 %v3511
    %v11452 = vunpack.c.l.b16 %v3512
    %v11453 = vunpack.c.h.b16 %v3512
    %v11454 = vunpack.c.l.b16 %v3513
    %v11455 = vunpack.c.h.b16 %v3513
    %v11456 = vunpack.c.l.b16 %v3514
    %v11457 = vunpack.c.h.b16 %v3514
    %v11458 = vunpack.c.l.b16 %v3515
    %v11459 = vunpack.c.h.b16 %v3515
    %v11460 = vunpack.c.l.b16 %v3516
    %v11461 = vunpack.c.h.b16 %v3516
    %v11462 = vunpack.c.l.b16 %v3517
    %v11463 = vunpack.c.h.b16 %v3517
    %v11464 = vunpack.c.l.b16 %v3518
    %v11465 = vunpack.c.h.b16 %v3518
    %v11466 = vunpack.c.l.b16 %v3519
    %v11467 = vunpack.c.h.b16 %v3519
    %v11468 = vunpack.c.l.b16 %v3520
    %v11469 = vunpack.c.h.b16 %v3520
    %v11470 = vunpack.c.l.b16 %v3521
    %v11471 = vunpack.c.h.b16 %v3521
    %v11472 = vunpack.c.l.b16 %v3522
    %v11473 = vunpack.c.h.b16 %v3522
    %v11474 = vunpack.c.l.b16 %v3523
    %v11475 = vunpack.c.h.b16 %v3523
    %v11476 = vunpack.c.l.b16 %v3524
    %v11477 = vunpack.c.h.b16 %v3524
    %v11478 = vunpack.c.l.b16 %v3525
    %v11479 = vunpack.c.h.b16 %v3525
    %v11480 = vunpack.c.l.b16 %v3526
    %v11481 = vunpack.c.h.b16 %v3526
    %v11482 = vunpack.c.l.b16 %v3527
    %v11483 = vunpack.c.h.b16 %v3527
    %v11484 = vunpack.c.l.b16 %v3528
    %v11485 = vunpack.c.h.b16 %v3528
    %v11486 = vunpack.c.l.b16 %v3529
    %v11487 = vunpack.c.h.b16 %v3529
    %v11488 = vunpack.c.l.b16 %v3530
    %v11489 = vunpack.c.h.b16 %v3530
    %v11490 = vunpack.c.l.b16 %v3531
    %v11491 = vunpack.c.h.b16 %v3531
    %v11492 = vunpack.c.l.b16 %v3532
    %v11493 = vunpack.c.h.b16 %v3532
    %v11494 = vunpack.c.l.b16 %v3533
    %v11495 = vunpack.c.h.b16 %v3533
    %v11496 = vunpack.c.l.b16 %v3534
    %v11497 = vunpack.c.h.b16 %v3534
    %v11498 = vunpack.c.l.b16 %v3535
    %v11499 = vunpack.c.h.b16 %v3535
    %v11500 = vunpack.c.l.b16 %v3536
    %v11501 = vunpack.c.h.b16 %v3536
    %v11502 = vunpack.c.l.b16 %v3537
    %v11503 = vunpack.c.h.b16 %v3537
    %v11504 = vunpack.c.l.b16 %v3538
    %v11505 = vunpack.c.h.b16 %v3538
    %v11506 = vunpack.c.l.b16 %v3539
    %v11507 = vunpack.c.h.b16 %v3539
    %v11508 = vunpack.c.l.b16 %v3540
    %v11509 = vunpack.c.h.b16 %v3540
    %v11510 = vunpack.c.l.b16 %v3541
    %v11511 = vunpack.c.h.b16 %v3541
    %v11512 = vunpack.c.l.b16 %v3542
    %v11513 = vunpack.c.h.b16 %v3542
    %v11514 = vunpack.c.l.b16 %v3543
    %v11515 = vunpack.c.h.b16 %v3543
    %v11516 = vunpack.c.l.b16 %v3544
    %v11517 = vunpack.c.h.b16 %v3544
    %v11518 = vpack.c.b16 %v11270, %v11262
    %v11519 = vpack.c.b16 %v11271, %v11263
    %v11520 = vpack.c.b16 %v11272, %v11264
    %v11521 = vpack.c.b16 %v11273, %v11265
    %v11522 = vpack.c.b16 %v11274, %v11266
    %v11523 = vpack.c.b16 %v11275, %v11267
    %v11524 = vpack.c.b16 %v11276, %v11268
    %v11525 = vpack.c.b16 %v11277, %v11269
    %v11526 = vpack.c.b16 %v11286, %v11278
    %v11527 = vpack.c.b16 %v11287, %v11279
    %v11528 = vpack.c.b16 %v11288, %v11280
    %v11529 = vpack.c.b16 %v11289, %v11281
    %v11530 = vpack.c.b16 %v11290, %v11282
    %v11531 = vpack.c.b16 %v11291, %v11283
    %v11532 = vpack.c.b16 %v11292, %v11284
    %v11533 = vpack.c.b16 %v11293, %v11285
    %v11534 = vpack.c.b16 %v11302, %v11294
    %v11535 = vpack.c.b16 %v11303, %v11295
    %v11536 = vpack.c.b16 %v11304, %v11296
    %v11537 = vpack.c.b16 %v11305, %v11297
    %v11538 = vpack.c.b16 %v11306, %v11298
    %v11539 = vpack.c.b16 %v11307, %v11299
    %v11540 = vpack.c.b16 %v11308, %v11300
    %v11541 = vpack.c.b16 %v11309, %v11301
    %v11542 = vpack.c.b16 %v11318, %v11310
    %v11543 = vpack.c.b16 %v11319, %v11311
    %v11544 = vpack.c.b16 %v11320, %v11312
    %v11545 = vpack.c.b16 %v11321, %v11313
    %v11546 = vpack.c.b16 %v11322, %v11314
    %v11547 = vpack.c.b16 %v11323, %v11315
    %v11548 = vpack.c.b16 %v11324, %v11316
    %v11549 = vpack.c.b16 %v11325, %v11317
    %v11550 = vpack.c.b16 %v11334, %v11326
    %v11551 = vpack.c.b16 %v11335, %v11327
    %v11552 = vpack.c.b16 %v11336, %v11328
    %v11553 = vpack.c.b16 %v11337, %v11329
    %v11554 = vpack.c.b16 %v11338, %v11330
    %v11555 = vpack.c.b16 %v11339, %v11331
    %v11556 = vpack.c.b16 %v11340, %v11332
    %v11557 = vpack.c.b16 %v11341, %v11333
    %v11558 = vpack.c.b16 %v11350, %v11342
    %v11559 = vpack.c.b16 %v11351, %v11343
    %v11560 = vpack.c.b16 %v11352, %v11344
    %v11561 = vpack.c.b16 %v11353, %v11345
    %v11562 = vpack.c.b16 %v11354, %v11346
    %v11563 = vpack.c.b16 %v11355, %v11347
    %v11564 = vpack.c.b16 %v11356, %v11348
    %v11565 = vpack.c.b16 %v11357, %v11349
    %v11566 = vpack.c.b16 %v11366, %v11358
    %v11567 = vpack.c.b16 %v11367, %v11359
    %v11568 = vpack.c.b16 %v11368, %v11360
    %v11569 = vpack.c.b16 %v11369, %v11361
    %v11570 = vpack.c.b16 %v11370, %v11362
    %v11571 = vpack.c.b16 %v11371, %v11363
    %v11572 = vpack.c.b16 %v11372, %v11364
    %v11573 = vpack.c.b16 %v11373, %v11365
    %v11574 = vpack.c.b16 %v11382, %v11374
    %v11575 = vpack.c.b16 %v11383, %v11375
    %v11576 = vpack.c.b16 %v11384, %v11376
    %v11577 = vpack.c.b16 %v11385, %v11377
    %v11578 = vpack.c.b16 %v11386, %v11378
    %v11579 = vpack.c.b16 %v11387, %v11379
    %v11580 = vpack.c.b16 %v11388, %v11380
    %v11581 = vpack.c.b16 %v11389, %v11381
    %v11582 = vpack.c.b16 %v11398, %v11390
    %v11583 = vpack.c.b16 %v11399, %v11391
    %v11584 = vpack.c.b16 %v11400, %v11392
    %v11585 = vpack.c.b16 %v11401, %v11393
    %v11586 = vpack.c.b16 %v11402, %v11394
    %v11587 = vpack.c.b16 %v11403, %v11395
    %v11588 = vpack.c.b16 %v11404, %v11396
    %v11589 = vpack.c.b16 %v11405, %v11397
    %v11590 = vpack.c.b16 %v11414, %v11406
    %v11591 = vpack.c.b16 %v11415, %v11407
    %v11592 = vpack.c.b16 %v11416, %v11408
    %v11593 = vpack.c.b16 %v11417, %v11409
    %v11594 = vpack.c.b16 %v11418, %v11410
    %v11595 = vpack.c.b16 %v11419, %v11411
    %v11596 = vpack.c.b16 %v11420, %v11412
    %v11597 = vpack.c.b16 %v11421, %v11413
    %v11598 = vpack.c.b16 %v11430, %v11422
    %v11599 = vpack.c.b16 %v11431, %v11423
    %v11600 = vpack.c.b16 %v11432, %v11424
    %v11601 = vpack.c.b16 %v11433, %v11425
    %v11602 = vpack.c.b16 %v11434, %v11426
    %v11603 = vpack.c.b16 %v11435, %v11427
    %v11604 = vpack.c.b16 %v11436, %v11428
    %v11605 = vpack.c.b16 %v11437, %v11429
    %v11606 = vpack.c.b16 %v11446, %v11438
    %v11607 = vpack.c.b16 %v11447, %v11439
    %v11608 = vpack.c.b16 %v11448, %v11440
    %v11609 = vpack.c.b16 %v11449, %v11441
    %v11610 = vpack.c.b16 %v11450, %v11442
    %v11611 = vpack.c.b16 %v11451, %v11443
    %v11612 = vpack.c.b16 %v11452, %v11444
    %v11613 = vpack.c.b16 %v11453, %v11445
    %v11614 = vpack.c.b16 %v11462, %v11454
    %v11615 = vpack.c.b16 %v11463, %v11455
    %v11616 = vpack.c.b16 %v11464, %v11456
    %v11617 = vpack.c.b16 %v11465, %v11457
    %v11618 = vpack.c.b16 %v11466, %v11458
    %v11619 = vpack.c.b16 %v11467, %v11459
    %v11620 = vpack.c.b16 %v11468, %v11460
    %v11621 = vpack.c.b16 %v11469, %v11461
    %v11622 = vpack.c.b16 %v11478, %v11470
    %v11623 = vpack.c.b16 %v11479, %v11471
    %v11624 = vpack.c.b16 %v11480, %v11472
    %v11625 = vpack.c.b16 %v11481, %v11473
    %v11626 = vpack.c.b16 %v11482, %v11474
    %v11627 = vpack.c.b16 %v11483, %v11475
    %v11628 = vpack.c.b16 %v11484, %v11476
    %v11629 = vpack.c.b16 %v11485, %v11477
    %v11630 = vpack.c.b16 %v11494, %v11486
    %v11631 = vpack.c.b16 %v11495, %v11487
    %v11632 = vpack.c.b16 %v11496, %v11488
    %v11633 = vpack.c.b16 %v11497, %v11489
    %v11634 = vpack.c.b16 %v11498, %v11490
    %v11635 = vpack.c.b16 %v11499, %v11491
    %v11636 = vpack.c.b16 %v11500, %v11492
    %v11637 = vpack.c.b16 %v11501, %v11493
    %v11638 = vpack.c.b16 %v11510, %v11502
    %v11639 = vpack.c.b16 %v11511, %v11503
    %v11640 = vpack.c.b16 %v11512, %v11504
    %v11641 = vpack.c.b16 %v11513, %v11505
    %v11642 = vpack.c.b16 %v11514, %v11506
    %v11643 = vpack.c.b16 %v11515, %v11507
    %v11644 = vpack.c.b16 %v11516, %v11508
    %v11645 = vpack.c.b16 %v11517, %v11509
    %11774 = vmatprep.subr.bf16.mxu0 %v11519
    %11775 = vmatpush1.bf16.msra.mxu0 %v11518
    %11776 = vmatprep.subr.bf16.mxu0 %v11527
    %11777 = vmatpush1.bf16.msra.mxu0 %v11526
    %11778 = vmatprep.subr.bf16.mxu0 %v11535
    %11779 = vmatpush1.bf16.msra.mxu0 %v11534
    %11780 = vmatprep.subr.bf16.mxu0 %v11543
    %11781 = vmatpush1.bf16.msra.mxu0 %v11542
    %11782 = vmatprep.subr.bf16.mxu0 %v11551
    %11783 = vmatpush1.bf16.msra.mxu0 %v11550
    %11784 = vmatprep.subr.bf16.mxu0 %v11559
    %11785 = vmatpush1.bf16.msra.mxu0 %v11558
    %11786 = vmatprep.subr.bf16.mxu0 %v11567
    %11787 = vmatpush1.bf16.msra.mxu0 %v11566
    %11788 = vmatprep.subr.bf16.mxu0 %v11575
    %11789 = vmatpush1.bf16.msra.mxu0 %v11574
    %11790 = vmatprep.subr.bf16.mxu0 %v11583
    %11791 = vmatpush1.bf16.msra.mxu0 %v11582
    %11792 = vmatprep.subr.bf16.mxu0 %v11591
    %11793 = vmatpush1.bf16.msra.mxu0 %v11590
    %11794 = vmatprep.subr.bf16.mxu0 %v11599
    %11795 = vmatpush1.bf16.msra.mxu0 %v11598
    %11796 = vmatprep.subr.bf16.mxu0 %v11607
    %11797 = vmatpush1.bf16.msra.mxu0 %v11606
    %11798 = vmatprep.subr.bf16.mxu0 %v11615
    %11799 = vmatpush1.bf16.msra.mxu0 %v11614
    %11800 = vmatprep.subr.bf16.mxu0 %v11623
    %11801 = vmatpush1.bf16.msra.mxu0 %v11622
    %11802 = vmatprep.subr.bf16.mxu0 %v11631
    %11803 = vmatpush1.bf16.msra.mxu0 %v11630
    %11804 = vmatprep.subr.bf16.mxu0 %v11639
    %11805 = vmatpush1.bf16.msra.mxu0 %v11638
    %11806 = vmatprep.mubr.bf16.mxu0 %v3409
    %11807 = vmatmul.mubr.bf16.gmra.mrb[0].mxu0 %v3408
    %v11808 = vpop.f32.mrb[0].mxu0
    %v11809 = vadd.f32 %v10877, %v11808
    %v11810 = vpop.f32.mrb[0].mxu0
    %v11811 = vadd.f32 %v10879, %v11810
    %v11812 = vpop.f32.mrb[0].mxu0
    %v11813 = vadd.f32 %v10881, %v11812
    %v11814 = vpop.f32.mrb[0].mxu0
    %v11815 = vadd.f32 %v10883, %v11814
    %11816 = vmatprep.mubr.bf16.mxu0 %v3411
    %11817 = vmatmul.mubr.bf16.gmra.mrb[0].mxu0 %v3410
    %v11818 = vpop.f32.mrb[0].mxu0
    %v11819 = vadd.f32 %v10887, %v11818
    %v11820 = vpop.f32.mrb[0].mxu0
    %v11821 = vadd.f32 %v10889, %v11820
    %v11822 = vpop.f32.mrb[0].mxu0
    %v11823 = vadd.f32 %v10891, %v11822
    %v11824 = vpop.f32.mrb[0].mxu0
    %v11825 = vadd.f32 %v10893, %v11824
    %11826 = vmatprep.mubr.bf16.mxu0 %v3413
    %11827 = vmatmul.mubr.bf16.gmra.mrb[0].mxu0 %v3412
    %v11828 = vpop.f32.mrb[0].mxu0
    %v11829 = vadd.f32 %v10897, %v11828
    %v11830 = vpop.f32.mrb[0].mxu0
    %v11831 = vadd.f32 %v10899, %v11830
    %v11832 = vpop.f32.mrb[0].mxu0
    %v11833 = vadd.f32 %v10901, %v11832
    %v11834 = vpop.f32.mrb[0].mxu0
    %v11835 = vadd.f32 %v10903, %v11834
    %11836 = vmatprep.mubr.bf16.mxu0 %v3415
    %11837 = vmatmul.mubr.bf16.gmra.mrb[0].mxu0 %v3414
    %v11838 = vpop.f32.mrb[0].mxu0
    %v11839 = vadd.f32 %v10907, %v11838
    %v11840 = vpop.f32.mrb[0].mxu0
    %v11841 = vadd.f32 %v10909, %v11840
    %v11842 = vpop.f32.mrb[0].mxu0
    %v11843 = vadd.f32 %v10911, %v11842
    %v11844 = vpop.f32.mrb[0].mxu0
    %v11845 = vadd.f32 %v10913, %v11844
    %11846 = vdwg.mxu0
    %11847 = vmatprep.subr.bf16.mxu0 %v11521
    %11848 = vmatpush1.bf16.msra.mxu0 %v11520
    %11849 = vmatprep.subr.bf16.mxu0 %v11529
    %11850 = vmatpush1.bf16.msra.mxu0 %v11528
    %11851 = vmatprep.subr.bf16.mxu0 %v11537
    %11852 = vmatpush1.bf16.msra.mxu0 %v11536
    %11853 = vmatprep.subr.bf16.mxu0 %v11545
    %11854 = vmatpush1.bf16.msra.mxu0 %v11544
    %11855 = vmatprep.subr.bf16.mxu0 %v11553
    %11856 = vmatpush1.bf16.msra.mxu0 %v11552
    %11857 = vmatprep.subr.bf16.mxu0 %v11561
    %11858 = vmatpush1.bf16.msra.mxu0 %v11560
    %11859 = vmatprep.subr.bf16.mxu0 %v11569
    %11860 = vmatpush1.bf16.msra.mxu0 %v11568
    %11861 = vmatprep.subr.bf16.mxu0 %v11577
    %11862 = vmatpush1.bf16.msra.mxu0 %v11576
    %11863 = vmatprep.subr.bf16.mxu0 %v11585
    %11864 = vmatpush1.bf16.msra.mxu0 %v11584
    %11865 = vmatprep.subr.bf16.mxu0 %v11593
    %11866 = vmatpush1.bf16.msra.mxu0 %v11592
    %11867 = vmatprep.subr.bf16.mxu0 %v11601
    %11868 = vmatpush1.bf16.msra.mxu0 %v11600
    %11869 = vmatprep.subr.bf16.mxu0 %v11609
    %11870 = vmatpush1.bf16.msra.mxu0 %v11608
    %11871 = vmatprep.subr.bf16.mxu0 %v11617
    %11872 = vmatpush1.bf16.msra.mxu0 %v11616
    %11873 = vmatprep.subr.bf16.mxu0 %v11625
    %11874 = vmatpush1.bf16.msra.mxu0 %v11624
    %11875 = vmatprep.subr.bf16.mxu0 %v11633
    %11876 = vmatpush1.bf16.msra.mxu0 %v11632
    %11877 = vmatprep.subr.bf16.mxu0 %v11641
    %11878 = vmatpush1.bf16.msra.mxu0 %v11640
    %11879 = vmatprep.mubr.bf16.mxu0 %v3409
    %11880 = vmatmul.mubr.bf16.gmra.mrb[0].mxu0 %v3408
    %v11881 = vpop.f32.mrb[0].mxu0
    %v11882 = vadd.f32 %v10950, %v11881
    %v11883 = vpop.f32.mrb[0].mxu0
    %v11884 = vadd.f32 %v10952, %v11883
    %v11885 = vpop.f32.mrb[0].mxu0
    %v11886 = vadd.f32 %v10954, %v11885
    %v11887 = vpop.f32.mrb[0].mxu0
    %v11888 = vadd.f32 %v10956, %v11887
    %11889 = vmatprep.mubr.bf16.mxu0 %v3411
    %11890 = vmatmul.mubr.bf16.gmra.mrb[0].mxu0 %v3410
    %v11891 = vpop.f32.mrb[0].mxu0
    %v11892 = vadd.f32 %v10960, %v11891
    %v11893 = vpop.f32.mrb[0].mxu0
    %v11894 = vadd.f32 %v10962, %v11893
    %v11895 = vpop.f32.mrb[0].mxu0
    %v11896 = vadd.f32 %v10964, %v11895
    %v11897 = vpop.f32.mrb[0].mxu0
    %v11898 = vadd.f32 %v10966, %v11897
    %11899 = vmatprep.mubr.bf16.mxu0 %v3413
    %11900 = vmatmul.mubr.bf16.gmra.mrb[0].mxu0 %v3412
    %v11901 = vpop.f32.mrb[0].mxu0
    %v11902 = vadd.f32 %v10970, %v11901
    %v11903 = vpop.f32.mrb[0].mxu0
    %v11904 = vadd.f32 %v10972, %v11903
    %v11905 = vpop.f32.mrb[0].mxu0
    %v11906 = vadd.f32 %v10974, %v11905
    %v11907 = vpop.f32.mrb[0].mxu0
    %v11908 = vadd.f32 %v10976, %v11907
    %11909 = vmatprep.mubr.bf16.mxu0 %v3415
    %11910 = vmatmul.mubr.bf16.gmra.mrb[0].mxu0 %v3414
    %v11911 = vpop.f32.mrb[0].mxu0
    %v11912 = vadd.f32 %v10980, %v11911
    %v11913 = vpop.f32.mrb[0].mxu0
    %v11914 = vadd.f32 %v10982, %v11913
    %v11915 = vpop.f32.mrb[0].mxu0
    %v11916 = vadd.f32 %v10984, %v11915
    %v11917 = vpop.f32.mrb[0].mxu0
    %v11918 = vadd.f32 %v10986, %v11917
    %11919 = vdwg.mxu0
    %11920 = vmatprep.subr.bf16.mxu0 %v11523
    %11921 = vmatpush1.bf16.msra.mxu0 %v11522
    %11922 = vmatprep.subr.bf16.mxu0 %v11531
    %11923 = vmatpush1.bf16.msra.mxu0 %v11530
    %11924 = vmatprep.subr.bf16.mxu0 %v11539
    %11925 = vmatpush1.bf16.msra.mxu0 %v11538
    %11926 = vmatprep.subr.bf16.mxu0 %v11547
    %11927 = vmatpush1.bf16.msra.mxu0 %v11546
    %11928 = vmatprep.subr.bf16.mxu0 %v11555
    %11929 = vmatpush1.bf16.msra.mxu0 %v11554
    %11930 = vmatprep.subr.bf16.mxu0 %v11563
    %11931 = vmatpush1.bf16.msra.mxu0 %v11562
    %11932 = vmatprep.subr.bf16.mxu0 %v11571
    %11933 = vmatpush1.bf16.msra.mxu0 %v11570
    %11934 = vmatprep.subr.bf16.mxu0 %v11579
    %11935 = vmatpush1.bf16.msra.mxu0 %v11578
    %11936 = vmatprep.subr.bf16.mxu0 %v11587
    %11937 = vmatpush1.bf16.msra.mxu0 %v11586
    %11938 = vmatprep.subr.bf16.mxu0 %v11595
    %11939 = vmatpush1.bf16.msra.mxu0 %v11594
    %11940 = vmatprep.subr.bf16.mxu0 %v11603
    %11941 = vmatpush1.bf16.msra.mxu0 %v11602
    %11942 = vmatprep.subr.bf16.mxu0 %v11611
    %11943 = vmatpush1.bf16.msra.mxu0 %v11610
    %11944 = vmatprep.subr.bf16.mxu0 %v11619
    %11945 = vmatpush1.bf16.msra.mxu0 %v11618
    %11946 = vmatprep.subr.bf16.mxu0 %v11627
    %11947 = vmatpush1.bf16.msra.mxu0 %v11626
    %11948 = vmatprep.subr.bf16.mxu0 %v11635
    %11949 = vmatpush1.bf16.msra.mxu0 %v11634
    %11950 = vmatprep.subr.bf16.mxu0 %v11643
    %11951 = vmatpush1.bf16.msra.mxu0 %v11642
    %11952 = vmatprep.mubr.bf16.mxu0 %v3409
    %11953 = vmatmul.mubr.bf16.gmra.mrb[0].mxu0 %v3408
    %v11954 = vpop.f32.mrb[0].mxu0
    %v11955 = vadd.f32 %v11023, %v11954
    %v11956 = vpop.f32.mrb[0].mxu0
    %v11957 = vadd.f32 %v11025, %v11956
    %v11958 = vpop.f32.mrb[0].mxu0
    %v11959 = vadd.f32 %v11027, %v11958
    %v11960 = vpop.f32.mrb[0].mxu0
    %v11961 = vadd.f32 %v11029, %v11960
    %11962 = vmatprep.mubr.bf16.mxu0 %v3411
    %11963 = vmatmul.mubr.bf16.gmra.mrb[0].mxu0 %v3410
    %v11964 = vpop.f32.mrb[0].mxu0
    %v11965 = vadd.f32 %v11033, %v11964
    %v11966 = vpop.f32.mrb[0].mxu0
    %v11967 = vadd.f32 %v11035, %v11966
    %v11968 = vpop.f32.mrb[0].mxu0
    %v11969 = vadd.f32 %v11037, %v11968
    %v11970 = vpop.f32.mrb[0].mxu0
    %v11971 = vadd.f32 %v11039, %v11970
    %11972 = vmatprep.mubr.bf16.mxu0 %v3413
    %11973 = vmatmul.mubr.bf16.gmra.mrb[0].mxu0 %v3412
    %v11974 = vpop.f32.mrb[0].mxu0
    %v11975 = vadd.f32 %v11043, %v11974
    %v11976 = vpop.f32.mrb[0].mxu0
    %v11977 = vadd.f32 %v11045, %v11976
    %v11978 = vpop.f32.mrb[0].mxu0
    %v11979 = vadd.f32 %v11047, %v11978
    %v11980 = vpop.f32.mrb[0].mxu0
    %v11981 = vadd.f32 %v11049, %v11980
    %11982 = vmatprep.mubr.bf16.mxu0 %v3415
    %11983 = vmatmul.mubr.bf16.gmra.mrb[0].mxu0 %v3414
    %v11984 = vpop.f32.mrb[0].mxu0
    %v11985 = vadd.f32 %v11053, %v11984
    %v11986 = vpop.f32.mrb[0].mxu0
    %v11987 = vadd.f32 %v11055, %v11986
    %v11988 = vpop.f32.mrb[0].mxu0
    %v11989 = vadd.f32 %v11057, %v11988
    %v11990 = vpop.f32.mrb[0].mxu0
    %v11991 = vadd.f32 %v11059, %v11990
    %11992 = vdwg.mxu0
    %11993 = vmatprep.subr.bf16.mxu0 %v11525
    %11994 = vmatpush1.bf16.msra.mxu0 %v11524
    %11995 = vmatprep.subr.bf16.mxu0 %v11533
    %11996 = vmatpush1.bf16.msra.mxu0 %v11532
    %11997 = vmatprep.subr.bf16.mxu0 %v11541
    %11998 = vmatpush1.bf16.msra.mxu0 %v11540
    %11999 = vmatprep.subr.bf16.mxu0 %v11549
    %12000 = vmatpush1.bf16.msra.mxu0 %v11548
    %12001 = vmatprep.subr.bf16.mxu0 %v11557
    %12002 = vmatpush1.bf16.msra.mxu0 %v11556
    %12003 = vmatprep.subr.bf16.mxu0 %v11565
    %12004 = vmatpush1.bf16.msra.mxu0 %v11564
    %12005 = vmatprep.subr.bf16.mxu0 %v11573
    %12006 = vmatpush1.bf16.msra.mxu0 %v11572
    %12007 = vmatprep.subr.bf16.mxu0 %v11581
    %12008 = vmatpush1.bf16.msra.mxu0 %v11580
    %12009 = vmatprep.subr.bf16.mxu0 %v11589
    %12010 = vmatpush1.bf16.msra.mxu0 %v11588
    %12011 = vmatprep.subr.bf16.mxu0 %v11597
    %12012 = vmatpush1.bf16.msra.mxu0 %v11596
    %12013 = vmatprep.subr.bf16.mxu0 %v11605
    %12014 = vmatpush1.bf16.msra.mxu0 %v11604
    %12015 = vmatprep.subr.bf16.mxu0 %v11613
    %12016 = vmatpush1.bf16.msra.mxu0 %v11612
    %12017 = vmatprep.subr.bf16.mxu0 %v11621
    %12018 = vmatpush1.bf16.msra.mxu0 %v11620
    %12019 = vmatprep.subr.bf16.mxu0 %v11629
    %12020 = vmatpush1.bf16.msra.mxu0 %v11628
    %12021 = vmatprep.subr.bf16.mxu0 %v11637
    %12022 = vmatpush1.bf16.msra.mxu0 %v11636
    %12023 = vmatprep.subr.bf16.mxu0 %v11645
    %12024 = vmatpush1.bf16.msra.mxu0 %v11644
    %12025 = vmatprep.mubr.bf16.mxu0 %v3409
    %12026 = vmatmul.mubr.bf16.gmra.mrb[0].mxu0 %v3408
    %v12027 = vpop.f32.mrb[0].mxu0
    %v12028 = vadd.f32 %v11096, %v12027
    %v12029 = vpop.f32.mrb[0].mxu0
    %v12030 = vadd.f32 %v11098, %v12029
    %v12031 = vpop.f32.mrb[0].mxu0
    %v12032 = vadd.f32 %v11100, %v12031
    %v12033 = vpop.f32.mrb[0].mxu0
    %v12034 = vadd.f32 %v11102, %v12033
    %12035 = vmatprep.mubr.bf16.mxu0 %v3411
    %12036 = vmatmul.mubr.bf16.gmra.mrb[0].mxu0 %v3410
    %v12037 = vpop.f32.mrb[0].mxu0
    %v12038 = vadd.f32 %v11106, %v12037
    %v12039 = vpop.f32.mrb[0].mxu0
    %v12040 = vadd.f32 %v11108, %v12039
    %v12041 = vpop.f32.mrb[0].mxu0
    %v12042 = vadd.f32 %v11110, %v12041
    %v12043 = vpop.f32.mrb[0].mxu0
    %v12044 = vadd.f32 %v11112, %v12043
    %12045 = vmatprep.mubr.bf16.mxu0 %v3413
    %12046 = vmatmul.mubr.bf16.gmra.mrb[0].mxu0 %v3412
    %v12047 = vpop.f32.mrb[0].mxu0
    %v12048 = vadd.f32 %v11116, %v12047
    %v12049 = vpop.f32.mrb[0].mxu0
    %v12050 = vadd.f32 %v11118, %v12049
    %v12051 = vpop.f32.mrb[0].mxu0
    %v12052 = vadd.f32 %v11120, %v12051
    %v12053 = vpop.f32.mrb[0].mxu0
    %v12054 = vadd.f32 %v11122, %v12053
    %12055 = vmatprep.mubr.bf16.mxu0 %v3415
    %12056 = vmatmul.mubr.bf16.gmra.mrb[0].mxu0 %v3414
    %v12057 = vpop.f32.mrb[0].mxu0
    %v12058 = vadd.f32 %v11126, %v12057
    %v12059 = vpop.f32.mrb[0].mxu0
    %v12060 = vadd.f32 %v11128, %v12059
    %v12061 = vpop.f32.mrb[0].mxu0
    %v12062 = vadd.f32 %v11130, %v12061
    %v12063 = vpop.f32.mrb[0].mxu0
    %v12064 = vadd.f32 %v11132, %v12063
    %12065 = vdwg.mxu0
    %v12066 = vxor.u32 %v11809, 2147483648
    %v12067 = vxor.u32 %v11811, 2147483648
    %v12068 = vxor.u32 %v11813, 2147483648
    %v12069 = vxor.u32 %v11815, 2147483648
    %v12070 = vxor.u32 %v11819, 2147483648
    %v12071 = vxor.u32 %v11821, 2147483648
    %v12072 = vxor.u32 %v11823, 2147483648
    %v12073 = vxor.u32 %v11825, 2147483648
    %v12074 = vxor.u32 %v11829, 2147483648
    %v12075 = vxor.u32 %v11831, 2147483648
    %v12076 = vxor.u32 %v11833, 2147483648
    %v12077 = vxor.u32 %v11835, 2147483648
    %v12078 = vxor.u32 %v11839, 2147483648
    %v12079 = vxor.u32 %v11841, 2147483648
    %v12080 = vxor.u32 %v11843, 2147483648
    %v12081 = vxor.u32 %v11845, 2147483648
    %v12082 = vmul.f32 %v12066, 1.442695
    %v12083 = vpow.pop %v12082
    %v12084 = vmul.f32 %v12067, 1.442695
    %v12085 = vpow.pop %v12084
    %v12086 = vmul.f32 %v12068, 1.442695
    %v12087 = vpow.pop %v12086
    %v12088 = vmul.f32 %v12069, 1.442695
    %v12089 = vpow.pop %v12088
    %v12090 = vmul.f32 %v12070, 1.442695
    %v12091 = vpow.pop %v12090
    %v12092 = vmul.f32 %v12071, 1.442695
    %v12093 = vpow.pop %v12092
    %v12094 = vmul.f32 %v12072, 1.442695
    %v12095 = vpow.pop %v12094
    %v12096 = vmul.f32 %v12073, 1.442695
    %v12097 = vpow.pop %v12096
    %v12098 = vmul.f32 %v12074, 1.442695
    %v12099 = vpow.pop %v12098
    %v12100 = vmul.f32 %v12075, 1.442695
    %v12101 = vpow.pop %v12100
    %v12102 = vmul.f32 %v12076, 1.442695
    %v12103 = vpow.pop %v12102
    %v12104 = vmul.f32 %v12077, 1.442695
    %v12105 = vpow.pop %v12104
    %v12106 = vmul.f32 %v12078, 1.442695
    %v12107 = vpow.pop %v12106
    %v12108 = vmul.f32 %v12079, 1.442695
    %v12109 = vpow.pop %v12108
    %v12110 = vmul.f32 %v12080, 1.442695
    %v12111 = vpow.pop %v12110
    %v12112 = vmul.f32 %v12081, 1.442695
    %v12113 = vpow.pop %v12112
    %v12114 = vadd.f32 %v12083, 1.0
    %v12115 = vadd.f32 %v12085, 1.0
    %v12116 = vadd.f32 %v12087, 1.0
    %v12117 = vadd.f32 %v12089, 1.0
    %v12118 = vadd.f32 %v12091, 1.0
    %v12119 = vadd.f32 %v12093, 1.0
    %v12120 = vadd.f32 %v12095, 1.0
    %v12121 = vadd.f32 %v12097, 1.0
    %v12122 = vadd.f32 %v12099, 1.0
    %v12123 = vadd.f32 %v12101, 1.0
    %v12124 = vadd.f32 %v12103, 1.0
    %v12125 = vadd.f32 %v12105, 1.0
    %v12126 = vadd.f32 %v12107, 1.0
    %v12127 = vadd.f32 %v12109, 1.0
    %v12128 = vadd.f32 %v12111, 1.0
    %v12129 = vadd.f32 %v12113, 1.0
    %v12130 = vrcp.pop %v12114
    %v12131 = vmul.f32 1.0, %v12130
    %v12132 = vrcp.pop %v12115
    %v12133 = vmul.f32 1.0, %v12132
    %v12134 = vrcp.pop %v12116
    %v12135 = vmul.f32 1.0, %v12134
    %v12136 = vrcp.pop %v12117
    %v12137 = vmul.f32 1.0, %v12136
    %v12138 = vrcp.pop %v12118
    %v12139 = vmul.f32 1.0, %v12138
    %v12140 = vrcp.pop %v12119
    %v12141 = vmul.f32 1.0, %v12140
    %v12142 = vrcp.pop %v12120
    %v12143 = vmul.f32 1.0, %v12142
    %v12144 = vrcp.pop %v12121
    %v12145 = vmul.f32 1.0, %v12144
    %v12146 = vrcp.pop %v12122
    %v12147 = vmul.f32 1.0, %v12146
    %v12148 = vrcp.pop %v12123
    %v12149 = vmul.f32 1.0, %v12148
    %v12150 = vrcp.pop %v12124
    %v12151 = vmul.f32 1.0, %v12150
    %v12152 = vrcp.pop %v12125
    %v12153 = vmul.f32 1.0, %v12152
    %v12154 = vrcp.pop %v12126
    %v12155 = vmul.f32 1.0, %v12154
    %v12156 = vrcp.pop %v12127
    %v12157 = vmul.f32 1.0, %v12156
    %v12158 = vrcp.pop %v12128
    %v12159 = vmul.f32 1.0, %v12158
    %v12160 = vrcp.pop %v12129
    %v12161 = vmul.f32 1.0, %v12160
    %v12162 = vxor.u32 %v11882, 2147483648
    %v12163 = vxor.u32 %v11884, 2147483648
    %v12164 = vxor.u32 %v11886, 2147483648
    %v12165 = vxor.u32 %v11888, 2147483648
    %v12166 = vxor.u32 %v11892, 2147483648
    %v12167 = vxor.u32 %v11894, 2147483648
    %v12168 = vxor.u32 %v11896, 2147483648
    %v12169 = vxor.u32 %v11898, 2147483648
    %v12170 = vxor.u32 %v11902, 2147483648
    %v12171 = vxor.u32 %v11904, 2147483648
    %v12172 = vxor.u32 %v11906, 2147483648
    %v12173 = vxor.u32 %v11908, 2147483648
    %v12174 = vxor.u32 %v11912, 2147483648
    %v12175 = vxor.u32 %v11914, 2147483648
    %v12176 = vxor.u32 %v11916, 2147483648
    %v12177 = vxor.u32 %v11918, 2147483648
    %v12178 = vmul.f32 %v12162, 1.442695
    %v12179 = vpow.pop %v12178
    %v12180 = vmul.f32 %v12163, 1.442695
    %v12181 = vpow.pop %v12180
    %v12182 = vmul.f32 %v12164, 1.442695
    %v12183 = vpow.pop %v12182
    %v12184 = vmul.f32 %v12165, 1.442695
    %v12185 = vpow.pop %v12184
    %v12186 = vmul.f32 %v12166, 1.442695
    %v12187 = vpow.pop %v12186
    %v12188 = vmul.f32 %v12167, 1.442695
    %v12189 = vpow.pop %v12188
    %v12190 = vmul.f32 %v12168, 1.442695
    %v12191 = vpow.pop %v12190
    %v12192 = vmul.f32 %v12169, 1.442695
    %v12193 = vpow.pop %v12192
    %v12194 = vmul.f32 %v12170, 1.442695
    %v12195 = vpow.pop %v12194
    %v12196 = vmul.f32 %v12171, 1.442695
    %v12197 = vpow.pop %v12196
    %v12198 = vmul.f32 %v12172, 1.442695
    %v12199 = vpow.pop %v12198
    %v12200 = vmul.f32 %v12173, 1.442695
    %v12201 = vpow.pop %v12200
    %v12202 = vmul.f32 %v12174, 1.442695
    %v12203 = vpow.pop %v12202
    %v12204 = vmul.f32 %v12175, 1.442695
    %v12205 = vpow.pop %v12204
    %v12206 = vmul.f32 %v12176, 1.442695
    %v12207 = vpow.pop %v12206
    %v12208 = vmul.f32 %v12177, 1.442695
    %v12209 = vpow.pop %v12208
    %v12210 = vadd.f32 %v12179, 1.0
    %v12211 = vadd.f32 %v12181, 1.0
    %v12212 = vadd.f32 %v12183, 1.0
    %v12213 = vadd.f32 %v12185, 1.0
    %v12214 = vadd.f32 %v12187, 1.0
    %v12215 = vadd.f32 %v12189, 1.0
    %v12216 = vadd.f32 %v12191, 1.0
    %v12217 = vadd.f32 %v12193, 1.0
    %v12218 = vadd.f32 %v12195, 1.0
    %v12219 = vadd.f32 %v12197, 1.0
    %v12220 = vadd.f32 %v12199, 1.0
    %v12221 = vadd.f32 %v12201, 1.0
    %v12222 = vadd.f32 %v12203, 1.0
    %v12223 = vadd.f32 %v12205, 1.0
    %v12224 = vadd.f32 %v12207, 1.0
    %v12225 = vadd.f32 %v12209, 1.0
    %v12226 = vrcp.pop %v12210
    %v12227 = vmul.f32 1.0, %v12226
    %v12228 = vrcp.pop %v12211
    %v12229 = vmul.f32 1.0, %v12228
    %v12230 = vrcp.pop %v12212
    %v12231 = vmul.f32 1.0, %v12230
    %v12232 = vrcp.pop %v12213
    %v12233 = vmul.f32 1.0, %v12232
    %v12234 = vrcp.pop %v12214
    %v12235 = vmul.f32 1.0, %v12234
    %v12236 = vrcp.pop %v12215
    %v12237 = vmul.f32 1.0, %v12236
    %v12238 = vrcp.pop %v12216
    %v12239 = vmul.f32 1.0, %v12238
    %v12240 = vrcp.pop %v12217
    %v12241 = vmul.f32 1.0, %v12240
    %v12242 = vrcp.pop %v12218
    %v12243 = vmul.f32 1.0, %v12242
    %v12244 = vrcp.pop %v12219
    %v12245 = vmul.f32 1.0, %v12244
    %v12246 = vrcp.pop %v12220
    %v12247 = vmul.f32 1.0, %v12246
    %v12248 = vrcp.pop %v12221
    %v12249 = vmul.f32 1.0, %v12248
    %v12250 = vrcp.pop %v12222
    %v12251 = vmul.f32 1.0, %v12250
    %v12252 = vrcp.pop %v12223
    %v12253 = vmul.f32 1.0, %v12252
    %v12254 = vrcp.pop %v12224
    %v12255 = vmul.f32 1.0, %v12254
    %v12256 = vrcp.pop %v12225
    %v12257 = vmul.f32 1.0, %v12256
    %v12258 = vtanh.pop %v11955
    %v12259 = vtanh.pop %v11957
    %v12260 = vtanh.pop %v11959
    %v12261 = vtanh.pop %v11961
    %v12262 = vtanh.pop %v11965
    %v12263 = vtanh.pop %v11967
    %v12264 = vtanh.pop %v11969
    %v12265 = vtanh.pop %v11971
    %v12266 = vtanh.pop %v11975
    %v12267 = vtanh.pop %v11977
    %v12268 = vtanh.pop %v11979
    %v12269 = vtanh.pop %v11981
    %v12270 = vtanh.pop %v11985
    %v12271 = vtanh.pop %v11987
    %v12272 = vtanh.pop %v11989
    %v12273 = vtanh.pop %v11991
    %v12274 = vxor.u32 %v12028, 2147483648
    %v12275 = vxor.u32 %v12030, 2147483648
    %v12276 = vxor.u32 %v12032, 2147483648
    %v12277 = vxor.u32 %v12034, 2147483648
    %v12278 = vxor.u32 %v12038, 2147483648
    %v12279 = vxor.u32 %v12040, 2147483648
    %v12280 = vxor.u32 %v12042, 2147483648
    %v12281 = vxor.u32 %v12044, 2147483648
    %v12282 = vxor.u32 %v12048, 2147483648
    %v12283 = vxor.u32 %v12050, 2147483648
    %v12284 = vxor.u32 %v12052, 2147483648
    %v12285 = vxor.u32 %v12054, 2147483648
    %v12286 = vxor.u32 %v12058, 2147483648
    %v12287 = vxor.u32 %v12060, 2147483648
    %v12288 = vxor.u32 %v12062, 2147483648
    %v12289 = vxor.u32 %v12064, 2147483648
    %v12290 = vmul.f32 %v12274, 1.442695
    %v12291 = vpow.pop %v12290
    %v12292 = vmul.f32 %v12275, 1.442695
    %v12293 = vpow.pop %v12292
    %v12294 = vmul.f32 %v12276, 1.442695
    %v12295 = vpow.pop %v12294
    %v12296 = vmul.f32 %v12277, 1.442695
    %v12297 = vpow.pop %v12296
    %v12298 = vmul.f32 %v12278, 1.442695
    %v12299 = vpow.pop %v12298
    %v12300 = vmul.f32 %v12279, 1.442695
    %v12301 = vpow.pop %v12300
    %v12302 = vmul.f32 %v12280, 1.442695
    %v12303 = vpow.pop %v12302
    %v12304 = vmul.f32 %v12281, 1.442695
    %v12305 = vpow.pop %v12304
    %v12306 = vmul.f32 %v12282, 1.442695
    %v12307 = vpow.pop %v12306
    %v12308 = vmul.f32 %v12283, 1.442695
    %v12309 = vpow.pop %v12308
    %v12310 = vmul.f32 %v12284, 1.442695
    %v12311 = vpow.pop %v12310
    %v12312 = vmul.f32 %v12285, 1.442695
    %v12313 = vpow.pop %v12312
    %v12314 = vmul.f32 %v12286, 1.442695
    %v12315 = vpow.pop %v12314
    %v12316 = vmul.f32 %v12287, 1.442695
    %v12317 = vpow.pop %v12316
    %v12318 = vmul.f32 %v12288, 1.442695
    %v12319 = vpow.pop %v12318
    %v12320 = vmul.f32 %v12289, 1.442695
    %v12321 = vpow.pop %v12320
    %v12322 = vadd.f32 %v12291, 1.0
    %v12323 = vadd.f32 %v12293, 1.0
    %v12324 = vadd.f32 %v12295, 1.0
    %v12325 = vadd.f32 %v12297, 1.0
    %v12326 = vadd.f32 %v12299, 1.0
    %v12327 = vadd.f32 %v12301, 1.0
    %v12328 = vadd.f32 %v12303, 1.0
    %v12329 = vadd.f32 %v12305, 1.0
    %v12330 = vadd.f32 %v12307, 1.0
    %v12331 = vadd.f32 %v12309, 1.0
    %v12332 = vadd.f32 %v12311, 1.0
    %v12333 = vadd.f32 %v12313, 1.0
    %v12334 = vadd.f32 %v12315, 1.0
    %v12335 = vadd.f32 %v12317, 1.0
    %v12336 = vadd.f32 %v12319, 1.0
    %v12337 = vadd.f32 %v12321, 1.0
    %v12338 = vrcp.pop %v12322
    %v12339 = vmul.f32 1.0, %v12338
    %v12340 = vrcp.pop %v12323
    %v12341 = vmul.f32 1.0, %v12340
    %v12342 = vrcp.pop %v12324
    %v12343 = vmul.f32 1.0, %v12342
    %v12344 = vrcp.pop %v12325
    %v12345 = vmul.f32 1.0, %v12344
    %v12346 = vrcp.pop %v12326
    %v12347 = vmul.f32 1.0, %v12346
    %v12348 = vrcp.pop %v12327
    %v12349 = vmul.f32 1.0, %v12348
    %v12350 = vrcp.pop %v12328
    %v12351 = vmul.f32 1.0, %v12350
    %v12352 = vrcp.pop %v12329
    %v12353 = vmul.f32 1.0, %v12352
    %v12354 = vrcp.pop %v12330
    %v12355 = vmul.f32 1.0, %v12354
    %v12356 = vrcp.pop %v12331
    %v12357 = vmul.f32 1.0, %v12356
    %v12358 = vrcp.pop %v12332
    %v12359 = vmul.f32 1.0, %v12358
    %v12360 = vrcp.pop %v12333
    %v12361 = vmul.f32 1.0, %v12360
    %v12362 = vrcp.pop %v12334
    %v12363 = vmul.f32 1.0, %v12362
    %v12364 = vrcp.pop %v12335
    %v12365 = vmul.f32 1.0, %v12364
    %v12366 = vrcp.pop %v12336
    %v12367 = vmul.f32 1.0, %v12366
    %v12368 = vrcp.pop %v12337
    %v12369 = vmul.f32 1.0, %v12368
    %v12370 = vmul.f32 %v12227, %v10017
    %v12371 = vmul.f32 %v12229, %v10018
    %v12372 = vmul.f32 %v12231, %v10019
    %v12373 = vmul.f32 %v12233, %v10020
    %v12374 = vmul.f32 %v12235, %v10021
    %v12375 = vmul.f32 %v12237, %v10022
    %v12376 = vmul.f32 %v12239, %v10023
    %v12377 = vmul.f32 %v12241, %v10024
    %v12378 = vmul.f32 %v12243, %v10025
    %v12379 = vmul.f32 %v12245, %v10026
    %v12380 = vmul.f32 %v12247, %v10027
    %v12381 = vmul.f32 %v12249, %v10028
    %v12382 = vmul.f32 %v12251, %v10029
    %v12383 = vmul.f32 %v12253, %v10030
    %v12384 = vmul.f32 %v12255, %v10031
    %v12385 = vmul.f32 %v12257, %v10032
    %v12386 = vmul.f32 %v12131, %v12258
    %v12387 = vmul.f32 %v12133, %v12259
    %v12388 = vmul.f32 %v12135, %v12260
    %v12389 = vmul.f32 %v12137, %v12261
    %v12390 = vmul.f32 %v12139, %v12262
    %v12391 = vmul.f32 %v12141, %v12263
    %v12392 = vmul.f32 %v12143, %v12264
    %v12393 = vmul.f32 %v12145, %v12265
    %v12394 = vmul.f32 %v12147, %v12266
    %v12395 = vmul.f32 %v12149, %v12267
    %v12396 = vmul.f32 %v12151, %v12268
    %v12397 = vmul.f32 %v12153, %v12269
    %v12398 = vmul.f32 %v12155, %v12270
    %v12399 = vmul.f32 %v12157, %v12271
    %v12400 = vmul.f32 %v12159, %v12272
    %v12401 = vmul.f32 %v12161, %v12273
    %v12402 = vadd.f32 %v12370, %v12386
    %v12403 = vadd.f32 %v12371, %v12387
    %v12404 = vadd.f32 %v12372, %v12388
    %v12405 = vadd.f32 %v12373, %v12389
    %v12406 = vadd.f32 %v12374, %v12390
    %v12407 = vadd.f32 %v12375, %v12391
    %v12408 = vadd.f32 %v12376, %v12392
    %v12409 = vadd.f32 %v12377, %v12393
    %v12410 = vadd.f32 %v12378, %v12394
    %v12411 = vadd.f32 %v12379, %v12395
    %v12412 = vadd.f32 %v12380, %v12396
    %v12413 = vadd.f32 %v12381, %v12397
    %v12414 = vadd.f32 %v12382, %v12398
    %v12415 = vadd.f32 %v12383, %v12399
    %v12416 = vadd.f32 %v12384, %v12400
    %v12417 = vadd.f32 %v12385, %v12401
    %v12418 = vtanh.pop %v12402
    %v12419 = vtanh.pop %v12403
    %v12420 = vtanh.pop %v12404
    %v12421 = vtanh.pop %v12405
    %v12422 = vtanh.pop %v12406
    %v12423 = vtanh.pop %v12407
    %v12424 = vtanh.pop %v12408
    %v12425 = vtanh.pop %v12409
    %v12426 = vtanh.pop %v12410
    %v12427 = vtanh.pop %v12411
    %v12428 = vtanh.pop %v12412
    %v12429 = vtanh.pop %v12413
    %v12430 = vtanh.pop %v12414
    %v12431 = vtanh.pop %v12415
    %v12432 = vtanh.pop %v12416
    %v12433 = vtanh.pop %v12417
    %v12434 = vmul.f32 %v12339, %v12418
    %v12435 = vmul.f32 %v12341, %v12419
    %v12436 = vmul.f32 %v12343, %v12420
    %v12437 = vmul.f32 %v12345, %v12421
    %v12438 = vmul.f32 %v12347, %v12422
    %v12439 = vmul.f32 %v12349, %v12423
    %v12440 = vmul.f32 %v12351, %v12424
    %v12441 = vmul.f32 %v12353, %v12425
    %v12442 = vmul.f32 %v12355, %v12426
    %v12443 = vmul.f32 %v12357, %v12427
    %v12444 = vmul.f32 %v12359, %v12428
    %v12445 = vmul.f32 %v12361, %v12429
    %v12446 = vmul.f32 %v12363, %v12430
    %v12447 = vmul.f32 %v12365, %v12431
    %v12448 = vmul.f32 %v12367, %v12432
    %v12449 = vmul.f32 %v12369, %v12433
    %v12450 = vpack.c.bf16 %v12436, %v12434
    %v12451 = vpack.c.bf16 %v12437, %v12435
    %v12452 = vpack.c.bf16 %v12440, %v12438
    %v12453 = vpack.c.bf16 %v12441, %v12439
    %v12454 = vpack.c.bf16 %v12444, %v12442
    %v12455 = vpack.c.bf16 %v12445, %v12443
    %v12456 = vpack.c.bf16 %v12448, %v12446
    %v12457 = vpack.c.bf16 %v12449, %v12447
    %v12458 = vld [vmem:[%s10] sm:$0xf]
    %v12459 = vld [vmem:[%s10 + $0x4] sm:$0xf]
    %v12460 = vld [vmem:[%s10 + $0x8] sm:$0xf]
    %v12461 = vld [vmem:[%s10 + $0xc] sm:$0xf]
    %v12462 = vld [vmem:[%s10 + $0x10] sm:$0xf]
    %v12463 = vld [vmem:[%s10 + $0x14] sm:$0xf]
    %v12464 = vld [vmem:[%s10 + $0x18] sm:$0xf]
    %v12465 = vld [vmem:[%s10 + $0x1c] sm:$0xf]
    %v12466 = vld [vmem:[%s10 + $0x20] sm:$0xf]
    %v12467 = vld [vmem:[%s10 + $0x24] sm:$0xf]
    %v12468 = vld [vmem:[%s10 + $0x28] sm:$0xf]
    %v12469 = vld [vmem:[%s10 + $0x2c] sm:$0xf]
    %v12470 = vld [vmem:[%s10 + $0x30] sm:$0xf]
    %v12471 = vld [vmem:[%s10 + $0x34] sm:$0xf]
    %v12472 = vld [vmem:[%s10 + $0x38] sm:$0xf]
    %v12473 = vld [vmem:[%s10 + $0x3c] sm:$0xf]
    %v12474 = vld [vmem:[%s10 + $0x40] sm:$0xf]
    %v12475 = vld [vmem:[%s10 + $0x44] sm:$0xf]
    %v12476 = vld [vmem:[%s10 + $0x48] sm:$0xf]
    %v12477 = vld [vmem:[%s10 + $0x4c] sm:$0xf]
    %v12478 = vld [vmem:[%s10 + $0x50] sm:$0xf]
    %v12479 = vld [vmem:[%s10 + $0x54] sm:$0xf]
    %v12480 = vld [vmem:[%s10 + $0x58] sm:$0xf]
    %v12481 = vld [vmem:[%s10 + $0x5c] sm:$0xf]
    %v12482 = vld [vmem:[%s10 + $0x60] sm:$0xf]
    %v12483 = vld [vmem:[%s10 + $0x64] sm:$0xf]
    %v12484 = vld [vmem:[%s10 + $0x68] sm:$0xf]
    %v12485 = vld [vmem:[%s10 + $0x6c] sm:$0xf]
    %v12486 = vld [vmem:[%s10 + $0x70] sm:$0xf]
    %v12487 = vld [vmem:[%s10 + $0x74] sm:$0xf]
    %v12488 = vld [vmem:[%s10 + $0x78] sm:$0xf]
    %v12489 = vld [vmem:[%s10 + $0x7c] sm:$0xf]
    %v12490 = vld [vmem:[%s11] sm:$0x1]
    %v12492 = vlaneseq
    %v12493 = vshrl.u32 %v12492, 7
    %v12494 = vsub.s32 0, %v12493
    %v12495 = vrot.slane %v12490, %v12494
    %v12529 = vunpack.c.l.b16 %v12458
    %v12530 = vunpack.c.l.b16 %v12459
    %v12531 = vunpack.c.l.b16 %v12460
    %v12532 = vunpack.c.l.b16 %v12461
    %v12533 = vunpack.c.l.b16 %v12462
    %v12534 = vunpack.c.l.b16 %v12463
    %v12535 = vunpack.c.l.b16 %v12464
    %v12536 = vunpack.c.l.b16 %v12465
    %v12537 = vunpack.c.l.b16 %v12466
    %v12538 = vunpack.c.l.b16 %v12467
    %v12539 = vunpack.c.l.b16 %v12468
    %v12540 = vunpack.c.l.b16 %v12469
    %v12541 = vunpack.c.l.b16 %v12470
    %v12542 = vunpack.c.l.b16 %v12471
    %v12543 = vunpack.c.l.b16 %v12472
    %v12544 = vunpack.c.l.b16 %v12473
    %v12545 = vunpack.c.l.b16 %v12474
    %v12546 = vunpack.c.l.b16 %v12475
    %v12547 = vunpack.c.l.b16 %v12476
    %v12548 = vunpack.c.l.b16 %v12477
    %v12549 = vunpack.c.l.b16 %v12478
    %v12550 = vunpack.c.l.b16 %v12479
    %v12551 = vunpack.c.l.b16 %v12480
    %v12552 = vunpack.c.l.b16 %v12481
    %v12553 = vunpack.c.l.b16 %v12482
    %v12554 = vunpack.c.l.b16 %v12483
    %v12555 = vunpack.c.l.b16 %v12484
    %v12556 = vunpack.c.l.b16 %v12485
    %v12557 = vunpack.c.l.b16 %v12486
    %v12558 = vunpack.c.l.b16 %v12487
    %v12559 = vunpack.c.l.b16 %v12488
    %v12560 = vunpack.c.l.b16 %v12489
    %v12561 = vpack.c.b16 %v12530, %v12529
    %v12562 = vpack.c.b16 %v12532, %v12531
    %v12563 = vpack.c.b16 %v12534, %v12533
    %v12564 = vpack.c.b16 %v12536, %v12535
    %v12565 = vpack.c.b16 %v12538, %v12537
    %v12566 = vpack.c.b16 %v12540, %v12539
    %v12567 = vpack.c.b16 %v12542, %v12541
    %v12568 = vpack.c.b16 %v12544, %v12543
    %v12569 = vpack.c.b16 %v12546, %v12545
    %v12570 = vpack.c.b16 %v12548, %v12547
    %v12571 = vpack.c.b16 %v12550, %v12549
    %v12572 = vpack.c.b16 %v12552, %v12551
    %v12573 = vpack.c.b16 %v12554, %v12553
    %v12574 = vpack.c.b16 %v12556, %v12555
    %v12575 = vpack.c.b16 %v12558, %v12557
    %v12576 = vpack.c.b16 %v12560, %v12559
    %12593 = vmatprep.subr.bf16.mxu0 0
    %12594 = vmatpush1.bf16.msra.mxu0 %v12561
    %12595 = vmatprep.subr.bf16.mxu0 0
    %12596 = vmatpush1.bf16.msra.mxu0 %v12562
    %12597 = vmatprep.subr.bf16.mxu0 0
    %12598 = vmatpush1.bf16.msra.mxu0 %v12563
    %12599 = vmatprep.subr.bf16.mxu0 0
    %12600 = vmatpush1.bf16.msra.mxu0 %v12564
    %12601 = vmatprep.subr.bf16.mxu0 0
    %12602 = vmatpush1.bf16.msra.mxu0 %v12565
    %12603 = vmatprep.subr.bf16.mxu0 0
    %12604 = vmatpush1.bf16.msra.mxu0 %v12566
    %12605 = vmatprep.subr.bf16.mxu0 0
    %12606 = vmatpush1.bf16.msra.mxu0 %v12567
    %12607 = vmatprep.subr.bf16.mxu0 0
    %12608 = vmatpush1.bf16.msra.mxu0 %v12568
    %12609 = vmatprep.subr.bf16.mxu0 0
    %12610 = vmatpush1.bf16.msra.mxu0 %v12569
    %12611 = vmatprep.subr.bf16.mxu0 0
    %12612 = vmatpush1.bf16.msra.mxu0 %v12570
    %12613 = vmatprep.subr.bf16.mxu0 0
    %12614 = vmatpush1.bf16.msra.mxu0 %v12571
    %12615 = vmatprep.subr.bf16.mxu0 0
    %12616 = vmatpush1.bf16.msra.mxu0 %v12572
    %12617 = vmatprep.subr.bf16.mxu0 0
    %12618 = vmatpush1.bf16.msra.mxu0 %v12573
    %12619 = vmatprep.subr.bf16.mxu0 0
    %12620 = vmatpush1.bf16.msra.mxu0 %v12574
    %12621 = vmatprep.subr.bf16.mxu0 0
    %12622 = vmatpush1.bf16.msra.mxu0 %v12575
    %12623 = vmatprep.subr.bf16.mxu0 0
    %12624 = vmatpush1.bf16.msra.mxu0 %v12576
    %12625 = vmatprep.mubr.bf16.mxu0 %v12451
    %12626 = vmatmul.mubr.bf16.gmra.mrb[0].mxu0 %v12450
    %v12627 = vpop.f32.mrb[0].mxu0
    %v12628 = vadd.f32 %v12495, %v12627
    %v12629 = vpop.f32.mrb[0].mxu0
    %v12630 = vpop.f32.mrb[0].mxu0
    %v12631 = vadd.f32 %v12495, %v12630
    %v12632 = vpop.f32.mrb[0].mxu0
    %12633 = vmatprep.mubr.bf16.mxu0 %v12453
    %12634 = vmatmul.mubr.bf16.gmra.mrb[0].mxu0 %v12452
    %v12635 = vpop.f32.mrb[0].mxu0
    %v12636 = vadd.f32 %v12495, %v12635
    %v12637 = vpop.f32.mrb[0].mxu0
    %v12638 = vpop.f32.mrb[0].mxu0
    %v12639 = vadd.f32 %v12495, %v12638
    %v12640 = vpop.f32.mrb[0].mxu0
    %12641 = vmatprep.mubr.bf16.mxu0 %v12455
    %12642 = vmatmul.mubr.bf16.gmra.mrb[0].mxu0 %v12454
    %v12643 = vpop.f32.mrb[0].mxu0
    %v12644 = vadd.f32 %v12495, %v12643
    %v12645 = vpop.f32.mrb[0].mxu0
    %v12646 = vpop.f32.mrb[0].mxu0
    %v12647 = vadd.f32 %v12495, %v12646
    %v12648 = vpop.f32.mrb[0].mxu0
    %12649 = vmatprep.mubr.bf16.mxu0 %v12457
    %12650 = vmatmul.mubr.bf16.gmra.mrb[0].mxu0 %v12456
    %v12651 = vpop.f32.mrb[0].mxu0
    %v12652 = vadd.f32 %v12495, %v12651
    %v12653 = vpop.f32.mrb[0].mxu0
    %v12654 = vpop.f32.mrb[0].mxu0
    %v12655 = vadd.f32 %v12495, %v12654
    %v12656 = vpop.f32.mrb[0].mxu0
    %12657 = vdwg.mxu0
    %12658 = vst [vmem:[#allocation2] sm:$0xff] %v12628
    %12659 = vst [vmem:[#allocation2 + $0x8] sm:$0xff] %v12631
    %12660 = vst [vmem:[#allocation2 + $0x10] sm:$0xff] %v12636
    %12661 = vst [vmem:[#allocation2 + $0x18] sm:$0xff] %v12639
    %12662 = vst [vmem:[#allocation2 + $0x20] sm:$0xff] %v12644
    %12663 = vst [vmem:[#allocation2 + $0x28] sm:$0xff] %v12647
    %12664 = vst [vmem:[#allocation2 + $0x30] sm:$0xff] %v12652
    %12665 = vst [vmem:[#allocation2 + $0x38] sm:$0xff] %v12655
    // Predicated region
    $region50: #{geniepath_forward.1} parent=1 // pred_check
      _
    $region51: #{geniepath_forward.1} parent=1 // pred_check_branch
      %12667 = sbr.rel (0) target = $region53
    $region52: #{geniepath_forward.1} parent=1 // pred_region
      %s12669 = ssub.s32 1024, 1024
      %12670 = vsyncadd [#allocation3], %s12669
      %s12671 = sshll.u32 [#allocation2], 4
      %s12672 = int_to_ptr.vmem [resolvable:$true] %s12671
      %12677 = dma.vmem_to_hbm [thread:$0]  %s12672, 1024, %s12, [#allocation3], 128, 128, 8
    $region53: #{geniepath_forward.1} parent=1 // pred_fallthru
      _
    // Predicated region
    $region54: #{geniepath_forward.1} parent=1 // pred_check
      _
    $region55: #{geniepath_forward.1} parent=1 // pred_check_branch
      %12679 = sbr.rel (0) target = $region57
    $region56: #{geniepath_forward.1} parent=1 // pred_region
      %12680 = dma.done [#allocation3], 1024
    $region57: #{geniepath_forward.1} parent=1 // pred_fallthru
      _
    %12681 = vsyncpa [#allocation3], 1

</llo_original>
